<compile_context>
chip_gen: v7x
topology: tpu7x:2x2x1
jax: 0.10.0
libtpu: 0.0.40
codegen_flags: <defaults>
</compile_context>

<pallas_src>
import functools

import jax
import jax.numpy as jnp
from jax.experimental import pallas as pl
from jax.experimental.pallas import tpu as pltpu

B = 8            # batch (multiple of 8 sublanes)
D_IN = 3072      # fc2 input features
D_HID = 2048     # fc2 output / fc3 input features
D_OUT = 10       # fc3 output (num classes)
D_PAD = 128      # fc3 output padded to one full lane group
EPS = 1e-5       # BatchNorm1d eps


def _device_kind() -> str:
    try:
        return jax.devices()[0].device_kind.lower()
    except Exception:  # pragma: no cover - defensive
        return ""


_KIND = _device_kind()
_IS_V7X = ("v7" in _KIND) or ("tpu7" in _KIND)

if _IS_V7X:
    # Two TensorCores: shard D_HID across cores, one reduction step per core.
    NUM_SHARDS = 2
    TK = 3072                     # whole D_IN in one step (6 MiB w2 tile/core)
    DIM_SEMANTICS = (getattr(pltpu, "CORE_PARALLEL", "parallel"),
                     getattr(pltpu, "ARBITRARY", "arbitrary"))
else:
    # Single TensorCore (v5e / v6e): no shard axis, 2 reduction steps so the
    # second w2 DMA overlaps the first matmul; 12 MiB double-buffered w2.
    NUM_SHARDS = 1
    TK = 1536
    DIM_SEMANTICS = ("arbitrary", "arbitrary")

D_HALF = D_HID // NUM_SHARDS
K_STEPS = D_IN // TK


def classifier_kernel(num_shards, x_ref, w2_ref, scale_ref, shift_ref,
                      w3_ref, b3_ref, o_ref, acc_ref):
    """Fused fc2 -> BN(eval) -> relu -> partial fc3 (+bias) for one shard.

    Grid: (shard, k). Axis 0 shards D_HID across TensorCores (size 1 on
    single-core chips); axis 1 iterates the D_IN reduction in TK chunks with
    fc2 partials accumulated in f32 VMEM scratch. On the final k step the
    folded BN scale/shift + relu is applied and the shard's slice of fc3 is
    computed (bf16 x bf16 -> f32) into a lane-dense (B, 128) output slab.
    The fc3 bias is added on shard 0 only so the cross-shard sum sees it once.
    """
    k = pl.program_id(1)

    @pl.when(k == 0)
    def _init():
        acc_ref[...] = jnp.zeros_like(acc_ref)

    # bf16 x bf16 -> f32 accumulate on the MXU.
    acc_ref[...] += jnp.dot(x_ref[...], w2_ref[...],
                            preferred_element_type=jnp.float32)

    @pl.when(k == pl.num_programs(1) - 1)
    def _finalize():
        h = acc_ref[...] * scale_ref[...] + shift_ref[...]   # fused bias + BN
        h = jnp.maximum(h, 0.0)                              # relu
        out = jnp.dot(h.astype(jnp.bfloat16), w3_ref[...],
                      preferred_element_type=jnp.float32)
        if num_shards == 1:
            out = out + b3_ref[...]
        else:
            out = out + jnp.where(pl.program_id(0) == 0,
                                  b3_ref[...],
                                  jnp.zeros_like(b3_ref[...]))
        o_ref[...] = out.astype(o_ref.dtype)


def prepare_params(w2, b2, gamma2, beta2, mean2, var2, w3, b3):
    """One-time (parameter-load-time) weight preparation — NOT per forward.

    Folds fc2 bias + eval-mode BatchNorm1d into a per-feature scale/shift:
        bn(fc2(x)) = (x @ w2.T + b2 - mean) * g/sqrt(v+eps) + beta
                   = (x @ w2.T) * scale + shift
    Pre-transposes & casts w2 AND w3 to bf16 (the HBM streams), zero-pads
    fc3's weight and bias to 128 output lanes.
    """
    scale = gamma2 / jnp.sqrt(var2 + EPS)                 # (2048,)
    shift = (b2 - mean2) * scale + beta2                  # (2048,)
    w2t = w2.T.astype(jnp.bfloat16)                       # (3072, 2048) bf16
    w3t_pad = jnp.zeros((D_HID, D_PAD), jnp.float32).at[:, :D_OUT].set(w3.T)
    w3t_pad = w3t_pad.astype(jnp.bfloat16)                # (2048, 128) bf16
    b3_pad = jnp.zeros((1, D_PAD), jnp.float32).at[0, :D_OUT].set(b3)
    return (w2t,
            scale.reshape(1, D_HID).astype(jnp.float32),
            shift.reshape(1, D_HID).astype(jnp.float32),
            w3t_pad,
            b3_pad)


@jax.jit
def classifier_forward(x, w2t, scale2d, shift2d, w3t_pad, b3_pad):
    """x: (B, 3072) float32; remaining args from prepare_params()."""
    x_bf16 = x.astype(jnp.bfloat16)

    partial_out = pl.pallas_call(
        functools.partial(classifier_kernel, NUM_SHARDS),
        out_shape=jax.ShapeDtypeStruct((NUM_SHARDS, B, D_PAD), jnp.float32),
        grid_spec=pltpu.PrefetchScalarGridSpec(
            num_scalar_prefetch=0,
            grid=(NUM_SHARDS, K_STEPS),
            in_specs=[
                pl.BlockSpec((B, TK), lambda c, k: (0, k)),          # x chunk
                pl.BlockSpec((TK, D_HALF), lambda c, k: (k, c)),     # w2.T chunk
                pl.BlockSpec((1, D_HALF), lambda c, k: (0, c)),      # BN scale
                pl.BlockSpec((1, D_HALF), lambda c, k: (0, c)),      # BN shift
                pl.BlockSpec((D_HALF, D_PAD), lambda c, k: (c, 0)),  # w3.T shard
                pl.BlockSpec((1, D_PAD), lambda c, k: (0, 0)),       # fc3 bias
            ],
            out_specs=pl.BlockSpec((None, B, D_PAD),
                                   lambda c, k: (c, 0, 0)),          # partial fc3
            scratch_shapes=[pltpu.VMEM((B, D_HALF), jnp.float32)],
        ),
        compiler_params=pltpu.CompilerParams(
            dimension_semantics=DIM_SEMANTICS,
            vmem_limit_bytes=32 * 1024 * 1024),
    )(x_bf16, w2t, scale2d, shift2d, w3t_pad, b3_pad)

    if NUM_SHARDS == 1:
        logits_pad = partial_out[0]
    else:
        logits_pad = partial_out.sum(axis=0)   # disjoint shards, bias added once
    return logits_pad[:, :D_OUT]


def _reference(x, w2, b2, gamma2, beta2, mean2, var2, w3, b3):
    """Full-precision (f32) reference of Classifier.forward in eval mode."""
    h = x @ w2.T + b2
    h = (h - mean2) / jnp.sqrt(var2 + EPS) * gamma2 + beta2
    h = jnp.maximum(h, 0.0)
    return h @ w3.T + b3


def _reference_kernel_path(x, w2, b2, gamma2, beta2, mean2, var2, w3, b3):
    """f32 emulation of the kernel's exact quantization (bf16 x/w2/h/w3)."""
    scale = gamma2 / jnp.sqrt(var2 + EPS)
    shift = (b2 - mean2) * scale + beta2
    xq = x.astype(jnp.bfloat16).astype(jnp.float32)
    w2q = w2.T.astype(jnp.bfloat16).astype(jnp.float32)
    acc = xq @ w2q
    h = jnp.maximum(acc * scale + shift, 0.0)
    hq = h.astype(jnp.bfloat16).astype(jnp.float32)
    w3q = w3.T.astype(jnp.bfloat16).astype(jnp.float32)
    return hq @ w3q + b3


if __name__ == "__main__":
    key = jax.random.PRNGKey(0)
    keys = jax.random.split(key, 8)

    x = jax.random.normal(keys[0], (B, D_IN), dtype=jnp.float32)

    # Deterministic synthetic parameters (PyTorch shape conventions).
    w2 = jax.random.normal(keys[1], (D_HID, D_IN), dtype=jnp.float32) * 0.02
    b2 = jax.random.normal(keys[2], (D_HID,), dtype=jnp.float32) * 0.1
    gamma2 = 1.0 + 0.1 * jax.random.normal(keys[3], (D_HID,), dtype=jnp.float32)
    beta2 = 0.1 * jax.random.normal(keys[4], (D_HID,), dtype=jnp.float32)
    mean2 = 0.05 * jax.random.normal(keys[5], (D_HID,), dtype=jnp.float32)
    var2 = jnp.abs(1.0 + 0.1 * jax.random.normal(keys[6], (D_HID,),
                                                 dtype=jnp.float32))
    w3 = jax.random.normal(keys[7], (D_OUT, D_HID), dtype=jnp.float32) * 0.02
    b3 = jnp.linspace(-0.1, 0.1, D_OUT, dtype=jnp.float32)

    # One-time weight prep (outside the hot path), then the jitted forward.
    params = prepare_params(w2, b2, gamma2, beta2, mean2, var2, w3, b3)
    out = classifier_forward(x, *params)
    out = jax.block_until_ready(out)
    assert out.shape == (B, D_OUT)

    # (1) Full-precision reference: loose tolerance accounts for the bf16
    #     casts of x / w2 / h / w3 in the streamed path.
    ref = _reference(x, w2, b2, gamma2, beta2, mean2, var2, w3, b3)
    assert jnp.allclose(out, ref, atol=5e-2, rtol=5e-2), \
        "mismatch vs f32 reference"

    # (2) bf16-rounded reference (same quantization as the kernel, f32 math):
    #     tight tolerance validates the kernel arithmetic itself.
    refq = _reference_kernel_path(x, w2, b2, gamma2, beta2, mean2, var2, w3, b3)
    assert jnp.allclose(out, refq, atol=5e-3, rtol=5e-3), \
        "mismatch vs bf16-rounded reference"

    print("KERNEL_OK")
</pallas_src>

<mosaic_0001>
module attributes {stable_mosaic.version = 11 : i64} {
  func.func @classifier_kernel(%arg0: i32, %arg1: i32, %arg2: memref<8x1536xbf16, #tpu.memory_space<vmem>>, %arg3: memref<1536x2048xbf16, #tpu.memory_space<vmem>>, %arg4: memref<1x2048xf32, #tpu.memory_space<vmem>>, %arg5: memref<1x2048xf32, #tpu.memory_space<vmem>>, %arg6: memref<2048x128xbf16, #tpu.memory_space<vmem>>, %arg7: memref<1x128xf32, #tpu.memory_space<vmem>>, %arg8: memref<1x8x128xf32, #tpu.memory_space<vmem>>, %arg9: memref<8x2048xf32, #tpu.memory_space<vmem>>) attributes {dimension_semantics = [#tpu.dimension_semantics<arbitrary>, #tpu.dimension_semantics<arbitrary>], iteration_bounds = array<i64: 1, 2>, scalar_prefetch = 0 : i64, scratch_operands = 1 : i64, tpu.core_type = #tpu.core_type<tc>, window_params = [{transform_indices = @transform_0, window_bounds = array<i64: 8, 1536>}, {transform_indices = @transform_1, window_bounds = array<i64: 1536, 2048>}, {transform_indices = @transform_2, window_bounds = array<i64: 1, 2048>}, {transform_indices = @transform_3, window_bounds = array<i64: 1, 2048>}, {transform_indices = @transform_4, window_bounds = array<i64: 2048, 128>}, {pipeline_mode = #tpu.pipeline_mode<synchronous>, transform_indices = @transform_5, window_bounds = array<i64: 1, 128>}, {transform_indices = @transform_6, window_bounds = array<i64: 1, 8, 128>}]} {
    %c0_i32 = arith.constant 0 : i32
    %0 = arith.cmpi eq, %arg1, %c0_i32 : i32
    %1 = arith.extui %0 : i1 to i32
    %c0_i32_0 = arith.constant 0 : i32
    %2 = arith.cmpi ne, %1, %c0_i32_0 : i32
    scf.if %2 {
      %cst_9 = arith.constant 0.000000e+00 : f32
      %12 = vector.broadcast %cst_9 : f32 to vector<8x2048xf32>
      %c0_10 = arith.constant 0 : index
      %c0_11 = arith.constant 0 : index
      %13 = vector.load %arg9[%c0_10, %c0_11] : memref<8x2048xf32, #tpu.memory_space<vmem>>, vector<8x2048xf32>
      tpu.vector_store %arg9[%c0_10, %c0_11], %12 {strides = array<i32>} : memref<8x2048xf32, #tpu.memory_space<vmem>>, vector<8x2048xf32>,
    } else {
    }
    %c0 = arith.constant 0 : index
    %c0_1 = arith.constant 0 : index
    %3 = vector.load %arg9[%c0, %c0_1] : memref<8x2048xf32, #tpu.memory_space<vmem>>, vector<8x2048xf32>
    %c0_2 = arith.constant 0 : index
    %c0_3 = arith.constant 0 : index
    %4 = vector.load %arg2[%c0_2, %c0_3] : memref<8x1536xbf16, #tpu.memory_space<vmem>>, vector<8x1536xbf16>
    %c0_4 = arith.constant 0 : index
    %c0_5 = arith.constant 0 : index
    %5 = vector.load %arg3[%c0_4, %c0_5] : memref<1536x2048xbf16, #tpu.memory_space<vmem>>, vector<1536x2048xbf16>
    %cst = arith.constant dense<0.000000e+00> : vector<8x2048xf32>
    %6 = tpu.matmul %4, %5, %cst {dimension_numbers = #tpu.dot_dimension_numbers<[1], [0], [0], [1], [0, 0, 1, 1], [], []>} : vector<8x1536xbf16>, vector<1536x2048xbf16>, vector<8x2048xf32> -> vector<8x2048xf32>
    %7 = arith.addf %3, %6 : vector<8x2048xf32>
    %c0_6 = arith.constant 0 : index
    %c0_7 = arith.constant 0 : index
    %8 = vector.load %arg9[%c0_6, %c0_7] : memref<8x2048xf32, #tpu.memory_space<vmem>>, vector<8x2048xf32>
    tpu.vector_store %arg9[%c0_6, %c0_7], %7 {strides = array<i32>} : memref<8x2048xf32, #tpu.memory_space<vmem>>, vector<8x2048xf32>,
    %c1_i32 = arith.constant 1 : i32
    %9 = arith.cmpi eq, %arg1, %c1_i32 : i32
    %10 = arith.extui %9 : i1 to i32
    %c0_i32_8 = arith.constant 0 : i32
    %11 = arith.cmpi ne, %10, %c0_i32_8 : i32
    scf.if %11 {
      %c0_9 = arith.constant 0 : index
      %c0_10 = arith.constant 0 : index
      %12 = vector.load %arg9[%c0_9, %c0_10] : memref<8x2048xf32, #tpu.memory_space<vmem>>, vector<8x2048xf32>
      %c0_11 = arith.constant 0 : index
      %c0_12 = arith.constant 0 : index
      %13 = vector.load %arg4[%c0_11, %c0_12] : memref<1x2048xf32, #tpu.memory_space<vmem>>, vector<1x2048xf32>
      %14 = vector.broadcast %13 : vector<1x2048xf32> to vector<8x2048xf32>
      %15 = arith.mulf %12, %14 : vector<8x2048xf32>
      %c0_13 = arith.constant 0 : index
      %c0_14 = arith.constant 0 : index
      %16 = vector.load %arg5[%c0_13, %c0_14] : memref<1x2048xf32, #tpu.memory_space<vmem>>, vector<1x2048xf32>
      %17 = vector.broadcast %16 : vector<1x2048xf32> to vector<8x2048xf32>
      %18 = arith.addf %15, %17 : vector<8x2048xf32>
      %cst_15 = arith.constant 0.000000e+00 : f32
      %19 = vector.broadcast %cst_15 : f32 to vector<8x2048xf32>
      %20 = arith.maximumf %18, %19 : vector<8x2048xf32>
      %21 = arith.truncf %20 : vector<8x2048xf32> to vector<8x2048xbf16>
      %c0_16 = arith.constant 0 : index
      %c0_17 = arith.constant 0 : index
      %22 = vector.load %arg6[%c0_16, %c0_17] : memref<2048x128xbf16, #tpu.memory_space<vmem>>, vector<2048x128xbf16>
      %cst_18 = arith.constant dense<0.000000e+00> : vector<8x128xf32>
      %23 = tpu.matmul %21, %22, %cst_18 {dimension_numbers = #tpu.dot_dimension_numbers<[1], [0], [0], [1], [0, 0, 1, 1], [], []>} : vector<8x2048xbf16>, vector<2048x128xbf16>, vector<8x128xf32> -> vector<8x128xf32>
      %c0_19 = arith.constant 0 : index
      %c0_20 = arith.constant 0 : index
      %24 = vector.load %arg7[%c0_19, %c0_20] : memref<1x128xf32, #tpu.memory_space<vmem>>, vector<1x128xf32>
      %25 = vector.broadcast %24 : vector<1x128xf32> to vector<8x128xf32>
      %26 = arith.addf %23, %25 : vector<8x128xf32>
      %c0_21 = arith.constant 0 : index
      %c0_22 = arith.constant 0 : index
      %c0_23 = arith.constant 0 : index
      %27 = vector.load %arg8[%c0_21, %c0_22, %c0_23] : memref<1x8x128xf32, #tpu.memory_space<vmem>>, vector<1x8x128xf32>
      %28 = vector.shape_cast %27 : vector<1x8x128xf32> to vector<8x128xf32>
      %29 = vector.shape_cast %26 : vector<8x128xf32> to vector<1x8x128xf32>
      tpu.vector_store %arg8[%c0_21, %c0_22, %c0_23], %29 {strides = array<i32>} : memref<1x8x128xf32, #tpu.memory_space<vmem>>, vector<1x8x128xf32>,
    } else {
    }
    return
  }
  func.func @transform_0(%arg0: i32, %arg1: i32) -> (i32, i32) {
    %c0_i32 = arith.constant 0 : i32
    %c0_i32_0 = arith.constant 0 : i32
    return %c0_i32, %arg1 : i32, i32
  }
  func.func @transform_1(%arg0: i32, %arg1: i32) -> (i32, i32) {
    %c0_i32 = arith.constant 0 : i32
    return %arg1, %arg0 : i32, i32
  }
  func.func @transform_2(%arg0: i32, %arg1: i32) -> (i32, i32) {
    %c0_i32 = arith.constant 0 : i32
    %c0_i32_0 = arith.constant 0 : i32
    return %c0_i32, %arg0 : i32, i32
  }
  func.func @transform_3(%arg0: i32, %arg1: i32) -> (i32, i32) {
    %c0_i32 = arith.constant 0 : i32
    %c0_i32_0 = arith.constant 0 : i32
    return %c0_i32, %arg0 : i32, i32
  }
  func.func @transform_4(%arg0: i32, %arg1: i32) -> (i32, i32) {
    %c0_i32 = arith.constant 0 : i32
    %c0_i32_0 = arith.constant 0 : i32
    return %arg0, %c0_i32 : i32, i32
  }
  func.func @transform_5(%arg0: i32, %arg1: i32) -> (i32, i32) {
    %c0_i32 = arith.constant 0 : i32
    %c0_i32_0 = arith.constant 0 : i32
    %c0_i32_1 = arith.constant 0 : i32
    return %c0_i32, %c0_i32_0 : i32, i32
  }
  func.func @transform_6(%arg0: i32, %arg1: i32) -> (i32, i32, i32) {
    %c0_i32 = arith.constant 0 : i32
    %c0_i32_0 = arith.constant 0 : i32
    %c0_i32_1 = arith.constant 0 : i32
    return %arg0, %c0_i32, %c0_i32_0 : i32, i32, i32
  }
}

</mosaic_0001>

<llo_original>
// kernel: classifier_forward.1
$region0: #{classifier_forward.1}
  #allocation0 [shape = 'u32[]', space=smem, size = 0x4, offset = 0x4, fixed_abs, tag = 'smem constant byte address 0x4 - core index']
  #allocation1 [shape = 'u32[144,128]{1,0:T(1,128)}', space=vmem, size = 0x12000, scoped, tag = 'internal scratch']
  #allocation2 [shape = 'f32[8,2048]{1,0:T(8,128)}', space=vmem, size = 0x10000, scoped, tag = 'scratch operand']
  %s0 = inlined_call_operand.vmem [shape: bf16[8,3072], index: 0, kind: input, shape index: {}]
  %s1 = inlined_call_operand.hbm [shape: bf16[3072,2048], index: 1, kind: input, shape index: {}]
  %s2 = inlined_call_operand.hbm [shape: f32[1,2048], index: 2, kind: input, shape index: {}]
  %s3 = inlined_call_operand.hbm [shape: f32[1,2048], index: 3, kind: input, shape index: {}]
  %s4 = inlined_call_operand.hbm [shape: bf16[2048,128], index: 4, kind: input, shape index: {}]
  %s5 = inlined_call_operand.hbm [shape: f32[1,128], index: 5, kind: input, shape index: {}]
  %s6 = inlined_call_operand.hbm [shape: f32[1,8,128], index: 6, kind: output, shape index: {}]
  %s7 = sld [smem:[#allocation0]]
  $region85: #{classifier_forward.1} parent=0
    _
  %s9 = ssub.s32 1, %s7
  %s10 = scalar_select 0, %s9, %s7
  $region1: #{classifier_forward.1} parent=0
    #allocation3 [shape = 'u8[12582912]{0}', space=vmem, size = 0xc00000, scoped, tag = 'input window, operand 1']
    #allocation4 [shape = 's32[2]{0}', space=sflag, size = 0x8, scoped, tag = 'scoped memory for classifier_forward.1']
    #allocation5 [shape = 's32[2]{0}', space=sflag, size = 0x8, scoped, tag = 'scoped memory for classifier_forward.1']
    #allocation6 [shape = 'u8[8192]{0}', space=vmem, size = 0x2000, scoped, tag = 'input window, operand 2, single buffered']
    #allocation7 [shape = 's32[1]{0}', space=sflag, size = 0x4, scoped, tag = 'scoped memory for classifier_forward.1']
    #allocation8 [shape = 'u8[8192]{0}', space=vmem, size = 0x2000, scoped, tag = 'input window, operand 3, single buffered']
    #allocation9 [shape = 'u8[524288]{0}', space=vmem, size = 0x80000, scoped, tag = 'input window, operand 4, single buffered']
    #allocation10 [shape = 's32[1]{0}', space=sflag, size = 0x4, scoped, tag = 'scoped memory for classifier_forward.1']
    #allocation11 [shape = 'u8[512]{0}', space=vmem, size = 0x400, scoped, tag = 'input window, operand 5, single buffered']
    #allocation12 [shape = 'u8[4096]{0}', space=vmem, size = 0x1000, scoped, tag = 'output window, operand 0, single buffered']
    %11 = vsyncpa [#allocation4], 0
    %s12 = scalar_lea.sflag [#allocation4], 1
    %13 = vsyncpa %s12, 0
    %14 = vsyncpa [#allocation7], 0
    %15 = vsyncpa [#allocation10], 0
    %16 = vsyncpa [#allocation5], 0
    loop: start=0, step=1, limit=4
    $region2: #{classifier_forward.1} parent=1 // loop_pre_header
      _
    $region3: #{classifier_forward.1} parent=1 // loop_header
      %s18 = sphi 0, %s22
      %p19 = scmp.ge.s32.totalorder %s18, 4
      %s25 = sphi 0, %s37
      %s26 = sphi 0, %s33
      %s27 = sphi 0, %s25
      %s28 = sphi 0, %s26
      %s29 = sphi 0, %s27
      %s30 = sphi 0, %s28
      %s40 = sphi 0, %s42
      %s43 = sphi 0, %s40
      %s44 = sphi 0, %s43
      %s60 = sphi 0, %s44
      %s68 = sphi 0, %s70
      %s71 = sphi 0, %s68
      %s72 = sphi 0, %s71
      %s88 = sphi 0, %s72
      %s94 = sphi 0, %s96
      %s97 = sphi 0, %s94
      %s98 = sphi 0, %s97
      %s114 = sphi 0, %s98
      %s120 = sphi 0, %s122
      %s123 = sphi 0, %s120
      %s124 = sphi 0, %s123
      %s140 = sphi 0, %s124
      %s146 = sphi 0, %s148
      %s149 = sphi 0, %s146
      %s150 = sphi 0, %s149
      %s166 = sphi 0, %s150
      %s170 = sphi 0, %s170
      %s172 = sphi 0, %s170
      %s173 = sphi 0, %s172
      %s187 = sphi 0, %s173
      %s193 = sphi 0, %s195
      %s196 = sphi 0, %s193
      %s197 = sphi 0, %s196
      %s213 = sphi 0, %s197
    $region4: #{classifier_forward.1} parent=1 // loop_header_branch
      %21 = sbr.rel (%p19) target = $region8
    $region5: #{classifier_forward.1} parent=1 // loop_body
      %s23 = ssub.s32 %s18, 1
      %s24 = ssub.s32 %s18, 2
      %s31 = sadd.s32 1, %s26
      %p32 = scmp.ge.s32.totalorder %s31, 2
      %s33 = scalar_select %p32, 0, %s31
      %s34 = sadd.s32 1, %s25
      %s35 = scalar_select %p32, %s34, %s25
      %p36 = scmp.ge.s32.totalorder %s35, 1
      %s37 = scalar_select %p36, 0, %s35
      %s38 = ssub.s32 %s26, %s33
      %p39 = scmp.eq.s32.totalorder %s38, 0
      %s41 = sadd.s32 %s40, 1
      %s42 = scalar_select %p39, %s40, %s41
      %p45 = pneg %p39
      %p46 = scmp.eq.s32.totalorder %s18, 1
      %p47 = por %p45, %p46
      %p48 = scmp.ne.s32.totalorder %s40, %s43
      %p49 = scmp.eq.s32.totalorder %s18, 0
      %p50 = por %p48, %p49
      %p51 = scmp.ne.s32.totalorder %s40, %s43
      %p52 = scmp.eq.s32.totalorder %s23, 1
      %p53 = por %p51, %p52
      %p54 = scmp.ne.s32.totalorder %s43, %s44
      %p55 = scmp.eq.s32.totalorder %s23, 0
      %p56 = por %p54, %p55
      %p57 = scmp.ne.s32.totalorder %s43, %s44
      %p58 = scmp.eq.s32.totalorder %s24, 1
      %p59 = por %p57, %p58
      %p61 = scmp.ne.s32.totalorder %s44, %s60
      %p62 = scmp.eq.s32.totalorder %s24, 0
      %p63 = por %p61, %p62
      %s64 = ssub.s32 %s26, %s33
      %s65 = ssub.s32 %s25, %s37
      %s66 = sor.u32 %s64, %s65
      %p67 = scmp.eq.s32.totalorder %s66, 0
      %s69 = sadd.s32 %s68, 1
      %s70 = scalar_select %p67, %s68, %s69
      %p73 = pneg %p67
      %p74 = scmp.eq.s32.totalorder %s18, 1
      %p75 = por %p73, %p74
      %p76 = scmp.ne.s32.totalorder %s68, %s71
      %p77 = scmp.eq.s32.totalorder %s18, 0
      %p78 = por %p76, %p77
      %p79 = scmp.ne.s32.totalorder %s68, %s71
      %p80 = scmp.eq.s32.totalorder %s23, 1
      %p81 = por %p79, %p80
      %p82 = scmp.ne.s32.totalorder %s71, %s72
      %p83 = scmp.eq.s32.totalorder %s23, 0
      %p84 = por %p82, %p83
      %p85 = scmp.ne.s32.totalorder %s71, %s72
      %p86 = scmp.eq.s32.totalorder %s24, 1
      %p87 = por %p85, %p86
      %p89 = scmp.ne.s32.totalorder %s72, %s88
      %p90 = scmp.eq.s32.totalorder %s24, 0
      %p91 = por %p89, %p90
      %s92 = ssub.s32 %s25, %s37
      %p93 = scmp.eq.s32.totalorder %s92, 0
      %s95 = sadd.s32 %s94, 1
      %s96 = scalar_select %p93, %s94, %s95
      %p99 = pneg %p93
      %p100 = scmp.eq.s32.totalorder %s18, 1
      %p101 = por %p99, %p100
      %p102 = scmp.ne.s32.totalorder %s94, %s97
      %p103 = scmp.eq.s32.totalorder %s18, 0
      %p104 = por %p102, %p103
      %p105 = scmp.ne.s32.totalorder %s94, %s97
      %p106 = scmp.eq.s32.totalorder %s23, 1
      %p107 = por %p105, %p106
      %p108 = scmp.ne.s32.totalorder %s97, %s98
      %p109 = scmp.eq.s32.totalorder %s23, 0
      %p110 = por %p108, %p109
      %p111 = scmp.ne.s32.totalorder %s97, %s98
      %p112 = scmp.eq.s32.totalorder %s24, 1
      %p113 = por %p111, %p112
      %p115 = scmp.ne.s32.totalorder %s98, %s114
      %p116 = scmp.eq.s32.totalorder %s24, 0
      %p117 = por %p115, %p116
      %s118 = ssub.s32 %s25, %s37
      %p119 = scmp.eq.s32.totalorder %s118, 0
      %s121 = sadd.s32 %s120, 1
      %s122 = scalar_select %p119, %s120, %s121
      %p125 = pneg %p119
      %p126 = scmp.eq.s32.totalorder %s18, 1
      %p127 = por %p125, %p126
      %p128 = scmp.ne.s32.totalorder %s120, %s123
      %p129 = scmp.eq.s32.totalorder %s18, 0
      %p130 = por %p128, %p129
      %p131 = scmp.ne.s32.totalorder %s120, %s123
      %p132 = scmp.eq.s32.totalorder %s23, 1
      %p133 = por %p131, %p132
      %p134 = scmp.ne.s32.totalorder %s123, %s124
      %p135 = scmp.eq.s32.totalorder %s23, 0
      %p136 = por %p134, %p135
      %p137 = scmp.ne.s32.totalorder %s123, %s124
      %p138 = scmp.eq.s32.totalorder %s24, 1
      %p139 = por %p137, %p138
      %p141 = scmp.ne.s32.totalorder %s124, %s140
      %p142 = scmp.eq.s32.totalorder %s24, 0
      %p143 = por %p141, %p142
      %s144 = ssub.s32 %s25, %s37
      %p145 = scmp.eq.s32.totalorder %s144, 0
      %s147 = sadd.s32 %s146, 1
      %s148 = scalar_select %p145, %s146, %s147
      %p151 = pneg %p145
      %p152 = scmp.eq.s32.totalorder %s18, 1
      %p153 = por %p151, %p152
      %p154 = scmp.ne.s32.totalorder %s146, %s149
      %p155 = scmp.eq.s32.totalorder %s18, 0
      %p156 = por %p154, %p155
      %p157 = scmp.ne.s32.totalorder %s146, %s149
      %p158 = scmp.eq.s32.totalorder %s23, 1
      %p159 = por %p157, %p158
      %p160 = scmp.ne.s32.totalorder %s149, %s150
      %p161 = scmp.eq.s32.totalorder %s23, 0
      %p162 = por %p160, %p161
      %p163 = scmp.ne.s32.totalorder %s149, %s150
      %p164 = scmp.eq.s32.totalorder %s24, 1
      %p165 = por %p163, %p164
      %p167 = scmp.ne.s32.totalorder %s150, %s166
      %p168 = scmp.eq.s32.totalorder %s24, 0
      %p169 = por %p167, %p168
      %s171 = sadd.s32 %s170, 1
      %p174 = scmp.eq.s32.totalorder %s18, 1
      %p175 = scmp.ne.s32.totalorder %s170, %s172
      %p176 = scmp.eq.s32.totalorder %s18, 0
      %p177 = por %p175, %p176
      %p178 = scmp.ne.s32.totalorder %s170, %s172
      %p179 = scmp.eq.s32.totalorder %s23, 1
      %p180 = por %p178, %p179
      %p181 = scmp.ne.s32.totalorder %s172, %s173
      %p182 = scmp.eq.s32.totalorder %s23, 0
      %p183 = por %p181, %p182
      %p184 = scmp.ne.s32.totalorder %s172, %s173
      %p185 = scmp.eq.s32.totalorder %s24, 1
      %p186 = por %p184, %p185
      %p188 = scmp.ne.s32.totalorder %s173, %s187
      %p189 = scmp.eq.s32.totalorder %s24, 0
      %p190 = por %p188, %p189
      %s191 = ssub.s32 %s25, %s37
      %p192 = scmp.eq.s32.totalorder %s191, 0
      %s194 = sadd.s32 %s193, 1
      %s195 = scalar_select %p192, %s193, %s194
      %p198 = pneg %p192
      %p199 = scmp.eq.s32.totalorder %s18, 1
      %p200 = por %p198, %p199
      %p201 = scmp.ne.s32.totalorder %s193, %s196
      %p202 = scmp.eq.s32.totalorder %s18, 0
      %p203 = por %p201, %p202
      %p204 = scmp.ne.s32.totalorder %s193, %s196
      %p205 = scmp.eq.s32.totalorder %s23, 1
      %p206 = por %p204, %p205
      %p207 = scmp.ne.s32.totalorder %s196, %s197
      %p208 = scmp.eq.s32.totalorder %s23, 0
      %p209 = por %p207, %p208
      %p210 = scmp.ne.s32.totalorder %s196, %s197
      %p211 = scmp.eq.s32.totalorder %s24, 1
      %p212 = por %p210, %p211
      %p214 = scmp.ne.s32.totalorder %s197, %s213
      %p215 = scmp.eq.s32.totalorder %s24, 0
      %p216 = por %p214, %p215
      %p217 = scmp.le.s32.totalorder 1, %s18
      %p218 = scmp.lt.s32.totalorder %s18, 3
      %p219 = pnand %p217, %p218
      %p220 = pneg %p219
      // Predicated region
      $region9: #{classifier_forward.1} parent=5 // pred_check
        _
      $region10: #{classifier_forward.1} parent=5 // pred_check_branch
        %222 = sbr.rel (%p219) target = $region12
      $region11: #{classifier_forward.1} parent=5 // pred_region
        %s223 = ssub.s32 %s18, 1
        // Predicated region
        $region13: #{classifier_forward.1} parent=11 // pred_check
          %p224 = pneg %p110
        $region14: #{classifier_forward.1} parent=11 // pred_check_branch
          %226 = sbr.rel (%p224) target = $region16
        $region15: #{classifier_forward.1} parent=11 // pred_region
          %s227 = smul.u32 16, %s27
          %s229 = ssub.s32 256, 256
          %230 = vsyncadd [#allocation7], %s229
          %s231 = smul.addr %s227, 16
          %s232 = scalar_lea.hbm %s2, %s231
          %s234 = sshll.u32 [#allocation6], 4
          %s235 = int_to_ptr.vmem [resolvable:$true] %s234
          %237 = dma.hbm_to_vmem [thread:$0]  %s232, 256, %s235, [#allocation7]
        $region16: #{classifier_forward.1} parent=11 // pred_fallthru
          _
        // Predicated region
        $region17: #{classifier_forward.1} parent=11 // pred_check
          %p238 = pneg %p136
        $region18: #{classifier_forward.1} parent=11 // pred_check_branch
          %240 = sbr.rel (%p238) target = $region20
        $region19: #{classifier_forward.1} parent=11 // pred_region
          %s241 = smul.u32 16, %s27
          %s243 = ssub.s32 256, 256
          %244 = vsyncadd [#allocation7], %s243
          %s245 = smul.addr %s241, 16
          %s246 = scalar_lea.hbm %s3, %s245
          %s248 = sshll.u32 [#allocation8], 4
          %s249 = int_to_ptr.vmem [resolvable:$true] %s248
          %251 = dma.hbm_to_vmem [thread:$0]  %s246, 256, %s249, [#allocation7]
        $region20: #{classifier_forward.1} parent=11 // pred_fallthru
          _
        // Predicated region
        $region21: #{classifier_forward.1} parent=11 // pred_check
          %p252 = pneg %p162
        $region22: #{classifier_forward.1} parent=11 // pred_check_branch
          %254 = sbr.rel (%p252) target = $region24
        $region23: #{classifier_forward.1} parent=11 // pred_region
          %s255 = smul.u32 256, %s27
          %s257 = ssub.s32 16384, 16384
          %258 = vsyncadd [#allocation10], %s257
          %s259 = smul.addr %s255, 64
          %s260 = scalar_lea.hbm %s4, %s259
          %s261 = sshll.u32 [#allocation9], 4
          %s262 = int_to_ptr.vmem [resolvable:$true] %s261
          %267 = dma.hbm_to_vmem [thread:$0]  %s260, 16384, %s262, [#allocation10], 64, 64, 4
        $region24: #{classifier_forward.1} parent=11 // pred_fallthru
          _
        // Predicated region
        $region25: #{classifier_forward.1} parent=11 // pred_check
          %p268 = pneg %p183
        $region26: #{classifier_forward.1} parent=11 // pred_check_branch
          %270 = sbr.rel (%p268) target = $region28
        $region27: #{classifier_forward.1} parent=11 // pred_region
          %s272 = ssub.s32 16, 16
          %273 = vsyncadd [#allocation10], %s272
          %s275 = sshll.u32 [#allocation11], 4
          %s276 = int_to_ptr.vmem [resolvable:$true] %s275
          %278 = dma.hbm_to_vmem [thread:$0]  %s5, 16, %s276, [#allocation10]
        $region28: #{classifier_forward.1} parent=11 // pred_fallthru
          _
      $region12: #{classifier_forward.1} parent=5 // pred_fallthru
        _
      %p279 = scmp.lt.s32.totalorder %s18, 2
      // Predicated region
      $region29: #{classifier_forward.1} parent=5 // pred_check
        %p280 = pneg %p279
      $region30: #{classifier_forward.1} parent=5 // pred_check_branch
        %282 = sbr.rel (%p280) target = $region32
      $region31: #{classifier_forward.1} parent=5 // pred_region
        // Predicated region
        $region33: #{classifier_forward.1} parent=31 // pred_check
          %p283 = pneg %p50
        $region34: #{classifier_forward.1} parent=31 // pred_check_branch
          %285 = sbr.rel (%p283) target = $region36
        $region35: #{classifier_forward.1} parent=31 // pred_region
          %s286 = smul.u32 12, %s26
          %p287 = scmp.lt.s32.totalorder %s286, 23
          %s288 = scalar_select %p287, %s286, 23
          %s289 = smul.addr %s288, 4
          %s290 = scalar_lea.vmem %s0, %s289
          %s291 = smul.u32 12, %s26
        $region36: #{classifier_forward.1} parent=31 // pred_fallthru
          _
        // Predicated region
        $region37: #{classifier_forward.1} parent=31 // pred_check
          %p292 = pneg %p78
        $region38: #{classifier_forward.1} parent=31 // pred_check_branch
          %294 = sbr.rel (%p292) target = $region40
        $region39: #{classifier_forward.1} parent=31 // pred_region
          %s295 = sand.u32 %s68, 1
          %s296 = scalar_lea.sflag [#allocation4], %s295
          %s297 = sand.u32 %s68, 1
          %s298 = smul.addr %s297, 12288
          %s299 = scalar_lea.vmem [#allocation3], %s298
          %s300 = smul.u32 192, %s26
          %s301 = smul.u32 16, %s25
          %s303 = ssub.s32 196608, 196608
          %304 = vsyncadd %s296, %s303
          %s305 = smul.addr %s300, 16
          %s306 = sadd.s32 %s301, %s305
          %s307 = smul.addr %s306, 64
          %s308 = scalar_lea.hbm %s1, %s307
          %s309 = sshll.u32 %s299, 4
          %s310 = int_to_ptr.vmem [resolvable:$true] %s309
          %315 = dma.hbm_to_vmem [thread:$0]  %s308, 196608, %s310, %s296, 1024, 1024, 64
        $region40: #{classifier_forward.1} parent=31 // pred_fallthru
          _
      $region32: #{classifier_forward.1} parent=5 // pred_fallthru
        _
      %p316 = scmp.le.s32.totalorder 1, %s18
      %p317 = scmp.lt.s32.totalorder %s18, 3
      %p318 = pnand %p316, %p317
      %p319 = pneg %p318
      // Predicated region
      $region41: #{classifier_forward.1} parent=5 // pred_check
        _
      $region42: #{classifier_forward.1} parent=5 // pred_check_branch
        %321 = sbr.rel (%p318) target = $region44
      $region43: #{classifier_forward.1} parent=5 // pred_region
        %s322 = ssub.s32 %s18, 1
        %s323 = sand.u32 %s71, 1
        %s324 = scalar_lea.sflag [#allocation4], %s323
        %s325 = sand.u32 %s71, 1
        %s326 = smul.addr %s325, 12288
        %s327 = scalar_lea.vmem [#allocation3], %s326
        // Predicated region
        $region45: #{classifier_forward.1} parent=43 // pred_check
          %p328 = pneg %p84
        $region46: #{classifier_forward.1} parent=43 // pred_check_branch
          %330 = sbr.rel (%p328) target = $region48
        $region47: #{classifier_forward.1} parent=43 // pred_region
          %331 = dma.done %s324, 196608
        $region48: #{classifier_forward.1} parent=43 // pred_fallthru
          _
        // Predicated region
        $region49: #{classifier_forward.1} parent=43 // pred_check
          %p332 = pneg %p110
        $region50: #{classifier_forward.1} parent=43 // pred_check_branch
          %334 = sbr.rel (%p332) target = $region52
        $region51: #{classifier_forward.1} parent=43 // pred_region
          %335 = dma.done [#allocation7], 256
        $region52: #{classifier_forward.1} parent=43 // pred_fallthru
          _
        // Predicated region
        $region53: #{classifier_forward.1} parent=43 // pred_check
          %p336 = pneg %p136
        $region54: #{classifier_forward.1} parent=43 // pred_check_branch
          %338 = sbr.rel (%p336) target = $region56
        $region55: #{classifier_forward.1} parent=43 // pred_region
          %339 = dma.done [#allocation7], 256
        $region56: #{classifier_forward.1} parent=43 // pred_fallthru
          _
        // Predicated region
        $region57: #{classifier_forward.1} parent=43 // pred_check
          %p340 = pneg %p162
        $region58: #{classifier_forward.1} parent=43 // pred_check_branch
          %342 = sbr.rel (%p340) target = $region60
        $region59: #{classifier_forward.1} parent=43 // pred_region
          %343 = dma.done [#allocation10], 16384
        $region60: #{classifier_forward.1} parent=43 // pred_fallthru
          _
        // Predicated region
        $region61: #{classifier_forward.1} parent=43 // pred_check
          %p344 = pneg %p183
        $region62: #{classifier_forward.1} parent=43 // pred_check_branch
          %346 = sbr.rel (%p344) target = $region64
        $region63: #{classifier_forward.1} parent=43 // pred_region
          %347 = dma.done [#allocation10], 16
        $region64: #{classifier_forward.1} parent=43 // pred_fallthru
          _
        %s348 = smul.u32 12, %s28
        %p349 = scmp.lt.s32.totalorder %s348, 23
        %s350 = scalar_select %p349, %s348, 23
        %s351 = smul.addr %s350, 4
        %s352 = scalar_lea.vmem %s0, %s351
        %p353 = pneg %p56
        %p354 = pneg %p53
        %s355 = sand.u32 %s71, 1
        %s356 = scalar_lea.sflag [#allocation4], %s355
        %s357 = sand.u32 %s71, 1
        %s358 = smul.addr %s357, 12288
        %s359 = scalar_lea.vmem [#allocation3], %s358
        %p360 = pneg %p84
        %p361 = pneg %p81
        %p362 = pneg %p110
        %p363 = pneg %p107
        %p364 = pneg %p136
        %p365 = pneg %p133
        %p366 = pneg %p162
        %p367 = pneg %p159
        %p368 = pneg %p183
        %p369 = pneg %p180
        %p370 = pneg %p209
        %p371 = pneg %p206
        %s372 = smul.u32 12, %s28
        %p373 = scmp.lt.s32.totalorder %s372, 23
        %s374 = scalar_select %p373, %s372, 23
        %s375 = smul.addr %s374, 4
        %s376 = scalar_lea.vmem %s0, %s375
        %s377 = smul.u32 12, %s28
        %s378 = smul.u32 192, %s28
        %s379 = smul.u32 16, %s27
        %s380 = smul.u32 16, %s27
        %s381 = smul.u32 16, %s27
        %s382 = smul.u32 256, %s27
        %p384 = scmp.eq.s32.totalorder %s28, 0
        // Predicated region
        $region65: #{classifier_forward.1} parent=43 // pred_check
          %p385 = pneg %p384
        $region66: #{classifier_forward.1} parent=43 // pred_check_branch
          %387 = sbr.rel (%p385) target = $region68
        $region67: #{classifier_forward.1} parent=43 // pred_region
          %388 = vst [vmem:[#allocation2] sm:$0xff] 0.0
          %389 = vst [vmem:[#allocation2 + $0x8] sm:$0xff] 0.0
          %390 = vst [vmem:[#allocation2 + $0x10] sm:$0xff] 0.0
          %391 = vst [vmem:[#allocation2 + $0x18] sm:$0xff] 0.0
          %392 = vst [vmem:[#allocation2 + $0x20] sm:$0xff] 0.0
          %393 = vst [vmem:[#allocation2 + $0x28] sm:$0xff] 0.0
          %394 = vst [vmem:[#allocation2 + $0x30] sm:$0xff] 0.0
          %395 = vst [vmem:[#allocation2 + $0x38] sm:$0xff] 0.0
          %396 = vst [vmem:[#allocation2 + $0x40] sm:$0xff] 0.0
          %397 = vst [vmem:[#allocation2 + $0x48] sm:$0xff] 0.0
          %398 = vst [vmem:[#allocation2 + $0x50] sm:$0xff] 0.0
          %399 = vst [vmem:[#allocation2 + $0x58] sm:$0xff] 0.0
          %400 = vst [vmem:[#allocation2 + $0x60] sm:$0xff] 0.0
          %401 = vst [vmem:[#allocation2 + $0x68] sm:$0xff] 0.0
          %402 = vst [vmem:[#allocation2 + $0x70] sm:$0xff] 0.0
          %403 = vst [vmem:[#allocation2 + $0x78] sm:$0xff] 0.0
        $region68: #{classifier_forward.1} parent=43 // pred_fallthru
          _
        %v404 = vld [vmem:[#allocation2] sm:$0xff]
        %v405 = vld [vmem:[#allocation2 + $0x8] sm:$0xff]
        %v406 = vld [vmem:[#allocation2 + $0x10] sm:$0xff]
        %v407 = vld [vmem:[#allocation2 + $0x18] sm:$0xff]
        %v408 = vld [vmem:[#allocation2 + $0x20] sm:$0xff]
        %v409 = vld [vmem:[#allocation2 + $0x28] sm:$0xff]
        %v410 = vld [vmem:[#allocation2 + $0x30] sm:$0xff]
        %v411 = vld [vmem:[#allocation2 + $0x38] sm:$0xff]
        %v412 = vld [vmem:[#allocation2 + $0x40] sm:$0xff]
        %v413 = vld [vmem:[#allocation2 + $0x48] sm:$0xff]
        %v414 = vld [vmem:[#allocation2 + $0x50] sm:$0xff]
        %v415 = vld [vmem:[#allocation2 + $0x58] sm:$0xff]
        %v416 = vld [vmem:[#allocation2 + $0x60] sm:$0xff]
        %v417 = vld [vmem:[#allocation2 + $0x68] sm:$0xff]
        %v418 = vld [vmem:[#allocation2 + $0x70] sm:$0xff]
        %v419 = vld [vmem:[#allocation2 + $0x78] sm:$0xff]
        %v420 = vld [vmem:[%s376] sm:$0xff]
        %v421 = vld [vmem:[%s376 + $0x8] sm:$0xff]
        %v422 = vld [vmem:[%s376 + $0x10] sm:$0xff]
        %v423 = vld [vmem:[%s376 + $0x18] sm:$0xff]
        %v424 = vld [vmem:[%s376 + $0x20] sm:$0xff]
        %v425 = vld [vmem:[%s376 + $0x28] sm:$0xff]
        %v426 = vld [vmem:[%s327] sm:$0xff]
        %v427 = vld [vmem:[%s327 + $0x8] sm:$0xff]
        %v428 = vld [vmem:[%s327 + $0x10] sm:$0xff]
        %v429 = vld [vmem:[%s327 + $0x18] sm:$0xff]
        %v430 = vld [vmem:[%s327 + $0x20] sm:$0xff]
        %v431 = vld [vmem:[%s327 + $0x28] sm:$0xff]
        %v432 = vld [vmem:[%s327 + $0x30] sm:$0xff]
        %v433 = vld [vmem:[%s327 + $0x38] sm:$0xff]
        %v434 = vld [vmem:[%s327 + $0x40] sm:$0xff]
        %v435 = vld [vmem:[%s327 + $0x48] sm:$0xff]
        %v436 = vld [vmem:[%s327 + $0x50] sm:$0xff]
        %v437 = vld [vmem:[%s327 + $0x58] sm:$0xff]
        %v438 = vld [vmem:[%s327 + $0x60] sm:$0xff]
        %v439 = vld [vmem:[%s327 + $0x68] sm:$0xff]
        %v440 = vld [vmem:[%s327 + $0x70] sm:$0xff]
        %v441 = vld [vmem:[%s327 + $0x78] sm:$0xff]
        %v442 = vld [vmem:[%s327 + $0x80] sm:$0xff]
        %v443 = vld [vmem:[%s327 + $0x88] sm:$0xff]
        %v444 = vld [vmem:[%s327 + $0x90] sm:$0xff]
        %v445 = vld [vmem:[%s327 + $0x98] sm:$0xff]
        %v446 = vld [vmem:[%s327 + $0xa0] sm:$0xff]
        %v447 = vld [vmem:[%s327 + $0xa8] sm:$0xff]
        %v448 = vld [vmem:[%s327 + $0xb0] sm:$0xff]
        %v449 = vld [vmem:[%s327 + $0xb8] sm:$0xff]
        %v450 = vld [vmem:[%s327 + $0xc0] sm:$0xff]
        %v451 = vld [vmem:[%s327 + $0xc8] sm:$0xff]
        %v452 = vld [vmem:[%s327 + $0xd0] sm:$0xff]
        %v453 = vld [vmem:[%s327 + $0xd8] sm:$0xff]
        %v454 = vld [vmem:[%s327 + $0xe0] sm:$0xff]
        %v455 = vld [vmem:[%s327 + $0xe8] sm:$0xff]
        %v456 = vld [vmem:[%s327 + $0xf0] sm:$0xff]
        %v457 = vld [vmem:[%s327 + $0xf8] sm:$0xff]
        %v458 = vld [vmem:[%s327 + $0x100] sm:$0xff]
        %v459 = vld [vmem:[%s327 + $0x108] sm:$0xff]
        %v460 = vld [vmem:[%s327 + $0x110] sm:$0xff]
        %v461 = vld [vmem:[%s327 + $0x118] sm:$0xff]
        %v462 = vld [vmem:[%s327 + $0x120] sm:$0xff]
        %v463 = vld [vmem:[%s327 + $0x128] sm:$0xff]
        %v464 = vld [vmem:[%s327 + $0x130] sm:$0xff]
        %v465 = vld [vmem:[%s327 + $0x138] sm:$0xff]
        %v466 = vld [vmem:[%s327 + $0x140] sm:$0xff]
        %v467 = vld [vmem:[%s327 + $0x148] sm:$0xff]
        %v468 = vld [vmem:[%s327 + $0x150] sm:$0xff]
        %v469 = vld [vmem:[%s327 + $0x158] sm:$0xff]
        %v470 = vld [vmem:[%s327 + $0x160] sm:$0xff]
        %v471 = vld [vmem:[%s327 + $0x168] sm:$0xff]
        %v472 = vld [vmem:[%s327 + $0x170] sm:$0xff]
        %v473 = vld [vmem:[%s327 + $0x178] sm:$0xff]
        %v474 = vld [vmem:[%s327 + $0x180] sm:$0xff]
        %v475 = vld [vmem:[%s327 + $0x188] sm:$0xff]
        %v476 = vld [vmem:[%s327 + $0x190] sm:$0xff]
        %v477 = vld [vmem:[%s327 + $0x198] sm:$0xff]
        %v478 = vld [vmem:[%s327 + $0x1a0] sm:$0xff]
        %v479 = vld [vmem:[%s327 + $0x1a8] sm:$0xff]
        %v480 = vld [vmem:[%s327 + $0x1b0] sm:$0xff]
        %v481 = vld [vmem:[%s327 + $0x1b8] sm:$0xff]
        %v482 = vld [vmem:[%s327 + $0x1c0] sm:$0xff]
        %v483 = vld [vmem:[%s327 + $0x1c8] sm:$0xff]
        %v484 = vld [vmem:[%s327 + $0x1d0] sm:$0xff]
        %v485 = vld [vmem:[%s327 + $0x1d8] sm:$0xff]
        %v486 = vld [vmem:[%s327 + $0x1e0] sm:$0xff]
        %v487 = vld [vmem:[%s327 + $0x1e8] sm:$0xff]
        %v488 = vld [vmem:[%s327 + $0x1f0] sm:$0xff]
        %v489 = vld [vmem:[%s327 + $0x1f8] sm:$0xff]
        %v490 = vld [vmem:[%s327 + $0x200] sm:$0xff]
        %v491 = vld [vmem:[%s327 + $0x208] sm:$0xff]
        %v492 = vld [vmem:[%s327 + $0x210] sm:$0xff]
        %v493 = vld [vmem:[%s327 + $0x218] sm:$0xff]
        %v494 = vld [vmem:[%s327 + $0x220] sm:$0xff]
        %v495 = vld [vmem:[%s327 + $0x228] sm:$0xff]
        %v496 = vld [vmem:[%s327 + $0x230] sm:$0xff]
        %v497 = vld [vmem:[%s327 + $0x238] sm:$0xff]
        %v498 = vld [vmem:[%s327 + $0x240] sm:$0xff]
        %v499 = vld [vmem:[%s327 + $0x248] sm:$0xff]
        %v500 = vld [vmem:[%s327 + $0x250] sm:$0xff]
        %v501 = vld [vmem:[%s327 + $0x258] sm:$0xff]
        %v502 = vld [vmem:[%s327 + $0x260] sm:$0xff]
        %v503 = vld [vmem:[%s327 + $0x268] sm:$0xff]
        %v504 = vld [vmem:[%s327 + $0x270] sm:$0xff]
        %v505 = vld [vmem:[%s327 + $0x278] sm:$0xff]
        %v506 = vld [vmem:[%s327 + $0x280] sm:$0xff]
        %v507 = vld [vmem:[%s327 + $0x288] sm:$0xff]
        %v508 = vld [vmem:[%s327 + $0x290] sm:$0xff]
        %v509 = vld [vmem:[%s327 + $0x298] sm:$0xff]
        %v510 = vld [vmem:[%s327 + $0x2a0] sm:$0xff]
        %v511 = vld [vmem:[%s327 + $0x2a8] sm:$0xff]
        %v512 = vld [vmem:[%s327 + $0x2b0] sm:$0xff]
        %v513 = vld [vmem:[%s327 + $0x2b8] sm:$0xff]
        %v514 = vld [vmem:[%s327 + $0x2c0] sm:$0xff]
        %v515 = vld [vmem:[%s327 + $0x2c8] sm:$0xff]
        %v516 = vld [vmem:[%s327 + $0x2d0] sm:$0xff]
        %v517 = vld [vmem:[%s327 + $0x2d8] sm:$0xff]
        %v518 = vld [vmem:[%s327 + $0x2e0] sm:$0xff]
        %v519 = vld [vmem:[%s327 + $0x2e8] sm:$0xff]
        %v520 = vld [vmem:[%s327 + $0x2f0] sm:$0xff]
        %v521 = vld [vmem:[%s327 + $0x2f8] sm:$0xff]
        %v522 = vld [vmem:[%s327 + $0x300] sm:$0xff]
        %v523 = vld [vmem:[%s327 + $0x308] sm:$0xff]
        %v524 = vld [vmem:[%s327 + $0x310] sm:$0xff]
        %v525 = vld [vmem:[%s327 + $0x318] sm:$0xff]
        %v526 = vld [vmem:[%s327 + $0x320] sm:$0xff]
        %v527 = vld [vmem:[%s327 + $0x328] sm:$0xff]
        %v528 = vld [vmem:[%s327 + $0x330] sm:$0xff]
        %v529 = vld [vmem:[%s327 + $0x338] sm:$0xff]
        %v530 = vld [vmem:[%s327 + $0x340] sm:$0xff]
        %v531 = vld [vmem:[%s327 + $0x348] sm:$0xff]
        %v532 = vld [vmem:[%s327 + $0x350] sm:$0xff]
        %v533 = vld [vmem:[%s327 + $0x358] sm:$0xff]
        %v534 = vld [vmem:[%s327 + $0x360] sm:$0xff]
        %v535 = vld [vmem:[%s327 + $0x368] sm:$0xff]
        %v536 = vld [vmem:[%s327 + $0x370] sm:$0xff]
        %v537 = vld [vmem:[%s327 + $0x378] sm:$0xff]
        %v538 = vld [vmem:[%s327 + $0x380] sm:$0xff]
        %v539 = vld [vmem:[%s327 + $0x388] sm:$0xff]
        %v540 = vld [vmem:[%s327 + $0x390] sm:$0xff]
        %v541 = vld [vmem:[%s327 + $0x398] sm:$0xff]
        %v542 = vld [vmem:[%s327 + $0x3a0] sm:$0xff]
        %v543 = vld [vmem:[%s327 + $0x3a8] sm:$0xff]
        %v544 = vld [vmem:[%s327 + $0x3b0] sm:$0xff]
        %v545 = vld [vmem:[%s327 + $0x3b8] sm:$0xff]
        %v546 = vld [vmem:[%s327 + $0x3c0] sm:$0xff]
        %v547 = vld [vmem:[%s327 + $0x3c8] sm:$0xff]
        %v548 = vld [vmem:[%s327 + $0x3d0] sm:$0xff]
        %v549 = vld [vmem:[%s327 + $0x3d8] sm:$0xff]
        %v550 = vld [vmem:[%s327 + $0x3e0] sm:$0xff]
        %v551 = vld [vmem:[%s327 + $0x3e8] sm:$0xff]
        %v552 = vld [vmem:[%s327 + $0x3f0] sm:$0xff]
        %v553 = vld [vmem:[%s327 + $0x3f8] sm:$0xff]
        %v554 = vld [vmem:[%s327 + $0x400] sm:$0xff]
        %v555 = vld [vmem:[%s327 + $0x408] sm:$0xff]
        %v556 = vld [vmem:[%s327 + $0x410] sm:$0xff]
        %v557 = vld [vmem:[%s327 + $0x418] sm:$0xff]
        %v558 = vld [vmem:[%s327 + $0x420] sm:$0xff]
        %v559 = vld [vmem:[%s327 + $0x428] sm:$0xff]
        %v560 = vld [vmem:[%s327 + $0x430] sm:$0xff]
        %v561 = vld [vmem:[%s327 + $0x438] sm:$0xff]
        %v562 = vld [vmem:[%s327 + $0x440] sm:$0xff]
        %v563 = vld [vmem:[%s327 + $0x448] sm:$0xff]
        %v564 = vld [vmem:[%s327 + $0x450] sm:$0xff]
        %v565 = vld [vmem:[%s327 + $0x458] sm:$0xff]
        %v566 = vld [vmem:[%s327 + $0x460] sm:$0xff]
        %v567 = vld [vmem:[%s327 + $0x468] sm:$0xff]
        %v568 = vld [vmem:[%s327 + $0x470] sm:$0xff]
        %v569 = vld [vmem:[%s327 + $0x478] sm:$0xff]
        %v570 = vld [vmem:[%s327 + $0x480] sm:$0xff]
        %v571 = vld [vmem:[%s327 + $0x488] sm:$0xff]
        %v572 = vld [vmem:[%s327 + $0x490] sm:$0xff]
        %v573 = vld [vmem:[%s327 + $0x498] sm:$0xff]
        %v574 = vld [vmem:[%s327 + $0x4a0] sm:$0xff]
        %v575 = vld [vmem:[%s327 + $0x4a8] sm:$0xff]
        %v576 = vld [vmem:[%s327 + $0x4b0] sm:$0xff]
        %v577 = vld [vmem:[%s327 + $0x4b8] sm:$0xff]
        %v578 = vld [vmem:[%s327 + $0x4c0] sm:$0xff]
        %v579 = vld [vmem:[%s327 + $0x4c8] sm:$0xff]
        %v580 = vld [vmem:[%s327 + $0x4d0] sm:$0xff]
        %v581 = vld [vmem:[%s327 + $0x4d8] sm:$0xff]
        %v582 = vld [vmem:[%s327 + $0x4e0] sm:$0xff]
        %v583 = vld [vmem:[%s327 + $0x4e8] sm:$0xff]
        %v584 = vld [vmem:[%s327 + $0x4f0] sm:$0xff]
        %v585 = vld [vmem:[%s327 + $0x4f8] sm:$0xff]
        %v586 = vld [vmem:[%s327 + $0x500] sm:$0xff]
        %v587 = vld [vmem:[%s327 + $0x508] sm:$0xff]
        %v588 = vld [vmem:[%s327 + $0x510] sm:$0xff]
        %v589 = vld [vmem:[%s327 + $0x518] sm:$0xff]
        %v590 = vld [vmem:[%s327 + $0x520] sm:$0xff]
        %v591 = vld [vmem:[%s327 + $0x528] sm:$0xff]
        %v592 = vld [vmem:[%s327 + $0x530] sm:$0xff]
        %v593 = vld [vmem:[%s327 + $0x538] sm:$0xff]
        %v594 = vld [vmem:[%s327 + $0x540] sm:$0xff]
        %v595 = vld [vmem:[%s327 + $0x548] sm:$0xff]
        %v596 = vld [vmem:[%s327 + $0x550] sm:$0xff]
        %v597 = vld [vmem:[%s327 + $0x558] sm:$0xff]
        %v598 = vld [vmem:[%s327 + $0x560] sm:$0xff]
        %v599 = vld [vmem:[%s327 + $0x568] sm:$0xff]
        %v600 = vld [vmem:[%s327 + $0x570] sm:$0xff]
        %v601 = vld [vmem:[%s327 + $0x578] sm:$0xff]
        %v602 = vld [vmem:[%s327 + $0x580] sm:$0xff]
        %v603 = vld [vmem:[%s327 + $0x588] sm:$0xff]
        %v604 = vld [vmem:[%s327 + $0x590] sm:$0xff]
        %v605 = vld [vmem:[%s327 + $0x598] sm:$0xff]
        %v606 = vld [vmem:[%s327 + $0x5a0] sm:$0xff]
        %v607 = vld [vmem:[%s327 + $0x5a8] sm:$0xff]
        %v608 = vld [vmem:[%s327 + $0x5b0] sm:$0xff]
        %v609 = vld [vmem:[%s327 + $0x5b8] sm:$0xff]
        %v610 = vld [vmem:[%s327 + $0x5c0] sm:$0xff]
        %v611 = vld [vmem:[%s327 + $0x5c8] sm:$0xff]
        %v612 = vld [vmem:[%s327 + $0x5d0] sm:$0xff]
        %v613 = vld [vmem:[%s327 + $0x5d8] sm:$0xff]
        %v614 = vld [vmem:[%s327 + $0x5e0] sm:$0xff]
        %v615 = vld [vmem:[%s327 + $0x5e8] sm:$0xff]
        %v616 = vld [vmem:[%s327 + $0x5f0] sm:$0xff]
        %v617 = vld [vmem:[%s327 + $0x5f8] sm:$0xff]
        %v618 = vld [vmem:[%s327 + $0x600] sm:$0xff]
        %v619 = vld [vmem:[%s327 + $0x608] sm:$0xff]
        %v620 = vld [vmem:[%s327 + $0x610] sm:$0xff]
        %v621 = vld [vmem:[%s327 + $0x618] sm:$0xff]
        %v622 = vld [vmem:[%s327 + $0x620] sm:$0xff]
        %v623 = vld [vmem:[%s327 + $0x628] sm:$0xff]
        %v624 = vld [vmem:[%s327 + $0x630] sm:$0xff]
        %v625 = vld [vmem:[%s327 + $0x638] sm:$0xff]
        %v626 = vld [vmem:[%s327 + $0x640] sm:$0xff]
        %v627 = vld [vmem:[%s327 + $0x648] sm:$0xff]
        %v628 = vld [vmem:[%s327 + $0x650] sm:$0xff]
        %v629 = vld [vmem:[%s327 + $0x658] sm:$0xff]
        %v630 = vld [vmem:[%s327 + $0x660] sm:$0xff]
        %v631 = vld [vmem:[%s327 + $0x668] sm:$0xff]
        %v632 = vld [vmem:[%s327 + $0x670] sm:$0xff]
        %v633 = vld [vmem:[%s327 + $0x678] sm:$0xff]
        %v634 = vld [vmem:[%s327 + $0x680] sm:$0xff]
        %v635 = vld [vmem:[%s327 + $0x688] sm:$0xff]
        %v636 = vld [vmem:[%s327 + $0x690] sm:$0xff]
        %v637 = vld [vmem:[%s327 + $0x698] sm:$0xff]
        %v638 = vld [vmem:[%s327 + $0x6a0] sm:$0xff]
        %v639 = vld [vmem:[%s327 + $0x6a8] sm:$0xff]
        %v640 = vld [vmem:[%s327 + $0x6b0] sm:$0xff]
        %v641 = vld [vmem:[%s327 + $0x6b8] sm:$0xff]
        %v642 = vld [vmem:[%s327 + $0x6c0] sm:$0xff]
        %v643 = vld [vmem:[%s327 + $0x6c8] sm:$0xff]
        %v644 = vld [vmem:[%s327 + $0x6d0] sm:$0xff]
        %v645 = vld [vmem:[%s327 + $0x6d8] sm:$0xff]
        %v646 = vld [vmem:[%s327 + $0x6e0] sm:$0xff]
        %v647 = vld [vmem:[%s327 + $0x6e8] sm:$0xff]
        %v648 = vld [vmem:[%s327 + $0x6f0] sm:$0xff]
        %v649 = vld [vmem:[%s327 + $0x6f8] sm:$0xff]
        %v650 = vld [vmem:[%s327 + $0x700] sm:$0xff]
        %v651 = vld [vmem:[%s327 + $0x708] sm:$0xff]
        %v652 = vld [vmem:[%s327 + $0x710] sm:$0xff]
        %v653 = vld [vmem:[%s327 + $0x718] sm:$0xff]
        %v654 = vld [vmem:[%s327 + $0x720] sm:$0xff]
        %v655 = vld [vmem:[%s327 + $0x728] sm:$0xff]
        %v656 = vld [vmem:[%s327 + $0x730] sm:$0xff]
        %v657 = vld [vmem:[%s327 + $0x738] sm:$0xff]
        %v658 = vld [vmem:[%s327 + $0x740] sm:$0xff]
        %v659 = vld [vmem:[%s327 + $0x748] sm:$0xff]
        %v660 = vld [vmem:[%s327 + $0x750] sm:$0xff]
        %v661 = vld [vmem:[%s327 + $0x758] sm:$0xff]
        %v662 = vld [vmem:[%s327 + $0x760] sm:$0xff]
        %v663 = vld [vmem:[%s327 + $0x768] sm:$0xff]
        %v664 = vld [vmem:[%s327 + $0x770] sm:$0xff]
        %v665 = vld [vmem:[%s327 + $0x778] sm:$0xff]
        %v666 = vld [vmem:[%s327 + $0x780] sm:$0xff]
        %v667 = vld [vmem:[%s327 + $0x788] sm:$0xff]
        %v668 = vld [vmem:[%s327 + $0x790] sm:$0xff]
        %v669 = vld [vmem:[%s327 + $0x798] sm:$0xff]
        %v670 = vld [vmem:[%s327 + $0x7a0] sm:$0xff]
        %v671 = vld [vmem:[%s327 + $0x7a8] sm:$0xff]
        %v672 = vld [vmem:[%s327 + $0x7b0] sm:$0xff]
        %v673 = vld [vmem:[%s327 + $0x7b8] sm:$0xff]
        %v674 = vld [vmem:[%s327 + $0x7c0] sm:$0xff]
        %v675 = vld [vmem:[%s327 + $0x7c8] sm:$0xff]
        %v676 = vld [vmem:[%s327 + $0x7d0] sm:$0xff]
        %v677 = vld [vmem:[%s327 + $0x7d8] sm:$0xff]
        %v678 = vld [vmem:[%s327 + $0x7e0] sm:$0xff]
        %v679 = vld [vmem:[%s327 + $0x7e8] sm:$0xff]
        %v680 = vld [vmem:[%s327 + $0x7f0] sm:$0xff]
        %v681 = vld [vmem:[%s327 + $0x7f8] sm:$0xff]
        %v682 = vld [vmem:[%s327 + $0x800] sm:$0xff]
        %v683 = vld [vmem:[%s327 + $0x808] sm:$0xff]
        %v684 = vld [vmem:[%s327 + $0x810] sm:$0xff]
        %v685 = vld [vmem:[%s327 + $0x818] sm:$0xff]
        %v686 = vld [vmem:[%s327 + $0x820] sm:$0xff]
        %v687 = vld [vmem:[%s327 + $0x828] sm:$0xff]
        %v688 = vld [vmem:[%s327 + $0x830] sm:$0xff]
        %v689 = vld [vmem:[%s327 + $0x838] sm:$0xff]
        %v690 = vld [vmem:[%s327 + $0x840] sm:$0xff]
        %v691 = vld [vmem:[%s327 + $0x848] sm:$0xff]
        %v692 = vld [vmem:[%s327 + $0x850] sm:$0xff]
        %v693 = vld [vmem:[%s327 + $0x858] sm:$0xff]
        %v694 = vld [vmem:[%s327 + $0x860] sm:$0xff]
        %v695 = vld [vmem:[%s327 + $0x868] sm:$0xff]
        %v696 = vld [vmem:[%s327 + $0x870] sm:$0xff]
        %v697 = vld [vmem:[%s327 + $0x878] sm:$0xff]
        %v698 = vld [vmem:[%s327 + $0x880] sm:$0xff]
        %v699 = vld [vmem:[%s327 + $0x888] sm:$0xff]
        %v700 = vld [vmem:[%s327 + $0x890] sm:$0xff]
        %v701 = vld [vmem:[%s327 + $0x898] sm:$0xff]
        %v702 = vld [vmem:[%s327 + $0x8a0] sm:$0xff]
        %v703 = vld [vmem:[%s327 + $0x8a8] sm:$0xff]
        %v704 = vld [vmem:[%s327 + $0x8b0] sm:$0xff]
        %v705 = vld [vmem:[%s327 + $0x8b8] sm:$0xff]
        %v706 = vld [vmem:[%s327 + $0x8c0] sm:$0xff]
        %v707 = vld [vmem:[%s327 + $0x8c8] sm:$0xff]
        %v708 = vld [vmem:[%s327 + $0x8d0] sm:$0xff]
        %v709 = vld [vmem:[%s327 + $0x8d8] sm:$0xff]
        %v710 = vld [vmem:[%s327 + $0x8e0] sm:$0xff]
        %v711 = vld [vmem:[%s327 + $0x8e8] sm:$0xff]
        %v712 = vld [vmem:[%s327 + $0x8f0] sm:$0xff]
        %v713 = vld [vmem:[%s327 + $0x8f8] sm:$0xff]
        %v714 = vld [vmem:[%s327 + $0x900] sm:$0xff]
        %v715 = vld [vmem:[%s327 + $0x908] sm:$0xff]
        %v716 = vld [vmem:[%s327 + $0x910] sm:$0xff]
        %v717 = vld [vmem:[%s327 + $0x918] sm:$0xff]
        %v718 = vld [vmem:[%s327 + $0x920] sm:$0xff]
        %v719 = vld [vmem:[%s327 + $0x928] sm:$0xff]
        %v720 = vld [vmem:[%s327 + $0x930] sm:$0xff]
        %v721 = vld [vmem:[%s327 + $0x938] sm:$0xff]
        %v722 = vld [vmem:[%s327 + $0x940] sm:$0xff]
        %v723 = vld [vmem:[%s327 + $0x948] sm:$0xff]
        %v724 = vld [vmem:[%s327 + $0x950] sm:$0xff]
        %v725 = vld [vmem:[%s327 + $0x958] sm:$0xff]
        %v726 = vld [vmem:[%s327 + $0x960] sm:$0xff]
        %v727 = vld [vmem:[%s327 + $0x968] sm:$0xff]
        %v728 = vld [vmem:[%s327 + $0x970] sm:$0xff]
        %v729 = vld [vmem:[%s327 + $0x978] sm:$0xff]
        %v730 = vld [vmem:[%s327 + $0x980] sm:$0xff]
        %v731 = vld [vmem:[%s327 + $0x988] sm:$0xff]
        %v732 = vld [vmem:[%s327 + $0x990] sm:$0xff]
        %v733 = vld [vmem:[%s327 + $0x998] sm:$0xff]
        %v734 = vld [vmem:[%s327 + $0x9a0] sm:$0xff]
        %v735 = vld [vmem:[%s327 + $0x9a8] sm:$0xff]
        %v736 = vld [vmem:[%s327 + $0x9b0] sm:$0xff]
        %v737 = vld [vmem:[%s327 + $0x9b8] sm:$0xff]
        %v738 = vld [vmem:[%s327 + $0x9c0] sm:$0xff]
        %v739 = vld [vmem:[%s327 + $0x9c8] sm:$0xff]
        %v740 = vld [vmem:[%s327 + $0x9d0] sm:$0xff]
        %v741 = vld [vmem:[%s327 + $0x9d8] sm:$0xff]
        %v742 = vld [vmem:[%s327 + $0x9e0] sm:$0xff]
        %v743 = vld [vmem:[%s327 + $0x9e8] sm:$0xff]
        %v744 = vld [vmem:[%s327 + $0x9f0] sm:$0xff]
        %v745 = vld [vmem:[%s327 + $0x9f8] sm:$0xff]
        %v746 = vld [vmem:[%s327 + $0xa00] sm:$0xff]
        %v747 = vld [vmem:[%s327 + $0xa08] sm:$0xff]
        %v748 = vld [vmem:[%s327 + $0xa10] sm:$0xff]
        %v749 = vld [vmem:[%s327 + $0xa18] sm:$0xff]
        %v750 = vld [vmem:[%s327 + $0xa20] sm:$0xff]
        %v751 = vld [vmem:[%s327 + $0xa28] sm:$0xff]
        %v752 = vld [vmem:[%s327 + $0xa30] sm:$0xff]
        %v753 = vld [vmem:[%s327 + $0xa38] sm:$0xff]
        %v754 = vld [vmem:[%s327 + $0xa40] sm:$0xff]
        %v755 = vld [vmem:[%s327 + $0xa48] sm:$0xff]
        %v756 = vld [vmem:[%s327 + $0xa50] sm:$0xff]
        %v757 = vld [vmem:[%s327 + $0xa58] sm:$0xff]
        %v758 = vld [vmem:[%s327 + $0xa60] sm:$0xff]
        %v759 = vld [vmem:[%s327 + $0xa68] sm:$0xff]
        %v760 = vld [vmem:[%s327 + $0xa70] sm:$0xff]
        %v761 = vld [vmem:[%s327 + $0xa78] sm:$0xff]
        %v762 = vld [vmem:[%s327 + $0xa80] sm:$0xff]
        %v763 = vld [vmem:[%s327 + $0xa88] sm:$0xff]
        %v764 = vld [vmem:[%s327 + $0xa90] sm:$0xff]
        %v765 = vld [vmem:[%s327 + $0xa98] sm:$0xff]
        %v766 = vld [vmem:[%s327 + $0xaa0] sm:$0xff]
        %v767 = vld [vmem:[%s327 + $0xaa8] sm:$0xff]
        %v768 = vld [vmem:[%s327 + $0xab0] sm:$0xff]
        %v769 = vld [vmem:[%s327 + $0xab8] sm:$0xff]
        %v770 = vld [vmem:[%s327 + $0xac0] sm:$0xff]
        %v771 = vld [vmem:[%s327 + $0xac8] sm:$0xff]
        %v772 = vld [vmem:[%s327 + $0xad0] sm:$0xff]
        %v773 = vld [vmem:[%s327 + $0xad8] sm:$0xff]
        %v774 = vld [vmem:[%s327 + $0xae0] sm:$0xff]
        %v775 = vld [vmem:[%s327 + $0xae8] sm:$0xff]
        %v776 = vld [vmem:[%s327 + $0xaf0] sm:$0xff]
        %v777 = vld [vmem:[%s327 + $0xaf8] sm:$0xff]
        %v778 = vld [vmem:[%s327 + $0xb00] sm:$0xff]
        %v779 = vld [vmem:[%s327 + $0xb08] sm:$0xff]
        %v780 = vld [vmem:[%s327 + $0xb10] sm:$0xff]
        %v781 = vld [vmem:[%s327 + $0xb18] sm:$0xff]
        %v782 = vld [vmem:[%s327 + $0xb20] sm:$0xff]
        %v783 = vld [vmem:[%s327 + $0xb28] sm:$0xff]
        %v784 = vld [vmem:[%s327 + $0xb30] sm:$0xff]
        %v785 = vld [vmem:[%s327 + $0xb38] sm:$0xff]
        %v786 = vld [vmem:[%s327 + $0xb40] sm:$0xff]
        %v787 = vld [vmem:[%s327 + $0xb48] sm:$0xff]
        %v788 = vld [vmem:[%s327 + $0xb50] sm:$0xff]
        %v789 = vld [vmem:[%s327 + $0xb58] sm:$0xff]
        %v790 = vld [vmem:[%s327 + $0xb60] sm:$0xff]
        %v791 = vld [vmem:[%s327 + $0xb68] sm:$0xff]
        %v792 = vld [vmem:[%s327 + $0xb70] sm:$0xff]
        %v793 = vld [vmem:[%s327 + $0xb78] sm:$0xff]
        %v794 = vld [vmem:[%s327 + $0xb80] sm:$0xff]
        %v795 = vld [vmem:[%s327 + $0xb88] sm:$0xff]
        %v796 = vld [vmem:[%s327 + $0xb90] sm:$0xff]
        %v797 = vld [vmem:[%s327 + $0xb98] sm:$0xff]
        %v798 = vld [vmem:[%s327 + $0xba0] sm:$0xff]
        %v799 = vld [vmem:[%s327 + $0xba8] sm:$0xff]
        %v800 = vld [vmem:[%s327 + $0xbb0] sm:$0xff]
        %v801 = vld [vmem:[%s327 + $0xbb8] sm:$0xff]
        %v802 = vld [vmem:[%s327 + $0xbc0] sm:$0xff]
        %v803 = vld [vmem:[%s327 + $0xbc8] sm:$0xff]
        %v804 = vld [vmem:[%s327 + $0xbd0] sm:$0xff]
        %v805 = vld [vmem:[%s327 + $0xbd8] sm:$0xff]
        %v806 = vld [vmem:[%s327 + $0xbe0] sm:$0xff]
        %v807 = vld [vmem:[%s327 + $0xbe8] sm:$0xff]
        %v808 = vld [vmem:[%s327 + $0xbf0] sm:$0xff]
        %v809 = vld [vmem:[%s327 + $0xbf8] sm:$0xff]
        %v810 = vld [vmem:[%s327 + $0xc00] sm:$0xff]
        %v811 = vld [vmem:[%s327 + $0xc08] sm:$0xff]
        %v812 = vld [vmem:[%s327 + $0xc10] sm:$0xff]
        %v813 = vld [vmem:[%s327 + $0xc18] sm:$0xff]
        %v814 = vld [vmem:[%s327 + $0xc20] sm:$0xff]
        %v815 = vld [vmem:[%s327 + $0xc28] sm:$0xff]
        %v816 = vld [vmem:[%s327 + $0xc30] sm:$0xff]
        %v817 = vld [vmem:[%s327 + $0xc38] sm:$0xff]
        %v818 = vld [vmem:[%s327 + $0xc40] sm:$0xff]
        %v819 = vld [vmem:[%s327 + $0xc48] sm:$0xff]
        %v820 = vld [vmem:[%s327 + $0xc50] sm:$0xff]
        %v821 = vld [vmem:[%s327 + $0xc58] sm:$0xff]
        %v822 = vld [vmem:[%s327 + $0xc60] sm:$0xff]
        %v823 = vld [vmem:[%s327 + $0xc68] sm:$0xff]
        %v824 = vld [vmem:[%s327 + $0xc70] sm:$0xff]
        %v825 = vld [vmem:[%s327 + $0xc78] sm:$0xff]
        %v826 = vld [vmem:[%s327 + $0xc80] sm:$0xff]
        %v827 = vld [vmem:[%s327 + $0xc88] sm:$0xff]
        %v828 = vld [vmem:[%s327 + $0xc90] sm:$0xff]
        %v829 = vld [vmem:[%s327 + $0xc98] sm:$0xff]
        %v830 = vld [vmem:[%s327 + $0xca0] sm:$0xff]
        %v831 = vld [vmem:[%s327 + $0xca8] sm:$0xff]
        %v832 = vld [vmem:[%s327 + $0xcb0] sm:$0xff]
        %v833 = vld [vmem:[%s327 + $0xcb8] sm:$0xff]
        %v834 = vld [vmem:[%s327 + $0xcc0] sm:$0xff]
        %v835 = vld [vmem:[%s327 + $0xcc8] sm:$0xff]
        %v836 = vld [vmem:[%s327 + $0xcd0] sm:$0xff]
        %v837 = vld [vmem:[%s327 + $0xcd8] sm:$0xff]
        %v838 = vld [vmem:[%s327 + $0xce0] sm:$0xff]
        %v839 = vld [vmem:[%s327 + $0xce8] sm:$0xff]
        %v840 = vld [vmem:[%s327 + $0xcf0] sm:$0xff]
        %v841 = vld [vmem:[%s327 + $0xcf8] sm:$0xff]
        %v842 = vld [vmem:[%s327 + $0xd00] sm:$0xff]
        %v843 = vld [vmem:[%s327 + $0xd08] sm:$0xff]
        %v844 = vld [vmem:[%s327 + $0xd10] sm:$0xff]
        %v845 = vld [vmem:[%s327 + $0xd18] sm:$0xff]
        %v846 = vld [vmem:[%s327 + $0xd20] sm:$0xff]
        %v847 = vld [vmem:[%s327 + $0xd28] sm:$0xff]
        %v848 = vld [vmem:[%s327 + $0xd30] sm:$0xff]
        %v849 = vld [vmem:[%s327 + $0xd38] sm:$0xff]
        %v850 = vld [vmem:[%s327 + $0xd40] sm:$0xff]
        %v851 = vld [vmem:[%s327 + $0xd48] sm:$0xff]
        %v852 = vld [vmem:[%s327 + $0xd50] sm:$0xff]
        %v853 = vld [vmem:[%s327 + $0xd58] sm:$0xff]
        %v854 = vld [vmem:[%s327 + $0xd60] sm:$0xff]
        %v855 = vld [vmem:[%s327 + $0xd68] sm:$0xff]
        %v856 = vld [vmem:[%s327 + $0xd70] sm:$0xff]
        %v857 = vld [vmem:[%s327 + $0xd78] sm:$0xff]
        %v858 = vld [vmem:[%s327 + $0xd80] sm:$0xff]
        %v859 = vld [vmem:[%s327 + $0xd88] sm:$0xff]
        %v860 = vld [vmem:[%s327 + $0xd90] sm:$0xff]
        %v861 = vld [vmem:[%s327 + $0xd98] sm:$0xff]
        %v862 = vld [vmem:[%s327 + $0xda0] sm:$0xff]
        %v863 = vld [vmem:[%s327 + $0xda8] sm:$0xff]
        %v864 = vld [vmem:[%s327 + $0xdb0] sm:$0xff]
        %v865 = vld [vmem:[%s327 + $0xdb8] sm:$0xff]
        %v866 = vld [vmem:[%s327 + $0xdc0] sm:$0xff]
        %v867 = vld [vmem:[%s327 + $0xdc8] sm:$0xff]
        %v868 = vld [vmem:[%s327 + $0xdd0] sm:$0xff]
        %v869 = vld [vmem:[%s327 + $0xdd8] sm:$0xff]
        %v870 = vld [vmem:[%s327 + $0xde0] sm:$0xff]
        %v871 = vld [vmem:[%s327 + $0xde8] sm:$0xff]
        %v872 = vld [vmem:[%s327 + $0xdf0] sm:$0xff]
        %v873 = vld [vmem:[%s327 + $0xdf8] sm:$0xff]
        %v874 = vld [vmem:[%s327 + $0xe00] sm:$0xff]
        %v875 = vld [vmem:[%s327 + $0xe08] sm:$0xff]
        %v876 = vld [vmem:[%s327 + $0xe10] sm:$0xff]
        %v877 = vld [vmem:[%s327 + $0xe18] sm:$0xff]
        %v878 = vld [vmem:[%s327 + $0xe20] sm:$0xff]
        %v879 = vld [vmem:[%s327 + $0xe28] sm:$0xff]
        %v880 = vld [vmem:[%s327 + $0xe30] sm:$0xff]
        %v881 = vld [vmem:[%s327 + $0xe38] sm:$0xff]
        %v882 = vld [vmem:[%s327 + $0xe40] sm:$0xff]
        %v883 = vld [vmem:[%s327 + $0xe48] sm:$0xff]
        %v884 = vld [vmem:[%s327 + $0xe50] sm:$0xff]
        %v885 = vld [vmem:[%s327 + $0xe58] sm:$0xff]
        %v886 = vld [vmem:[%s327 + $0xe60] sm:$0xff]
        %v887 = vld [vmem:[%s327 + $0xe68] sm:$0xff]
        %v888 = vld [vmem:[%s327 + $0xe70] sm:$0xff]
        %v889 = vld [vmem:[%s327 + $0xe78] sm:$0xff]
        %v890 = vld [vmem:[%s327 + $0xe80] sm:$0xff]
        %v891 = vld [vmem:[%s327 + $0xe88] sm:$0xff]
        %v892 = vld [vmem:[%s327 + $0xe90] sm:$0xff]
        %v893 = vld [vmem:[%s327 + $0xe98] sm:$0xff]
        %v894 = vld [vmem:[%s327 + $0xea0] sm:$0xff]
        %v895 = vld [vmem:[%s327 + $0xea8] sm:$0xff]
        %v896 = vld [vmem:[%s327 + $0xeb0] sm:$0xff]
        %v897 = vld [vmem:[%s327 + $0xeb8] sm:$0xff]
        %v898 = vld [vmem:[%s327 + $0xec0] sm:$0xff]
        %v899 = vld [vmem:[%s327 + $0xec8] sm:$0xff]
        %v900 = vld [vmem:[%s327 + $0xed0] sm:$0xff]
        %v901 = vld [vmem:[%s327 + $0xed8] sm:$0xff]
        %v902 = vld [vmem:[%s327 + $0xee0] sm:$0xff]
        %v903 = vld [vmem:[%s327 + $0xee8] sm:$0xff]
        %v904 = vld [vmem:[%s327 + $0xef0] sm:$0xff]
        %v905 = vld [vmem:[%s327 + $0xef8] sm:$0xff]
        %v906 = vld [vmem:[%s327 + $0xf00] sm:$0xff]
        %v907 = vld [vmem:[%s327 + $0xf08] sm:$0xff]
        %v908 = vld [vmem:[%s327 + $0xf10] sm:$0xff]
        %v909 = vld [vmem:[%s327 + $0xf18] sm:$0xff]
        %v910 = vld [vmem:[%s327 + $0xf20] sm:$0xff]
        %v911 = vld [vmem:[%s327 + $0xf28] sm:$0xff]
        %v912 = vld [vmem:[%s327 + $0xf30] sm:$0xff]
        %v913 = vld [vmem:[%s327 + $0xf38] sm:$0xff]
        %v914 = vld [vmem:[%s327 + $0xf40] sm:$0xff]
        %v915 = vld [vmem:[%s327 + $0xf48] sm:$0xff]
        %v916 = vld [vmem:[%s327 + $0xf50] sm:$0xff]
        %v917 = vld [vmem:[%s327 + $0xf58] sm:$0xff]
        %v918 = vld [vmem:[%s327 + $0xf60] sm:$0xff]
        %v919 = vld [vmem:[%s327 + $0xf68] sm:$0xff]
        %v920 = vld [vmem:[%s327 + $0xf70] sm:$0xff]
        %v921 = vld [vmem:[%s327 + $0xf78] sm:$0xff]
        %v922 = vld [vmem:[%s327 + $0xf80] sm:$0xff]
        %v923 = vld [vmem:[%s327 + $0xf88] sm:$0xff]
        %v924 = vld [vmem:[%s327 + $0xf90] sm:$0xff]
        %v925 = vld [vmem:[%s327 + $0xf98] sm:$0xff]
        %v926 = vld [vmem:[%s327 + $0xfa0] sm:$0xff]
        %v927 = vld [vmem:[%s327 + $0xfa8] sm:$0xff]
        %v928 = vld [vmem:[%s327 + $0xfb0] sm:$0xff]
        %v929 = vld [vmem:[%s327 + $0xfb8] sm:$0xff]
        %v930 = vld [vmem:[%s327 + $0xfc0] sm:$0xff]
        %v931 = vld [vmem:[%s327 + $0xfc8] sm:$0xff]
        %v932 = vld [vmem:[%s327 + $0xfd0] sm:$0xff]
        %v933 = vld [vmem:[%s327 + $0xfd8] sm:$0xff]
        %v934 = vld [vmem:[%s327 + $0xfe0] sm:$0xff]
        %v935 = vld [vmem:[%s327 + $0xfe8] sm:$0xff]
        %v936 = vld [vmem:[%s327 + $0xff0] sm:$0xff]
        %v937 = vld [vmem:[%s327 + $0xff8] sm:$0xff]
        %v938 = vld [vmem:[%s327 + $0x1000] sm:$0xff]
        %v939 = vld [vmem:[%s327 + $0x1008] sm:$0xff]
        %v940 = vld [vmem:[%s327 + $0x1010] sm:$0xff]
        %v941 = vld [vmem:[%s327 + $0x1018] sm:$0xff]
        %v942 = vld [vmem:[%s327 + $0x1020] sm:$0xff]
        %v943 = vld [vmem:[%s327 + $0x1028] sm:$0xff]
        %v944 = vld [vmem:[%s327 + $0x1030] sm:$0xff]
        %v945 = vld [vmem:[%s327 + $0x1038] sm:$0xff]
        %v946 = vld [vmem:[%s327 + $0x1040] sm:$0xff]
        %v947 = vld [vmem:[%s327 + $0x1048] sm:$0xff]
        %v948 = vld [vmem:[%s327 + $0x1050] sm:$0xff]
        %v949 = vld [vmem:[%s327 + $0x1058] sm:$0xff]
        %v950 = vld [vmem:[%s327 + $0x1060] sm:$0xff]
        %v951 = vld [vmem:[%s327 + $0x1068] sm:$0xff]
        %v952 = vld [vmem:[%s327 + $0x1070] sm:$0xff]
        %v953 = vld [vmem:[%s327 + $0x1078] sm:$0xff]
        %v954 = vld [vmem:[%s327 + $0x1080] sm:$0xff]
        %v955 = vld [vmem:[%s327 + $0x1088] sm:$0xff]
        %v956 = vld [vmem:[%s327 + $0x1090] sm:$0xff]
        %v957 = vld [vmem:[%s327 + $0x1098] sm:$0xff]
        %v958 = vld [vmem:[%s327 + $0x10a0] sm:$0xff]
        %v959 = vld [vmem:[%s327 + $0x10a8] sm:$0xff]
        %v960 = vld [vmem:[%s327 + $0x10b0] sm:$0xff]
        %v961 = vld [vmem:[%s327 + $0x10b8] sm:$0xff]
        %v962 = vld [vmem:[%s327 + $0x10c0] sm:$0xff]
        %v963 = vld [vmem:[%s327 + $0x10c8] sm:$0xff]
        %v964 = vld [vmem:[%s327 + $0x10d0] sm:$0xff]
        %v965 = vld [vmem:[%s327 + $0x10d8] sm:$0xff]
        %v966 = vld [vmem:[%s327 + $0x10e0] sm:$0xff]
        %v967 = vld [vmem:[%s327 + $0x10e8] sm:$0xff]
        %v968 = vld [vmem:[%s327 + $0x10f0] sm:$0xff]
        %v969 = vld [vmem:[%s327 + $0x10f8] sm:$0xff]
        %v970 = vld [vmem:[%s327 + $0x1100] sm:$0xff]
        %v971 = vld [vmem:[%s327 + $0x1108] sm:$0xff]
        %v972 = vld [vmem:[%s327 + $0x1110] sm:$0xff]
        %v973 = vld [vmem:[%s327 + $0x1118] sm:$0xff]
        %v974 = vld [vmem:[%s327 + $0x1120] sm:$0xff]
        %v975 = vld [vmem:[%s327 + $0x1128] sm:$0xff]
        %v976 = vld [vmem:[%s327 + $0x1130] sm:$0xff]
        %v977 = vld [vmem:[%s327 + $0x1138] sm:$0xff]
        %v978 = vld [vmem:[%s327 + $0x1140] sm:$0xff]
        %v979 = vld [vmem:[%s327 + $0x1148] sm:$0xff]
        %v980 = vld [vmem:[%s327 + $0x1150] sm:$0xff]
        %v981 = vld [vmem:[%s327 + $0x1158] sm:$0xff]
        %v982 = vld [vmem:[%s327 + $0x1160] sm:$0xff]
        %v983 = vld [vmem:[%s327 + $0x1168] sm:$0xff]
        %v984 = vld [vmem:[%s327 + $0x1170] sm:$0xff]
        %v985 = vld [vmem:[%s327 + $0x1178] sm:$0xff]
        %v986 = vld [vmem:[%s327 + $0x1180] sm:$0xff]
        %v987 = vld [vmem:[%s327 + $0x1188] sm:$0xff]
        %v988 = vld [vmem:[%s327 + $0x1190] sm:$0xff]
        %v989 = vld [vmem:[%s327 + $0x1198] sm:$0xff]
        %v990 = vld [vmem:[%s327 + $0x11a0] sm:$0xff]
        %v991 = vld [vmem:[%s327 + $0x11a8] sm:$0xff]
        %v992 = vld [vmem:[%s327 + $0x11b0] sm:$0xff]
        %v993 = vld [vmem:[%s327 + $0x11b8] sm:$0xff]
        %v994 = vld [vmem:[%s327 + $0x11c0] sm:$0xff]
        %v995 = vld [vmem:[%s327 + $0x11c8] sm:$0xff]
        %v996 = vld [vmem:[%s327 + $0x11d0] sm:$0xff]
        %v997 = vld [vmem:[%s327 + $0x11d8] sm:$0xff]
        %v998 = vld [vmem:[%s327 + $0x11e0] sm:$0xff]
        %v999 = vld [vmem:[%s327 + $0x11e8] sm:$0xff]
        %v1000 = vld [vmem:[%s327 + $0x11f0] sm:$0xff]
        %v1001 = vld [vmem:[%s327 + $0x11f8] sm:$0xff]
        %v1002 = vld [vmem:[%s327 + $0x1200] sm:$0xff]
        %v1003 = vld [vmem:[%s327 + $0x1208] sm:$0xff]
        %v1004 = vld [vmem:[%s327 + $0x1210] sm:$0xff]
        %v1005 = vld [vmem:[%s327 + $0x1218] sm:$0xff]
        %v1006 = vld [vmem:[%s327 + $0x1220] sm:$0xff]
        %v1007 = vld [vmem:[%s327 + $0x1228] sm:$0xff]
        %v1008 = vld [vmem:[%s327 + $0x1230] sm:$0xff]
        %v1009 = vld [vmem:[%s327 + $0x1238] sm:$0xff]
        %v1010 = vld [vmem:[%s327 + $0x1240] sm:$0xff]
        %v1011 = vld [vmem:[%s327 + $0x1248] sm:$0xff]
        %v1012 = vld [vmem:[%s327 + $0x1250] sm:$0xff]
        %v1013 = vld [vmem:[%s327 + $0x1258] sm:$0xff]
        %v1014 = vld [vmem:[%s327 + $0x1260] sm:$0xff]
        %v1015 = vld [vmem:[%s327 + $0x1268] sm:$0xff]
        %v1016 = vld [vmem:[%s327 + $0x1270] sm:$0xff]
        %v1017 = vld [vmem:[%s327 + $0x1278] sm:$0xff]
        %v1018 = vld [vmem:[%s327 + $0x1280] sm:$0xff]
        %v1019 = vld [vmem:[%s327 + $0x1288] sm:$0xff]
        %v1020 = vld [vmem:[%s327 + $0x1290] sm:$0xff]
        %v1021 = vld [vmem:[%s327 + $0x1298] sm:$0xff]
        %v1022 = vld [vmem:[%s327 + $0x12a0] sm:$0xff]
        %v1023 = vld [vmem:[%s327 + $0x12a8] sm:$0xff]
        %v1024 = vld [vmem:[%s327 + $0x12b0] sm:$0xff]
        %v1025 = vld [vmem:[%s327 + $0x12b8] sm:$0xff]
        %v1026 = vld [vmem:[%s327 + $0x12c0] sm:$0xff]
        %v1027 = vld [vmem:[%s327 + $0x12c8] sm:$0xff]
        %v1028 = vld [vmem:[%s327 + $0x12d0] sm:$0xff]
        %v1029 = vld [vmem:[%s327 + $0x12d8] sm:$0xff]
        %v1030 = vld [vmem:[%s327 + $0x12e0] sm:$0xff]
        %v1031 = vld [vmem:[%s327 + $0x12e8] sm:$0xff]
        %v1032 = vld [vmem:[%s327 + $0x12f0] sm:$0xff]
        %v1033 = vld [vmem:[%s327 + $0x12f8] sm:$0xff]
        %v1034 = vld [vmem:[%s327 + $0x1300] sm:$0xff]
        %v1035 = vld [vmem:[%s327 + $0x1308] sm:$0xff]
        %v1036 = vld [vmem:[%s327 + $0x1310] sm:$0xff]
        %v1037 = vld [vmem:[%s327 + $0x1318] sm:$0xff]
        %v1038 = vld [vmem:[%s327 + $0x1320] sm:$0xff]
        %v1039 = vld [vmem:[%s327 + $0x1328] sm:$0xff]
        %v1040 = vld [vmem:[%s327 + $0x1330] sm:$0xff]
        %v1041 = vld [vmem:[%s327 + $0x1338] sm:$0xff]
        %v1042 = vld [vmem:[%s327 + $0x1340] sm:$0xff]
        %v1043 = vld [vmem:[%s327 + $0x1348] sm:$0xff]
        %v1044 = vld [vmem:[%s327 + $0x1350] sm:$0xff]
        %v1045 = vld [vmem:[%s327 + $0x1358] sm:$0xff]
        %v1046 = vld [vmem:[%s327 + $0x1360] sm:$0xff]
        %v1047 = vld [vmem:[%s327 + $0x1368] sm:$0xff]
        %v1048 = vld [vmem:[%s327 + $0x1370] sm:$0xff]
        %v1049 = vld [vmem:[%s327 + $0x1378] sm:$0xff]
        %v1050 = vld [vmem:[%s327 + $0x1380] sm:$0xff]
        %v1051 = vld [vmem:[%s327 + $0x1388] sm:$0xff]
        %v1052 = vld [vmem:[%s327 + $0x1390] sm:$0xff]
        %v1053 = vld [vmem:[%s327 + $0x1398] sm:$0xff]
        %v1054 = vld [vmem:[%s327 + $0x13a0] sm:$0xff]
        %v1055 = vld [vmem:[%s327 + $0x13a8] sm:$0xff]
        %v1056 = vld [vmem:[%s327 + $0x13b0] sm:$0xff]
        %v1057 = vld [vmem:[%s327 + $0x13b8] sm:$0xff]
        %v1058 = vld [vmem:[%s327 + $0x13c0] sm:$0xff]
        %v1059 = vld [vmem:[%s327 + $0x13c8] sm:$0xff]
        %v1060 = vld [vmem:[%s327 + $0x13d0] sm:$0xff]
        %v1061 = vld [vmem:[%s327 + $0x13d8] sm:$0xff]
        %v1062 = vld [vmem:[%s327 + $0x13e0] sm:$0xff]
        %v1063 = vld [vmem:[%s327 + $0x13e8] sm:$0xff]
        %v1064 = vld [vmem:[%s327 + $0x13f0] sm:$0xff]
        %v1065 = vld [vmem:[%s327 + $0x13f8] sm:$0xff]
        %v1066 = vld [vmem:[%s327 + $0x1400] sm:$0xff]
        %v1067 = vld [vmem:[%s327 + $0x1408] sm:$0xff]
        %v1068 = vld [vmem:[%s327 + $0x1410] sm:$0xff]
        %v1069 = vld [vmem:[%s327 + $0x1418] sm:$0xff]
        %v1070 = vld [vmem:[%s327 + $0x1420] sm:$0xff]
        %v1071 = vld [vmem:[%s327 + $0x1428] sm:$0xff]
        %v1072 = vld [vmem:[%s327 + $0x1430] sm:$0xff]
        %v1073 = vld [vmem:[%s327 + $0x1438] sm:$0xff]
        %v1074 = vld [vmem:[%s327 + $0x1440] sm:$0xff]
        %v1075 = vld [vmem:[%s327 + $0x1448] sm:$0xff]
        %v1076 = vld [vmem:[%s327 + $0x1450] sm:$0xff]
        %v1077 = vld [vmem:[%s327 + $0x1458] sm:$0xff]
        %v1078 = vld [vmem:[%s327 + $0x1460] sm:$0xff]
        %v1079 = vld [vmem:[%s327 + $0x1468] sm:$0xff]
        %v1080 = vld [vmem:[%s327 + $0x1470] sm:$0xff]
        %v1081 = vld [vmem:[%s327 + $0x1478] sm:$0xff]
        %v1082 = vld [vmem:[%s327 + $0x1480] sm:$0xff]
        %v1083 = vld [vmem:[%s327 + $0x1488] sm:$0xff]
        %v1084 = vld [vmem:[%s327 + $0x1490] sm:$0xff]
        %v1085 = vld [vmem:[%s327 + $0x1498] sm:$0xff]
        %v1086 = vld [vmem:[%s327 + $0x14a0] sm:$0xff]
        %v1087 = vld [vmem:[%s327 + $0x14a8] sm:$0xff]
        %v1088 = vld [vmem:[%s327 + $0x14b0] sm:$0xff]
        %v1089 = vld [vmem:[%s327 + $0x14b8] sm:$0xff]
        %v1090 = vld [vmem:[%s327 + $0x14c0] sm:$0xff]
        %v1091 = vld [vmem:[%s327 + $0x14c8] sm:$0xff]
        %v1092 = vld [vmem:[%s327 + $0x14d0] sm:$0xff]
        %v1093 = vld [vmem:[%s327 + $0x14d8] sm:$0xff]
        %v1094 = vld [vmem:[%s327 + $0x14e0] sm:$0xff]
        %v1095 = vld [vmem:[%s327 + $0x14e8] sm:$0xff]
        %v1096 = vld [vmem:[%s327 + $0x14f0] sm:$0xff]
        %v1097 = vld [vmem:[%s327 + $0x14f8] sm:$0xff]
        %v1098 = vld [vmem:[%s327 + $0x1500] sm:$0xff]
        %v1099 = vld [vmem:[%s327 + $0x1508] sm:$0xff]
        %v1100 = vld [vmem:[%s327 + $0x1510] sm:$0xff]
        %v1101 = vld [vmem:[%s327 + $0x1518] sm:$0xff]
        %v1102 = vld [vmem:[%s327 + $0x1520] sm:$0xff]
        %v1103 = vld [vmem:[%s327 + $0x1528] sm:$0xff]
        %v1104 = vld [vmem:[%s327 + $0x1530] sm:$0xff]
        %v1105 = vld [vmem:[%s327 + $0x1538] sm:$0xff]
        %v1106 = vld [vmem:[%s327 + $0x1540] sm:$0xff]
        %v1107 = vld [vmem:[%s327 + $0x1548] sm:$0xff]
        %v1108 = vld [vmem:[%s327 + $0x1550] sm:$0xff]
        %v1109 = vld [vmem:[%s327 + $0x1558] sm:$0xff]
        %v1110 = vld [vmem:[%s327 + $0x1560] sm:$0xff]
        %v1111 = vld [vmem:[%s327 + $0x1568] sm:$0xff]
        %v1112 = vld [vmem:[%s327 + $0x1570] sm:$0xff]
        %v1113 = vld [vmem:[%s327 + $0x1578] sm:$0xff]
        %v1114 = vld [vmem:[%s327 + $0x1580] sm:$0xff]
        %v1115 = vld [vmem:[%s327 + $0x1588] sm:$0xff]
        %v1116 = vld [vmem:[%s327 + $0x1590] sm:$0xff]
        %v1117 = vld [vmem:[%s327 + $0x1598] sm:$0xff]
        %v1118 = vld [vmem:[%s327 + $0x15a0] sm:$0xff]
        %v1119 = vld [vmem:[%s327 + $0x15a8] sm:$0xff]
        %v1120 = vld [vmem:[%s327 + $0x15b0] sm:$0xff]
        %v1121 = vld [vmem:[%s327 + $0x15b8] sm:$0xff]
        %v1122 = vld [vmem:[%s327 + $0x15c0] sm:$0xff]
        %v1123 = vld [vmem:[%s327 + $0x15c8] sm:$0xff]
        %v1124 = vld [vmem:[%s327 + $0x15d0] sm:$0xff]
        %v1125 = vld [vmem:[%s327 + $0x15d8] sm:$0xff]
        %v1126 = vld [vmem:[%s327 + $0x15e0] sm:$0xff]
        %v1127 = vld [vmem:[%s327 + $0x15e8] sm:$0xff]
        %v1128 = vld [vmem:[%s327 + $0x15f0] sm:$0xff]
        %v1129 = vld [vmem:[%s327 + $0x15f8] sm:$0xff]
        %v1130 = vld [vmem:[%s327 + $0x1600] sm:$0xff]
        %v1131 = vld [vmem:[%s327 + $0x1608] sm:$0xff]
        %v1132 = vld [vmem:[%s327 + $0x1610] sm:$0xff]
        %v1133 = vld [vmem:[%s327 + $0x1618] sm:$0xff]
        %v1134 = vld [vmem:[%s327 + $0x1620] sm:$0xff]
        %v1135 = vld [vmem:[%s327 + $0x1628] sm:$0xff]
        %v1136 = vld [vmem:[%s327 + $0x1630] sm:$0xff]
        %v1137 = vld [vmem:[%s327 + $0x1638] sm:$0xff]
        %v1138 = vld [vmem:[%s327 + $0x1640] sm:$0xff]
        %v1139 = vld [vmem:[%s327 + $0x1648] sm:$0xff]
        %v1140 = vld [vmem:[%s327 + $0x1650] sm:$0xff]
        %v1141 = vld [vmem:[%s327 + $0x1658] sm:$0xff]
        %v1142 = vld [vmem:[%s327 + $0x1660] sm:$0xff]
        %v1143 = vld [vmem:[%s327 + $0x1668] sm:$0xff]
        %v1144 = vld [vmem:[%s327 + $0x1670] sm:$0xff]
        %v1145 = vld [vmem:[%s327 + $0x1678] sm:$0xff]
        %v1146 = vld [vmem:[%s327 + $0x1680] sm:$0xff]
        %v1147 = vld [vmem:[%s327 + $0x1688] sm:$0xff]
        %v1148 = vld [vmem:[%s327 + $0x1690] sm:$0xff]
        %v1149 = vld [vmem:[%s327 + $0x1698] sm:$0xff]
        %v1150 = vld [vmem:[%s327 + $0x16a0] sm:$0xff]
        %v1151 = vld [vmem:[%s327 + $0x16a8] sm:$0xff]
        %v1152 = vld [vmem:[%s327 + $0x16b0] sm:$0xff]
        %v1153 = vld [vmem:[%s327 + $0x16b8] sm:$0xff]
        %v1154 = vld [vmem:[%s327 + $0x16c0] sm:$0xff]
        %v1155 = vld [vmem:[%s327 + $0x16c8] sm:$0xff]
        %v1156 = vld [vmem:[%s327 + $0x16d0] sm:$0xff]
        %v1157 = vld [vmem:[%s327 + $0x16d8] sm:$0xff]
        %v1158 = vld [vmem:[%s327 + $0x16e0] sm:$0xff]
        %v1159 = vld [vmem:[%s327 + $0x16e8] sm:$0xff]
        %v1160 = vld [vmem:[%s327 + $0x16f0] sm:$0xff]
        %v1161 = vld [vmem:[%s327 + $0x16f8] sm:$0xff]
        %v1162 = vld [vmem:[%s327 + $0x1700] sm:$0xff]
        %v1163 = vld [vmem:[%s327 + $0x1708] sm:$0xff]
        %v1164 = vld [vmem:[%s327 + $0x1710] sm:$0xff]
        %v1165 = vld [vmem:[%s327 + $0x1718] sm:$0xff]
        %v1166 = vld [vmem:[%s327 + $0x1720] sm:$0xff]
        %v1167 = vld [vmem:[%s327 + $0x1728] sm:$0xff]
        %v1168 = vld [vmem:[%s327 + $0x1730] sm:$0xff]
        %v1169 = vld [vmem:[%s327 + $0x1738] sm:$0xff]
        %v1170 = vld [vmem:[%s327 + $0x1740] sm:$0xff]
        %v1171 = vld [vmem:[%s327 + $0x1748] sm:$0xff]
        %v1172 = vld [vmem:[%s327 + $0x1750] sm:$0xff]
        %v1173 = vld [vmem:[%s327 + $0x1758] sm:$0xff]
        %v1174 = vld [vmem:[%s327 + $0x1760] sm:$0xff]
        %v1175 = vld [vmem:[%s327 + $0x1768] sm:$0xff]
        %v1176 = vld [vmem:[%s327 + $0x1770] sm:$0xff]
        %v1177 = vld [vmem:[%s327 + $0x1778] sm:$0xff]
        %v1178 = vld [vmem:[%s327 + $0x1780] sm:$0xff]
        %v1179 = vld [vmem:[%s327 + $0x1788] sm:$0xff]
        %v1180 = vld [vmem:[%s327 + $0x1790] sm:$0xff]
        %v1181 = vld [vmem:[%s327 + $0x1798] sm:$0xff]
        %v1182 = vld [vmem:[%s327 + $0x17a0] sm:$0xff]
        %v1183 = vld [vmem:[%s327 + $0x17a8] sm:$0xff]
        %v1184 = vld [vmem:[%s327 + $0x17b0] sm:$0xff]
        %v1185 = vld [vmem:[%s327 + $0x17b8] sm:$0xff]
        %v1186 = vld [vmem:[%s327 + $0x17c0] sm:$0xff]
        %v1187 = vld [vmem:[%s327 + $0x17c8] sm:$0xff]
        %v1188 = vld [vmem:[%s327 + $0x17d0] sm:$0xff]
        %v1189 = vld [vmem:[%s327 + $0x17d8] sm:$0xff]
        %v1190 = vld [vmem:[%s327 + $0x17e0] sm:$0xff]
        %v1191 = vld [vmem:[%s327 + $0x17e8] sm:$0xff]
        %v1192 = vld [vmem:[%s327 + $0x17f0] sm:$0xff]
        %v1193 = vld [vmem:[%s327 + $0x17f8] sm:$0xff]
        %v1194 = vld [vmem:[%s327 + $0x1800] sm:$0xff]
        %v1195 = vld [vmem:[%s327 + $0x1808] sm:$0xff]
        %v1196 = vld [vmem:[%s327 + $0x1810] sm:$0xff]
        %v1197 = vld [vmem:[%s327 + $0x1818] sm:$0xff]
        %v1198 = vld [vmem:[%s327 + $0x1820] sm:$0xff]
        %v1199 = vld [vmem:[%s327 + $0x1828] sm:$0xff]
        %v1200 = vld [vmem:[%s327 + $0x1830] sm:$0xff]
        %v1201 = vld [vmem:[%s327 + $0x1838] sm:$0xff]
        %v1202 = vld [vmem:[%s327 + $0x1840] sm:$0xff]
        %v1203 = vld [vmem:[%s327 + $0x1848] sm:$0xff]
        %v1204 = vld [vmem:[%s327 + $0x1850] sm:$0xff]
        %v1205 = vld [vmem:[%s327 + $0x1858] sm:$0xff]
        %v1206 = vld [vmem:[%s327 + $0x1860] sm:$0xff]
        %v1207 = vld [vmem:[%s327 + $0x1868] sm:$0xff]
        %v1208 = vld [vmem:[%s327 + $0x1870] sm:$0xff]
        %v1209 = vld [vmem:[%s327 + $0x1878] sm:$0xff]
        %v1210 = vld [vmem:[%s327 + $0x1880] sm:$0xff]
        %v1211 = vld [vmem:[%s327 + $0x1888] sm:$0xff]
        %v1212 = vld [vmem:[%s327 + $0x1890] sm:$0xff]
        %v1213 = vld [vmem:[%s327 + $0x1898] sm:$0xff]
        %v1214 = vld [vmem:[%s327 + $0x18a0] sm:$0xff]
        %v1215 = vld [vmem:[%s327 + $0x18a8] sm:$0xff]
        %v1216 = vld [vmem:[%s327 + $0x18b0] sm:$0xff]
        %v1217 = vld [vmem:[%s327 + $0x18b8] sm:$0xff]
        %v1218 = vld [vmem:[%s327 + $0x18c0] sm:$0xff]
        %v1219 = vld [vmem:[%s327 + $0x18c8] sm:$0xff]
        %v1220 = vld [vmem:[%s327 + $0x18d0] sm:$0xff]
        %v1221 = vld [vmem:[%s327 + $0x18d8] sm:$0xff]
        %v1222 = vld [vmem:[%s327 + $0x18e0] sm:$0xff]
        %v1223 = vld [vmem:[%s327 + $0x18e8] sm:$0xff]
        %v1224 = vld [vmem:[%s327 + $0x18f0] sm:$0xff]
        %v1225 = vld [vmem:[%s327 + $0x18f8] sm:$0xff]
        %v1226 = vld [vmem:[%s327 + $0x1900] sm:$0xff]
        %v1227 = vld [vmem:[%s327 + $0x1908] sm:$0xff]
        %v1228 = vld [vmem:[%s327 + $0x1910] sm:$0xff]
        %v1229 = vld [vmem:[%s327 + $0x1918] sm:$0xff]
        %v1230 = vld [vmem:[%s327 + $0x1920] sm:$0xff]
        %v1231 = vld [vmem:[%s327 + $0x1928] sm:$0xff]
        %v1232 = vld [vmem:[%s327 + $0x1930] sm:$0xff]
        %v1233 = vld [vmem:[%s327 + $0x1938] sm:$0xff]
        %v1234 = vld [vmem:[%s327 + $0x1940] sm:$0xff]
        %v1235 = vld [vmem:[%s327 + $0x1948] sm:$0xff]
        %v1236 = vld [vmem:[%s327 + $0x1950] sm:$0xff]
        %v1237 = vld [vmem:[%s327 + $0x1958] sm:$0xff]
        %v1238 = vld [vmem:[%s327 + $0x1960] sm:$0xff]
        %v1239 = vld [vmem:[%s327 + $0x1968] sm:$0xff]
        %v1240 = vld [vmem:[%s327 + $0x1970] sm:$0xff]
        %v1241 = vld [vmem:[%s327 + $0x1978] sm:$0xff]
        %v1242 = vld [vmem:[%s327 + $0x1980] sm:$0xff]
        %v1243 = vld [vmem:[%s327 + $0x1988] sm:$0xff]
        %v1244 = vld [vmem:[%s327 + $0x1990] sm:$0xff]
        %v1245 = vld [vmem:[%s327 + $0x1998] sm:$0xff]
        %v1246 = vld [vmem:[%s327 + $0x19a0] sm:$0xff]
        %v1247 = vld [vmem:[%s327 + $0x19a8] sm:$0xff]
        %v1248 = vld [vmem:[%s327 + $0x19b0] sm:$0xff]
        %v1249 = vld [vmem:[%s327 + $0x19b8] sm:$0xff]
        %v1250 = vld [vmem:[%s327 + $0x19c0] sm:$0xff]
        %v1251 = vld [vmem:[%s327 + $0x19c8] sm:$0xff]
        %v1252 = vld [vmem:[%s327 + $0x19d0] sm:$0xff]
        %v1253 = vld [vmem:[%s327 + $0x19d8] sm:$0xff]
        %v1254 = vld [vmem:[%s327 + $0x19e0] sm:$0xff]
        %v1255 = vld [vmem:[%s327 + $0x19e8] sm:$0xff]
        %v1256 = vld [vmem:[%s327 + $0x19f0] sm:$0xff]
        %v1257 = vld [vmem:[%s327 + $0x19f8] sm:$0xff]
        %v1258 = vld [vmem:[%s327 + $0x1a00] sm:$0xff]
        %v1259 = vld [vmem:[%s327 + $0x1a08] sm:$0xff]
        %v1260 = vld [vmem:[%s327 + $0x1a10] sm:$0xff]
        %v1261 = vld [vmem:[%s327 + $0x1a18] sm:$0xff]
        %v1262 = vld [vmem:[%s327 + $0x1a20] sm:$0xff]
        %v1263 = vld [vmem:[%s327 + $0x1a28] sm:$0xff]
        %v1264 = vld [vmem:[%s327 + $0x1a30] sm:$0xff]
        %v1265 = vld [vmem:[%s327 + $0x1a38] sm:$0xff]
        %v1266 = vld [vmem:[%s327 + $0x1a40] sm:$0xff]
        %v1267 = vld [vmem:[%s327 + $0x1a48] sm:$0xff]
        %v1268 = vld [vmem:[%s327 + $0x1a50] sm:$0xff]
        %v1269 = vld [vmem:[%s327 + $0x1a58] sm:$0xff]
        %v1270 = vld [vmem:[%s327 + $0x1a60] sm:$0xff]
        %v1271 = vld [vmem:[%s327 + $0x1a68] sm:$0xff]
        %v1272 = vld [vmem:[%s327 + $0x1a70] sm:$0xff]
        %v1273 = vld [vmem:[%s327 + $0x1a78] sm:$0xff]
        %v1274 = vld [vmem:[%s327 + $0x1a80] sm:$0xff]
        %v1275 = vld [vmem:[%s327 + $0x1a88] sm:$0xff]
        %v1276 = vld [vmem:[%s327 + $0x1a90] sm:$0xff]
        %v1277 = vld [vmem:[%s327 + $0x1a98] sm:$0xff]
        %v1278 = vld [vmem:[%s327 + $0x1aa0] sm:$0xff]
        %v1279 = vld [vmem:[%s327 + $0x1aa8] sm:$0xff]
        %v1280 = vld [vmem:[%s327 + $0x1ab0] sm:$0xff]
        %v1281 = vld [vmem:[%s327 + $0x1ab8] sm:$0xff]
        %v1282 = vld [vmem:[%s327 + $0x1ac0] sm:$0xff]
        %v1283 = vld [vmem:[%s327 + $0x1ac8] sm:$0xff]
        %v1284 = vld [vmem:[%s327 + $0x1ad0] sm:$0xff]
        %v1285 = vld [vmem:[%s327 + $0x1ad8] sm:$0xff]
        %v1286 = vld [vmem:[%s327 + $0x1ae0] sm:$0xff]
        %v1287 = vld [vmem:[%s327 + $0x1ae8] sm:$0xff]
        %v1288 = vld [vmem:[%s327 + $0x1af0] sm:$0xff]
        %v1289 = vld [vmem:[%s327 + $0x1af8] sm:$0xff]
        %v1290 = vld [vmem:[%s327 + $0x1b00] sm:$0xff]
        %v1291 = vld [vmem:[%s327 + $0x1b08] sm:$0xff]
        %v1292 = vld [vmem:[%s327 + $0x1b10] sm:$0xff]
        %v1293 = vld [vmem:[%s327 + $0x1b18] sm:$0xff]
        %v1294 = vld [vmem:[%s327 + $0x1b20] sm:$0xff]
        %v1295 = vld [vmem:[%s327 + $0x1b28] sm:$0xff]
        %v1296 = vld [vmem:[%s327 + $0x1b30] sm:$0xff]
        %v1297 = vld [vmem:[%s327 + $0x1b38] sm:$0xff]
        %v1298 = vld [vmem:[%s327 + $0x1b40] sm:$0xff]
        %v1299 = vld [vmem:[%s327 + $0x1b48] sm:$0xff]
        %v1300 = vld [vmem:[%s327 + $0x1b50] sm:$0xff]
        %v1301 = vld [vmem:[%s327 + $0x1b58] sm:$0xff]
        %v1302 = vld [vmem:[%s327 + $0x1b60] sm:$0xff]
        %v1303 = vld [vmem:[%s327 + $0x1b68] sm:$0xff]
        %v1304 = vld [vmem:[%s327 + $0x1b70] sm:$0xff]
        %v1305 = vld [vmem:[%s327 + $0x1b78] sm:$0xff]
        %v1306 = vld [vmem:[%s327 + $0x1b80] sm:$0xff]
        %v1307 = vld [vmem:[%s327 + $0x1b88] sm:$0xff]
        %v1308 = vld [vmem:[%s327 + $0x1b90] sm:$0xff]
        %v1309 = vld [vmem:[%s327 + $0x1b98] sm:$0xff]
        %v1310 = vld [vmem:[%s327 + $0x1ba0] sm:$0xff]
        %v1311 = vld [vmem:[%s327 + $0x1ba8] sm:$0xff]
        %v1312 = vld [vmem:[%s327 + $0x1bb0] sm:$0xff]
        %v1313 = vld [vmem:[%s327 + $0x1bb8] sm:$0xff]
        %v1314 = vld [vmem:[%s327 + $0x1bc0] sm:$0xff]
        %v1315 = vld [vmem:[%s327 + $0x1bc8] sm:$0xff]
        %v1316 = vld [vmem:[%s327 + $0x1bd0] sm:$0xff]
        %v1317 = vld [vmem:[%s327 + $0x1bd8] sm:$0xff]
        %v1318 = vld [vmem:[%s327 + $0x1be0] sm:$0xff]
        %v1319 = vld [vmem:[%s327 + $0x1be8] sm:$0xff]
        %v1320 = vld [vmem:[%s327 + $0x1bf0] sm:$0xff]
        %v1321 = vld [vmem:[%s327 + $0x1bf8] sm:$0xff]
        %v1322 = vld [vmem:[%s327 + $0x1c00] sm:$0xff]
        %v1323 = vld [vmem:[%s327 + $0x1c08] sm:$0xff]
        %v1324 = vld [vmem:[%s327 + $0x1c10] sm:$0xff]
        %v1325 = vld [vmem:[%s327 + $0x1c18] sm:$0xff]
        %v1326 = vld [vmem:[%s327 + $0x1c20] sm:$0xff]
        %v1327 = vld [vmem:[%s327 + $0x1c28] sm:$0xff]
        %v1328 = vld [vmem:[%s327 + $0x1c30] sm:$0xff]
        %v1329 = vld [vmem:[%s327 + $0x1c38] sm:$0xff]
        %v1330 = vld [vmem:[%s327 + $0x1c40] sm:$0xff]
        %v1331 = vld [vmem:[%s327 + $0x1c48] sm:$0xff]
        %v1332 = vld [vmem:[%s327 + $0x1c50] sm:$0xff]
        %v1333 = vld [vmem:[%s327 + $0x1c58] sm:$0xff]
        %v1334 = vld [vmem:[%s327 + $0x1c60] sm:$0xff]
        %v1335 = vld [vmem:[%s327 + $0x1c68] sm:$0xff]
        %v1336 = vld [vmem:[%s327 + $0x1c70] sm:$0xff]
        %v1337 = vld [vmem:[%s327 + $0x1c78] sm:$0xff]
        %v1338 = vld [vmem:[%s327 + $0x1c80] sm:$0xff]
        %v1339 = vld [vmem:[%s327 + $0x1c88] sm:$0xff]
        %v1340 = vld [vmem:[%s327 + $0x1c90] sm:$0xff]
        %v1341 = vld [vmem:[%s327 + $0x1c98] sm:$0xff]
        %v1342 = vld [vmem:[%s327 + $0x1ca0] sm:$0xff]
        %v1343 = vld [vmem:[%s327 + $0x1ca8] sm:$0xff]
        %v1344 = vld [vmem:[%s327 + $0x1cb0] sm:$0xff]
        %v1345 = vld [vmem:[%s327 + $0x1cb8] sm:$0xff]
        %v1346 = vld [vmem:[%s327 + $0x1cc0] sm:$0xff]
        %v1347 = vld [vmem:[%s327 + $0x1cc8] sm:$0xff]
        %v1348 = vld [vmem:[%s327 + $0x1cd0] sm:$0xff]
        %v1349 = vld [vmem:[%s327 + $0x1cd8] sm:$0xff]
        %v1350 = vld [vmem:[%s327 + $0x1ce0] sm:$0xff]
        %v1351 = vld [vmem:[%s327 + $0x1ce8] sm:$0xff]
        %v1352 = vld [vmem:[%s327 + $0x1cf0] sm:$0xff]
        %v1353 = vld [vmem:[%s327 + $0x1cf8] sm:$0xff]
        %v1354 = vld [vmem:[%s327 + $0x1d00] sm:$0xff]
        %v1355 = vld [vmem:[%s327 + $0x1d08] sm:$0xff]
        %v1356 = vld [vmem:[%s327 + $0x1d10] sm:$0xff]
        %v1357 = vld [vmem:[%s327 + $0x1d18] sm:$0xff]
        %v1358 = vld [vmem:[%s327 + $0x1d20] sm:$0xff]
        %v1359 = vld [vmem:[%s327 + $0x1d28] sm:$0xff]
        %v1360 = vld [vmem:[%s327 + $0x1d30] sm:$0xff]
        %v1361 = vld [vmem:[%s327 + $0x1d38] sm:$0xff]
        %v1362 = vld [vmem:[%s327 + $0x1d40] sm:$0xff]
        %v1363 = vld [vmem:[%s327 + $0x1d48] sm:$0xff]
        %v1364 = vld [vmem:[%s327 + $0x1d50] sm:$0xff]
        %v1365 = vld [vmem:[%s327 + $0x1d58] sm:$0xff]
        %v1366 = vld [vmem:[%s327 + $0x1d60] sm:$0xff]
        %v1367 = vld [vmem:[%s327 + $0x1d68] sm:$0xff]
        %v1368 = vld [vmem:[%s327 + $0x1d70] sm:$0xff]
        %v1369 = vld [vmem:[%s327 + $0x1d78] sm:$0xff]
        %v1370 = vld [vmem:[%s327 + $0x1d80] sm:$0xff]
        %v1371 = vld [vmem:[%s327 + $0x1d88] sm:$0xff]
        %v1372 = vld [vmem:[%s327 + $0x1d90] sm:$0xff]
        %v1373 = vld [vmem:[%s327 + $0x1d98] sm:$0xff]
        %v1374 = vld [vmem:[%s327 + $0x1da0] sm:$0xff]
        %v1375 = vld [vmem:[%s327 + $0x1da8] sm:$0xff]
        %v1376 = vld [vmem:[%s327 + $0x1db0] sm:$0xff]
        %v1377 = vld [vmem:[%s327 + $0x1db8] sm:$0xff]
        %v1378 = vld [vmem:[%s327 + $0x1dc0] sm:$0xff]
        %v1379 = vld [vmem:[%s327 + $0x1dc8] sm:$0xff]
        %v1380 = vld [vmem:[%s327 + $0x1dd0] sm:$0xff]
        %v1381 = vld [vmem:[%s327 + $0x1dd8] sm:$0xff]
        %v1382 = vld [vmem:[%s327 + $0x1de0] sm:$0xff]
        %v1383 = vld [vmem:[%s327 + $0x1de8] sm:$0xff]
        %v1384 = vld [vmem:[%s327 + $0x1df0] sm:$0xff]
        %v1385 = vld [vmem:[%s327 + $0x1df8] sm:$0xff]
        %v1386 = vld [vmem:[%s327 + $0x1e00] sm:$0xff]
        %v1387 = vld [vmem:[%s327 + $0x1e08] sm:$0xff]
        %v1388 = vld [vmem:[%s327 + $0x1e10] sm:$0xff]
        %v1389 = vld [vmem:[%s327 + $0x1e18] sm:$0xff]
        %v1390 = vld [vmem:[%s327 + $0x1e20] sm:$0xff]
        %v1391 = vld [vmem:[%s327 + $0x1e28] sm:$0xff]
        %v1392 = vld [vmem:[%s327 + $0x1e30] sm:$0xff]
        %v1393 = vld [vmem:[%s327 + $0x1e38] sm:$0xff]
        %v1394 = vld [vmem:[%s327 + $0x1e40] sm:$0xff]
        %v1395 = vld [vmem:[%s327 + $0x1e48] sm:$0xff]
        %v1396 = vld [vmem:[%s327 + $0x1e50] sm:$0xff]
        %v1397 = vld [vmem:[%s327 + $0x1e58] sm:$0xff]
        %v1398 = vld [vmem:[%s327 + $0x1e60] sm:$0xff]
        %v1399 = vld [vmem:[%s327 + $0x1e68] sm:$0xff]
        %v1400 = vld [vmem:[%s327 + $0x1e70] sm:$0xff]
        %v1401 = vld [vmem:[%s327 + $0x1e78] sm:$0xff]
        %v1402 = vld [vmem:[%s327 + $0x1e80] sm:$0xff]
        %v1403 = vld [vmem:[%s327 + $0x1e88] sm:$0xff]
        %v1404 = vld [vmem:[%s327 + $0x1e90] sm:$0xff]
        %v1405 = vld [vmem:[%s327 + $0x1e98] sm:$0xff]
        %v1406 = vld [vmem:[%s327 + $0x1ea0] sm:$0xff]
        %v1407 = vld [vmem:[%s327 + $0x1ea8] sm:$0xff]
        %v1408 = vld [vmem:[%s327 + $0x1eb0] sm:$0xff]
        %v1409 = vld [vmem:[%s327 + $0x1eb8] sm:$0xff]
        %v1410 = vld [vmem:[%s327 + $0x1ec0] sm:$0xff]
        %v1411 = vld [vmem:[%s327 + $0x1ec8] sm:$0xff]
        %v1412 = vld [vmem:[%s327 + $0x1ed0] sm:$0xff]
        %v1413 = vld [vmem:[%s327 + $0x1ed8] sm:$0xff]
        %v1414 = vld [vmem:[%s327 + $0x1ee0] sm:$0xff]
        %v1415 = vld [vmem:[%s327 + $0x1ee8] sm:$0xff]
        %v1416 = vld [vmem:[%s327 + $0x1ef0] sm:$0xff]
        %v1417 = vld [vmem:[%s327 + $0x1ef8] sm:$0xff]
        %v1418 = vld [vmem:[%s327 + $0x1f00] sm:$0xff]
        %v1419 = vld [vmem:[%s327 + $0x1f08] sm:$0xff]
        %v1420 = vld [vmem:[%s327 + $0x1f10] sm:$0xff]
        %v1421 = vld [vmem:[%s327 + $0x1f18] sm:$0xff]
        %v1422 = vld [vmem:[%s327 + $0x1f20] sm:$0xff]
        %v1423 = vld [vmem:[%s327 + $0x1f28] sm:$0xff]
        %v1424 = vld [vmem:[%s327 + $0x1f30] sm:$0xff]
        %v1425 = vld [vmem:[%s327 + $0x1f38] sm:$0xff]
        %v1426 = vld [vmem:[%s327 + $0x1f40] sm:$0xff]
        %v1427 = vld [vmem:[%s327 + $0x1f48] sm:$0xff]
        %v1428 = vld [vmem:[%s327 + $0x1f50] sm:$0xff]
        %v1429 = vld [vmem:[%s327 + $0x1f58] sm:$0xff]
        %v1430 = vld [vmem:[%s327 + $0x1f60] sm:$0xff]
        %v1431 = vld [vmem:[%s327 + $0x1f68] sm:$0xff]
        %v1432 = vld [vmem:[%s327 + $0x1f70] sm:$0xff]
        %v1433 = vld [vmem:[%s327 + $0x1f78] sm:$0xff]
        %v1434 = vld [vmem:[%s327 + $0x1f80] sm:$0xff]
        %v1435 = vld [vmem:[%s327 + $0x1f88] sm:$0xff]
        %v1436 = vld [vmem:[%s327 + $0x1f90] sm:$0xff]
        %v1437 = vld [vmem:[%s327 + $0x1f98] sm:$0xff]
        %v1438 = vld [vmem:[%s327 + $0x1fa0] sm:$0xff]
        %v1439 = vld [vmem:[%s327 + $0x1fa8] sm:$0xff]
        %v1440 = vld [vmem:[%s327 + $0x1fb0] sm:$0xff]
        %v1441 = vld [vmem:[%s327 + $0x1fb8] sm:$0xff]
        %v1442 = vld [vmem:[%s327 + $0x1fc0] sm:$0xff]
        %v1443 = vld [vmem:[%s327 + $0x1fc8] sm:$0xff]
        %v1444 = vld [vmem:[%s327 + $0x1fd0] sm:$0xff]
        %v1445 = vld [vmem:[%s327 + $0x1fd8] sm:$0xff]
        %v1446 = vld [vmem:[%s327 + $0x1fe0] sm:$0xff]
        %v1447 = vld [vmem:[%s327 + $0x1fe8] sm:$0xff]
        %v1448 = vld [vmem:[%s327 + $0x1ff0] sm:$0xff]
        %v1449 = vld [vmem:[%s327 + $0x1ff8] sm:$0xff]
        %v1450 = vld [vmem:[%s327 + $0x2000] sm:$0xff]
        %v1451 = vld [vmem:[%s327 + $0x2008] sm:$0xff]
        %v1452 = vld [vmem:[%s327 + $0x2010] sm:$0xff]
        %v1453 = vld [vmem:[%s327 + $0x2018] sm:$0xff]
        %v1454 = vld [vmem:[%s327 + $0x2020] sm:$0xff]
        %v1455 = vld [vmem:[%s327 + $0x2028] sm:$0xff]
        %v1456 = vld [vmem:[%s327 + $0x2030] sm:$0xff]
        %v1457 = vld [vmem:[%s327 + $0x2038] sm:$0xff]
        %v1458 = vld [vmem:[%s327 + $0x2040] sm:$0xff]
        %v1459 = vld [vmem:[%s327 + $0x2048] sm:$0xff]
        %v1460 = vld [vmem:[%s327 + $0x2050] sm:$0xff]
        %v1461 = vld [vmem:[%s327 + $0x2058] sm:$0xff]
        %v1462 = vld [vmem:[%s327 + $0x2060] sm:$0xff]
        %v1463 = vld [vmem:[%s327 + $0x2068] sm:$0xff]
        %v1464 = vld [vmem:[%s327 + $0x2070] sm:$0xff]
        %v1465 = vld [vmem:[%s327 + $0x2078] sm:$0xff]
        %v1466 = vld [vmem:[%s327 + $0x2080] sm:$0xff]
        %v1467 = vld [vmem:[%s327 + $0x2088] sm:$0xff]
        %v1468 = vld [vmem:[%s327 + $0x2090] sm:$0xff]
        %v1469 = vld [vmem:[%s327 + $0x2098] sm:$0xff]
        %v1470 = vld [vmem:[%s327 + $0x20a0] sm:$0xff]
        %v1471 = vld [vmem:[%s327 + $0x20a8] sm:$0xff]
        %v1472 = vld [vmem:[%s327 + $0x20b0] sm:$0xff]
        %v1473 = vld [vmem:[%s327 + $0x20b8] sm:$0xff]
        %v1474 = vld [vmem:[%s327 + $0x20c0] sm:$0xff]
        %v1475 = vld [vmem:[%s327 + $0x20c8] sm:$0xff]
        %v1476 = vld [vmem:[%s327 + $0x20d0] sm:$0xff]
        %v1477 = vld [vmem:[%s327 + $0x20d8] sm:$0xff]
        %v1478 = vld [vmem:[%s327 + $0x20e0] sm:$0xff]
        %v1479 = vld [vmem:[%s327 + $0x20e8] sm:$0xff]
        %v1480 = vld [vmem:[%s327 + $0x20f0] sm:$0xff]
        %v1481 = vld [vmem:[%s327 + $0x20f8] sm:$0xff]
        %v1482 = vld [vmem:[%s327 + $0x2100] sm:$0xff]
        %v1483 = vld [vmem:[%s327 + $0x2108] sm:$0xff]
        %v1484 = vld [vmem:[%s327 + $0x2110] sm:$0xff]
        %v1485 = vld [vmem:[%s327 + $0x2118] sm:$0xff]
        %v1486 = vld [vmem:[%s327 + $0x2120] sm:$0xff]
        %v1487 = vld [vmem:[%s327 + $0x2128] sm:$0xff]
        %v1488 = vld [vmem:[%s327 + $0x2130] sm:$0xff]
        %v1489 = vld [vmem:[%s327 + $0x2138] sm:$0xff]
        %v1490 = vld [vmem:[%s327 + $0x2140] sm:$0xff]
        %v1491 = vld [vmem:[%s327 + $0x2148] sm:$0xff]
        %v1492 = vld [vmem:[%s327 + $0x2150] sm:$0xff]
        %v1493 = vld [vmem:[%s327 + $0x2158] sm:$0xff]
        %v1494 = vld [vmem:[%s327 + $0x2160] sm:$0xff]
        %v1495 = vld [vmem:[%s327 + $0x2168] sm:$0xff]
        %v1496 = vld [vmem:[%s327 + $0x2170] sm:$0xff]
        %v1497 = vld [vmem:[%s327 + $0x2178] sm:$0xff]
        %v1498 = vld [vmem:[%s327 + $0x2180] sm:$0xff]
        %v1499 = vld [vmem:[%s327 + $0x2188] sm:$0xff]
        %v1500 = vld [vmem:[%s327 + $0x2190] sm:$0xff]
        %v1501 = vld [vmem:[%s327 + $0x2198] sm:$0xff]
        %v1502 = vld [vmem:[%s327 + $0x21a0] sm:$0xff]
        %v1503 = vld [vmem:[%s327 + $0x21a8] sm:$0xff]
        %v1504 = vld [vmem:[%s327 + $0x21b0] sm:$0xff]
        %v1505 = vld [vmem:[%s327 + $0x21b8] sm:$0xff]
        %v1506 = vld [vmem:[%s327 + $0x21c0] sm:$0xff]
        %v1507 = vld [vmem:[%s327 + $0x21c8] sm:$0xff]
        %v1508 = vld [vmem:[%s327 + $0x21d0] sm:$0xff]
        %v1509 = vld [vmem:[%s327 + $0x21d8] sm:$0xff]
        %v1510 = vld [vmem:[%s327 + $0x21e0] sm:$0xff]
        %v1511 = vld [vmem:[%s327 + $0x21e8] sm:$0xff]
        %v1512 = vld [vmem:[%s327 + $0x21f0] sm:$0xff]
        %v1513 = vld [vmem:[%s327 + $0x21f8] sm:$0xff]
        %v1514 = vld [vmem:[%s327 + $0x2200] sm:$0xff]
        %v1515 = vld [vmem:[%s327 + $0x2208] sm:$0xff]
        %v1516 = vld [vmem:[%s327 + $0x2210] sm:$0xff]
        %v1517 = vld [vmem:[%s327 + $0x2218] sm:$0xff]
        %v1518 = vld [vmem:[%s327 + $0x2220] sm:$0xff]
        %v1519 = vld [vmem:[%s327 + $0x2228] sm:$0xff]
        %v1520 = vld [vmem:[%s327 + $0x2230] sm:$0xff]
        %v1521 = vld [vmem:[%s327 + $0x2238] sm:$0xff]
        %v1522 = vld [vmem:[%s327 + $0x2240] sm:$0xff]
        %v1523 = vld [vmem:[%s327 + $0x2248] sm:$0xff]
        %v1524 = vld [vmem:[%s327 + $0x2250] sm:$0xff]
        %v1525 = vld [vmem:[%s327 + $0x2258] sm:$0xff]
        %v1526 = vld [vmem:[%s327 + $0x2260] sm:$0xff]
        %v1527 = vld [vmem:[%s327 + $0x2268] sm:$0xff]
        %v1528 = vld [vmem:[%s327 + $0x2270] sm:$0xff]
        %v1529 = vld [vmem:[%s327 + $0x2278] sm:$0xff]
        %v1530 = vld [vmem:[%s327 + $0x2280] sm:$0xff]
        %v1531 = vld [vmem:[%s327 + $0x2288] sm:$0xff]
        %v1532 = vld [vmem:[%s327 + $0x2290] sm:$0xff]
        %v1533 = vld [vmem:[%s327 + $0x2298] sm:$0xff]
        %v1534 = vld [vmem:[%s327 + $0x22a0] sm:$0xff]
        %v1535 = vld [vmem:[%s327 + $0x22a8] sm:$0xff]
        %v1536 = vld [vmem:[%s327 + $0x22b0] sm:$0xff]
        %v1537 = vld [vmem:[%s327 + $0x22b8] sm:$0xff]
        %v1538 = vld [vmem:[%s327 + $0x22c0] sm:$0xff]
        %v1539 = vld [vmem:[%s327 + $0x22c8] sm:$0xff]
        %v1540 = vld [vmem:[%s327 + $0x22d0] sm:$0xff]
        %v1541 = vld [vmem:[%s327 + $0x22d8] sm:$0xff]
        %v1542 = vld [vmem:[%s327 + $0x22e0] sm:$0xff]
        %v1543 = vld [vmem:[%s327 + $0x22e8] sm:$0xff]
        %v1544 = vld [vmem:[%s327 + $0x22f0] sm:$0xff]
        %v1545 = vld [vmem:[%s327 + $0x22f8] sm:$0xff]
        %v1546 = vld [vmem:[%s327 + $0x2300] sm:$0xff]
        %v1547 = vld [vmem:[%s327 + $0x2308] sm:$0xff]
        %v1548 = vld [vmem:[%s327 + $0x2310] sm:$0xff]
        %v1549 = vld [vmem:[%s327 + $0x2318] sm:$0xff]
        %v1550 = vld [vmem:[%s327 + $0x2320] sm:$0xff]
        %v1551 = vld [vmem:[%s327 + $0x2328] sm:$0xff]
        %v1552 = vld [vmem:[%s327 + $0x2330] sm:$0xff]
        %v1553 = vld [vmem:[%s327 + $0x2338] sm:$0xff]
        %v1554 = vld [vmem:[%s327 + $0x2340] sm:$0xff]
        %v1555 = vld [vmem:[%s327 + $0x2348] sm:$0xff]
        %v1556 = vld [vmem:[%s327 + $0x2350] sm:$0xff]
        %v1557 = vld [vmem:[%s327 + $0x2358] sm:$0xff]
        %v1558 = vld [vmem:[%s327 + $0x2360] sm:$0xff]
        %v1559 = vld [vmem:[%s327 + $0x2368] sm:$0xff]
        %v1560 = vld [vmem:[%s327 + $0x2370] sm:$0xff]
        %v1561 = vld [vmem:[%s327 + $0x2378] sm:$0xff]
        %v1562 = vld [vmem:[%s327 + $0x2380] sm:$0xff]
        %v1563 = vld [vmem:[%s327 + $0x2388] sm:$0xff]
        %v1564 = vld [vmem:[%s327 + $0x2390] sm:$0xff]
        %v1565 = vld [vmem:[%s327 + $0x2398] sm:$0xff]
        %v1566 = vld [vmem:[%s327 + $0x23a0] sm:$0xff]
        %v1567 = vld [vmem:[%s327 + $0x23a8] sm:$0xff]
        %v1568 = vld [vmem:[%s327 + $0x23b0] sm:$0xff]
        %v1569 = vld [vmem:[%s327 + $0x23b8] sm:$0xff]
        %v1570 = vld [vmem:[%s327 + $0x23c0] sm:$0xff]
        %v1571 = vld [vmem:[%s327 + $0x23c8] sm:$0xff]
        %v1572 = vld [vmem:[%s327 + $0x23d0] sm:$0xff]
        %v1573 = vld [vmem:[%s327 + $0x23d8] sm:$0xff]
        %v1574 = vld [vmem:[%s327 + $0x23e0] sm:$0xff]
        %v1575 = vld [vmem:[%s327 + $0x23e8] sm:$0xff]
        %v1576 = vld [vmem:[%s327 + $0x23f0] sm:$0xff]
        %v1577 = vld [vmem:[%s327 + $0x23f8] sm:$0xff]
        %v1578 = vld [vmem:[%s327 + $0x2400] sm:$0xff]
        %v1579 = vld [vmem:[%s327 + $0x2408] sm:$0xff]
        %v1580 = vld [vmem:[%s327 + $0x2410] sm:$0xff]
        %v1581 = vld [vmem:[%s327 + $0x2418] sm:$0xff]
        %v1582 = vld [vmem:[%s327 + $0x2420] sm:$0xff]
        %v1583 = vld [vmem:[%s327 + $0x2428] sm:$0xff]
        %v1584 = vld [vmem:[%s327 + $0x2430] sm:$0xff]
        %v1585 = vld [vmem:[%s327 + $0x2438] sm:$0xff]
        %v1586 = vld [vmem:[%s327 + $0x2440] sm:$0xff]
        %v1587 = vld [vmem:[%s327 + $0x2448] sm:$0xff]
        %v1588 = vld [vmem:[%s327 + $0x2450] sm:$0xff]
        %v1589 = vld [vmem:[%s327 + $0x2458] sm:$0xff]
        %v1590 = vld [vmem:[%s327 + $0x2460] sm:$0xff]
        %v1591 = vld [vmem:[%s327 + $0x2468] sm:$0xff]
        %v1592 = vld [vmem:[%s327 + $0x2470] sm:$0xff]
        %v1593 = vld [vmem:[%s327 + $0x2478] sm:$0xff]
        %v1594 = vld [vmem:[%s327 + $0x2480] sm:$0xff]
        %v1595 = vld [vmem:[%s327 + $0x2488] sm:$0xff]
        %v1596 = vld [vmem:[%s327 + $0x2490] sm:$0xff]
        %v1597 = vld [vmem:[%s327 + $0x2498] sm:$0xff]
        %v1598 = vld [vmem:[%s327 + $0x24a0] sm:$0xff]
        %v1599 = vld [vmem:[%s327 + $0x24a8] sm:$0xff]
        %v1600 = vld [vmem:[%s327 + $0x24b0] sm:$0xff]
        %v1601 = vld [vmem:[%s327 + $0x24b8] sm:$0xff]
        %v1602 = vld [vmem:[%s327 + $0x24c0] sm:$0xff]
        %v1603 = vld [vmem:[%s327 + $0x24c8] sm:$0xff]
        %v1604 = vld [vmem:[%s327 + $0x24d0] sm:$0xff]
        %v1605 = vld [vmem:[%s327 + $0x24d8] sm:$0xff]
        %v1606 = vld [vmem:[%s327 + $0x24e0] sm:$0xff]
        %v1607 = vld [vmem:[%s327 + $0x24e8] sm:$0xff]
        %v1608 = vld [vmem:[%s327 + $0x24f0] sm:$0xff]
        %v1609 = vld [vmem:[%s327 + $0x24f8] sm:$0xff]
        %v1610 = vld [vmem:[%s327 + $0x2500] sm:$0xff]
        %v1611 = vld [vmem:[%s327 + $0x2508] sm:$0xff]
        %v1612 = vld [vmem:[%s327 + $0x2510] sm:$0xff]
        %v1613 = vld [vmem:[%s327 + $0x2518] sm:$0xff]
        %v1614 = vld [vmem:[%s327 + $0x2520] sm:$0xff]
        %v1615 = vld [vmem:[%s327 + $0x2528] sm:$0xff]
        %v1616 = vld [vmem:[%s327 + $0x2530] sm:$0xff]
        %v1617 = vld [vmem:[%s327 + $0x2538] sm:$0xff]
        %v1618 = vld [vmem:[%s327 + $0x2540] sm:$0xff]
        %v1619 = vld [vmem:[%s327 + $0x2548] sm:$0xff]
        %v1620 = vld [vmem:[%s327 + $0x2550] sm:$0xff]
        %v1621 = vld [vmem:[%s327 + $0x2558] sm:$0xff]
        %v1622 = vld [vmem:[%s327 + $0x2560] sm:$0xff]
        %v1623 = vld [vmem:[%s327 + $0x2568] sm:$0xff]
        %v1624 = vld [vmem:[%s327 + $0x2570] sm:$0xff]
        %v1625 = vld [vmem:[%s327 + $0x2578] sm:$0xff]
        %v1626 = vld [vmem:[%s327 + $0x2580] sm:$0xff]
        %v1627 = vld [vmem:[%s327 + $0x2588] sm:$0xff]
        %v1628 = vld [vmem:[%s327 + $0x2590] sm:$0xff]
        %v1629 = vld [vmem:[%s327 + $0x2598] sm:$0xff]
        %v1630 = vld [vmem:[%s327 + $0x25a0] sm:$0xff]
        %v1631 = vld [vmem:[%s327 + $0x25a8] sm:$0xff]
        %v1632 = vld [vmem:[%s327 + $0x25b0] sm:$0xff]
        %v1633 = vld [vmem:[%s327 + $0x25b8] sm:$0xff]
        %v1634 = vld [vmem:[%s327 + $0x25c0] sm:$0xff]
        %v1635 = vld [vmem:[%s327 + $0x25c8] sm:$0xff]
        %v1636 = vld [vmem:[%s327 + $0x25d0] sm:$0xff]
        %v1637 = vld [vmem:[%s327 + $0x25d8] sm:$0xff]
        %v1638 = vld [vmem:[%s327 + $0x25e0] sm:$0xff]
        %v1639 = vld [vmem:[%s327 + $0x25e8] sm:$0xff]
        %v1640 = vld [vmem:[%s327 + $0x25f0] sm:$0xff]
        %v1641 = vld [vmem:[%s327 + $0x25f8] sm:$0xff]
        %v1642 = vld [vmem:[%s327 + $0x2600] sm:$0xff]
        %v1643 = vld [vmem:[%s327 + $0x2608] sm:$0xff]
        %v1644 = vld [vmem:[%s327 + $0x2610] sm:$0xff]
        %v1645 = vld [vmem:[%s327 + $0x2618] sm:$0xff]
        %v1646 = vld [vmem:[%s327 + $0x2620] sm:$0xff]
        %v1647 = vld [vmem:[%s327 + $0x2628] sm:$0xff]
        %v1648 = vld [vmem:[%s327 + $0x2630] sm:$0xff]
        %v1649 = vld [vmem:[%s327 + $0x2638] sm:$0xff]
        %v1650 = vld [vmem:[%s327 + $0x2640] sm:$0xff]
        %v1651 = vld [vmem:[%s327 + $0x2648] sm:$0xff]
        %v1652 = vld [vmem:[%s327 + $0x2650] sm:$0xff]
        %v1653 = vld [vmem:[%s327 + $0x2658] sm:$0xff]
        %v1654 = vld [vmem:[%s327 + $0x2660] sm:$0xff]
        %v1655 = vld [vmem:[%s327 + $0x2668] sm:$0xff]
        %v1656 = vld [vmem:[%s327 + $0x2670] sm:$0xff]
        %v1657 = vld [vmem:[%s327 + $0x2678] sm:$0xff]
        %v1658 = vld [vmem:[%s327 + $0x2680] sm:$0xff]
        %v1659 = vld [vmem:[%s327 + $0x2688] sm:$0xff]
        %v1660 = vld [vmem:[%s327 + $0x2690] sm:$0xff]
        %v1661 = vld [vmem:[%s327 + $0x2698] sm:$0xff]
        %v1662 = vld [vmem:[%s327 + $0x26a0] sm:$0xff]
        %v1663 = vld [vmem:[%s327 + $0x26a8] sm:$0xff]
        %v1664 = vld [vmem:[%s327 + $0x26b0] sm:$0xff]
        %v1665 = vld [vmem:[%s327 + $0x26b8] sm:$0xff]
        %v1666 = vld [vmem:[%s327 + $0x26c0] sm:$0xff]
        %v1667 = vld [vmem:[%s327 + $0x26c8] sm:$0xff]
        %v1668 = vld [vmem:[%s327 + $0x26d0] sm:$0xff]
        %v1669 = vld [vmem:[%s327 + $0x26d8] sm:$0xff]
        %v1670 = vld [vmem:[%s327 + $0x26e0] sm:$0xff]
        %v1671 = vld [vmem:[%s327 + $0x26e8] sm:$0xff]
        %v1672 = vld [vmem:[%s327 + $0x26f0] sm:$0xff]
        %v1673 = vld [vmem:[%s327 + $0x26f8] sm:$0xff]
        %v1674 = vld [vmem:[%s327 + $0x2700] sm:$0xff]
        %v1675 = vld [vmem:[%s327 + $0x2708] sm:$0xff]
        %v1676 = vld [vmem:[%s327 + $0x2710] sm:$0xff]
        %v1677 = vld [vmem:[%s327 + $0x2718] sm:$0xff]
        %v1678 = vld [vmem:[%s327 + $0x2720] sm:$0xff]
        %v1679 = vld [vmem:[%s327 + $0x2728] sm:$0xff]
        %v1680 = vld [vmem:[%s327 + $0x2730] sm:$0xff]
        %v1681 = vld [vmem:[%s327 + $0x2738] sm:$0xff]
        %v1682 = vld [vmem:[%s327 + $0x2740] sm:$0xff]
        %v1683 = vld [vmem:[%s327 + $0x2748] sm:$0xff]
        %v1684 = vld [vmem:[%s327 + $0x2750] sm:$0xff]
        %v1685 = vld [vmem:[%s327 + $0x2758] sm:$0xff]
        %v1686 = vld [vmem:[%s327 + $0x2760] sm:$0xff]
        %v1687 = vld [vmem:[%s327 + $0x2768] sm:$0xff]
        %v1688 = vld [vmem:[%s327 + $0x2770] sm:$0xff]
        %v1689 = vld [vmem:[%s327 + $0x2778] sm:$0xff]
        %v1690 = vld [vmem:[%s327 + $0x2780] sm:$0xff]
        %v1691 = vld [vmem:[%s327 + $0x2788] sm:$0xff]
        %v1692 = vld [vmem:[%s327 + $0x2790] sm:$0xff]
        %v1693 = vld [vmem:[%s327 + $0x2798] sm:$0xff]
        %v1694 = vld [vmem:[%s327 + $0x27a0] sm:$0xff]
        %v1695 = vld [vmem:[%s327 + $0x27a8] sm:$0xff]
        %v1696 = vld [vmem:[%s327 + $0x27b0] sm:$0xff]
        %v1697 = vld [vmem:[%s327 + $0x27b8] sm:$0xff]
        %v1698 = vld [vmem:[%s327 + $0x27c0] sm:$0xff]
        %v1699 = vld [vmem:[%s327 + $0x27c8] sm:$0xff]
        %v1700 = vld [vmem:[%s327 + $0x27d0] sm:$0xff]
        %v1701 = vld [vmem:[%s327 + $0x27d8] sm:$0xff]
        %v1702 = vld [vmem:[%s327 + $0x27e0] sm:$0xff]
        %v1703 = vld [vmem:[%s327 + $0x27e8] sm:$0xff]
        %v1704 = vld [vmem:[%s327 + $0x27f0] sm:$0xff]
        %v1705 = vld [vmem:[%s327 + $0x27f8] sm:$0xff]
        %v1706 = vld [vmem:[%s327 + $0x2800] sm:$0xff]
        %v1707 = vld [vmem:[%s327 + $0x2808] sm:$0xff]
        %v1708 = vld [vmem:[%s327 + $0x2810] sm:$0xff]
        %v1709 = vld [vmem:[%s327 + $0x2818] sm:$0xff]
        %v1710 = vld [vmem:[%s327 + $0x2820] sm:$0xff]
        %v1711 = vld [vmem:[%s327 + $0x2828] sm:$0xff]
        %v1712 = vld [vmem:[%s327 + $0x2830] sm:$0xff]
        %v1713 = vld [vmem:[%s327 + $0x2838] sm:$0xff]
        %v1714 = vld [vmem:[%s327 + $0x2840] sm:$0xff]
        %v1715 = vld [vmem:[%s327 + $0x2848] sm:$0xff]
        %v1716 = vld [vmem:[%s327 + $0x2850] sm:$0xff]
        %v1717 = vld [vmem:[%s327 + $0x2858] sm:$0xff]
        %v1718 = vld [vmem:[%s327 + $0x2860] sm:$0xff]
        %v1719 = vld [vmem:[%s327 + $0x2868] sm:$0xff]
        %v1720 = vld [vmem:[%s327 + $0x2870] sm:$0xff]
        %v1721 = vld [vmem:[%s327 + $0x2878] sm:$0xff]
        %v1722 = vld [vmem:[%s327 + $0x2880] sm:$0xff]
        %v1723 = vld [vmem:[%s327 + $0x2888] sm:$0xff]
        %v1724 = vld [vmem:[%s327 + $0x2890] sm:$0xff]
        %v1725 = vld [vmem:[%s327 + $0x2898] sm:$0xff]
        %v1726 = vld [vmem:[%s327 + $0x28a0] sm:$0xff]
        %v1727 = vld [vmem:[%s327 + $0x28a8] sm:$0xff]
        %v1728 = vld [vmem:[%s327 + $0x28b0] sm:$0xff]
        %v1729 = vld [vmem:[%s327 + $0x28b8] sm:$0xff]
        %v1730 = vld [vmem:[%s327 + $0x28c0] sm:$0xff]
        %v1731 = vld [vmem:[%s327 + $0x28c8] sm:$0xff]
        %v1732 = vld [vmem:[%s327 + $0x28d0] sm:$0xff]
        %v1733 = vld [vmem:[%s327 + $0x28d8] sm:$0xff]
        %v1734 = vld [vmem:[%s327 + $0x28e0] sm:$0xff]
        %v1735 = vld [vmem:[%s327 + $0x28e8] sm:$0xff]
        %v1736 = vld [vmem:[%s327 + $0x28f0] sm:$0xff]
        %v1737 = vld [vmem:[%s327 + $0x28f8] sm:$0xff]
        %v1738 = vld [vmem:[%s327 + $0x2900] sm:$0xff]
        %v1739 = vld [vmem:[%s327 + $0x2908] sm:$0xff]
        %v1740 = vld [vmem:[%s327 + $0x2910] sm:$0xff]
        %v1741 = vld [vmem:[%s327 + $0x2918] sm:$0xff]
        %v1742 = vld [vmem:[%s327 + $0x2920] sm:$0xff]
        %v1743 = vld [vmem:[%s327 + $0x2928] sm:$0xff]
        %v1744 = vld [vmem:[%s327 + $0x2930] sm:$0xff]
        %v1745 = vld [vmem:[%s327 + $0x2938] sm:$0xff]
        %v1746 = vld [vmem:[%s327 + $0x2940] sm:$0xff]
        %v1747 = vld [vmem:[%s327 + $0x2948] sm:$0xff]
        %v1748 = vld [vmem:[%s327 + $0x2950] sm:$0xff]
        %v1749 = vld [vmem:[%s327 + $0x2958] sm:$0xff]
        %v1750 = vld [vmem:[%s327 + $0x2960] sm:$0xff]
        %v1751 = vld [vmem:[%s327 + $0x2968] sm:$0xff]
        %v1752 = vld [vmem:[%s327 + $0x2970] sm:$0xff]
        %v1753 = vld [vmem:[%s327 + $0x2978] sm:$0xff]
        %v1754 = vld [vmem:[%s327 + $0x2980] sm:$0xff]
        %v1755 = vld [vmem:[%s327 + $0x2988] sm:$0xff]
        %v1756 = vld [vmem:[%s327 + $0x2990] sm:$0xff]
        %v1757 = vld [vmem:[%s327 + $0x2998] sm:$0xff]
        %v1758 = vld [vmem:[%s327 + $0x29a0] sm:$0xff]
        %v1759 = vld [vmem:[%s327 + $0x29a8] sm:$0xff]
        %v1760 = vld [vmem:[%s327 + $0x29b0] sm:$0xff]
        %v1761 = vld [vmem:[%s327 + $0x29b8] sm:$0xff]
        %v1762 = vld [vmem:[%s327 + $0x29c0] sm:$0xff]
        %v1763 = vld [vmem:[%s327 + $0x29c8] sm:$0xff]
        %v1764 = vld [vmem:[%s327 + $0x29d0] sm:$0xff]
        %v1765 = vld [vmem:[%s327 + $0x29d8] sm:$0xff]
        %v1766 = vld [vmem:[%s327 + $0x29e0] sm:$0xff]
        %v1767 = vld [vmem:[%s327 + $0x29e8] sm:$0xff]
        %v1768 = vld [vmem:[%s327 + $0x29f0] sm:$0xff]
        %v1769 = vld [vmem:[%s327 + $0x29f8] sm:$0xff]
        %v1770 = vld [vmem:[%s327 + $0x2a00] sm:$0xff]
        %v1771 = vld [vmem:[%s327 + $0x2a08] sm:$0xff]
        %v1772 = vld [vmem:[%s327 + $0x2a10] sm:$0xff]
        %v1773 = vld [vmem:[%s327 + $0x2a18] sm:$0xff]
        %v1774 = vld [vmem:[%s327 + $0x2a20] sm:$0xff]
        %v1775 = vld [vmem:[%s327 + $0x2a28] sm:$0xff]
        %v1776 = vld [vmem:[%s327 + $0x2a30] sm:$0xff]
        %v1777 = vld [vmem:[%s327 + $0x2a38] sm:$0xff]
        %v1778 = vld [vmem:[%s327 + $0x2a40] sm:$0xff]
        %v1779 = vld [vmem:[%s327 + $0x2a48] sm:$0xff]
        %v1780 = vld [vmem:[%s327 + $0x2a50] sm:$0xff]
        %v1781 = vld [vmem:[%s327 + $0x2a58] sm:$0xff]
        %v1782 = vld [vmem:[%s327 + $0x2a60] sm:$0xff]
        %v1783 = vld [vmem:[%s327 + $0x2a68] sm:$0xff]
        %v1784 = vld [vmem:[%s327 + $0x2a70] sm:$0xff]
        %v1785 = vld [vmem:[%s327 + $0x2a78] sm:$0xff]
        %v1786 = vld [vmem:[%s327 + $0x2a80] sm:$0xff]
        %v1787 = vld [vmem:[%s327 + $0x2a88] sm:$0xff]
        %v1788 = vld [vmem:[%s327 + $0x2a90] sm:$0xff]
        %v1789 = vld [vmem:[%s327 + $0x2a98] sm:$0xff]
        %v1790 = vld [vmem:[%s327 + $0x2aa0] sm:$0xff]
        %v1791 = vld [vmem:[%s327 + $0x2aa8] sm:$0xff]
        %v1792 = vld [vmem:[%s327 + $0x2ab0] sm:$0xff]
        %v1793 = vld [vmem:[%s327 + $0x2ab8] sm:$0xff]
        %v1794 = vld [vmem:[%s327 + $0x2ac0] sm:$0xff]
        %v1795 = vld [vmem:[%s327 + $0x2ac8] sm:$0xff]
        %v1796 = vld [vmem:[%s327 + $0x2ad0] sm:$0xff]
        %v1797 = vld [vmem:[%s327 + $0x2ad8] sm:$0xff]
        %v1798 = vld [vmem:[%s327 + $0x2ae0] sm:$0xff]
        %v1799 = vld [vmem:[%s327 + $0x2ae8] sm:$0xff]
        %v1800 = vld [vmem:[%s327 + $0x2af0] sm:$0xff]
        %v1801 = vld [vmem:[%s327 + $0x2af8] sm:$0xff]
        %v1802 = vld [vmem:[%s327 + $0x2b00] sm:$0xff]
        %v1803 = vld [vmem:[%s327 + $0x2b08] sm:$0xff]
        %v1804 = vld [vmem:[%s327 + $0x2b10] sm:$0xff]
        %v1805 = vld [vmem:[%s327 + $0x2b18] sm:$0xff]
        %v1806 = vld [vmem:[%s327 + $0x2b20] sm:$0xff]
        %v1807 = vld [vmem:[%s327 + $0x2b28] sm:$0xff]
        %v1808 = vld [vmem:[%s327 + $0x2b30] sm:$0xff]
        %v1809 = vld [vmem:[%s327 + $0x2b38] sm:$0xff]
        %v1810 = vld [vmem:[%s327 + $0x2b40] sm:$0xff]
        %v1811 = vld [vmem:[%s327 + $0x2b48] sm:$0xff]
        %v1812 = vld [vmem:[%s327 + $0x2b50] sm:$0xff]
        %v1813 = vld [vmem:[%s327 + $0x2b58] sm:$0xff]
        %v1814 = vld [vmem:[%s327 + $0x2b60] sm:$0xff]
        %v1815 = vld [vmem:[%s327 + $0x2b68] sm:$0xff]
        %v1816 = vld [vmem:[%s327 + $0x2b70] sm:$0xff]
        %v1817 = vld [vmem:[%s327 + $0x2b78] sm:$0xff]
        %v1818 = vld [vmem:[%s327 + $0x2b80] sm:$0xff]
        %v1819 = vld [vmem:[%s327 + $0x2b88] sm:$0xff]
        %v1820 = vld [vmem:[%s327 + $0x2b90] sm:$0xff]
        %v1821 = vld [vmem:[%s327 + $0x2b98] sm:$0xff]
        %v1822 = vld [vmem:[%s327 + $0x2ba0] sm:$0xff]
        %v1823 = vld [vmem:[%s327 + $0x2ba8] sm:$0xff]
        %v1824 = vld [vmem:[%s327 + $0x2bb0] sm:$0xff]
        %v1825 = vld [vmem:[%s327 + $0x2bb8] sm:$0xff]
        %v1826 = vld [vmem:[%s327 + $0x2bc0] sm:$0xff]
        %v1827 = vld [vmem:[%s327 + $0x2bc8] sm:$0xff]
        %v1828 = vld [vmem:[%s327 + $0x2bd0] sm:$0xff]
        %v1829 = vld [vmem:[%s327 + $0x2bd8] sm:$0xff]
        %v1830 = vld [vmem:[%s327 + $0x2be0] sm:$0xff]
        %v1831 = vld [vmem:[%s327 + $0x2be8] sm:$0xff]
        %v1832 = vld [vmem:[%s327 + $0x2bf0] sm:$0xff]
        %v1833 = vld [vmem:[%s327 + $0x2bf8] sm:$0xff]
        %v1834 = vld [vmem:[%s327 + $0x2c00] sm:$0xff]
        %v1835 = vld [vmem:[%s327 + $0x2c08] sm:$0xff]
        %v1836 = vld [vmem:[%s327 + $0x2c10] sm:$0xff]
        %v1837 = vld [vmem:[%s327 + $0x2c18] sm:$0xff]
        %v1838 = vld [vmem:[%s327 + $0x2c20] sm:$0xff]
        %v1839 = vld [vmem:[%s327 + $0x2c28] sm:$0xff]
        %v1840 = vld [vmem:[%s327 + $0x2c30] sm:$0xff]
        %v1841 = vld [vmem:[%s327 + $0x2c38] sm:$0xff]
        %v1842 = vld [vmem:[%s327 + $0x2c40] sm:$0xff]
        %v1843 = vld [vmem:[%s327 + $0x2c48] sm:$0xff]
        %v1844 = vld [vmem:[%s327 + $0x2c50] sm:$0xff]
        %v1845 = vld [vmem:[%s327 + $0x2c58] sm:$0xff]
        %v1846 = vld [vmem:[%s327 + $0x2c60] sm:$0xff]
        %v1847 = vld [vmem:[%s327 + $0x2c68] sm:$0xff]
        %v1848 = vld [vmem:[%s327 + $0x2c70] sm:$0xff]
        %v1849 = vld [vmem:[%s327 + $0x2c78] sm:$0xff]
        %v1850 = vld [vmem:[%s327 + $0x2c80] sm:$0xff]
        %v1851 = vld [vmem:[%s327 + $0x2c88] sm:$0xff]
        %v1852 = vld [vmem:[%s327 + $0x2c90] sm:$0xff]
        %v1853 = vld [vmem:[%s327 + $0x2c98] sm:$0xff]
        %v1854 = vld [vmem:[%s327 + $0x2ca0] sm:$0xff]
        %v1855 = vld [vmem:[%s327 + $0x2ca8] sm:$0xff]
        %v1856 = vld [vmem:[%s327 + $0x2cb0] sm:$0xff]
        %v1857 = vld [vmem:[%s327 + $0x2cb8] sm:$0xff]
        %v1858 = vld [vmem:[%s327 + $0x2cc0] sm:$0xff]
        %v1859 = vld [vmem:[%s327 + $0x2cc8] sm:$0xff]
        %v1860 = vld [vmem:[%s327 + $0x2cd0] sm:$0xff]
        %v1861 = vld [vmem:[%s327 + $0x2cd8] sm:$0xff]
        %v1862 = vld [vmem:[%s327 + $0x2ce0] sm:$0xff]
        %v1863 = vld [vmem:[%s327 + $0x2ce8] sm:$0xff]
        %v1864 = vld [vmem:[%s327 + $0x2cf0] sm:$0xff]
        %v1865 = vld [vmem:[%s327 + $0x2cf8] sm:$0xff]
        %v1866 = vld [vmem:[%s327 + $0x2d00] sm:$0xff]
        %v1867 = vld [vmem:[%s327 + $0x2d08] sm:$0xff]
        %v1868 = vld [vmem:[%s327 + $0x2d10] sm:$0xff]
        %v1869 = vld [vmem:[%s327 + $0x2d18] sm:$0xff]
        %v1870 = vld [vmem:[%s327 + $0x2d20] sm:$0xff]
        %v1871 = vld [vmem:[%s327 + $0x2d28] sm:$0xff]
        %v1872 = vld [vmem:[%s327 + $0x2d30] sm:$0xff]
        %v1873 = vld [vmem:[%s327 + $0x2d38] sm:$0xff]
        %v1874 = vld [vmem:[%s327 + $0x2d40] sm:$0xff]
        %v1875 = vld [vmem:[%s327 + $0x2d48] sm:$0xff]
        %v1876 = vld [vmem:[%s327 + $0x2d50] sm:$0xff]
        %v1877 = vld [vmem:[%s327 + $0x2d58] sm:$0xff]
        %v1878 = vld [vmem:[%s327 + $0x2d60] sm:$0xff]
        %v1879 = vld [vmem:[%s327 + $0x2d68] sm:$0xff]
        %v1880 = vld [vmem:[%s327 + $0x2d70] sm:$0xff]
        %v1881 = vld [vmem:[%s327 + $0x2d78] sm:$0xff]
        %v1882 = vld [vmem:[%s327 + $0x2d80] sm:$0xff]
        %v1883 = vld [vmem:[%s327 + $0x2d88] sm:$0xff]
        %v1884 = vld [vmem:[%s327 + $0x2d90] sm:$0xff]
        %v1885 = vld [vmem:[%s327 + $0x2d98] sm:$0xff]
        %v1886 = vld [vmem:[%s327 + $0x2da0] sm:$0xff]
        %v1887 = vld [vmem:[%s327 + $0x2da8] sm:$0xff]
        %v1888 = vld [vmem:[%s327 + $0x2db0] sm:$0xff]
        %v1889 = vld [vmem:[%s327 + $0x2db8] sm:$0xff]
        %v1890 = vld [vmem:[%s327 + $0x2dc0] sm:$0xff]
        %v1891 = vld [vmem:[%s327 + $0x2dc8] sm:$0xff]
        %v1892 = vld [vmem:[%s327 + $0x2dd0] sm:$0xff]
        %v1893 = vld [vmem:[%s327 + $0x2dd8] sm:$0xff]
        %v1894 = vld [vmem:[%s327 + $0x2de0] sm:$0xff]
        %v1895 = vld [vmem:[%s327 + $0x2de8] sm:$0xff]
        %v1896 = vld [vmem:[%s327 + $0x2df0] sm:$0xff]
        %v1897 = vld [vmem:[%s327 + $0x2df8] sm:$0xff]
        %v1898 = vld [vmem:[%s327 + $0x2e00] sm:$0xff]
        %v1899 = vld [vmem:[%s327 + $0x2e08] sm:$0xff]
        %v1900 = vld [vmem:[%s327 + $0x2e10] sm:$0xff]
        %v1901 = vld [vmem:[%s327 + $0x2e18] sm:$0xff]
        %v1902 = vld [vmem:[%s327 + $0x2e20] sm:$0xff]
        %v1903 = vld [vmem:[%s327 + $0x2e28] sm:$0xff]
        %v1904 = vld [vmem:[%s327 + $0x2e30] sm:$0xff]
        %v1905 = vld [vmem:[%s327 + $0x2e38] sm:$0xff]
        %v1906 = vld [vmem:[%s327 + $0x2e40] sm:$0xff]
        %v1907 = vld [vmem:[%s327 + $0x2e48] sm:$0xff]
        %v1908 = vld [vmem:[%s327 + $0x2e50] sm:$0xff]
        %v1909 = vld [vmem:[%s327 + $0x2e58] sm:$0xff]
        %v1910 = vld [vmem:[%s327 + $0x2e60] sm:$0xff]
        %v1911 = vld [vmem:[%s327 + $0x2e68] sm:$0xff]
        %v1912 = vld [vmem:[%s327 + $0x2e70] sm:$0xff]
        %v1913 = vld [vmem:[%s327 + $0x2e78] sm:$0xff]
        %v1914 = vld [vmem:[%s327 + $0x2e80] sm:$0xff]
        %v1915 = vld [vmem:[%s327 + $0x2e88] sm:$0xff]
        %v1916 = vld [vmem:[%s327 + $0x2e90] sm:$0xff]
        %v1917 = vld [vmem:[%s327 + $0x2e98] sm:$0xff]
        %v1918 = vld [vmem:[%s327 + $0x2ea0] sm:$0xff]
        %v1919 = vld [vmem:[%s327 + $0x2ea8] sm:$0xff]
        %v1920 = vld [vmem:[%s327 + $0x2eb0] sm:$0xff]
        %v1921 = vld [vmem:[%s327 + $0x2eb8] sm:$0xff]
        %v1922 = vld [vmem:[%s327 + $0x2ec0] sm:$0xff]
        %v1923 = vld [vmem:[%s327 + $0x2ec8] sm:$0xff]
        %v1924 = vld [vmem:[%s327 + $0x2ed0] sm:$0xff]
        %v1925 = vld [vmem:[%s327 + $0x2ed8] sm:$0xff]
        %v1926 = vld [vmem:[%s327 + $0x2ee0] sm:$0xff]
        %v1927 = vld [vmem:[%s327 + $0x2ee8] sm:$0xff]
        %v1928 = vld [vmem:[%s327 + $0x2ef0] sm:$0xff]
        %v1929 = vld [vmem:[%s327 + $0x2ef8] sm:$0xff]
        %v1930 = vld [vmem:[%s327 + $0x2f00] sm:$0xff]
        %v1931 = vld [vmem:[%s327 + $0x2f08] sm:$0xff]
        %v1932 = vld [vmem:[%s327 + $0x2f10] sm:$0xff]
        %v1933 = vld [vmem:[%s327 + $0x2f18] sm:$0xff]
        %v1934 = vld [vmem:[%s327 + $0x2f20] sm:$0xff]
        %v1935 = vld [vmem:[%s327 + $0x2f28] sm:$0xff]
        %v1936 = vld [vmem:[%s327 + $0x2f30] sm:$0xff]
        %v1937 = vld [vmem:[%s327 + $0x2f38] sm:$0xff]
        %v1938 = vld [vmem:[%s327 + $0x2f40] sm:$0xff]
        %v1939 = vld [vmem:[%s327 + $0x2f48] sm:$0xff]
        %v1940 = vld [vmem:[%s327 + $0x2f50] sm:$0xff]
        %v1941 = vld [vmem:[%s327 + $0x2f58] sm:$0xff]
        %v1942 = vld [vmem:[%s327 + $0x2f60] sm:$0xff]
        %v1943 = vld [vmem:[%s327 + $0x2f68] sm:$0xff]
        %v1944 = vld [vmem:[%s327 + $0x2f70] sm:$0xff]
        %v1945 = vld [vmem:[%s327 + $0x2f78] sm:$0xff]
        %v1946 = vld [vmem:[%s327 + $0x2f80] sm:$0xff]
        %v1947 = vld [vmem:[%s327 + $0x2f88] sm:$0xff]
        %v1948 = vld [vmem:[%s327 + $0x2f90] sm:$0xff]
        %v1949 = vld [vmem:[%s327 + $0x2f98] sm:$0xff]
        %v1950 = vld [vmem:[%s327 + $0x2fa0] sm:$0xff]
        %v1951 = vld [vmem:[%s327 + $0x2fa8] sm:$0xff]
        %v1952 = vld [vmem:[%s327 + $0x2fb0] sm:$0xff]
        %v1953 = vld [vmem:[%s327 + $0x2fb8] sm:$0xff]
        %v1954 = vld [vmem:[%s327 + $0x2fc0] sm:$0xff]
        %v1955 = vld [vmem:[%s327 + $0x2fc8] sm:$0xff]
        %v1956 = vld [vmem:[%s327 + $0x2fd0] sm:$0xff]
        %v1957 = vld [vmem:[%s327 + $0x2fd8] sm:$0xff]
        %v1958 = vld [vmem:[%s327 + $0x2fe0] sm:$0xff]
        %v1959 = vld [vmem:[%s327 + $0x2fe8] sm:$0xff]
        %v1960 = vld [vmem:[%s327 + $0x2ff0] sm:$0xff]
        %v1961 = vld [vmem:[%s327 + $0x2ff8] sm:$0xff]
        %v1968 = vunpack.c.l.b16 %v420
        %v1969 = vunpack.c.h.b16 %v420
        %v1970 = vunpack.c.l.b16 %v421
        %v1971 = vunpack.c.h.b16 %v421
        %v1972 = vunpack.c.l.b16 %v422
        %v1973 = vunpack.c.h.b16 %v422
        %v1974 = vunpack.c.l.b16 %v423
        %v1975 = vunpack.c.h.b16 %v423
        %v1976 = vunpack.c.l.b16 %v424
        %v1977 = vunpack.c.h.b16 %v424
        %v1978 = vunpack.c.l.b16 %v425
        %v1979 = vunpack.c.h.b16 %v425
        %v1980 = vpack.c.b16 %v1968, %v1968
        %v1981 = vpack.c.b16 %v1969, %v1969
        %v1982 = vpack.c.b16 %v1970, %v1970
        %v1983 = vpack.c.b16 %v1971, %v1971
        %v1984 = vpack.c.b16 %v1972, %v1972
        %v1985 = vpack.c.b16 %v1973, %v1973
        %v1986 = vpack.c.b16 %v1974, %v1974
        %v1987 = vpack.c.b16 %v1975, %v1975
        %v1988 = vpack.c.b16 %v1976, %v1976
        %v1989 = vpack.c.b16 %v1977, %v1977
        %v1990 = vpack.c.b16 %v1978, %v1978
        %v1991 = vpack.c.b16 %v1979, %v1979
        %v3540 = vunpack.c.l.b16 %v426
        %v3541 = vunpack.c.h.b16 %v426
        %v3542 = vunpack.c.l.b16 %v427
        %v3543 = vunpack.c.h.b16 %v427
        %v3544 = vunpack.c.l.b16 %v428
        %v3545 = vunpack.c.h.b16 %v428
        %v3546 = vunpack.c.l.b16 %v429
        %v3547 = vunpack.c.h.b16 %v429
        %v3548 = vunpack.c.l.b16 %v430
        %v3549 = vunpack.c.h.b16 %v430
        %v3550 = vunpack.c.l.b16 %v431
        %v3551 = vunpack.c.h.b16 %v431
        %v3552 = vunpack.c.l.b16 %v432
        %v3553 = vunpack.c.h.b16 %v432
        %v3554 = vunpack.c.l.b16 %v433
        %v3555 = vunpack.c.h.b16 %v433
        %v3556 = vunpack.c.l.b16 %v434
        %v3557 = vunpack.c.h.b16 %v434
        %v3558 = vunpack.c.l.b16 %v435
        %v3559 = vunpack.c.h.b16 %v435
        %v3560 = vunpack.c.l.b16 %v436
        %v3561 = vunpack.c.h.b16 %v436
        %v3562 = vunpack.c.l.b16 %v437
        %v3563 = vunpack.c.h.b16 %v437
        %v3564 = vunpack.c.l.b16 %v438
        %v3565 = vunpack.c.h.b16 %v438
        %v3566 = vunpack.c.l.b16 %v439
        %v3567 = vunpack.c.h.b16 %v439
        %v3568 = vunpack.c.l.b16 %v440
        %v3569 = vunpack.c.h.b16 %v440
        %v3570 = vunpack.c.l.b16 %v441
        %v3571 = vunpack.c.h.b16 %v441
        %v3572 = vunpack.c.l.b16 %v442
        %v3573 = vunpack.c.h.b16 %v442
        %v3574 = vunpack.c.l.b16 %v443
        %v3575 = vunpack.c.h.b16 %v443
        %v3576 = vunpack.c.l.b16 %v444
        %v3577 = vunpack.c.h.b16 %v444
        %v3578 = vunpack.c.l.b16 %v445
        %v3579 = vunpack.c.h.b16 %v445
        %v3580 = vunpack.c.l.b16 %v446
        %v3581 = vunpack.c.h.b16 %v446
        %v3582 = vunpack.c.l.b16 %v447
        %v3583 = vunpack.c.h.b16 %v447
        %v3584 = vunpack.c.l.b16 %v448
        %v3585 = vunpack.c.h.b16 %v448
        %v3586 = vunpack.c.l.b16 %v449
        %v3587 = vunpack.c.h.b16 %v449
        %v3588 = vunpack.c.l.b16 %v450
        %v3589 = vunpack.c.h.b16 %v450
        %v3590 = vunpack.c.l.b16 %v451
        %v3591 = vunpack.c.h.b16 %v451
        %v3592 = vunpack.c.l.b16 %v452
        %v3593 = vunpack.c.h.b16 %v452
        %v3594 = vunpack.c.l.b16 %v453
        %v3595 = vunpack.c.h.b16 %v453
        %v3596 = vunpack.c.l.b16 %v454
        %v3597 = vunpack.c.h.b16 %v454
        %v3598 = vunpack.c.l.b16 %v455
        %v3599 = vunpack.c.h.b16 %v455
        %v3600 = vunpack.c.l.b16 %v456
        %v3601 = vunpack.c.h.b16 %v456
        %v3602 = vunpack.c.l.b16 %v457
        %v3603 = vunpack.c.h.b16 %v457
        %v3604 = vunpack.c.l.b16 %v458
        %v3605 = vunpack.c.h.b16 %v458
        %v3606 = vunpack.c.l.b16 %v459
        %v3607 = vunpack.c.h.b16 %v459
        %v3608 = vunpack.c.l.b16 %v460
        %v3609 = vunpack.c.h.b16 %v460
        %v3610 = vunpack.c.l.b16 %v461
        %v3611 = vunpack.c.h.b16 %v461
        %v3612 = vunpack.c.l.b16 %v462
        %v3613 = vunpack.c.h.b16 %v462
        %v3614 = vunpack.c.l.b16 %v463
        %v3615 = vunpack.c.h.b16 %v463
        %v3616 = vunpack.c.l.b16 %v464
        %v3617 = vunpack.c.h.b16 %v464
        %v3618 = vunpack.c.l.b16 %v465
        %v3619 = vunpack.c.h.b16 %v465
        %v3620 = vunpack.c.l.b16 %v466
        %v3621 = vunpack.c.h.b16 %v466
        %v3622 = vunpack.c.l.b16 %v467
        %v3623 = vunpack.c.h.b16 %v467
        %v3624 = vunpack.c.l.b16 %v468
        %v3625 = vunpack.c.h.b16 %v468
        %v3626 = vunpack.c.l.b16 %v469
        %v3627 = vunpack.c.h.b16 %v469
        %v3628 = vunpack.c.l.b16 %v470
        %v3629 = vunpack.c.h.b16 %v470
        %v3630 = vunpack.c.l.b16 %v471
        %v3631 = vunpack.c.h.b16 %v471
        %v3632 = vunpack.c.l.b16 %v472
        %v3633 = vunpack.c.h.b16 %v472
        %v3634 = vunpack.c.l.b16 %v473
        %v3635 = vunpack.c.h.b16 %v473
        %v3636 = vunpack.c.l.b16 %v474
        %v3637 = vunpack.c.h.b16 %v474
        %v3638 = vunpack.c.l.b16 %v475
        %v3639 = vunpack.c.h.b16 %v475
        %v3640 = vunpack.c.l.b16 %v476
        %v3641 = vunpack.c.h.b16 %v476
        %v3642 = vunpack.c.l.b16 %v477
        %v3643 = vunpack.c.h.b16 %v477
        %v3644 = vunpack.c.l.b16 %v478
        %v3645 = vunpack.c.h.b16 %v478
        %v3646 = vunpack.c.l.b16 %v479
        %v3647 = vunpack.c.h.b16 %v479
        %v3648 = vunpack.c.l.b16 %v480
        %v3649 = vunpack.c.h.b16 %v480
        %v3650 = vunpack.c.l.b16 %v481
        %v3651 = vunpack.c.h.b16 %v481
        %v3652 = vunpack.c.l.b16 %v482
        %v3653 = vunpack.c.h.b16 %v482
        %v3654 = vunpack.c.l.b16 %v483
        %v3655 = vunpack.c.h.b16 %v483
        %v3656 = vunpack.c.l.b16 %v484
        %v3657 = vunpack.c.h.b16 %v484
        %v3658 = vunpack.c.l.b16 %v485
        %v3659 = vunpack.c.h.b16 %v485
        %v3660 = vunpack.c.l.b16 %v486
        %v3661 = vunpack.c.h.b16 %v486
        %v3662 = vunpack.c.l.b16 %v487
        %v3663 = vunpack.c.h.b16 %v487
        %v3664 = vunpack.c.l.b16 %v488
        %v3665 = vunpack.c.h.b16 %v488
        %v3666 = vunpack.c.l.b16 %v489
        %v3667 = vunpack.c.h.b16 %v489
        %v3668 = vunpack.c.l.b16 %v490
        %v3669 = vunpack.c.h.b16 %v490
        %v3670 = vunpack.c.l.b16 %v491
        %v3671 = vunpack.c.h.b16 %v491
        %v3672 = vunpack.c.l.b16 %v492
        %v3673 = vunpack.c.h.b16 %v492
        %v3674 = vunpack.c.l.b16 %v493
        %v3675 = vunpack.c.h.b16 %v493
        %v3676 = vunpack.c.l.b16 %v494
        %v3677 = vunpack.c.h.b16 %v494
        %v3678 = vunpack.c.l.b16 %v495
        %v3679 = vunpack.c.h.b16 %v495
        %v3680 = vunpack.c.l.b16 %v496
        %v3681 = vunpack.c.h.b16 %v496
        %v3682 = vunpack.c.l.b16 %v497
        %v3683 = vunpack.c.h.b16 %v497
        %v3684 = vunpack.c.l.b16 %v498
        %v3685 = vunpack.c.h.b16 %v498
        %v3686 = vunpack.c.l.b16 %v499
        %v3687 = vunpack.c.h.b16 %v499
        %v3688 = vunpack.c.l.b16 %v500
        %v3689 = vunpack.c.h.b16 %v500
        %v3690 = vunpack.c.l.b16 %v501
        %v3691 = vunpack.c.h.b16 %v501
        %v3692 = vunpack.c.l.b16 %v502
        %v3693 = vunpack.c.h.b16 %v502
        %v3694 = vunpack.c.l.b16 %v503
        %v3695 = vunpack.c.h.b16 %v503
        %v3696 = vunpack.c.l.b16 %v504
        %v3697 = vunpack.c.h.b16 %v504
        %v3698 = vunpack.c.l.b16 %v505
        %v3699 = vunpack.c.h.b16 %v505
        %v3700 = vunpack.c.l.b16 %v506
        %v3701 = vunpack.c.h.b16 %v506
        %v3702 = vunpack.c.l.b16 %v507
        %v3703 = vunpack.c.h.b16 %v507
        %v3704 = vunpack.c.l.b16 %v508
        %v3705 = vunpack.c.h.b16 %v508
        %v3706 = vunpack.c.l.b16 %v509
        %v3707 = vunpack.c.h.b16 %v509
        %v3708 = vunpack.c.l.b16 %v510
        %v3709 = vunpack.c.h.b16 %v510
        %v3710 = vunpack.c.l.b16 %v511
        %v3711 = vunpack.c.h.b16 %v511
        %v3712 = vunpack.c.l.b16 %v512
        %v3713 = vunpack.c.h.b16 %v512
        %v3714 = vunpack.c.l.b16 %v513
        %v3715 = vunpack.c.h.b16 %v513
        %v3716 = vunpack.c.l.b16 %v514
        %v3717 = vunpack.c.h.b16 %v514
        %v3718 = vunpack.c.l.b16 %v515
        %v3719 = vunpack.c.h.b16 %v515
        %v3720 = vunpack.c.l.b16 %v516
        %v3721 = vunpack.c.h.b16 %v516
        %v3722 = vunpack.c.l.b16 %v517
        %v3723 = vunpack.c.h.b16 %v517
        %v3724 = vunpack.c.l.b16 %v518
        %v3725 = vunpack.c.h.b16 %v518
        %v3726 = vunpack.c.l.b16 %v519
        %v3727 = vunpack.c.h.b16 %v519
        %v3728 = vunpack.c.l.b16 %v520
        %v3729 = vunpack.c.h.b16 %v520
        %v3730 = vunpack.c.l.b16 %v521
        %v3731 = vunpack.c.h.b16 %v521
        %v3732 = vunpack.c.l.b16 %v522
        %v3733 = vunpack.c.h.b16 %v522
        %v3734 = vunpack.c.l.b16 %v523
        %v3735 = vunpack.c.h.b16 %v523
        %v3736 = vunpack.c.l.b16 %v524
        %v3737 = vunpack.c.h.b16 %v524
        %v3738 = vunpack.c.l.b16 %v525
        %v3739 = vunpack.c.h.b16 %v525
        %v3740 = vunpack.c.l.b16 %v526
        %v3741 = vunpack.c.h.b16 %v526
        %v3742 = vunpack.c.l.b16 %v527
        %v3743 = vunpack.c.h.b16 %v527
        %v3744 = vunpack.c.l.b16 %v528
        %v3745 = vunpack.c.h.b16 %v528
        %v3746 = vunpack.c.l.b16 %v529
        %v3747 = vunpack.c.h.b16 %v529
        %v3748 = vunpack.c.l.b16 %v530
        %v3749 = vunpack.c.h.b16 %v530
        %v3750 = vunpack.c.l.b16 %v531
        %v3751 = vunpack.c.h.b16 %v531
        %v3752 = vunpack.c.l.b16 %v532
        %v3753 = vunpack.c.h.b16 %v532
        %v3754 = vunpack.c.l.b16 %v533
        %v3755 = vunpack.c.h.b16 %v533
        %v3756 = vunpack.c.l.b16 %v534
        %v3757 = vunpack.c.h.b16 %v534
        %v3758 = vunpack.c.l.b16 %v535
        %v3759 = vunpack.c.h.b16 %v535
        %v3760 = vunpack.c.l.b16 %v536
        %v3761 = vunpack.c.h.b16 %v536
        %v3762 = vunpack.c.l.b16 %v537
        %v3763 = vunpack.c.h.b16 %v537
        %v3764 = vunpack.c.l.b16 %v538
        %v3765 = vunpack.c.h.b16 %v538
        %v3766 = vunpack.c.l.b16 %v539
        %v3767 = vunpack.c.h.b16 %v539
        %v3768 = vunpack.c.l.b16 %v540
        %v3769 = vunpack.c.h.b16 %v540
        %v3770 = vunpack.c.l.b16 %v541
        %v3771 = vunpack.c.h.b16 %v541
        %v3772 = vunpack.c.l.b16 %v542
        %v3773 = vunpack.c.h.b16 %v542
        %v3774 = vunpack.c.l.b16 %v543
        %v3775 = vunpack.c.h.b16 %v543
        %v3776 = vunpack.c.l.b16 %v544
        %v3777 = vunpack.c.h.b16 %v544
        %v3778 = vunpack.c.l.b16 %v545
        %v3779 = vunpack.c.h.b16 %v545
        %v3780 = vunpack.c.l.b16 %v546
        %v3781 = vunpack.c.h.b16 %v546
        %v3782 = vunpack.c.l.b16 %v547
        %v3783 = vunpack.c.h.b16 %v547
        %v3784 = vunpack.c.l.b16 %v548
        %v3785 = vunpack.c.h.b16 %v548
        %v3786 = vunpack.c.l.b16 %v549
        %v3787 = vunpack.c.h.b16 %v549
        %v3788 = vunpack.c.l.b16 %v550
        %v3789 = vunpack.c.h.b16 %v550
        %v3790 = vunpack.c.l.b16 %v551
        %v3791 = vunpack.c.h.b16 %v551
        %v3792 = vunpack.c.l.b16 %v552
        %v3793 = vunpack.c.h.b16 %v552
        %v3794 = vunpack.c.l.b16 %v553
        %v3795 = vunpack.c.h.b16 %v553
        %v3796 = vunpack.c.l.b16 %v554
        %v3797 = vunpack.c.h.b16 %v554
        %v3798 = vunpack.c.l.b16 %v555
        %v3799 = vunpack.c.h.b16 %v555
        %v3800 = vunpack.c.l.b16 %v556
        %v3801 = vunpack.c.h.b16 %v556
        %v3802 = vunpack.c.l.b16 %v557
        %v3803 = vunpack.c.h.b16 %v557
        %v3804 = vunpack.c.l.b16 %v558
        %v3805 = vunpack.c.h.b16 %v558
        %v3806 = vunpack.c.l.b16 %v559
        %v3807 = vunpack.c.h.b16 %v559
        %v3808 = vunpack.c.l.b16 %v560
        %v3809 = vunpack.c.h.b16 %v560
        %v3810 = vunpack.c.l.b16 %v561
        %v3811 = vunpack.c.h.b16 %v561
        %v3812 = vunpack.c.l.b16 %v562
        %v3813 = vunpack.c.h.b16 %v562
        %v3814 = vunpack.c.l.b16 %v563
        %v3815 = vunpack.c.h.b16 %v563
        %v3816 = vunpack.c.l.b16 %v564
        %v3817 = vunpack.c.h.b16 %v564
        %v3818 = vunpack.c.l.b16 %v565
        %v3819 = vunpack.c.h.b16 %v565
        %v3820 = vunpack.c.l.b16 %v566
        %v3821 = vunpack.c.h.b16 %v566
        %v3822 = vunpack.c.l.b16 %v567
        %v3823 = vunpack.c.h.b16 %v567
        %v3824 = vunpack.c.l.b16 %v568
        %v3825 = vunpack.c.h.b16 %v568
        %v3826 = vunpack.c.l.b16 %v569
        %v3827 = vunpack.c.h.b16 %v569
        %v3828 = vunpack.c.l.b16 %v570
        %v3829 = vunpack.c.h.b16 %v570
        %v3830 = vunpack.c.l.b16 %v571
        %v3831 = vunpack.c.h.b16 %v571
        %v3832 = vunpack.c.l.b16 %v572
        %v3833 = vunpack.c.h.b16 %v572
        %v3834 = vunpack.c.l.b16 %v573
        %v3835 = vunpack.c.h.b16 %v573
        %v3836 = vunpack.c.l.b16 %v574
        %v3837 = vunpack.c.h.b16 %v574
        %v3838 = vunpack.c.l.b16 %v575
        %v3839 = vunpack.c.h.b16 %v575
        %v3840 = vunpack.c.l.b16 %v576
        %v3841 = vunpack.c.h.b16 %v576
        %v3842 = vunpack.c.l.b16 %v577
        %v3843 = vunpack.c.h.b16 %v577
        %v3844 = vunpack.c.l.b16 %v578
        %v3845 = vunpack.c.h.b16 %v578
        %v3846 = vunpack.c.l.b16 %v579
        %v3847 = vunpack.c.h.b16 %v579
        %v3848 = vunpack.c.l.b16 %v580
        %v3849 = vunpack.c.h.b16 %v580
        %v3850 = vunpack.c.l.b16 %v581
        %v3851 = vunpack.c.h.b16 %v581
        %v3852 = vunpack.c.l.b16 %v582
        %v3853 = vunpack.c.h.b16 %v582
        %v3854 = vunpack.c.l.b16 %v583
        %v3855 = vunpack.c.h.b16 %v583
        %v3856 = vunpack.c.l.b16 %v584
        %v3857 = vunpack.c.h.b16 %v584
        %v3858 = vunpack.c.l.b16 %v585
        %v3859 = vunpack.c.h.b16 %v585
        %v3860 = vunpack.c.l.b16 %v586
        %v3861 = vunpack.c.h.b16 %v586
        %v3862 = vunpack.c.l.b16 %v587
        %v3863 = vunpack.c.h.b16 %v587
        %v3864 = vunpack.c.l.b16 %v588
        %v3865 = vunpack.c.h.b16 %v588
        %v3866 = vunpack.c.l.b16 %v589
        %v3867 = vunpack.c.h.b16 %v589
        %v3868 = vunpack.c.l.b16 %v590
        %v3869 = vunpack.c.h.b16 %v590
        %v3870 = vunpack.c.l.b16 %v591
        %v3871 = vunpack.c.h.b16 %v591
        %v3872 = vunpack.c.l.b16 %v592
        %v3873 = vunpack.c.h.b16 %v592
        %v3874 = vunpack.c.l.b16 %v593
        %v3875 = vunpack.c.h.b16 %v593
        %v3876 = vunpack.c.l.b16 %v594
        %v3877 = vunpack.c.h.b16 %v594
        %v3878 = vunpack.c.l.b16 %v595
        %v3879 = vunpack.c.h.b16 %v595
        %v3880 = vunpack.c.l.b16 %v596
        %v3881 = vunpack.c.h.b16 %v596
        %v3882 = vunpack.c.l.b16 %v597
        %v3883 = vunpack.c.h.b16 %v597
        %v3884 = vunpack.c.l.b16 %v598
        %v3885 = vunpack.c.h.b16 %v598
        %v3886 = vunpack.c.l.b16 %v599
        %v3887 = vunpack.c.h.b16 %v599
        %v3888 = vunpack.c.l.b16 %v600
        %v3889 = vunpack.c.h.b16 %v600
        %v3890 = vunpack.c.l.b16 %v601
        %v3891 = vunpack.c.h.b16 %v601
        %v3892 = vunpack.c.l.b16 %v602
        %v3893 = vunpack.c.h.b16 %v602
        %v3894 = vunpack.c.l.b16 %v603
        %v3895 = vunpack.c.h.b16 %v603
        %v3896 = vunpack.c.l.b16 %v604
        %v3897 = vunpack.c.h.b16 %v604
        %v3898 = vunpack.c.l.b16 %v605
        %v3899 = vunpack.c.h.b16 %v605
        %v3900 = vunpack.c.l.b16 %v606
        %v3901 = vunpack.c.h.b16 %v606
        %v3902 = vunpack.c.l.b16 %v607
        %v3903 = vunpack.c.h.b16 %v607
        %v3904 = vunpack.c.l.b16 %v608
        %v3905 = vunpack.c.h.b16 %v608
        %v3906 = vunpack.c.l.b16 %v609
        %v3907 = vunpack.c.h.b16 %v609
        %v3908 = vunpack.c.l.b16 %v610
        %v3909 = vunpack.c.h.b16 %v610
        %v3910 = vunpack.c.l.b16 %v611
        %v3911 = vunpack.c.h.b16 %v611
        %v3912 = vunpack.c.l.b16 %v612
        %v3913 = vunpack.c.h.b16 %v612
        %v3914 = vunpack.c.l.b16 %v613
        %v3915 = vunpack.c.h.b16 %v613
        %v3916 = vunpack.c.l.b16 %v614
        %v3917 = vunpack.c.h.b16 %v614
        %v3918 = vunpack.c.l.b16 %v615
        %v3919 = vunpack.c.h.b16 %v615
        %v3920 = vunpack.c.l.b16 %v616
        %v3921 = vunpack.c.h.b16 %v616
        %v3922 = vunpack.c.l.b16 %v617
        %v3923 = vunpack.c.h.b16 %v617
        %v3924 = vunpack.c.l.b16 %v618
        %v3925 = vunpack.c.h.b16 %v618
        %v3926 = vunpack.c.l.b16 %v619
        %v3927 = vunpack.c.h.b16 %v619
        %v3928 = vunpack.c.l.b16 %v620
        %v3929 = vunpack.c.h.b16 %v620
        %v3930 = vunpack.c.l.b16 %v621
        %v3931 = vunpack.c.h.b16 %v621
        %v3932 = vunpack.c.l.b16 %v622
        %v3933 = vunpack.c.h.b16 %v622
        %v3934 = vunpack.c.l.b16 %v623
        %v3935 = vunpack.c.h.b16 %v623
        %v3936 = vunpack.c.l.b16 %v624
        %v3937 = vunpack.c.h.b16 %v624
        %v3938 = vunpack.c.l.b16 %v625
        %v3939 = vunpack.c.h.b16 %v625
        %v3940 = vunpack.c.l.b16 %v626
        %v3941 = vunpack.c.h.b16 %v626
        %v3942 = vunpack.c.l.b16 %v627
        %v3943 = vunpack.c.h.b16 %v627
        %v3944 = vunpack.c.l.b16 %v628
        %v3945 = vunpack.c.h.b16 %v628
        %v3946 = vunpack.c.l.b16 %v629
        %v3947 = vunpack.c.h.b16 %v629
        %v3948 = vunpack.c.l.b16 %v630
        %v3949 = vunpack.c.h.b16 %v630
        %v3950 = vunpack.c.l.b16 %v631
        %v3951 = vunpack.c.h.b16 %v631
        %v3952 = vunpack.c.l.b16 %v632
        %v3953 = vunpack.c.h.b16 %v632
        %v3954 = vunpack.c.l.b16 %v633
        %v3955 = vunpack.c.h.b16 %v633
        %v3956 = vunpack.c.l.b16 %v634
        %v3957 = vunpack.c.h.b16 %v634
        %v3958 = vunpack.c.l.b16 %v635
        %v3959 = vunpack.c.h.b16 %v635
        %v3960 = vunpack.c.l.b16 %v636
        %v3961 = vunpack.c.h.b16 %v636
        %v3962 = vunpack.c.l.b16 %v637
        %v3963 = vunpack.c.h.b16 %v637
        %v3964 = vunpack.c.l.b16 %v638
        %v3965 = vunpack.c.h.b16 %v638
        %v3966 = vunpack.c.l.b16 %v639
        %v3967 = vunpack.c.h.b16 %v639
        %v3968 = vunpack.c.l.b16 %v640
        %v3969 = vunpack.c.h.b16 %v640
        %v3970 = vunpack.c.l.b16 %v641
        %v3971 = vunpack.c.h.b16 %v641
        %v3972 = vunpack.c.l.b16 %v642
        %v3973 = vunpack.c.h.b16 %v642
        %v3974 = vunpack.c.l.b16 %v643
        %v3975 = vunpack.c.h.b16 %v643
        %v3976 = vunpack.c.l.b16 %v644
        %v3977 = vunpack.c.h.b16 %v644
        %v3978 = vunpack.c.l.b16 %v645
        %v3979 = vunpack.c.h.b16 %v645
        %v3980 = vunpack.c.l.b16 %v646
        %v3981 = vunpack.c.h.b16 %v646
        %v3982 = vunpack.c.l.b16 %v647
        %v3983 = vunpack.c.h.b16 %v647
        %v3984 = vunpack.c.l.b16 %v648
        %v3985 = vunpack.c.h.b16 %v648
        %v3986 = vunpack.c.l.b16 %v649
        %v3987 = vunpack.c.h.b16 %v649
        %v3988 = vunpack.c.l.b16 %v650
        %v3989 = vunpack.c.h.b16 %v650
        %v3990 = vunpack.c.l.b16 %v651
        %v3991 = vunpack.c.h.b16 %v651
        %v3992 = vunpack.c.l.b16 %v652
        %v3993 = vunpack.c.h.b16 %v652
        %v3994 = vunpack.c.l.b16 %v653
        %v3995 = vunpack.c.h.b16 %v653
        %v3996 = vunpack.c.l.b16 %v654
        %v3997 = vunpack.c.h.b16 %v654
        %v3998 = vunpack.c.l.b16 %v655
        %v3999 = vunpack.c.h.b16 %v655
        %v4000 = vunpack.c.l.b16 %v656
        %v4001 = vunpack.c.h.b16 %v656
        %v4002 = vunpack.c.l.b16 %v657
        %v4003 = vunpack.c.h.b16 %v657
        %v4004 = vunpack.c.l.b16 %v658
        %v4005 = vunpack.c.h.b16 %v658
        %v4006 = vunpack.c.l.b16 %v659
        %v4007 = vunpack.c.h.b16 %v659
        %v4008 = vunpack.c.l.b16 %v660
        %v4009 = vunpack.c.h.b16 %v660
        %v4010 = vunpack.c.l.b16 %v661
        %v4011 = vunpack.c.h.b16 %v661
        %v4012 = vunpack.c.l.b16 %v662
        %v4013 = vunpack.c.h.b16 %v662
        %v4014 = vunpack.c.l.b16 %v663
        %v4015 = vunpack.c.h.b16 %v663
        %v4016 = vunpack.c.l.b16 %v664
        %v4017 = vunpack.c.h.b16 %v664
        %v4018 = vunpack.c.l.b16 %v665
        %v4019 = vunpack.c.h.b16 %v665
        %v4020 = vunpack.c.l.b16 %v666
        %v4021 = vunpack.c.h.b16 %v666
        %v4022 = vunpack.c.l.b16 %v667
        %v4023 = vunpack.c.h.b16 %v667
        %v4024 = vunpack.c.l.b16 %v668
        %v4025 = vunpack.c.h.b16 %v668
        %v4026 = vunpack.c.l.b16 %v669
        %v4027 = vunpack.c.h.b16 %v669
        %v4028 = vunpack.c.l.b16 %v670
        %v4029 = vunpack.c.h.b16 %v670
        %v4030 = vunpack.c.l.b16 %v671
        %v4031 = vunpack.c.h.b16 %v671
        %v4032 = vunpack.c.l.b16 %v672
        %v4033 = vunpack.c.h.b16 %v672
        %v4034 = vunpack.c.l.b16 %v673
        %v4035 = vunpack.c.h.b16 %v673
        %v4036 = vunpack.c.l.b16 %v674
        %v4037 = vunpack.c.h.b16 %v674
        %v4038 = vunpack.c.l.b16 %v675
        %v4039 = vunpack.c.h.b16 %v675
        %v4040 = vunpack.c.l.b16 %v676
        %v4041 = vunpack.c.h.b16 %v676
        %v4042 = vunpack.c.l.b16 %v677
        %v4043 = vunpack.c.h.b16 %v677
        %v4044 = vunpack.c.l.b16 %v678
        %v4045 = vunpack.c.h.b16 %v678
        %v4046 = vunpack.c.l.b16 %v679
        %v4047 = vunpack.c.h.b16 %v679
        %v4048 = vunpack.c.l.b16 %v680
        %v4049 = vunpack.c.h.b16 %v680
        %v4050 = vunpack.c.l.b16 %v681
        %v4051 = vunpack.c.h.b16 %v681
        %v4052 = vunpack.c.l.b16 %v682
        %v4053 = vunpack.c.h.b16 %v682
        %v4054 = vunpack.c.l.b16 %v683
        %v4055 = vunpack.c.h.b16 %v683
        %v4056 = vunpack.c.l.b16 %v684
        %v4057 = vunpack.c.h.b16 %v684
        %v4058 = vunpack.c.l.b16 %v685
        %v4059 = vunpack.c.h.b16 %v685
        %v4060 = vunpack.c.l.b16 %v686
        %v4061 = vunpack.c.h.b16 %v686
        %v4062 = vunpack.c.l.b16 %v687
        %v4063 = vunpack.c.h.b16 %v687
        %v4064 = vunpack.c.l.b16 %v688
        %v4065 = vunpack.c.h.b16 %v688
        %v4066 = vunpack.c.l.b16 %v689
        %v4067 = vunpack.c.h.b16 %v689
        %v4068 = vunpack.c.l.b16 %v690
        %v4069 = vunpack.c.h.b16 %v690
        %v4070 = vunpack.c.l.b16 %v691
        %v4071 = vunpack.c.h.b16 %v691
        %v4072 = vunpack.c.l.b16 %v692
        %v4073 = vunpack.c.h.b16 %v692
        %v4074 = vunpack.c.l.b16 %v693
        %v4075 = vunpack.c.h.b16 %v693
        %v4076 = vunpack.c.l.b16 %v694
        %v4077 = vunpack.c.h.b16 %v694
        %v4078 = vunpack.c.l.b16 %v695
        %v4079 = vunpack.c.h.b16 %v695
        %v4080 = vunpack.c.l.b16 %v696
        %v4081 = vunpack.c.h.b16 %v696
        %v4082 = vunpack.c.l.b16 %v697
        %v4083 = vunpack.c.h.b16 %v697
        %v4084 = vunpack.c.l.b16 %v698
        %v4085 = vunpack.c.h.b16 %v698
        %v4086 = vunpack.c.l.b16 %v699
        %v4087 = vunpack.c.h.b16 %v699
        %v4088 = vunpack.c.l.b16 %v700
        %v4089 = vunpack.c.h.b16 %v700
        %v4090 = vunpack.c.l.b16 %v701
        %v4091 = vunpack.c.h.b16 %v701
        %v4092 = vunpack.c.l.b16 %v702
        %v4093 = vunpack.c.h.b16 %v702
        %v4094 = vunpack.c.l.b16 %v703
        %v4095 = vunpack.c.h.b16 %v703
        %v4096 = vunpack.c.l.b16 %v704
        %v4097 = vunpack.c.h.b16 %v704
        %v4098 = vunpack.c.l.b16 %v705
        %v4099 = vunpack.c.h.b16 %v705
        %v4100 = vunpack.c.l.b16 %v706
        %v4101 = vunpack.c.h.b16 %v706
        %v4102 = vunpack.c.l.b16 %v707
        %v4103 = vunpack.c.h.b16 %v707
        %v4104 = vunpack.c.l.b16 %v708
        %v4105 = vunpack.c.h.b16 %v708
        %v4106 = vunpack.c.l.b16 %v709
        %v4107 = vunpack.c.h.b16 %v709
        %v4108 = vunpack.c.l.b16 %v710
        %v4109 = vunpack.c.h.b16 %v710
        %v4110 = vunpack.c.l.b16 %v711
        %v4111 = vunpack.c.h.b16 %v711
        %v4112 = vunpack.c.l.b16 %v712
        %v4113 = vunpack.c.h.b16 %v712
        %v4114 = vunpack.c.l.b16 %v713
        %v4115 = vunpack.c.h.b16 %v713
        %v4116 = vunpack.c.l.b16 %v714
        %v4117 = vunpack.c.h.b16 %v714
        %v4118 = vunpack.c.l.b16 %v715
        %v4119 = vunpack.c.h.b16 %v715
        %v4120 = vunpack.c.l.b16 %v716
        %v4121 = vunpack.c.h.b16 %v716
        %v4122 = vunpack.c.l.b16 %v717
        %v4123 = vunpack.c.h.b16 %v717
        %v4124 = vunpack.c.l.b16 %v718
        %v4125 = vunpack.c.h.b16 %v718
        %v4126 = vunpack.c.l.b16 %v719
        %v4127 = vunpack.c.h.b16 %v719
        %v4128 = vunpack.c.l.b16 %v720
        %v4129 = vunpack.c.h.b16 %v720
        %v4130 = vunpack.c.l.b16 %v721
        %v4131 = vunpack.c.h.b16 %v721
        %v4132 = vunpack.c.l.b16 %v722
        %v4133 = vunpack.c.h.b16 %v722
        %v4134 = vunpack.c.l.b16 %v723
        %v4135 = vunpack.c.h.b16 %v723
        %v4136 = vunpack.c.l.b16 %v724
        %v4137 = vunpack.c.h.b16 %v724
        %v4138 = vunpack.c.l.b16 %v725
        %v4139 = vunpack.c.h.b16 %v725
        %v4140 = vunpack.c.l.b16 %v726
        %v4141 = vunpack.c.h.b16 %v726
        %v4142 = vunpack.c.l.b16 %v727
        %v4143 = vunpack.c.h.b16 %v727
        %v4144 = vunpack.c.l.b16 %v728
        %v4145 = vunpack.c.h.b16 %v728
        %v4146 = vunpack.c.l.b16 %v729
        %v4147 = vunpack.c.h.b16 %v729
        %v4148 = vunpack.c.l.b16 %v730
        %v4149 = vunpack.c.h.b16 %v730
        %v4150 = vunpack.c.l.b16 %v731
        %v4151 = vunpack.c.h.b16 %v731
        %v4152 = vunpack.c.l.b16 %v732
        %v4153 = vunpack.c.h.b16 %v732
        %v4154 = vunpack.c.l.b16 %v733
        %v4155 = vunpack.c.h.b16 %v733
        %v4156 = vunpack.c.l.b16 %v734
        %v4157 = vunpack.c.h.b16 %v734
        %v4158 = vunpack.c.l.b16 %v735
        %v4159 = vunpack.c.h.b16 %v735
        %v4160 = vunpack.c.l.b16 %v736
        %v4161 = vunpack.c.h.b16 %v736
        %v4162 = vunpack.c.l.b16 %v737
        %v4163 = vunpack.c.h.b16 %v737
        %v4164 = vunpack.c.l.b16 %v738
        %v4165 = vunpack.c.h.b16 %v738
        %v4166 = vunpack.c.l.b16 %v739
        %v4167 = vunpack.c.h.b16 %v739
        %v4168 = vunpack.c.l.b16 %v740
        %v4169 = vunpack.c.h.b16 %v740
        %v4170 = vunpack.c.l.b16 %v741
        %v4171 = vunpack.c.h.b16 %v741
        %v4172 = vunpack.c.l.b16 %v742
        %v4173 = vunpack.c.h.b16 %v742
        %v4174 = vunpack.c.l.b16 %v743
        %v4175 = vunpack.c.h.b16 %v743
        %v4176 = vunpack.c.l.b16 %v744
        %v4177 = vunpack.c.h.b16 %v744
        %v4178 = vunpack.c.l.b16 %v745
        %v4179 = vunpack.c.h.b16 %v745
        %v4180 = vunpack.c.l.b16 %v746
        %v4181 = vunpack.c.h.b16 %v746
        %v4182 = vunpack.c.l.b16 %v747
        %v4183 = vunpack.c.h.b16 %v747
        %v4184 = vunpack.c.l.b16 %v748
        %v4185 = vunpack.c.h.b16 %v748
        %v4186 = vunpack.c.l.b16 %v749
        %v4187 = vunpack.c.h.b16 %v749
        %v4188 = vunpack.c.l.b16 %v750
        %v4189 = vunpack.c.h.b16 %v750
        %v4190 = vunpack.c.l.b16 %v751
        %v4191 = vunpack.c.h.b16 %v751
        %v4192 = vunpack.c.l.b16 %v752
        %v4193 = vunpack.c.h.b16 %v752
        %v4194 = vunpack.c.l.b16 %v753
        %v4195 = vunpack.c.h.b16 %v753
        %v4196 = vunpack.c.l.b16 %v754
        %v4197 = vunpack.c.h.b16 %v754
        %v4198 = vunpack.c.l.b16 %v755
        %v4199 = vunpack.c.h.b16 %v755
        %v4200 = vunpack.c.l.b16 %v756
        %v4201 = vunpack.c.h.b16 %v756
        %v4202 = vunpack.c.l.b16 %v757
        %v4203 = vunpack.c.h.b16 %v757
        %v4204 = vunpack.c.l.b16 %v758
        %v4205 = vunpack.c.h.b16 %v758
        %v4206 = vunpack.c.l.b16 %v759
        %v4207 = vunpack.c.h.b16 %v759
        %v4208 = vunpack.c.l.b16 %v760
        %v4209 = vunpack.c.h.b16 %v760
        %v4210 = vunpack.c.l.b16 %v761
        %v4211 = vunpack.c.h.b16 %v761
        %v4212 = vunpack.c.l.b16 %v762
        %v4213 = vunpack.c.h.b16 %v762
        %v4214 = vunpack.c.l.b16 %v763
        %v4215 = vunpack.c.h.b16 %v763
        %v4216 = vunpack.c.l.b16 %v764
        %v4217 = vunpack.c.h.b16 %v764
        %v4218 = vunpack.c.l.b16 %v765
        %v4219 = vunpack.c.h.b16 %v765
        %v4220 = vunpack.c.l.b16 %v766
        %v4221 = vunpack.c.h.b16 %v766
        %v4222 = vunpack.c.l.b16 %v767
        %v4223 = vunpack.c.h.b16 %v767
        %v4224 = vunpack.c.l.b16 %v768
        %v4225 = vunpack.c.h.b16 %v768
        %v4226 = vunpack.c.l.b16 %v769
        %v4227 = vunpack.c.h.b16 %v769
        %v4228 = vunpack.c.l.b16 %v770
        %v4229 = vunpack.c.h.b16 %v770
        %v4230 = vunpack.c.l.b16 %v771
        %v4231 = vunpack.c.h.b16 %v771
        %v4232 = vunpack.c.l.b16 %v772
        %v4233 = vunpack.c.h.b16 %v772
        %v4234 = vunpack.c.l.b16 %v773
        %v4235 = vunpack.c.h.b16 %v773
        %v4236 = vunpack.c.l.b16 %v774
        %v4237 = vunpack.c.h.b16 %v774
        %v4238 = vunpack.c.l.b16 %v775
        %v4239 = vunpack.c.h.b16 %v775
        %v4240 = vunpack.c.l.b16 %v776
        %v4241 = vunpack.c.h.b16 %v776
        %v4242 = vunpack.c.l.b16 %v777
        %v4243 = vunpack.c.h.b16 %v777
        %v4244 = vunpack.c.l.b16 %v778
        %v4245 = vunpack.c.h.b16 %v778
        %v4246 = vunpack.c.l.b16 %v779
        %v4247 = vunpack.c.h.b16 %v779
        %v4248 = vunpack.c.l.b16 %v780
        %v4249 = vunpack.c.h.b16 %v780
        %v4250 = vunpack.c.l.b16 %v781
        %v4251 = vunpack.c.h.b16 %v781
        %v4252 = vunpack.c.l.b16 %v782
        %v4253 = vunpack.c.h.b16 %v782
        %v4254 = vunpack.c.l.b16 %v783
        %v4255 = vunpack.c.h.b16 %v783
        %v4256 = vunpack.c.l.b16 %v784
        %v4257 = vunpack.c.h.b16 %v784
        %v4258 = vunpack.c.l.b16 %v785
        %v4259 = vunpack.c.h.b16 %v785
        %v4260 = vunpack.c.l.b16 %v786
        %v4261 = vunpack.c.h.b16 %v786
        %v4262 = vunpack.c.l.b16 %v787
        %v4263 = vunpack.c.h.b16 %v787
        %v4264 = vunpack.c.l.b16 %v788
        %v4265 = vunpack.c.h.b16 %v788
        %v4266 = vunpack.c.l.b16 %v789
        %v4267 = vunpack.c.h.b16 %v789
        %v4268 = vunpack.c.l.b16 %v790
        %v4269 = vunpack.c.h.b16 %v790
        %v4270 = vunpack.c.l.b16 %v791
        %v4271 = vunpack.c.h.b16 %v791
        %v4272 = vunpack.c.l.b16 %v792
        %v4273 = vunpack.c.h.b16 %v792
        %v4274 = vunpack.c.l.b16 %v793
        %v4275 = vunpack.c.h.b16 %v793
        %v4276 = vunpack.c.l.b16 %v794
        %v4277 = vunpack.c.h.b16 %v794
        %v4278 = vunpack.c.l.b16 %v795
        %v4279 = vunpack.c.h.b16 %v795
        %v4280 = vunpack.c.l.b16 %v796
        %v4281 = vunpack.c.h.b16 %v796
        %v4282 = vunpack.c.l.b16 %v797
        %v4283 = vunpack.c.h.b16 %v797
        %v4284 = vunpack.c.l.b16 %v798
        %v4285 = vunpack.c.h.b16 %v798
        %v4286 = vunpack.c.l.b16 %v799
        %v4287 = vunpack.c.h.b16 %v799
        %v4288 = vunpack.c.l.b16 %v800
        %v4289 = vunpack.c.h.b16 %v800
        %v4290 = vunpack.c.l.b16 %v801
        %v4291 = vunpack.c.h.b16 %v801
        %v4292 = vunpack.c.l.b16 %v802
        %v4293 = vunpack.c.h.b16 %v802
        %v4294 = vunpack.c.l.b16 %v803
        %v4295 = vunpack.c.h.b16 %v803
        %v4296 = vunpack.c.l.b16 %v804
        %v4297 = vunpack.c.h.b16 %v804
        %v4298 = vunpack.c.l.b16 %v805
        %v4299 = vunpack.c.h.b16 %v805
        %v4300 = vunpack.c.l.b16 %v806
        %v4301 = vunpack.c.h.b16 %v806
        %v4302 = vunpack.c.l.b16 %v807
        %v4303 = vunpack.c.h.b16 %v807
        %v4304 = vunpack.c.l.b16 %v808
        %v4305 = vunpack.c.h.b16 %v808
        %v4306 = vunpack.c.l.b16 %v809
        %v4307 = vunpack.c.h.b16 %v809
        %v4308 = vunpack.c.l.b16 %v810
        %v4309 = vunpack.c.h.b16 %v810
        %v4310 = vunpack.c.l.b16 %v811
        %v4311 = vunpack.c.h.b16 %v811
        %v4312 = vunpack.c.l.b16 %v812
        %v4313 = vunpack.c.h.b16 %v812
        %v4314 = vunpack.c.l.b16 %v813
        %v4315 = vunpack.c.h.b16 %v813
        %v4316 = vunpack.c.l.b16 %v814
        %v4317 = vunpack.c.h.b16 %v814
        %v4318 = vunpack.c.l.b16 %v815
        %v4319 = vunpack.c.h.b16 %v815
        %v4320 = vunpack.c.l.b16 %v816
        %v4321 = vunpack.c.h.b16 %v816
        %v4322 = vunpack.c.l.b16 %v817
        %v4323 = vunpack.c.h.b16 %v817
        %v4324 = vunpack.c.l.b16 %v818
        %v4325 = vunpack.c.h.b16 %v818
        %v4326 = vunpack.c.l.b16 %v819
        %v4327 = vunpack.c.h.b16 %v819
        %v4328 = vunpack.c.l.b16 %v820
        %v4329 = vunpack.c.h.b16 %v820
        %v4330 = vunpack.c.l.b16 %v821
        %v4331 = vunpack.c.h.b16 %v821
        %v4332 = vunpack.c.l.b16 %v822
        %v4333 = vunpack.c.h.b16 %v822
        %v4334 = vunpack.c.l.b16 %v823
        %v4335 = vunpack.c.h.b16 %v823
        %v4336 = vunpack.c.l.b16 %v824
        %v4337 = vunpack.c.h.b16 %v824
        %v4338 = vunpack.c.l.b16 %v825
        %v4339 = vunpack.c.h.b16 %v825
        %v4340 = vunpack.c.l.b16 %v826
        %v4341 = vunpack.c.h.b16 %v826
        %v4342 = vunpack.c.l.b16 %v827
        %v4343 = vunpack.c.h.b16 %v827
        %v4344 = vunpack.c.l.b16 %v828
        %v4345 = vunpack.c.h.b16 %v828
        %v4346 = vunpack.c.l.b16 %v829
        %v4347 = vunpack.c.h.b16 %v829
        %v4348 = vunpack.c.l.b16 %v830
        %v4349 = vunpack.c.h.b16 %v830
        %v4350 = vunpack.c.l.b16 %v831
        %v4351 = vunpack.c.h.b16 %v831
        %v4352 = vunpack.c.l.b16 %v832
        %v4353 = vunpack.c.h.b16 %v832
        %v4354 = vunpack.c.l.b16 %v833
        %v4355 = vunpack.c.h.b16 %v833
        %v4356 = vunpack.c.l.b16 %v834
        %v4357 = vunpack.c.h.b16 %v834
        %v4358 = vunpack.c.l.b16 %v835
        %v4359 = vunpack.c.h.b16 %v835
        %v4360 = vunpack.c.l.b16 %v836
        %v4361 = vunpack.c.h.b16 %v836
        %v4362 = vunpack.c.l.b16 %v837
        %v4363 = vunpack.c.h.b16 %v837
        %v4364 = vunpack.c.l.b16 %v838
        %v4365 = vunpack.c.h.b16 %v838
        %v4366 = vunpack.c.l.b16 %v839
        %v4367 = vunpack.c.h.b16 %v839
        %v4368 = vunpack.c.l.b16 %v840
        %v4369 = vunpack.c.h.b16 %v840
        %v4370 = vunpack.c.l.b16 %v841
        %v4371 = vunpack.c.h.b16 %v841
        %v4372 = vunpack.c.l.b16 %v842
        %v4373 = vunpack.c.h.b16 %v842
        %v4374 = vunpack.c.l.b16 %v843
        %v4375 = vunpack.c.h.b16 %v843
        %v4376 = vunpack.c.l.b16 %v844
        %v4377 = vunpack.c.h.b16 %v844
        %v4378 = vunpack.c.l.b16 %v845
        %v4379 = vunpack.c.h.b16 %v845
        %v4380 = vunpack.c.l.b16 %v846
        %v4381 = vunpack.c.h.b16 %v846
        %v4382 = vunpack.c.l.b16 %v847
        %v4383 = vunpack.c.h.b16 %v847
        %v4384 = vunpack.c.l.b16 %v848
        %v4385 = vunpack.c.h.b16 %v848
        %v4386 = vunpack.c.l.b16 %v849
        %v4387 = vunpack.c.h.b16 %v849
        %v4388 = vunpack.c.l.b16 %v850
        %v4389 = vunpack.c.h.b16 %v850
        %v4390 = vunpack.c.l.b16 %v851
        %v4391 = vunpack.c.h.b16 %v851
        %v4392 = vunpack.c.l.b16 %v852
        %v4393 = vunpack.c.h.b16 %v852
        %v4394 = vunpack.c.l.b16 %v853
        %v4395 = vunpack.c.h.b16 %v853
        %v4396 = vunpack.c.l.b16 %v854
        %v4397 = vunpack.c.h.b16 %v854
        %v4398 = vunpack.c.l.b16 %v855
        %v4399 = vunpack.c.h.b16 %v855
        %v4400 = vunpack.c.l.b16 %v856
        %v4401 = vunpack.c.h.b16 %v856
        %v4402 = vunpack.c.l.b16 %v857
        %v4403 = vunpack.c.h.b16 %v857
        %v4404 = vunpack.c.l.b16 %v858
        %v4405 = vunpack.c.h.b16 %v858
        %v4406 = vunpack.c.l.b16 %v859
        %v4407 = vunpack.c.h.b16 %v859
        %v4408 = vunpack.c.l.b16 %v860
        %v4409 = vunpack.c.h.b16 %v860
        %v4410 = vunpack.c.l.b16 %v861
        %v4411 = vunpack.c.h.b16 %v861
        %v4412 = vunpack.c.l.b16 %v862
        %v4413 = vunpack.c.h.b16 %v862
        %v4414 = vunpack.c.l.b16 %v863
        %v4415 = vunpack.c.h.b16 %v863
        %v4416 = vunpack.c.l.b16 %v864
        %v4417 = vunpack.c.h.b16 %v864
        %v4418 = vunpack.c.l.b16 %v865
        %v4419 = vunpack.c.h.b16 %v865
        %v4420 = vunpack.c.l.b16 %v866
        %v4421 = vunpack.c.h.b16 %v866
        %v4422 = vunpack.c.l.b16 %v867
        %v4423 = vunpack.c.h.b16 %v867
        %v4424 = vunpack.c.l.b16 %v868
        %v4425 = vunpack.c.h.b16 %v868
        %v4426 = vunpack.c.l.b16 %v869
        %v4427 = vunpack.c.h.b16 %v869
        %v4428 = vunpack.c.l.b16 %v870
        %v4429 = vunpack.c.h.b16 %v870
        %v4430 = vunpack.c.l.b16 %v871
        %v4431 = vunpack.c.h.b16 %v871
        %v4432 = vunpack.c.l.b16 %v872
        %v4433 = vunpack.c.h.b16 %v872
        %v4434 = vunpack.c.l.b16 %v873
        %v4435 = vunpack.c.h.b16 %v873
        %v4436 = vunpack.c.l.b16 %v874
        %v4437 = vunpack.c.h.b16 %v874
        %v4438 = vunpack.c.l.b16 %v875
        %v4439 = vunpack.c.h.b16 %v875
        %v4440 = vunpack.c.l.b16 %v876
        %v4441 = vunpack.c.h.b16 %v876
        %v4442 = vunpack.c.l.b16 %v877
        %v4443 = vunpack.c.h.b16 %v877
        %v4444 = vunpack.c.l.b16 %v878
        %v4445 = vunpack.c.h.b16 %v878
        %v4446 = vunpack.c.l.b16 %v879
        %v4447 = vunpack.c.h.b16 %v879
        %v4448 = vunpack.c.l.b16 %v880
        %v4449 = vunpack.c.h.b16 %v880
        %v4450 = vunpack.c.l.b16 %v881
        %v4451 = vunpack.c.h.b16 %v881
        %v4452 = vunpack.c.l.b16 %v882
        %v4453 = vunpack.c.h.b16 %v882
        %v4454 = vunpack.c.l.b16 %v883
        %v4455 = vunpack.c.h.b16 %v883
        %v4456 = vunpack.c.l.b16 %v884
        %v4457 = vunpack.c.h.b16 %v884
        %v4458 = vunpack.c.l.b16 %v885
        %v4459 = vunpack.c.h.b16 %v885
        %v4460 = vunpack.c.l.b16 %v886
        %v4461 = vunpack.c.h.b16 %v886
        %v4462 = vunpack.c.l.b16 %v887
        %v4463 = vunpack.c.h.b16 %v887
        %v4464 = vunpack.c.l.b16 %v888
        %v4465 = vunpack.c.h.b16 %v888
        %v4466 = vunpack.c.l.b16 %v889
        %v4467 = vunpack.c.h.b16 %v889
        %v4468 = vunpack.c.l.b16 %v890
        %v4469 = vunpack.c.h.b16 %v890
        %v4470 = vunpack.c.l.b16 %v891
        %v4471 = vunpack.c.h.b16 %v891
        %v4472 = vunpack.c.l.b16 %v892
        %v4473 = vunpack.c.h.b16 %v892
        %v4474 = vunpack.c.l.b16 %v893
        %v4475 = vunpack.c.h.b16 %v893
        %v4476 = vunpack.c.l.b16 %v894
        %v4477 = vunpack.c.h.b16 %v894
        %v4478 = vunpack.c.l.b16 %v895
        %v4479 = vunpack.c.h.b16 %v895
        %v4480 = vunpack.c.l.b16 %v896
        %v4481 = vunpack.c.h.b16 %v896
        %v4482 = vunpack.c.l.b16 %v897
        %v4483 = vunpack.c.h.b16 %v897
        %v4484 = vunpack.c.l.b16 %v898
        %v4485 = vunpack.c.h.b16 %v898
        %v4486 = vunpack.c.l.b16 %v899
        %v4487 = vunpack.c.h.b16 %v899
        %v4488 = vunpack.c.l.b16 %v900
        %v4489 = vunpack.c.h.b16 %v900
        %v4490 = vunpack.c.l.b16 %v901
        %v4491 = vunpack.c.h.b16 %v901
        %v4492 = vunpack.c.l.b16 %v902
        %v4493 = vunpack.c.h.b16 %v902
        %v4494 = vunpack.c.l.b16 %v903
        %v4495 = vunpack.c.h.b16 %v903
        %v4496 = vunpack.c.l.b16 %v904
        %v4497 = vunpack.c.h.b16 %v904
        %v4498 = vunpack.c.l.b16 %v905
        %v4499 = vunpack.c.h.b16 %v905
        %v4500 = vunpack.c.l.b16 %v906
        %v4501 = vunpack.c.h.b16 %v906
        %v4502 = vunpack.c.l.b16 %v907
        %v4503 = vunpack.c.h.b16 %v907
        %v4504 = vunpack.c.l.b16 %v908
        %v4505 = vunpack.c.h.b16 %v908
        %v4506 = vunpack.c.l.b16 %v909
        %v4507 = vunpack.c.h.b16 %v909
        %v4508 = vunpack.c.l.b16 %v910
        %v4509 = vunpack.c.h.b16 %v910
        %v4510 = vunpack.c.l.b16 %v911
        %v4511 = vunpack.c.h.b16 %v911
        %v4512 = vunpack.c.l.b16 %v912
        %v4513 = vunpack.c.h.b16 %v912
        %v4514 = vunpack.c.l.b16 %v913
        %v4515 = vunpack.c.h.b16 %v913
        %v4516 = vunpack.c.l.b16 %v914
        %v4517 = vunpack.c.h.b16 %v914
        %v4518 = vunpack.c.l.b16 %v915
        %v4519 = vunpack.c.h.b16 %v915
        %v4520 = vunpack.c.l.b16 %v916
        %v4521 = vunpack.c.h.b16 %v916
        %v4522 = vunpack.c.l.b16 %v917
        %v4523 = vunpack.c.h.b16 %v917
        %v4524 = vunpack.c.l.b16 %v918
        %v4525 = vunpack.c.h.b16 %v918
        %v4526 = vunpack.c.l.b16 %v919
        %v4527 = vunpack.c.h.b16 %v919
        %v4528 = vunpack.c.l.b16 %v920
        %v4529 = vunpack.c.h.b16 %v920
        %v4530 = vunpack.c.l.b16 %v921
        %v4531 = vunpack.c.h.b16 %v921
        %v4532 = vunpack.c.l.b16 %v922
        %v4533 = vunpack.c.h.b16 %v922
        %v4534 = vunpack.c.l.b16 %v923
        %v4535 = vunpack.c.h.b16 %v923
        %v4536 = vunpack.c.l.b16 %v924
        %v4537 = vunpack.c.h.b16 %v924
        %v4538 = vunpack.c.l.b16 %v925
        %v4539 = vunpack.c.h.b16 %v925
        %v4540 = vunpack.c.l.b16 %v926
        %v4541 = vunpack.c.h.b16 %v926
        %v4542 = vunpack.c.l.b16 %v927
        %v4543 = vunpack.c.h.b16 %v927
        %v4544 = vunpack.c.l.b16 %v928
        %v4545 = vunpack.c.h.b16 %v928
        %v4546 = vunpack.c.l.b16 %v929
        %v4547 = vunpack.c.h.b16 %v929
        %v4548 = vunpack.c.l.b16 %v930
        %v4549 = vunpack.c.h.b16 %v930
        %v4550 = vunpack.c.l.b16 %v931
        %v4551 = vunpack.c.h.b16 %v931
        %v4552 = vunpack.c.l.b16 %v932
        %v4553 = vunpack.c.h.b16 %v932
        %v4554 = vunpack.c.l.b16 %v933
        %v4555 = vunpack.c.h.b16 %v933
        %v4556 = vunpack.c.l.b16 %v934
        %v4557 = vunpack.c.h.b16 %v934
        %v4558 = vunpack.c.l.b16 %v935
        %v4559 = vunpack.c.h.b16 %v935
        %v4560 = vunpack.c.l.b16 %v936
        %v4561 = vunpack.c.h.b16 %v936
        %v4562 = vunpack.c.l.b16 %v937
        %v4563 = vunpack.c.h.b16 %v937
        %v4564 = vunpack.c.l.b16 %v938
        %v4565 = vunpack.c.h.b16 %v938
        %v4566 = vunpack.c.l.b16 %v939
        %v4567 = vunpack.c.h.b16 %v939
        %v4568 = vunpack.c.l.b16 %v940
        %v4569 = vunpack.c.h.b16 %v940
        %v4570 = vunpack.c.l.b16 %v941
        %v4571 = vunpack.c.h.b16 %v941
        %v4572 = vunpack.c.l.b16 %v942
        %v4573 = vunpack.c.h.b16 %v942
        %v4574 = vunpack.c.l.b16 %v943
        %v4575 = vunpack.c.h.b16 %v943
        %v4576 = vunpack.c.l.b16 %v944
        %v4577 = vunpack.c.h.b16 %v944
        %v4578 = vunpack.c.l.b16 %v945
        %v4579 = vunpack.c.h.b16 %v945
        %v4580 = vunpack.c.l.b16 %v946
        %v4581 = vunpack.c.h.b16 %v946
        %v4582 = vunpack.c.l.b16 %v947
        %v4583 = vunpack.c.h.b16 %v947
        %v4584 = vunpack.c.l.b16 %v948
        %v4585 = vunpack.c.h.b16 %v948
        %v4586 = vunpack.c.l.b16 %v949
        %v4587 = vunpack.c.h.b16 %v949
        %v4588 = vunpack.c.l.b16 %v950
        %v4589 = vunpack.c.h.b16 %v950
        %v4590 = vunpack.c.l.b16 %v951
        %v4591 = vunpack.c.h.b16 %v951
        %v4592 = vunpack.c.l.b16 %v952
        %v4593 = vunpack.c.h.b16 %v952
        %v4594 = vunpack.c.l.b16 %v953
        %v4595 = vunpack.c.h.b16 %v953
        %v4596 = vunpack.c.l.b16 %v954
        %v4597 = vunpack.c.h.b16 %v954
        %v4598 = vunpack.c.l.b16 %v955
        %v4599 = vunpack.c.h.b16 %v955
        %v4600 = vunpack.c.l.b16 %v956
        %v4601 = vunpack.c.h.b16 %v956
        %v4602 = vunpack.c.l.b16 %v957
        %v4603 = vunpack.c.h.b16 %v957
        %v4604 = vunpack.c.l.b16 %v958
        %v4605 = vunpack.c.h.b16 %v958
        %v4606 = vunpack.c.l.b16 %v959
        %v4607 = vunpack.c.h.b16 %v959
        %v4608 = vunpack.c.l.b16 %v960
        %v4609 = vunpack.c.h.b16 %v960
        %v4610 = vunpack.c.l.b16 %v961
        %v4611 = vunpack.c.h.b16 %v961
        %v4612 = vunpack.c.l.b16 %v962
        %v4613 = vunpack.c.h.b16 %v962
        %v4614 = vunpack.c.l.b16 %v963
        %v4615 = vunpack.c.h.b16 %v963
        %v4616 = vunpack.c.l.b16 %v964
        %v4617 = vunpack.c.h.b16 %v964
        %v4618 = vunpack.c.l.b16 %v965
        %v4619 = vunpack.c.h.b16 %v965
        %v4620 = vunpack.c.l.b16 %v966
        %v4621 = vunpack.c.h.b16 %v966
        %v4622 = vunpack.c.l.b16 %v967
        %v4623 = vunpack.c.h.b16 %v967
        %v4624 = vunpack.c.l.b16 %v968
        %v4625 = vunpack.c.h.b16 %v968
        %v4626 = vunpack.c.l.b16 %v969
        %v4627 = vunpack.c.h.b16 %v969
        %v4628 = vunpack.c.l.b16 %v970
        %v4629 = vunpack.c.h.b16 %v970
        %v4630 = vunpack.c.l.b16 %v971
        %v4631 = vunpack.c.h.b16 %v971
        %v4632 = vunpack.c.l.b16 %v972
        %v4633 = vunpack.c.h.b16 %v972
        %v4634 = vunpack.c.l.b16 %v973
        %v4635 = vunpack.c.h.b16 %v973
        %v4636 = vunpack.c.l.b16 %v974
        %v4637 = vunpack.c.h.b16 %v974
        %v4638 = vunpack.c.l.b16 %v975
        %v4639 = vunpack.c.h.b16 %v975
        %v4640 = vunpack.c.l.b16 %v976
        %v4641 = vunpack.c.h.b16 %v976
        %v4642 = vunpack.c.l.b16 %v977
        %v4643 = vunpack.c.h.b16 %v977
        %v4644 = vunpack.c.l.b16 %v978
        %v4645 = vunpack.c.h.b16 %v978
        %v4646 = vunpack.c.l.b16 %v979
        %v4647 = vunpack.c.h.b16 %v979
        %v4648 = vunpack.c.l.b16 %v980
        %v4649 = vunpack.c.h.b16 %v980
        %v4650 = vunpack.c.l.b16 %v981
        %v4651 = vunpack.c.h.b16 %v981
        %v4652 = vunpack.c.l.b16 %v982
        %v4653 = vunpack.c.h.b16 %v982
        %v4654 = vunpack.c.l.b16 %v983
        %v4655 = vunpack.c.h.b16 %v983
        %v4656 = vunpack.c.l.b16 %v984
        %v4657 = vunpack.c.h.b16 %v984
        %v4658 = vunpack.c.l.b16 %v985
        %v4659 = vunpack.c.h.b16 %v985
        %v4660 = vunpack.c.l.b16 %v986
        %v4661 = vunpack.c.h.b16 %v986
        %v4662 = vunpack.c.l.b16 %v987
        %v4663 = vunpack.c.h.b16 %v987
        %v4664 = vunpack.c.l.b16 %v988
        %v4665 = vunpack.c.h.b16 %v988
        %v4666 = vunpack.c.l.b16 %v989
        %v4667 = vunpack.c.h.b16 %v989
        %v4668 = vunpack.c.l.b16 %v990
        %v4669 = vunpack.c.h.b16 %v990
        %v4670 = vunpack.c.l.b16 %v991
        %v4671 = vunpack.c.h.b16 %v991
        %v4672 = vunpack.c.l.b16 %v992
        %v4673 = vunpack.c.h.b16 %v992
        %v4674 = vunpack.c.l.b16 %v993
        %v4675 = vunpack.c.h.b16 %v993
        %v4676 = vunpack.c.l.b16 %v994
        %v4677 = vunpack.c.h.b16 %v994
        %v4678 = vunpack.c.l.b16 %v995
        %v4679 = vunpack.c.h.b16 %v995
        %v4680 = vunpack.c.l.b16 %v996
        %v4681 = vunpack.c.h.b16 %v996
        %v4682 = vunpack.c.l.b16 %v997
        %v4683 = vunpack.c.h.b16 %v997
        %v4684 = vunpack.c.l.b16 %v998
        %v4685 = vunpack.c.h.b16 %v998
        %v4686 = vunpack.c.l.b16 %v999
        %v4687 = vunpack.c.h.b16 %v999
        %v4688 = vunpack.c.l.b16 %v1000
        %v4689 = vunpack.c.h.b16 %v1000
        %v4690 = vunpack.c.l.b16 %v1001
        %v4691 = vunpack.c.h.b16 %v1001
        %v4692 = vunpack.c.l.b16 %v1002
        %v4693 = vunpack.c.h.b16 %v1002
        %v4694 = vunpack.c.l.b16 %v1003
        %v4695 = vunpack.c.h.b16 %v1003
        %v4696 = vunpack.c.l.b16 %v1004
        %v4697 = vunpack.c.h.b16 %v1004
        %v4698 = vunpack.c.l.b16 %v1005
        %v4699 = vunpack.c.h.b16 %v1005
        %v4700 = vunpack.c.l.b16 %v1006
        %v4701 = vunpack.c.h.b16 %v1006
        %v4702 = vunpack.c.l.b16 %v1007
        %v4703 = vunpack.c.h.b16 %v1007
        %v4704 = vunpack.c.l.b16 %v1008
        %v4705 = vunpack.c.h.b16 %v1008
        %v4706 = vunpack.c.l.b16 %v1009
        %v4707 = vunpack.c.h.b16 %v1009
        %v4708 = vunpack.c.l.b16 %v1010
        %v4709 = vunpack.c.h.b16 %v1010
        %v4710 = vunpack.c.l.b16 %v1011
        %v4711 = vunpack.c.h.b16 %v1011
        %v4712 = vunpack.c.l.b16 %v1012
        %v4713 = vunpack.c.h.b16 %v1012
        %v4714 = vunpack.c.l.b16 %v1013
        %v4715 = vunpack.c.h.b16 %v1013
        %v4716 = vunpack.c.l.b16 %v1014
        %v4717 = vunpack.c.h.b16 %v1014
        %v4718 = vunpack.c.l.b16 %v1015
        %v4719 = vunpack.c.h.b16 %v1015
        %v4720 = vunpack.c.l.b16 %v1016
        %v4721 = vunpack.c.h.b16 %v1016
        %v4722 = vunpack.c.l.b16 %v1017
        %v4723 = vunpack.c.h.b16 %v1017
        %v4724 = vunpack.c.l.b16 %v1018
        %v4725 = vunpack.c.h.b16 %v1018
        %v4726 = vunpack.c.l.b16 %v1019
        %v4727 = vunpack.c.h.b16 %v1019
        %v4728 = vunpack.c.l.b16 %v1020
        %v4729 = vunpack.c.h.b16 %v1020
        %v4730 = vunpack.c.l.b16 %v1021
        %v4731 = vunpack.c.h.b16 %v1021
        %v4732 = vunpack.c.l.b16 %v1022
        %v4733 = vunpack.c.h.b16 %v1022
        %v4734 = vunpack.c.l.b16 %v1023
        %v4735 = vunpack.c.h.b16 %v1023
        %v4736 = vunpack.c.l.b16 %v1024
        %v4737 = vunpack.c.h.b16 %v1024
        %v4738 = vunpack.c.l.b16 %v1025
        %v4739 = vunpack.c.h.b16 %v1025
        %v4740 = vunpack.c.l.b16 %v1026
        %v4741 = vunpack.c.h.b16 %v1026
        %v4742 = vunpack.c.l.b16 %v1027
        %v4743 = vunpack.c.h.b16 %v1027
        %v4744 = vunpack.c.l.b16 %v1028
        %v4745 = vunpack.c.h.b16 %v1028
        %v4746 = vunpack.c.l.b16 %v1029
        %v4747 = vunpack.c.h.b16 %v1029
        %v4748 = vunpack.c.l.b16 %v1030
        %v4749 = vunpack.c.h.b16 %v1030
        %v4750 = vunpack.c.l.b16 %v1031
        %v4751 = vunpack.c.h.b16 %v1031
        %v4752 = vunpack.c.l.b16 %v1032
        %v4753 = vunpack.c.h.b16 %v1032
        %v4754 = vunpack.c.l.b16 %v1033
        %v4755 = vunpack.c.h.b16 %v1033
        %v4756 = vunpack.c.l.b16 %v1034
        %v4757 = vunpack.c.h.b16 %v1034
        %v4758 = vunpack.c.l.b16 %v1035
        %v4759 = vunpack.c.h.b16 %v1035
        %v4760 = vunpack.c.l.b16 %v1036
        %v4761 = vunpack.c.h.b16 %v1036
        %v4762 = vunpack.c.l.b16 %v1037
        %v4763 = vunpack.c.h.b16 %v1037
        %v4764 = vunpack.c.l.b16 %v1038
        %v4765 = vunpack.c.h.b16 %v1038
        %v4766 = vunpack.c.l.b16 %v1039
        %v4767 = vunpack.c.h.b16 %v1039
        %v4768 = vunpack.c.l.b16 %v1040
        %v4769 = vunpack.c.h.b16 %v1040
        %v4770 = vunpack.c.l.b16 %v1041
        %v4771 = vunpack.c.h.b16 %v1041
        %v4772 = vunpack.c.l.b16 %v1042
        %v4773 = vunpack.c.h.b16 %v1042
        %v4774 = vunpack.c.l.b16 %v1043
        %v4775 = vunpack.c.h.b16 %v1043
        %v4776 = vunpack.c.l.b16 %v1044
        %v4777 = vunpack.c.h.b16 %v1044
        %v4778 = vunpack.c.l.b16 %v1045
        %v4779 = vunpack.c.h.b16 %v1045
        %v4780 = vunpack.c.l.b16 %v1046
        %v4781 = vunpack.c.h.b16 %v1046
        %v4782 = vunpack.c.l.b16 %v1047
        %v4783 = vunpack.c.h.b16 %v1047
        %v4784 = vunpack.c.l.b16 %v1048
        %v4785 = vunpack.c.h.b16 %v1048
        %v4786 = vunpack.c.l.b16 %v1049
        %v4787 = vunpack.c.h.b16 %v1049
        %v4788 = vunpack.c.l.b16 %v1050
        %v4789 = vunpack.c.h.b16 %v1050
        %v4790 = vunpack.c.l.b16 %v1051
        %v4791 = vunpack.c.h.b16 %v1051
        %v4792 = vunpack.c.l.b16 %v1052
        %v4793 = vunpack.c.h.b16 %v1052
        %v4794 = vunpack.c.l.b16 %v1053
        %v4795 = vunpack.c.h.b16 %v1053
        %v4796 = vunpack.c.l.b16 %v1054
        %v4797 = vunpack.c.h.b16 %v1054
        %v4798 = vunpack.c.l.b16 %v1055
        %v4799 = vunpack.c.h.b16 %v1055
        %v4800 = vunpack.c.l.b16 %v1056
        %v4801 = vunpack.c.h.b16 %v1056
        %v4802 = vunpack.c.l.b16 %v1057
        %v4803 = vunpack.c.h.b16 %v1057
        %v4804 = vunpack.c.l.b16 %v1058
        %v4805 = vunpack.c.h.b16 %v1058
        %v4806 = vunpack.c.l.b16 %v1059
        %v4807 = vunpack.c.h.b16 %v1059
        %v4808 = vunpack.c.l.b16 %v1060
        %v4809 = vunpack.c.h.b16 %v1060
        %v4810 = vunpack.c.l.b16 %v1061
        %v4811 = vunpack.c.h.b16 %v1061
        %v4812 = vunpack.c.l.b16 %v1062
        %v4813 = vunpack.c.h.b16 %v1062
        %v4814 = vunpack.c.l.b16 %v1063
        %v4815 = vunpack.c.h.b16 %v1063
        %v4816 = vunpack.c.l.b16 %v1064
        %v4817 = vunpack.c.h.b16 %v1064
        %v4818 = vunpack.c.l.b16 %v1065
        %v4819 = vunpack.c.h.b16 %v1065
        %v4820 = vunpack.c.l.b16 %v1066
        %v4821 = vunpack.c.h.b16 %v1066
        %v4822 = vunpack.c.l.b16 %v1067
        %v4823 = vunpack.c.h.b16 %v1067
        %v4824 = vunpack.c.l.b16 %v1068
        %v4825 = vunpack.c.h.b16 %v1068
        %v4826 = vunpack.c.l.b16 %v1069
        %v4827 = vunpack.c.h.b16 %v1069
        %v4828 = vunpack.c.l.b16 %v1070
        %v4829 = vunpack.c.h.b16 %v1070
        %v4830 = vunpack.c.l.b16 %v1071
        %v4831 = vunpack.c.h.b16 %v1071
        %v4832 = vunpack.c.l.b16 %v1072
        %v4833 = vunpack.c.h.b16 %v1072
        %v4834 = vunpack.c.l.b16 %v1073
        %v4835 = vunpack.c.h.b16 %v1073
        %v4836 = vunpack.c.l.b16 %v1074
        %v4837 = vunpack.c.h.b16 %v1074
        %v4838 = vunpack.c.l.b16 %v1075
        %v4839 = vunpack.c.h.b16 %v1075
        %v4840 = vunpack.c.l.b16 %v1076
        %v4841 = vunpack.c.h.b16 %v1076
        %v4842 = vunpack.c.l.b16 %v1077
        %v4843 = vunpack.c.h.b16 %v1077
        %v4844 = vunpack.c.l.b16 %v1078
        %v4845 = vunpack.c.h.b16 %v1078
        %v4846 = vunpack.c.l.b16 %v1079
        %v4847 = vunpack.c.h.b16 %v1079
        %v4848 = vunpack.c.l.b16 %v1080
        %v4849 = vunpack.c.h.b16 %v1080
        %v4850 = vunpack.c.l.b16 %v1081
        %v4851 = vunpack.c.h.b16 %v1081
        %v4852 = vunpack.c.l.b16 %v1082
        %v4853 = vunpack.c.h.b16 %v1082
        %v4854 = vunpack.c.l.b16 %v1083
        %v4855 = vunpack.c.h.b16 %v1083
        %v4856 = vunpack.c.l.b16 %v1084
        %v4857 = vunpack.c.h.b16 %v1084
        %v4858 = vunpack.c.l.b16 %v1085
        %v4859 = vunpack.c.h.b16 %v1085
        %v4860 = vunpack.c.l.b16 %v1086
        %v4861 = vunpack.c.h.b16 %v1086
        %v4862 = vunpack.c.l.b16 %v1087
        %v4863 = vunpack.c.h.b16 %v1087
        %v4864 = vunpack.c.l.b16 %v1088
        %v4865 = vunpack.c.h.b16 %v1088
        %v4866 = vunpack.c.l.b16 %v1089
        %v4867 = vunpack.c.h.b16 %v1089
        %v4868 = vunpack.c.l.b16 %v1090
        %v4869 = vunpack.c.h.b16 %v1090
        %v4870 = vunpack.c.l.b16 %v1091
        %v4871 = vunpack.c.h.b16 %v1091
        %v4872 = vunpack.c.l.b16 %v1092
        %v4873 = vunpack.c.h.b16 %v1092
        %v4874 = vunpack.c.l.b16 %v1093
        %v4875 = vunpack.c.h.b16 %v1093
        %v4876 = vunpack.c.l.b16 %v1094
        %v4877 = vunpack.c.h.b16 %v1094
        %v4878 = vunpack.c.l.b16 %v1095
        %v4879 = vunpack.c.h.b16 %v1095
        %v4880 = vunpack.c.l.b16 %v1096
        %v4881 = vunpack.c.h.b16 %v1096
        %v4882 = vunpack.c.l.b16 %v1097
        %v4883 = vunpack.c.h.b16 %v1097
        %v4884 = vunpack.c.l.b16 %v1098
        %v4885 = vunpack.c.h.b16 %v1098
        %v4886 = vunpack.c.l.b16 %v1099
        %v4887 = vunpack.c.h.b16 %v1099
        %v4888 = vunpack.c.l.b16 %v1100
        %v4889 = vunpack.c.h.b16 %v1100
        %v4890 = vunpack.c.l.b16 %v1101
        %v4891 = vunpack.c.h.b16 %v1101
        %v4892 = vunpack.c.l.b16 %v1102
        %v4893 = vunpack.c.h.b16 %v1102
        %v4894 = vunpack.c.l.b16 %v1103
        %v4895 = vunpack.c.h.b16 %v1103
        %v4896 = vunpack.c.l.b16 %v1104
        %v4897 = vunpack.c.h.b16 %v1104
        %v4898 = vunpack.c.l.b16 %v1105
        %v4899 = vunpack.c.h.b16 %v1105
        %v4900 = vunpack.c.l.b16 %v1106
        %v4901 = vunpack.c.h.b16 %v1106
        %v4902 = vunpack.c.l.b16 %v1107
        %v4903 = vunpack.c.h.b16 %v1107
        %v4904 = vunpack.c.l.b16 %v1108
        %v4905 = vunpack.c.h.b16 %v1108
        %v4906 = vunpack.c.l.b16 %v1109
        %v4907 = vunpack.c.h.b16 %v1109
        %v4908 = vunpack.c.l.b16 %v1110
        %v4909 = vunpack.c.h.b16 %v1110
        %v4910 = vunpack.c.l.b16 %v1111
        %v4911 = vunpack.c.h.b16 %v1111
        %v4912 = vunpack.c.l.b16 %v1112
        %v4913 = vunpack.c.h.b16 %v1112
        %v4914 = vunpack.c.l.b16 %v1113
        %v4915 = vunpack.c.h.b16 %v1113
        %v4916 = vunpack.c.l.b16 %v1114
        %v4917 = vunpack.c.h.b16 %v1114
        %v4918 = vunpack.c.l.b16 %v1115
        %v4919 = vunpack.c.h.b16 %v1115
        %v4920 = vunpack.c.l.b16 %v1116
        %v4921 = vunpack.c.h.b16 %v1116
        %v4922 = vunpack.c.l.b16 %v1117
        %v4923 = vunpack.c.h.b16 %v1117
        %v4924 = vunpack.c.l.b16 %v1118
        %v4925 = vunpack.c.h.b16 %v1118
        %v4926 = vunpack.c.l.b16 %v1119
        %v4927 = vunpack.c.h.b16 %v1119
        %v4928 = vunpack.c.l.b16 %v1120
        %v4929 = vunpack.c.h.b16 %v1120
        %v4930 = vunpack.c.l.b16 %v1121
        %v4931 = vunpack.c.h.b16 %v1121
        %v4932 = vunpack.c.l.b16 %v1122
        %v4933 = vunpack.c.h.b16 %v1122
        %v4934 = vunpack.c.l.b16 %v1123
        %v4935 = vunpack.c.h.b16 %v1123
        %v4936 = vunpack.c.l.b16 %v1124
        %v4937 = vunpack.c.h.b16 %v1124
        %v4938 = vunpack.c.l.b16 %v1125
        %v4939 = vunpack.c.h.b16 %v1125
        %v4940 = vunpack.c.l.b16 %v1126
        %v4941 = vunpack.c.h.b16 %v1126
        %v4942 = vunpack.c.l.b16 %v1127
        %v4943 = vunpack.c.h.b16 %v1127
        %v4944 = vunpack.c.l.b16 %v1128
        %v4945 = vunpack.c.h.b16 %v1128
        %v4946 = vunpack.c.l.b16 %v1129
        %v4947 = vunpack.c.h.b16 %v1129
        %v4948 = vunpack.c.l.b16 %v1130
        %v4949 = vunpack.c.h.b16 %v1130
        %v4950 = vunpack.c.l.b16 %v1131
        %v4951 = vunpack.c.h.b16 %v1131
        %v4952 = vunpack.c.l.b16 %v1132
        %v4953 = vunpack.c.h.b16 %v1132
        %v4954 = vunpack.c.l.b16 %v1133
        %v4955 = vunpack.c.h.b16 %v1133
        %v4956 = vunpack.c.l.b16 %v1134
        %v4957 = vunpack.c.h.b16 %v1134
        %v4958 = vunpack.c.l.b16 %v1135
        %v4959 = vunpack.c.h.b16 %v1135
        %v4960 = vunpack.c.l.b16 %v1136
        %v4961 = vunpack.c.h.b16 %v1136
        %v4962 = vunpack.c.l.b16 %v1137
        %v4963 = vunpack.c.h.b16 %v1137
        %v4964 = vunpack.c.l.b16 %v1138
        %v4965 = vunpack.c.h.b16 %v1138
        %v4966 = vunpack.c.l.b16 %v1139
        %v4967 = vunpack.c.h.b16 %v1139
        %v4968 = vunpack.c.l.b16 %v1140
        %v4969 = vunpack.c.h.b16 %v1140
        %v4970 = vunpack.c.l.b16 %v1141
        %v4971 = vunpack.c.h.b16 %v1141
        %v4972 = vunpack.c.l.b16 %v1142
        %v4973 = vunpack.c.h.b16 %v1142
        %v4974 = vunpack.c.l.b16 %v1143
        %v4975 = vunpack.c.h.b16 %v1143
        %v4976 = vunpack.c.l.b16 %v1144
        %v4977 = vunpack.c.h.b16 %v1144
        %v4978 = vunpack.c.l.b16 %v1145
        %v4979 = vunpack.c.h.b16 %v1145
        %v4980 = vunpack.c.l.b16 %v1146
        %v4981 = vunpack.c.h.b16 %v1146
        %v4982 = vunpack.c.l.b16 %v1147
        %v4983 = vunpack.c.h.b16 %v1147
        %v4984 = vunpack.c.l.b16 %v1148
        %v4985 = vunpack.c.h.b16 %v1148
        %v4986 = vunpack.c.l.b16 %v1149
        %v4987 = vunpack.c.h.b16 %v1149
        %v4988 = vunpack.c.l.b16 %v1150
        %v4989 = vunpack.c.h.b16 %v1150
        %v4990 = vunpack.c.l.b16 %v1151
        %v4991 = vunpack.c.h.b16 %v1151
        %v4992 = vunpack.c.l.b16 %v1152
        %v4993 = vunpack.c.h.b16 %v1152
        %v4994 = vunpack.c.l.b16 %v1153
        %v4995 = vunpack.c.h.b16 %v1153
        %v4996 = vunpack.c.l.b16 %v1154
        %v4997 = vunpack.c.h.b16 %v1154
        %v4998 = vunpack.c.l.b16 %v1155
        %v4999 = vunpack.c.h.b16 %v1155
        %v5000 = vunpack.c.l.b16 %v1156
        %v5001 = vunpack.c.h.b16 %v1156
        %v5002 = vunpack.c.l.b16 %v1157
        %v5003 = vunpack.c.h.b16 %v1157
        %v5004 = vunpack.c.l.b16 %v1158
        %v5005 = vunpack.c.h.b16 %v1158
        %v5006 = vunpack.c.l.b16 %v1159
        %v5007 = vunpack.c.h.b16 %v1159
        %v5008 = vunpack.c.l.b16 %v1160
        %v5009 = vunpack.c.h.b16 %v1160
        %v5010 = vunpack.c.l.b16 %v1161
        %v5011 = vunpack.c.h.b16 %v1161
        %v5012 = vunpack.c.l.b16 %v1162
        %v5013 = vunpack.c.h.b16 %v1162
        %v5014 = vunpack.c.l.b16 %v1163
        %v5015 = vunpack.c.h.b16 %v1163
        %v5016 = vunpack.c.l.b16 %v1164
        %v5017 = vunpack.c.h.b16 %v1164
        %v5018 = vunpack.c.l.b16 %v1165
        %v5019 = vunpack.c.h.b16 %v1165
        %v5020 = vunpack.c.l.b16 %v1166
        %v5021 = vunpack.c.h.b16 %v1166
        %v5022 = vunpack.c.l.b16 %v1167
        %v5023 = vunpack.c.h.b16 %v1167
        %v5024 = vunpack.c.l.b16 %v1168
        %v5025 = vunpack.c.h.b16 %v1168
        %v5026 = vunpack.c.l.b16 %v1169
        %v5027 = vunpack.c.h.b16 %v1169
        %v5028 = vunpack.c.l.b16 %v1170
        %v5029 = vunpack.c.h.b16 %v1170
        %v5030 = vunpack.c.l.b16 %v1171
        %v5031 = vunpack.c.h.b16 %v1171
        %v5032 = vunpack.c.l.b16 %v1172
        %v5033 = vunpack.c.h.b16 %v1172
        %v5034 = vunpack.c.l.b16 %v1173
        %v5035 = vunpack.c.h.b16 %v1173
        %v5036 = vunpack.c.l.b16 %v1174
        %v5037 = vunpack.c.h.b16 %v1174
        %v5038 = vunpack.c.l.b16 %v1175
        %v5039 = vunpack.c.h.b16 %v1175
        %v5040 = vunpack.c.l.b16 %v1176
        %v5041 = vunpack.c.h.b16 %v1176
        %v5042 = vunpack.c.l.b16 %v1177
        %v5043 = vunpack.c.h.b16 %v1177
        %v5044 = vunpack.c.l.b16 %v1178
        %v5045 = vunpack.c.h.b16 %v1178
        %v5046 = vunpack.c.l.b16 %v1179
        %v5047 = vunpack.c.h.b16 %v1179
        %v5048 = vunpack.c.l.b16 %v1180
        %v5049 = vunpack.c.h.b16 %v1180
        %v5050 = vunpack.c.l.b16 %v1181
        %v5051 = vunpack.c.h.b16 %v1181
        %v5052 = vunpack.c.l.b16 %v1182
        %v5053 = vunpack.c.h.b16 %v1182
        %v5054 = vunpack.c.l.b16 %v1183
        %v5055 = vunpack.c.h.b16 %v1183
        %v5056 = vunpack.c.l.b16 %v1184
        %v5057 = vunpack.c.h.b16 %v1184
        %v5058 = vunpack.c.l.b16 %v1185
        %v5059 = vunpack.c.h.b16 %v1185
        %v5060 = vunpack.c.l.b16 %v1186
        %v5061 = vunpack.c.h.b16 %v1186
        %v5062 = vunpack.c.l.b16 %v1187
        %v5063 = vunpack.c.h.b16 %v1187
        %v5064 = vunpack.c.l.b16 %v1188
        %v5065 = vunpack.c.h.b16 %v1188
        %v5066 = vunpack.c.l.b16 %v1189
        %v5067 = vunpack.c.h.b16 %v1189
        %v5068 = vunpack.c.l.b16 %v1190
        %v5069 = vunpack.c.h.b16 %v1190
        %v5070 = vunpack.c.l.b16 %v1191
        %v5071 = vunpack.c.h.b16 %v1191
        %v5072 = vunpack.c.l.b16 %v1192
        %v5073 = vunpack.c.h.b16 %v1192
        %v5074 = vunpack.c.l.b16 %v1193
        %v5075 = vunpack.c.h.b16 %v1193
        %v5076 = vunpack.c.l.b16 %v1194
        %v5077 = vunpack.c.h.b16 %v1194
        %v5078 = vunpack.c.l.b16 %v1195
        %v5079 = vunpack.c.h.b16 %v1195
        %v5080 = vunpack.c.l.b16 %v1196
        %v5081 = vunpack.c.h.b16 %v1196
        %v5082 = vunpack.c.l.b16 %v1197
        %v5083 = vunpack.c.h.b16 %v1197
        %v5084 = vunpack.c.l.b16 %v1198
        %v5085 = vunpack.c.h.b16 %v1198
        %v5086 = vunpack.c.l.b16 %v1199
        %v5087 = vunpack.c.h.b16 %v1199
        %v5088 = vunpack.c.l.b16 %v1200
        %v5089 = vunpack.c.h.b16 %v1200
        %v5090 = vunpack.c.l.b16 %v1201
        %v5091 = vunpack.c.h.b16 %v1201
        %v5092 = vunpack.c.l.b16 %v1202
        %v5093 = vunpack.c.h.b16 %v1202
        %v5094 = vunpack.c.l.b16 %v1203
        %v5095 = vunpack.c.h.b16 %v1203
        %v5096 = vunpack.c.l.b16 %v1204
        %v5097 = vunpack.c.h.b16 %v1204
        %v5098 = vunpack.c.l.b16 %v1205
        %v5099 = vunpack.c.h.b16 %v1205
        %v5100 = vunpack.c.l.b16 %v1206
        %v5101 = vunpack.c.h.b16 %v1206
        %v5102 = vunpack.c.l.b16 %v1207
        %v5103 = vunpack.c.h.b16 %v1207
        %v5104 = vunpack.c.l.b16 %v1208
        %v5105 = vunpack.c.h.b16 %v1208
        %v5106 = vunpack.c.l.b16 %v1209
        %v5107 = vunpack.c.h.b16 %v1209
        %v5108 = vunpack.c.l.b16 %v1210
        %v5109 = vunpack.c.h.b16 %v1210
        %v5110 = vunpack.c.l.b16 %v1211
        %v5111 = vunpack.c.h.b16 %v1211
        %v5112 = vunpack.c.l.b16 %v1212
        %v5113 = vunpack.c.h.b16 %v1212
        %v5114 = vunpack.c.l.b16 %v1213
        %v5115 = vunpack.c.h.b16 %v1213
        %v5116 = vunpack.c.l.b16 %v1214
        %v5117 = vunpack.c.h.b16 %v1214
        %v5118 = vunpack.c.l.b16 %v1215
        %v5119 = vunpack.c.h.b16 %v1215
        %v5120 = vunpack.c.l.b16 %v1216
        %v5121 = vunpack.c.h.b16 %v1216
        %v5122 = vunpack.c.l.b16 %v1217
        %v5123 = vunpack.c.h.b16 %v1217
        %v5124 = vunpack.c.l.b16 %v1218
        %v5125 = vunpack.c.h.b16 %v1218
        %v5126 = vunpack.c.l.b16 %v1219
        %v5127 = vunpack.c.h.b16 %v1219
        %v5128 = vunpack.c.l.b16 %v1220
        %v5129 = vunpack.c.h.b16 %v1220
        %v5130 = vunpack.c.l.b16 %v1221
        %v5131 = vunpack.c.h.b16 %v1221
        %v5132 = vunpack.c.l.b16 %v1222
        %v5133 = vunpack.c.h.b16 %v1222
        %v5134 = vunpack.c.l.b16 %v1223
        %v5135 = vunpack.c.h.b16 %v1223
        %v5136 = vunpack.c.l.b16 %v1224
        %v5137 = vunpack.c.h.b16 %v1224
        %v5138 = vunpack.c.l.b16 %v1225
        %v5139 = vunpack.c.h.b16 %v1225
        %v5140 = vunpack.c.l.b16 %v1226
        %v5141 = vunpack.c.h.b16 %v1226
        %v5142 = vunpack.c.l.b16 %v1227
        %v5143 = vunpack.c.h.b16 %v1227
        %v5144 = vunpack.c.l.b16 %v1228
        %v5145 = vunpack.c.h.b16 %v1228
        %v5146 = vunpack.c.l.b16 %v1229
        %v5147 = vunpack.c.h.b16 %v1229
        %v5148 = vunpack.c.l.b16 %v1230
        %v5149 = vunpack.c.h.b16 %v1230
        %v5150 = vunpack.c.l.b16 %v1231
        %v5151 = vunpack.c.h.b16 %v1231
        %v5152 = vunpack.c.l.b16 %v1232
        %v5153 = vunpack.c.h.b16 %v1232
        %v5154 = vunpack.c.l.b16 %v1233
        %v5155 = vunpack.c.h.b16 %v1233
        %v5156 = vunpack.c.l.b16 %v1234
        %v5157 = vunpack.c.h.b16 %v1234
        %v5158 = vunpack.c.l.b16 %v1235
        %v5159 = vunpack.c.h.b16 %v1235
        %v5160 = vunpack.c.l.b16 %v1236
        %v5161 = vunpack.c.h.b16 %v1236
        %v5162 = vunpack.c.l.b16 %v1237
        %v5163 = vunpack.c.h.b16 %v1237
        %v5164 = vunpack.c.l.b16 %v1238
        %v5165 = vunpack.c.h.b16 %v1238
        %v5166 = vunpack.c.l.b16 %v1239
        %v5167 = vunpack.c.h.b16 %v1239
        %v5168 = vunpack.c.l.b16 %v1240
        %v5169 = vunpack.c.h.b16 %v1240
        %v5170 = vunpack.c.l.b16 %v1241
        %v5171 = vunpack.c.h.b16 %v1241
        %v5172 = vunpack.c.l.b16 %v1242
        %v5173 = vunpack.c.h.b16 %v1242
        %v5174 = vunpack.c.l.b16 %v1243
        %v5175 = vunpack.c.h.b16 %v1243
        %v5176 = vunpack.c.l.b16 %v1244
        %v5177 = vunpack.c.h.b16 %v1244
        %v5178 = vunpack.c.l.b16 %v1245
        %v5179 = vunpack.c.h.b16 %v1245
        %v5180 = vunpack.c.l.b16 %v1246
        %v5181 = vunpack.c.h.b16 %v1246
        %v5182 = vunpack.c.l.b16 %v1247
        %v5183 = vunpack.c.h.b16 %v1247
        %v5184 = vunpack.c.l.b16 %v1248
        %v5185 = vunpack.c.h.b16 %v1248
        %v5186 = vunpack.c.l.b16 %v1249
        %v5187 = vunpack.c.h.b16 %v1249
        %v5188 = vunpack.c.l.b16 %v1250
        %v5189 = vunpack.c.h.b16 %v1250
        %v5190 = vunpack.c.l.b16 %v1251
        %v5191 = vunpack.c.h.b16 %v1251
        %v5192 = vunpack.c.l.b16 %v1252
        %v5193 = vunpack.c.h.b16 %v1252
        %v5194 = vunpack.c.l.b16 %v1253
        %v5195 = vunpack.c.h.b16 %v1253
        %v5196 = vunpack.c.l.b16 %v1254
        %v5197 = vunpack.c.h.b16 %v1254
        %v5198 = vunpack.c.l.b16 %v1255
        %v5199 = vunpack.c.h.b16 %v1255
        %v5200 = vunpack.c.l.b16 %v1256
        %v5201 = vunpack.c.h.b16 %v1256
        %v5202 = vunpack.c.l.b16 %v1257
        %v5203 = vunpack.c.h.b16 %v1257
        %v5204 = vunpack.c.l.b16 %v1258
        %v5205 = vunpack.c.h.b16 %v1258
        %v5206 = vunpack.c.l.b16 %v1259
        %v5207 = vunpack.c.h.b16 %v1259
        %v5208 = vunpack.c.l.b16 %v1260
        %v5209 = vunpack.c.h.b16 %v1260
        %v5210 = vunpack.c.l.b16 %v1261
        %v5211 = vunpack.c.h.b16 %v1261
        %v5212 = vunpack.c.l.b16 %v1262
        %v5213 = vunpack.c.h.b16 %v1262
        %v5214 = vunpack.c.l.b16 %v1263
        %v5215 = vunpack.c.h.b16 %v1263
        %v5216 = vunpack.c.l.b16 %v1264
        %v5217 = vunpack.c.h.b16 %v1264
        %v5218 = vunpack.c.l.b16 %v1265
        %v5219 = vunpack.c.h.b16 %v1265
        %v5220 = vunpack.c.l.b16 %v1266
        %v5221 = vunpack.c.h.b16 %v1266
        %v5222 = vunpack.c.l.b16 %v1267
        %v5223 = vunpack.c.h.b16 %v1267
        %v5224 = vunpack.c.l.b16 %v1268
        %v5225 = vunpack.c.h.b16 %v1268
        %v5226 = vunpack.c.l.b16 %v1269
        %v5227 = vunpack.c.h.b16 %v1269
        %v5228 = vunpack.c.l.b16 %v1270
        %v5229 = vunpack.c.h.b16 %v1270
        %v5230 = vunpack.c.l.b16 %v1271
        %v5231 = vunpack.c.h.b16 %v1271
        %v5232 = vunpack.c.l.b16 %v1272
        %v5233 = vunpack.c.h.b16 %v1272
        %v5234 = vunpack.c.l.b16 %v1273
        %v5235 = vunpack.c.h.b16 %v1273
        %v5236 = vunpack.c.l.b16 %v1274
        %v5237 = vunpack.c.h.b16 %v1274
        %v5238 = vunpack.c.l.b16 %v1275
        %v5239 = vunpack.c.h.b16 %v1275
        %v5240 = vunpack.c.l.b16 %v1276
        %v5241 = vunpack.c.h.b16 %v1276
        %v5242 = vunpack.c.l.b16 %v1277
        %v5243 = vunpack.c.h.b16 %v1277
        %v5244 = vunpack.c.l.b16 %v1278
        %v5245 = vunpack.c.h.b16 %v1278
        %v5246 = vunpack.c.l.b16 %v1279
        %v5247 = vunpack.c.h.b16 %v1279
        %v5248 = vunpack.c.l.b16 %v1280
        %v5249 = vunpack.c.h.b16 %v1280
        %v5250 = vunpack.c.l.b16 %v1281
        %v5251 = vunpack.c.h.b16 %v1281
        %v5252 = vunpack.c.l.b16 %v1282
        %v5253 = vunpack.c.h.b16 %v1282
        %v5254 = vunpack.c.l.b16 %v1283
        %v5255 = vunpack.c.h.b16 %v1283
        %v5256 = vunpack.c.l.b16 %v1284
        %v5257 = vunpack.c.h.b16 %v1284
        %v5258 = vunpack.c.l.b16 %v1285
        %v5259 = vunpack.c.h.b16 %v1285
        %v5260 = vunpack.c.l.b16 %v1286
        %v5261 = vunpack.c.h.b16 %v1286
        %v5262 = vunpack.c.l.b16 %v1287
        %v5263 = vunpack.c.h.b16 %v1287
        %v5264 = vunpack.c.l.b16 %v1288
        %v5265 = vunpack.c.h.b16 %v1288
        %v5266 = vunpack.c.l.b16 %v1289
        %v5267 = vunpack.c.h.b16 %v1289
        %v5268 = vunpack.c.l.b16 %v1290
        %v5269 = vunpack.c.h.b16 %v1290
        %v5270 = vunpack.c.l.b16 %v1291
        %v5271 = vunpack.c.h.b16 %v1291
        %v5272 = vunpack.c.l.b16 %v1292
        %v5273 = vunpack.c.h.b16 %v1292
        %v5274 = vunpack.c.l.b16 %v1293
        %v5275 = vunpack.c.h.b16 %v1293
        %v5276 = vunpack.c.l.b16 %v1294
        %v5277 = vunpack.c.h.b16 %v1294
        %v5278 = vunpack.c.l.b16 %v1295
        %v5279 = vunpack.c.h.b16 %v1295
        %v5280 = vunpack.c.l.b16 %v1296
        %v5281 = vunpack.c.h.b16 %v1296
        %v5282 = vunpack.c.l.b16 %v1297
        %v5283 = vunpack.c.h.b16 %v1297
        %v5284 = vunpack.c.l.b16 %v1298
        %v5285 = vunpack.c.h.b16 %v1298
        %v5286 = vunpack.c.l.b16 %v1299
        %v5287 = vunpack.c.h.b16 %v1299
        %v5288 = vunpack.c.l.b16 %v1300
        %v5289 = vunpack.c.h.b16 %v1300
        %v5290 = vunpack.c.l.b16 %v1301
        %v5291 = vunpack.c.h.b16 %v1301
        %v5292 = vunpack.c.l.b16 %v1302
        %v5293 = vunpack.c.h.b16 %v1302
        %v5294 = vunpack.c.l.b16 %v1303
        %v5295 = vunpack.c.h.b16 %v1303
        %v5296 = vunpack.c.l.b16 %v1304
        %v5297 = vunpack.c.h.b16 %v1304
        %v5298 = vunpack.c.l.b16 %v1305
        %v5299 = vunpack.c.h.b16 %v1305
        %v5300 = vunpack.c.l.b16 %v1306
        %v5301 = vunpack.c.h.b16 %v1306
        %v5302 = vunpack.c.l.b16 %v1307
        %v5303 = vunpack.c.h.b16 %v1307
        %v5304 = vunpack.c.l.b16 %v1308
        %v5305 = vunpack.c.h.b16 %v1308
        %v5306 = vunpack.c.l.b16 %v1309
        %v5307 = vunpack.c.h.b16 %v1309
        %v5308 = vunpack.c.l.b16 %v1310
        %v5309 = vunpack.c.h.b16 %v1310
        %v5310 = vunpack.c.l.b16 %v1311
        %v5311 = vunpack.c.h.b16 %v1311
        %v5312 = vunpack.c.l.b16 %v1312
        %v5313 = vunpack.c.h.b16 %v1312
        %v5314 = vunpack.c.l.b16 %v1313
        %v5315 = vunpack.c.h.b16 %v1313
        %v5316 = vunpack.c.l.b16 %v1314
        %v5317 = vunpack.c.h.b16 %v1314
        %v5318 = vunpack.c.l.b16 %v1315
        %v5319 = vunpack.c.h.b16 %v1315
        %v5320 = vunpack.c.l.b16 %v1316
        %v5321 = vunpack.c.h.b16 %v1316
        %v5322 = vunpack.c.l.b16 %v1317
        %v5323 = vunpack.c.h.b16 %v1317
        %v5324 = vunpack.c.l.b16 %v1318
        %v5325 = vunpack.c.h.b16 %v1318
        %v5326 = vunpack.c.l.b16 %v1319
        %v5327 = vunpack.c.h.b16 %v1319
        %v5328 = vunpack.c.l.b16 %v1320
        %v5329 = vunpack.c.h.b16 %v1320
        %v5330 = vunpack.c.l.b16 %v1321
        %v5331 = vunpack.c.h.b16 %v1321
        %v5332 = vunpack.c.l.b16 %v1322
        %v5333 = vunpack.c.h.b16 %v1322
        %v5334 = vunpack.c.l.b16 %v1323
        %v5335 = vunpack.c.h.b16 %v1323
        %v5336 = vunpack.c.l.b16 %v1324
        %v5337 = vunpack.c.h.b16 %v1324
        %v5338 = vunpack.c.l.b16 %v1325
        %v5339 = vunpack.c.h.b16 %v1325
        %v5340 = vunpack.c.l.b16 %v1326
        %v5341 = vunpack.c.h.b16 %v1326
        %v5342 = vunpack.c.l.b16 %v1327
        %v5343 = vunpack.c.h.b16 %v1327
        %v5344 = vunpack.c.l.b16 %v1328
        %v5345 = vunpack.c.h.b16 %v1328
        %v5346 = vunpack.c.l.b16 %v1329
        %v5347 = vunpack.c.h.b16 %v1329
        %v5348 = vunpack.c.l.b16 %v1330
        %v5349 = vunpack.c.h.b16 %v1330
        %v5350 = vunpack.c.l.b16 %v1331
        %v5351 = vunpack.c.h.b16 %v1331
        %v5352 = vunpack.c.l.b16 %v1332
        %v5353 = vunpack.c.h.b16 %v1332
        %v5354 = vunpack.c.l.b16 %v1333
        %v5355 = vunpack.c.h.b16 %v1333
        %v5356 = vunpack.c.l.b16 %v1334
        %v5357 = vunpack.c.h.b16 %v1334
        %v5358 = vunpack.c.l.b16 %v1335
        %v5359 = vunpack.c.h.b16 %v1335
        %v5360 = vunpack.c.l.b16 %v1336
        %v5361 = vunpack.c.h.b16 %v1336
        %v5362 = vunpack.c.l.b16 %v1337
        %v5363 = vunpack.c.h.b16 %v1337
        %v5364 = vunpack.c.l.b16 %v1338
        %v5365 = vunpack.c.h.b16 %v1338
        %v5366 = vunpack.c.l.b16 %v1339
        %v5367 = vunpack.c.h.b16 %v1339
        %v5368 = vunpack.c.l.b16 %v1340
        %v5369 = vunpack.c.h.b16 %v1340
        %v5370 = vunpack.c.l.b16 %v1341
        %v5371 = vunpack.c.h.b16 %v1341
        %v5372 = vunpack.c.l.b16 %v1342
        %v5373 = vunpack.c.h.b16 %v1342
        %v5374 = vunpack.c.l.b16 %v1343
        %v5375 = vunpack.c.h.b16 %v1343
        %v5376 = vunpack.c.l.b16 %v1344
        %v5377 = vunpack.c.h.b16 %v1344
        %v5378 = vunpack.c.l.b16 %v1345
        %v5379 = vunpack.c.h.b16 %v1345
        %v5380 = vunpack.c.l.b16 %v1346
        %v5381 = vunpack.c.h.b16 %v1346
        %v5382 = vunpack.c.l.b16 %v1347
        %v5383 = vunpack.c.h.b16 %v1347
        %v5384 = vunpack.c.l.b16 %v1348
        %v5385 = vunpack.c.h.b16 %v1348
        %v5386 = vunpack.c.l.b16 %v1349
        %v5387 = vunpack.c.h.b16 %v1349
        %v5388 = vunpack.c.l.b16 %v1350
        %v5389 = vunpack.c.h.b16 %v1350
        %v5390 = vunpack.c.l.b16 %v1351
        %v5391 = vunpack.c.h.b16 %v1351
        %v5392 = vunpack.c.l.b16 %v1352
        %v5393 = vunpack.c.h.b16 %v1352
        %v5394 = vunpack.c.l.b16 %v1353
        %v5395 = vunpack.c.h.b16 %v1353
        %v5396 = vunpack.c.l.b16 %v1354
        %v5397 = vunpack.c.h.b16 %v1354
        %v5398 = vunpack.c.l.b16 %v1355
        %v5399 = vunpack.c.h.b16 %v1355
        %v5400 = vunpack.c.l.b16 %v1356
        %v5401 = vunpack.c.h.b16 %v1356
        %v5402 = vunpack.c.l.b16 %v1357
        %v5403 = vunpack.c.h.b16 %v1357
        %v5404 = vunpack.c.l.b16 %v1358
        %v5405 = vunpack.c.h.b16 %v1358
        %v5406 = vunpack.c.l.b16 %v1359
        %v5407 = vunpack.c.h.b16 %v1359
        %v5408 = vunpack.c.l.b16 %v1360
        %v5409 = vunpack.c.h.b16 %v1360
        %v5410 = vunpack.c.l.b16 %v1361
        %v5411 = vunpack.c.h.b16 %v1361
        %v5412 = vunpack.c.l.b16 %v1362
        %v5413 = vunpack.c.h.b16 %v1362
        %v5414 = vunpack.c.l.b16 %v1363
        %v5415 = vunpack.c.h.b16 %v1363
        %v5416 = vunpack.c.l.b16 %v1364
        %v5417 = vunpack.c.h.b16 %v1364
        %v5418 = vunpack.c.l.b16 %v1365
        %v5419 = vunpack.c.h.b16 %v1365
        %v5420 = vunpack.c.l.b16 %v1366
        %v5421 = vunpack.c.h.b16 %v1366
        %v5422 = vunpack.c.l.b16 %v1367
        %v5423 = vunpack.c.h.b16 %v1367
        %v5424 = vunpack.c.l.b16 %v1368
        %v5425 = vunpack.c.h.b16 %v1368
        %v5426 = vunpack.c.l.b16 %v1369
        %v5427 = vunpack.c.h.b16 %v1369
        %v5428 = vunpack.c.l.b16 %v1370
        %v5429 = vunpack.c.h.b16 %v1370
        %v5430 = vunpack.c.l.b16 %v1371
        %v5431 = vunpack.c.h.b16 %v1371
        %v5432 = vunpack.c.l.b16 %v1372
        %v5433 = vunpack.c.h.b16 %v1372
        %v5434 = vunpack.c.l.b16 %v1373
        %v5435 = vunpack.c.h.b16 %v1373
        %v5436 = vunpack.c.l.b16 %v1374
        %v5437 = vunpack.c.h.b16 %v1374
        %v5438 = vunpack.c.l.b16 %v1375
        %v5439 = vunpack.c.h.b16 %v1375
        %v5440 = vunpack.c.l.b16 %v1376
        %v5441 = vunpack.c.h.b16 %v1376
        %v5442 = vunpack.c.l.b16 %v1377
        %v5443 = vunpack.c.h.b16 %v1377
        %v5444 = vunpack.c.l.b16 %v1378
        %v5445 = vunpack.c.h.b16 %v1378
        %v5446 = vunpack.c.l.b16 %v1379
        %v5447 = vunpack.c.h.b16 %v1379
        %v5448 = vunpack.c.l.b16 %v1380
        %v5449 = vunpack.c.h.b16 %v1380
        %v5450 = vunpack.c.l.b16 %v1381
        %v5451 = vunpack.c.h.b16 %v1381
        %v5452 = vunpack.c.l.b16 %v1382
        %v5453 = vunpack.c.h.b16 %v1382
        %v5454 = vunpack.c.l.b16 %v1383
        %v5455 = vunpack.c.h.b16 %v1383
        %v5456 = vunpack.c.l.b16 %v1384
        %v5457 = vunpack.c.h.b16 %v1384
        %v5458 = vunpack.c.l.b16 %v1385
        %v5459 = vunpack.c.h.b16 %v1385
        %v5460 = vunpack.c.l.b16 %v1386
        %v5461 = vunpack.c.h.b16 %v1386
        %v5462 = vunpack.c.l.b16 %v1387
        %v5463 = vunpack.c.h.b16 %v1387
        %v5464 = vunpack.c.l.b16 %v1388
        %v5465 = vunpack.c.h.b16 %v1388
        %v5466 = vunpack.c.l.b16 %v1389
        %v5467 = vunpack.c.h.b16 %v1389
        %v5468 = vunpack.c.l.b16 %v1390
        %v5469 = vunpack.c.h.b16 %v1390
        %v5470 = vunpack.c.l.b16 %v1391
        %v5471 = vunpack.c.h.b16 %v1391
        %v5472 = vunpack.c.l.b16 %v1392
        %v5473 = vunpack.c.h.b16 %v1392
        %v5474 = vunpack.c.l.b16 %v1393
        %v5475 = vunpack.c.h.b16 %v1393
        %v5476 = vunpack.c.l.b16 %v1394
        %v5477 = vunpack.c.h.b16 %v1394
        %v5478 = vunpack.c.l.b16 %v1395
        %v5479 = vunpack.c.h.b16 %v1395
        %v5480 = vunpack.c.l.b16 %v1396
        %v5481 = vunpack.c.h.b16 %v1396
        %v5482 = vunpack.c.l.b16 %v1397
        %v5483 = vunpack.c.h.b16 %v1397
        %v5484 = vunpack.c.l.b16 %v1398
        %v5485 = vunpack.c.h.b16 %v1398
        %v5486 = vunpack.c.l.b16 %v1399
        %v5487 = vunpack.c.h.b16 %v1399
        %v5488 = vunpack.c.l.b16 %v1400
        %v5489 = vunpack.c.h.b16 %v1400
        %v5490 = vunpack.c.l.b16 %v1401
        %v5491 = vunpack.c.h.b16 %v1401
        %v5492 = vunpack.c.l.b16 %v1402
        %v5493 = vunpack.c.h.b16 %v1402
        %v5494 = vunpack.c.l.b16 %v1403
        %v5495 = vunpack.c.h.b16 %v1403
        %v5496 = vunpack.c.l.b16 %v1404
        %v5497 = vunpack.c.h.b16 %v1404
        %v5498 = vunpack.c.l.b16 %v1405
        %v5499 = vunpack.c.h.b16 %v1405
        %v5500 = vunpack.c.l.b16 %v1406
        %v5501 = vunpack.c.h.b16 %v1406
        %v5502 = vunpack.c.l.b16 %v1407
        %v5503 = vunpack.c.h.b16 %v1407
        %v5504 = vunpack.c.l.b16 %v1408
        %v5505 = vunpack.c.h.b16 %v1408
        %v5506 = vunpack.c.l.b16 %v1409
        %v5507 = vunpack.c.h.b16 %v1409
        %v5508 = vunpack.c.l.b16 %v1410
        %v5509 = vunpack.c.h.b16 %v1410
        %v5510 = vunpack.c.l.b16 %v1411
        %v5511 = vunpack.c.h.b16 %v1411
        %v5512 = vunpack.c.l.b16 %v1412
        %v5513 = vunpack.c.h.b16 %v1412
        %v5514 = vunpack.c.l.b16 %v1413
        %v5515 = vunpack.c.h.b16 %v1413
        %v5516 = vunpack.c.l.b16 %v1414
        %v5517 = vunpack.c.h.b16 %v1414
        %v5518 = vunpack.c.l.b16 %v1415
        %v5519 = vunpack.c.h.b16 %v1415
        %v5520 = vunpack.c.l.b16 %v1416
        %v5521 = vunpack.c.h.b16 %v1416
        %v5522 = vunpack.c.l.b16 %v1417
        %v5523 = vunpack.c.h.b16 %v1417
        %v5524 = vunpack.c.l.b16 %v1418
        %v5525 = vunpack.c.h.b16 %v1418
        %v5526 = vunpack.c.l.b16 %v1419
        %v5527 = vunpack.c.h.b16 %v1419
        %v5528 = vunpack.c.l.b16 %v1420
        %v5529 = vunpack.c.h.b16 %v1420
        %v5530 = vunpack.c.l.b16 %v1421
        %v5531 = vunpack.c.h.b16 %v1421
        %v5532 = vunpack.c.l.b16 %v1422
        %v5533 = vunpack.c.h.b16 %v1422
        %v5534 = vunpack.c.l.b16 %v1423
        %v5535 = vunpack.c.h.b16 %v1423
        %v5536 = vunpack.c.l.b16 %v1424
        %v5537 = vunpack.c.h.b16 %v1424
        %v5538 = vunpack.c.l.b16 %v1425
        %v5539 = vunpack.c.h.b16 %v1425
        %v5540 = vunpack.c.l.b16 %v1426
        %v5541 = vunpack.c.h.b16 %v1426
        %v5542 = vunpack.c.l.b16 %v1427
        %v5543 = vunpack.c.h.b16 %v1427
        %v5544 = vunpack.c.l.b16 %v1428
        %v5545 = vunpack.c.h.b16 %v1428
        %v5546 = vunpack.c.l.b16 %v1429
        %v5547 = vunpack.c.h.b16 %v1429
        %v5548 = vunpack.c.l.b16 %v1430
        %v5549 = vunpack.c.h.b16 %v1430
        %v5550 = vunpack.c.l.b16 %v1431
        %v5551 = vunpack.c.h.b16 %v1431
        %v5552 = vunpack.c.l.b16 %v1432
        %v5553 = vunpack.c.h.b16 %v1432
        %v5554 = vunpack.c.l.b16 %v1433
        %v5555 = vunpack.c.h.b16 %v1433
        %v5556 = vunpack.c.l.b16 %v1434
        %v5557 = vunpack.c.h.b16 %v1434
        %v5558 = vunpack.c.l.b16 %v1435
        %v5559 = vunpack.c.h.b16 %v1435
        %v5560 = vunpack.c.l.b16 %v1436
        %v5561 = vunpack.c.h.b16 %v1436
        %v5562 = vunpack.c.l.b16 %v1437
        %v5563 = vunpack.c.h.b16 %v1437
        %v5564 = vunpack.c.l.b16 %v1438
        %v5565 = vunpack.c.h.b16 %v1438
        %v5566 = vunpack.c.l.b16 %v1439
        %v5567 = vunpack.c.h.b16 %v1439
        %v5568 = vunpack.c.l.b16 %v1440
        %v5569 = vunpack.c.h.b16 %v1440
        %v5570 = vunpack.c.l.b16 %v1441
        %v5571 = vunpack.c.h.b16 %v1441
        %v5572 = vunpack.c.l.b16 %v1442
        %v5573 = vunpack.c.h.b16 %v1442
        %v5574 = vunpack.c.l.b16 %v1443
        %v5575 = vunpack.c.h.b16 %v1443
        %v5576 = vunpack.c.l.b16 %v1444
        %v5577 = vunpack.c.h.b16 %v1444
        %v5578 = vunpack.c.l.b16 %v1445
        %v5579 = vunpack.c.h.b16 %v1445
        %v5580 = vunpack.c.l.b16 %v1446
        %v5581 = vunpack.c.h.b16 %v1446
        %v5582 = vunpack.c.l.b16 %v1447
        %v5583 = vunpack.c.h.b16 %v1447
        %v5584 = vunpack.c.l.b16 %v1448
        %v5585 = vunpack.c.h.b16 %v1448
        %v5586 = vunpack.c.l.b16 %v1449
        %v5587 = vunpack.c.h.b16 %v1449
        %v5588 = vunpack.c.l.b16 %v1450
        %v5589 = vunpack.c.h.b16 %v1450
        %v5590 = vunpack.c.l.b16 %v1451
        %v5591 = vunpack.c.h.b16 %v1451
        %v5592 = vunpack.c.l.b16 %v1452
        %v5593 = vunpack.c.h.b16 %v1452
        %v5594 = vunpack.c.l.b16 %v1453
        %v5595 = vunpack.c.h.b16 %v1453
        %v5596 = vunpack.c.l.b16 %v1454
        %v5597 = vunpack.c.h.b16 %v1454
        %v5598 = vunpack.c.l.b16 %v1455
        %v5599 = vunpack.c.h.b16 %v1455
        %v5600 = vunpack.c.l.b16 %v1456
        %v5601 = vunpack.c.h.b16 %v1456
        %v5602 = vunpack.c.l.b16 %v1457
        %v5603 = vunpack.c.h.b16 %v1457
        %v5604 = vunpack.c.l.b16 %v1458
        %v5605 = vunpack.c.h.b16 %v1458
        %v5606 = vunpack.c.l.b16 %v1459
        %v5607 = vunpack.c.h.b16 %v1459
        %v5608 = vunpack.c.l.b16 %v1460
        %v5609 = vunpack.c.h.b16 %v1460
        %v5610 = vunpack.c.l.b16 %v1461
        %v5611 = vunpack.c.h.b16 %v1461
        %v5612 = vunpack.c.l.b16 %v1462
        %v5613 = vunpack.c.h.b16 %v1462
        %v5614 = vunpack.c.l.b16 %v1463
        %v5615 = vunpack.c.h.b16 %v1463
        %v5616 = vunpack.c.l.b16 %v1464
        %v5617 = vunpack.c.h.b16 %v1464
        %v5618 = vunpack.c.l.b16 %v1465
        %v5619 = vunpack.c.h.b16 %v1465
        %v5620 = vunpack.c.l.b16 %v1466
        %v5621 = vunpack.c.h.b16 %v1466
        %v5622 = vunpack.c.l.b16 %v1467
        %v5623 = vunpack.c.h.b16 %v1467
        %v5624 = vunpack.c.l.b16 %v1468
        %v5625 = vunpack.c.h.b16 %v1468
        %v5626 = vunpack.c.l.b16 %v1469
        %v5627 = vunpack.c.h.b16 %v1469
        %v5628 = vunpack.c.l.b16 %v1470
        %v5629 = vunpack.c.h.b16 %v1470
        %v5630 = vunpack.c.l.b16 %v1471
        %v5631 = vunpack.c.h.b16 %v1471
        %v5632 = vunpack.c.l.b16 %v1472
        %v5633 = vunpack.c.h.b16 %v1472
        %v5634 = vunpack.c.l.b16 %v1473
        %v5635 = vunpack.c.h.b16 %v1473
        %v5636 = vunpack.c.l.b16 %v1474
        %v5637 = vunpack.c.h.b16 %v1474
        %v5638 = vunpack.c.l.b16 %v1475
        %v5639 = vunpack.c.h.b16 %v1475
        %v5640 = vunpack.c.l.b16 %v1476
        %v5641 = vunpack.c.h.b16 %v1476
        %v5642 = vunpack.c.l.b16 %v1477
        %v5643 = vunpack.c.h.b16 %v1477
        %v5644 = vunpack.c.l.b16 %v1478
        %v5645 = vunpack.c.h.b16 %v1478
        %v5646 = vunpack.c.l.b16 %v1479
        %v5647 = vunpack.c.h.b16 %v1479
        %v5648 = vunpack.c.l.b16 %v1480
        %v5649 = vunpack.c.h.b16 %v1480
        %v5650 = vunpack.c.l.b16 %v1481
        %v5651 = vunpack.c.h.b16 %v1481
        %v5652 = vunpack.c.l.b16 %v1482
        %v5653 = vunpack.c.h.b16 %v1482
        %v5654 = vunpack.c.l.b16 %v1483
        %v5655 = vunpack.c.h.b16 %v1483
        %v5656 = vunpack.c.l.b16 %v1484
        %v5657 = vunpack.c.h.b16 %v1484
        %v5658 = vunpack.c.l.b16 %v1485
        %v5659 = vunpack.c.h.b16 %v1485
        %v5660 = vunpack.c.l.b16 %v1486
        %v5661 = vunpack.c.h.b16 %v1486
        %v5662 = vunpack.c.l.b16 %v1487
        %v5663 = vunpack.c.h.b16 %v1487
        %v5664 = vunpack.c.l.b16 %v1488
        %v5665 = vunpack.c.h.b16 %v1488
        %v5666 = vunpack.c.l.b16 %v1489
        %v5667 = vunpack.c.h.b16 %v1489
        %v5668 = vunpack.c.l.b16 %v1490
        %v5669 = vunpack.c.h.b16 %v1490
        %v5670 = vunpack.c.l.b16 %v1491
        %v5671 = vunpack.c.h.b16 %v1491
        %v5672 = vunpack.c.l.b16 %v1492
        %v5673 = vunpack.c.h.b16 %v1492
        %v5674 = vunpack.c.l.b16 %v1493
        %v5675 = vunpack.c.h.b16 %v1493
        %v5676 = vunpack.c.l.b16 %v1494
        %v5677 = vunpack.c.h.b16 %v1494
        %v5678 = vunpack.c.l.b16 %v1495
        %v5679 = vunpack.c.h.b16 %v1495
        %v5680 = vunpack.c.l.b16 %v1496
        %v5681 = vunpack.c.h.b16 %v1496
        %v5682 = vunpack.c.l.b16 %v1497
        %v5683 = vunpack.c.h.b16 %v1497
        %v5684 = vunpack.c.l.b16 %v1498
        %v5685 = vunpack.c.h.b16 %v1498
        %v5686 = vunpack.c.l.b16 %v1499
        %v5687 = vunpack.c.h.b16 %v1499
        %v5688 = vunpack.c.l.b16 %v1500
        %v5689 = vunpack.c.h.b16 %v1500
        %v5690 = vunpack.c.l.b16 %v1501
        %v5691 = vunpack.c.h.b16 %v1501
        %v5692 = vunpack.c.l.b16 %v1502
        %v5693 = vunpack.c.h.b16 %v1502
        %v5694 = vunpack.c.l.b16 %v1503
        %v5695 = vunpack.c.h.b16 %v1503
        %v5696 = vunpack.c.l.b16 %v1504
        %v5697 = vunpack.c.h.b16 %v1504
        %v5698 = vunpack.c.l.b16 %v1505
        %v5699 = vunpack.c.h.b16 %v1505
        %v5700 = vunpack.c.l.b16 %v1506
        %v5701 = vunpack.c.h.b16 %v1506
        %v5702 = vunpack.c.l.b16 %v1507
        %v5703 = vunpack.c.h.b16 %v1507
        %v5704 = vunpack.c.l.b16 %v1508
        %v5705 = vunpack.c.h.b16 %v1508
        %v5706 = vunpack.c.l.b16 %v1509
        %v5707 = vunpack.c.h.b16 %v1509
        %v5708 = vunpack.c.l.b16 %v1510
        %v5709 = vunpack.c.h.b16 %v1510
        %v5710 = vunpack.c.l.b16 %v1511
        %v5711 = vunpack.c.h.b16 %v1511
        %v5712 = vunpack.c.l.b16 %v1512
        %v5713 = vunpack.c.h.b16 %v1512
        %v5714 = vunpack.c.l.b16 %v1513
        %v5715 = vunpack.c.h.b16 %v1513
        %v5716 = vunpack.c.l.b16 %v1514
        %v5717 = vunpack.c.h.b16 %v1514
        %v5718 = vunpack.c.l.b16 %v1515
        %v5719 = vunpack.c.h.b16 %v1515
        %v5720 = vunpack.c.l.b16 %v1516
        %v5721 = vunpack.c.h.b16 %v1516
        %v5722 = vunpack.c.l.b16 %v1517
        %v5723 = vunpack.c.h.b16 %v1517
        %v5724 = vunpack.c.l.b16 %v1518
        %v5725 = vunpack.c.h.b16 %v1518
        %v5726 = vunpack.c.l.b16 %v1519
        %v5727 = vunpack.c.h.b16 %v1519
        %v5728 = vunpack.c.l.b16 %v1520
        %v5729 = vunpack.c.h.b16 %v1520
        %v5730 = vunpack.c.l.b16 %v1521
        %v5731 = vunpack.c.h.b16 %v1521
        %v5732 = vunpack.c.l.b16 %v1522
        %v5733 = vunpack.c.h.b16 %v1522
        %v5734 = vunpack.c.l.b16 %v1523
        %v5735 = vunpack.c.h.b16 %v1523
        %v5736 = vunpack.c.l.b16 %v1524
        %v5737 = vunpack.c.h.b16 %v1524
        %v5738 = vunpack.c.l.b16 %v1525
        %v5739 = vunpack.c.h.b16 %v1525
        %v5740 = vunpack.c.l.b16 %v1526
        %v5741 = vunpack.c.h.b16 %v1526
        %v5742 = vunpack.c.l.b16 %v1527
        %v5743 = vunpack.c.h.b16 %v1527
        %v5744 = vunpack.c.l.b16 %v1528
        %v5745 = vunpack.c.h.b16 %v1528
        %v5746 = vunpack.c.l.b16 %v1529
        %v5747 = vunpack.c.h.b16 %v1529
        %v5748 = vunpack.c.l.b16 %v1530
        %v5749 = vunpack.c.h.b16 %v1530
        %v5750 = vunpack.c.l.b16 %v1531
        %v5751 = vunpack.c.h.b16 %v1531
        %v5752 = vunpack.c.l.b16 %v1532
        %v5753 = vunpack.c.h.b16 %v1532
        %v5754 = vunpack.c.l.b16 %v1533
        %v5755 = vunpack.c.h.b16 %v1533
        %v5756 = vunpack.c.l.b16 %v1534
        %v5757 = vunpack.c.h.b16 %v1534
        %v5758 = vunpack.c.l.b16 %v1535
        %v5759 = vunpack.c.h.b16 %v1535
        %v5760 = vunpack.c.l.b16 %v1536
        %v5761 = vunpack.c.h.b16 %v1536
        %v5762 = vunpack.c.l.b16 %v1537
        %v5763 = vunpack.c.h.b16 %v1537
        %v5764 = vunpack.c.l.b16 %v1538
        %v5765 = vunpack.c.h.b16 %v1538
        %v5766 = vunpack.c.l.b16 %v1539
        %v5767 = vunpack.c.h.b16 %v1539
        %v5768 = vunpack.c.l.b16 %v1540
        %v5769 = vunpack.c.h.b16 %v1540
        %v5770 = vunpack.c.l.b16 %v1541
        %v5771 = vunpack.c.h.b16 %v1541
        %v5772 = vunpack.c.l.b16 %v1542
        %v5773 = vunpack.c.h.b16 %v1542
        %v5774 = vunpack.c.l.b16 %v1543
        %v5775 = vunpack.c.h.b16 %v1543
        %v5776 = vunpack.c.l.b16 %v1544
        %v5777 = vunpack.c.h.b16 %v1544
        %v5778 = vunpack.c.l.b16 %v1545
        %v5779 = vunpack.c.h.b16 %v1545
        %v5780 = vunpack.c.l.b16 %v1546
        %v5781 = vunpack.c.h.b16 %v1546
        %v5782 = vunpack.c.l.b16 %v1547
        %v5783 = vunpack.c.h.b16 %v1547
        %v5784 = vunpack.c.l.b16 %v1548
        %v5785 = vunpack.c.h.b16 %v1548
        %v5786 = vunpack.c.l.b16 %v1549
        %v5787 = vunpack.c.h.b16 %v1549
        %v5788 = vunpack.c.l.b16 %v1550
        %v5789 = vunpack.c.h.b16 %v1550
        %v5790 = vunpack.c.l.b16 %v1551
        %v5791 = vunpack.c.h.b16 %v1551
        %v5792 = vunpack.c.l.b16 %v1552
        %v5793 = vunpack.c.h.b16 %v1552
        %v5794 = vunpack.c.l.b16 %v1553
        %v5795 = vunpack.c.h.b16 %v1553
        %v5796 = vunpack.c.l.b16 %v1554
        %v5797 = vunpack.c.h.b16 %v1554
        %v5798 = vunpack.c.l.b16 %v1555
        %v5799 = vunpack.c.h.b16 %v1555
        %v5800 = vunpack.c.l.b16 %v1556
        %v5801 = vunpack.c.h.b16 %v1556
        %v5802 = vunpack.c.l.b16 %v1557
        %v5803 = vunpack.c.h.b16 %v1557
        %v5804 = vunpack.c.l.b16 %v1558
        %v5805 = vunpack.c.h.b16 %v1558
        %v5806 = vunpack.c.l.b16 %v1559
        %v5807 = vunpack.c.h.b16 %v1559
        %v5808 = vunpack.c.l.b16 %v1560
        %v5809 = vunpack.c.h.b16 %v1560
        %v5810 = vunpack.c.l.b16 %v1561
        %v5811 = vunpack.c.h.b16 %v1561
        %v5812 = vunpack.c.l.b16 %v1562
        %v5813 = vunpack.c.h.b16 %v1562
        %v5814 = vunpack.c.l.b16 %v1563
        %v5815 = vunpack.c.h.b16 %v1563
        %v5816 = vunpack.c.l.b16 %v1564
        %v5817 = vunpack.c.h.b16 %v1564
        %v5818 = vunpack.c.l.b16 %v1565
        %v5819 = vunpack.c.h.b16 %v1565
        %v5820 = vunpack.c.l.b16 %v1566
        %v5821 = vunpack.c.h.b16 %v1566
        %v5822 = vunpack.c.l.b16 %v1567
        %v5823 = vunpack.c.h.b16 %v1567
        %v5824 = vunpack.c.l.b16 %v1568
        %v5825 = vunpack.c.h.b16 %v1568
        %v5826 = vunpack.c.l.b16 %v1569
        %v5827 = vunpack.c.h.b16 %v1569
        %v5828 = vunpack.c.l.b16 %v1570
        %v5829 = vunpack.c.h.b16 %v1570
        %v5830 = vunpack.c.l.b16 %v1571
        %v5831 = vunpack.c.h.b16 %v1571
        %v5832 = vunpack.c.l.b16 %v1572
        %v5833 = vunpack.c.h.b16 %v1572
        %v5834 = vunpack.c.l.b16 %v1573
        %v5835 = vunpack.c.h.b16 %v1573
        %v5836 = vunpack.c.l.b16 %v1574
        %v5837 = vunpack.c.h.b16 %v1574
        %v5838 = vunpack.c.l.b16 %v1575
        %v5839 = vunpack.c.h.b16 %v1575
        %v5840 = vunpack.c.l.b16 %v1576
        %v5841 = vunpack.c.h.b16 %v1576
        %v5842 = vunpack.c.l.b16 %v1577
        %v5843 = vunpack.c.h.b16 %v1577
        %v5844 = vunpack.c.l.b16 %v1578
        %v5845 = vunpack.c.h.b16 %v1578
        %v5846 = vunpack.c.l.b16 %v1579
        %v5847 = vunpack.c.h.b16 %v1579
        %v5848 = vunpack.c.l.b16 %v1580
        %v5849 = vunpack.c.h.b16 %v1580
        %v5850 = vunpack.c.l.b16 %v1581
        %v5851 = vunpack.c.h.b16 %v1581
        %v5852 = vunpack.c.l.b16 %v1582
        %v5853 = vunpack.c.h.b16 %v1582
        %v5854 = vunpack.c.l.b16 %v1583
        %v5855 = vunpack.c.h.b16 %v1583
        %v5856 = vunpack.c.l.b16 %v1584
        %v5857 = vunpack.c.h.b16 %v1584
        %v5858 = vunpack.c.l.b16 %v1585
        %v5859 = vunpack.c.h.b16 %v1585
        %v5860 = vunpack.c.l.b16 %v1586
        %v5861 = vunpack.c.h.b16 %v1586
        %v5862 = vunpack.c.l.b16 %v1587
        %v5863 = vunpack.c.h.b16 %v1587
        %v5864 = vunpack.c.l.b16 %v1588
        %v5865 = vunpack.c.h.b16 %v1588
        %v5866 = vunpack.c.l.b16 %v1589
        %v5867 = vunpack.c.h.b16 %v1589
        %v5868 = vunpack.c.l.b16 %v1590
        %v5869 = vunpack.c.h.b16 %v1590
        %v5870 = vunpack.c.l.b16 %v1591
        %v5871 = vunpack.c.h.b16 %v1591
        %v5872 = vunpack.c.l.b16 %v1592
        %v5873 = vunpack.c.h.b16 %v1592
        %v5874 = vunpack.c.l.b16 %v1593
        %v5875 = vunpack.c.h.b16 %v1593
        %v5876 = vunpack.c.l.b16 %v1594
        %v5877 = vunpack.c.h.b16 %v1594
        %v5878 = vunpack.c.l.b16 %v1595
        %v5879 = vunpack.c.h.b16 %v1595
        %v5880 = vunpack.c.l.b16 %v1596
        %v5881 = vunpack.c.h.b16 %v1596
        %v5882 = vunpack.c.l.b16 %v1597
        %v5883 = vunpack.c.h.b16 %v1597
        %v5884 = vunpack.c.l.b16 %v1598
        %v5885 = vunpack.c.h.b16 %v1598
        %v5886 = vunpack.c.l.b16 %v1599
        %v5887 = vunpack.c.h.b16 %v1599
        %v5888 = vunpack.c.l.b16 %v1600
        %v5889 = vunpack.c.h.b16 %v1600
        %v5890 = vunpack.c.l.b16 %v1601
        %v5891 = vunpack.c.h.b16 %v1601
        %v5892 = vunpack.c.l.b16 %v1602
        %v5893 = vunpack.c.h.b16 %v1602
        %v5894 = vunpack.c.l.b16 %v1603
        %v5895 = vunpack.c.h.b16 %v1603
        %v5896 = vunpack.c.l.b16 %v1604
        %v5897 = vunpack.c.h.b16 %v1604
        %v5898 = vunpack.c.l.b16 %v1605
        %v5899 = vunpack.c.h.b16 %v1605
        %v5900 = vunpack.c.l.b16 %v1606
        %v5901 = vunpack.c.h.b16 %v1606
        %v5902 = vunpack.c.l.b16 %v1607
        %v5903 = vunpack.c.h.b16 %v1607
        %v5904 = vunpack.c.l.b16 %v1608
        %v5905 = vunpack.c.h.b16 %v1608
        %v5906 = vunpack.c.l.b16 %v1609
        %v5907 = vunpack.c.h.b16 %v1609
        %v5908 = vunpack.c.l.b16 %v1610
        %v5909 = vunpack.c.h.b16 %v1610
        %v5910 = vunpack.c.l.b16 %v1611
        %v5911 = vunpack.c.h.b16 %v1611
        %v5912 = vunpack.c.l.b16 %v1612
        %v5913 = vunpack.c.h.b16 %v1612
        %v5914 = vunpack.c.l.b16 %v1613
        %v5915 = vunpack.c.h.b16 %v1613
        %v5916 = vunpack.c.l.b16 %v1614
        %v5917 = vunpack.c.h.b16 %v1614
        %v5918 = vunpack.c.l.b16 %v1615
        %v5919 = vunpack.c.h.b16 %v1615
        %v5920 = vunpack.c.l.b16 %v1616
        %v5921 = vunpack.c.h.b16 %v1616
        %v5922 = vunpack.c.l.b16 %v1617
        %v5923 = vunpack.c.h.b16 %v1617
        %v5924 = vunpack.c.l.b16 %v1618
        %v5925 = vunpack.c.h.b16 %v1618
        %v5926 = vunpack.c.l.b16 %v1619
        %v5927 = vunpack.c.h.b16 %v1619
        %v5928 = vunpack.c.l.b16 %v1620
        %v5929 = vunpack.c.h.b16 %v1620
        %v5930 = vunpack.c.l.b16 %v1621
        %v5931 = vunpack.c.h.b16 %v1621
        %v5932 = vunpack.c.l.b16 %v1622
        %v5933 = vunpack.c.h.b16 %v1622
        %v5934 = vunpack.c.l.b16 %v1623
        %v5935 = vunpack.c.h.b16 %v1623
        %v5936 = vunpack.c.l.b16 %v1624
        %v5937 = vunpack.c.h.b16 %v1624
        %v5938 = vunpack.c.l.b16 %v1625
        %v5939 = vunpack.c.h.b16 %v1625
        %v5940 = vunpack.c.l.b16 %v1626
        %v5941 = vunpack.c.h.b16 %v1626
        %v5942 = vunpack.c.l.b16 %v1627
        %v5943 = vunpack.c.h.b16 %v1627
        %v5944 = vunpack.c.l.b16 %v1628
        %v5945 = vunpack.c.h.b16 %v1628
        %v5946 = vunpack.c.l.b16 %v1629
        %v5947 = vunpack.c.h.b16 %v1629
        %v5948 = vunpack.c.l.b16 %v1630
        %v5949 = vunpack.c.h.b16 %v1630
        %v5950 = vunpack.c.l.b16 %v1631
        %v5951 = vunpack.c.h.b16 %v1631
        %v5952 = vunpack.c.l.b16 %v1632
        %v5953 = vunpack.c.h.b16 %v1632
        %v5954 = vunpack.c.l.b16 %v1633
        %v5955 = vunpack.c.h.b16 %v1633
        %v5956 = vunpack.c.l.b16 %v1634
        %v5957 = vunpack.c.h.b16 %v1634
        %v5958 = vunpack.c.l.b16 %v1635
        %v5959 = vunpack.c.h.b16 %v1635
        %v5960 = vunpack.c.l.b16 %v1636
        %v5961 = vunpack.c.h.b16 %v1636
        %v5962 = vunpack.c.l.b16 %v1637
        %v5963 = vunpack.c.h.b16 %v1637
        %v5964 = vunpack.c.l.b16 %v1638
        %v5965 = vunpack.c.h.b16 %v1638
        %v5966 = vunpack.c.l.b16 %v1639
        %v5967 = vunpack.c.h.b16 %v1639
        %v5968 = vunpack.c.l.b16 %v1640
        %v5969 = vunpack.c.h.b16 %v1640
        %v5970 = vunpack.c.l.b16 %v1641
        %v5971 = vunpack.c.h.b16 %v1641
        %v5972 = vunpack.c.l.b16 %v1642
        %v5973 = vunpack.c.h.b16 %v1642
        %v5974 = vunpack.c.l.b16 %v1643
        %v5975 = vunpack.c.h.b16 %v1643
        %v5976 = vunpack.c.l.b16 %v1644
        %v5977 = vunpack.c.h.b16 %v1644
        %v5978 = vunpack.c.l.b16 %v1645
        %v5979 = vunpack.c.h.b16 %v1645
        %v5980 = vunpack.c.l.b16 %v1646
        %v5981 = vunpack.c.h.b16 %v1646
        %v5982 = vunpack.c.l.b16 %v1647
        %v5983 = vunpack.c.h.b16 %v1647
        %v5984 = vunpack.c.l.b16 %v1648
        %v5985 = vunpack.c.h.b16 %v1648
        %v5986 = vunpack.c.l.b16 %v1649
        %v5987 = vunpack.c.h.b16 %v1649
        %v5988 = vunpack.c.l.b16 %v1650
        %v5989 = vunpack.c.h.b16 %v1650
        %v5990 = vunpack.c.l.b16 %v1651
        %v5991 = vunpack.c.h.b16 %v1651
        %v5992 = vunpack.c.l.b16 %v1652
        %v5993 = vunpack.c.h.b16 %v1652
        %v5994 = vunpack.c.l.b16 %v1653
        %v5995 = vunpack.c.h.b16 %v1653
        %v5996 = vunpack.c.l.b16 %v1654
        %v5997 = vunpack.c.h.b16 %v1654
        %v5998 = vunpack.c.l.b16 %v1655
        %v5999 = vunpack.c.h.b16 %v1655
        %v6000 = vunpack.c.l.b16 %v1656
        %v6001 = vunpack.c.h.b16 %v1656
        %v6002 = vunpack.c.l.b16 %v1657
        %v6003 = vunpack.c.h.b16 %v1657
        %v6004 = vunpack.c.l.b16 %v1658
        %v6005 = vunpack.c.h.b16 %v1658
        %v6006 = vunpack.c.l.b16 %v1659
        %v6007 = vunpack.c.h.b16 %v1659
        %v6008 = vunpack.c.l.b16 %v1660
        %v6009 = vunpack.c.h.b16 %v1660
        %v6010 = vunpack.c.l.b16 %v1661
        %v6011 = vunpack.c.h.b16 %v1661
        %v6012 = vunpack.c.l.b16 %v1662
        %v6013 = vunpack.c.h.b16 %v1662
        %v6014 = vunpack.c.l.b16 %v1663
        %v6015 = vunpack.c.h.b16 %v1663
        %v6016 = vunpack.c.l.b16 %v1664
        %v6017 = vunpack.c.h.b16 %v1664
        %v6018 = vunpack.c.l.b16 %v1665
        %v6019 = vunpack.c.h.b16 %v1665
        %v6020 = vunpack.c.l.b16 %v1666
        %v6021 = vunpack.c.h.b16 %v1666
        %v6022 = vunpack.c.l.b16 %v1667
        %v6023 = vunpack.c.h.b16 %v1667
        %v6024 = vunpack.c.l.b16 %v1668
        %v6025 = vunpack.c.h.b16 %v1668
        %v6026 = vunpack.c.l.b16 %v1669
        %v6027 = vunpack.c.h.b16 %v1669
        %v6028 = vunpack.c.l.b16 %v1670
        %v6029 = vunpack.c.h.b16 %v1670
        %v6030 = vunpack.c.l.b16 %v1671
        %v6031 = vunpack.c.h.b16 %v1671
        %v6032 = vunpack.c.l.b16 %v1672
        %v6033 = vunpack.c.h.b16 %v1672
        %v6034 = vunpack.c.l.b16 %v1673
        %v6035 = vunpack.c.h.b16 %v1673
        %v6036 = vunpack.c.l.b16 %v1674
        %v6037 = vunpack.c.h.b16 %v1674
        %v6038 = vunpack.c.l.b16 %v1675
        %v6039 = vunpack.c.h.b16 %v1675
        %v6040 = vunpack.c.l.b16 %v1676
        %v6041 = vunpack.c.h.b16 %v1676
        %v6042 = vunpack.c.l.b16 %v1677
        %v6043 = vunpack.c.h.b16 %v1677
        %v6044 = vunpack.c.l.b16 %v1678
        %v6045 = vunpack.c.h.b16 %v1678
        %v6046 = vunpack.c.l.b16 %v1679
        %v6047 = vunpack.c.h.b16 %v1679
        %v6048 = vunpack.c.l.b16 %v1680
        %v6049 = vunpack.c.h.b16 %v1680
        %v6050 = vunpack.c.l.b16 %v1681
        %v6051 = vunpack.c.h.b16 %v1681
        %v6052 = vunpack.c.l.b16 %v1682
        %v6053 = vunpack.c.h.b16 %v1682
        %v6054 = vunpack.c.l.b16 %v1683
        %v6055 = vunpack.c.h.b16 %v1683
        %v6056 = vunpack.c.l.b16 %v1684
        %v6057 = vunpack.c.h.b16 %v1684
        %v6058 = vunpack.c.l.b16 %v1685
        %v6059 = vunpack.c.h.b16 %v1685
        %v6060 = vunpack.c.l.b16 %v1686
        %v6061 = vunpack.c.h.b16 %v1686
        %v6062 = vunpack.c.l.b16 %v1687
        %v6063 = vunpack.c.h.b16 %v1687
        %v6064 = vunpack.c.l.b16 %v1688
        %v6065 = vunpack.c.h.b16 %v1688
        %v6066 = vunpack.c.l.b16 %v1689
        %v6067 = vunpack.c.h.b16 %v1689
        %v6068 = vunpack.c.l.b16 %v1690
        %v6069 = vunpack.c.h.b16 %v1690
        %v6070 = vunpack.c.l.b16 %v1691
        %v6071 = vunpack.c.h.b16 %v1691
        %v6072 = vunpack.c.l.b16 %v1692
        %v6073 = vunpack.c.h.b16 %v1692
        %v6074 = vunpack.c.l.b16 %v1693
        %v6075 = vunpack.c.h.b16 %v1693
        %v6076 = vunpack.c.l.b16 %v1694
        %v6077 = vunpack.c.h.b16 %v1694
        %v6078 = vunpack.c.l.b16 %v1695
        %v6079 = vunpack.c.h.b16 %v1695
        %v6080 = vunpack.c.l.b16 %v1696
        %v6081 = vunpack.c.h.b16 %v1696
        %v6082 = vunpack.c.l.b16 %v1697
        %v6083 = vunpack.c.h.b16 %v1697
        %v6084 = vunpack.c.l.b16 %v1698
        %v6085 = vunpack.c.h.b16 %v1698
        %v6086 = vunpack.c.l.b16 %v1699
        %v6087 = vunpack.c.h.b16 %v1699
        %v6088 = vunpack.c.l.b16 %v1700
        %v6089 = vunpack.c.h.b16 %v1700
        %v6090 = vunpack.c.l.b16 %v1701
        %v6091 = vunpack.c.h.b16 %v1701
        %v6092 = vunpack.c.l.b16 %v1702
        %v6093 = vunpack.c.h.b16 %v1702
        %v6094 = vunpack.c.l.b16 %v1703
        %v6095 = vunpack.c.h.b16 %v1703
        %v6096 = vunpack.c.l.b16 %v1704
        %v6097 = vunpack.c.h.b16 %v1704
        %v6098 = vunpack.c.l.b16 %v1705
        %v6099 = vunpack.c.h.b16 %v1705
        %v6100 = vunpack.c.l.b16 %v1706
        %v6101 = vunpack.c.h.b16 %v1706
        %v6102 = vunpack.c.l.b16 %v1707
        %v6103 = vunpack.c.h.b16 %v1707
        %v6104 = vunpack.c.l.b16 %v1708
        %v6105 = vunpack.c.h.b16 %v1708
        %v6106 = vunpack.c.l.b16 %v1709
        %v6107 = vunpack.c.h.b16 %v1709
        %v6108 = vunpack.c.l.b16 %v1710
        %v6109 = vunpack.c.h.b16 %v1710
        %v6110 = vunpack.c.l.b16 %v1711
        %v6111 = vunpack.c.h.b16 %v1711
        %v6112 = vunpack.c.l.b16 %v1712
        %v6113 = vunpack.c.h.b16 %v1712
        %v6114 = vunpack.c.l.b16 %v1713
        %v6115 = vunpack.c.h.b16 %v1713
        %v6116 = vunpack.c.l.b16 %v1714
        %v6117 = vunpack.c.h.b16 %v1714
        %v6118 = vunpack.c.l.b16 %v1715
        %v6119 = vunpack.c.h.b16 %v1715
        %v6120 = vunpack.c.l.b16 %v1716
        %v6121 = vunpack.c.h.b16 %v1716
        %v6122 = vunpack.c.l.b16 %v1717
        %v6123 = vunpack.c.h.b16 %v1717
        %v6124 = vunpack.c.l.b16 %v1718
        %v6125 = vunpack.c.h.b16 %v1718
        %v6126 = vunpack.c.l.b16 %v1719
        %v6127 = vunpack.c.h.b16 %v1719
        %v6128 = vunpack.c.l.b16 %v1720
        %v6129 = vunpack.c.h.b16 %v1720
        %v6130 = vunpack.c.l.b16 %v1721
        %v6131 = vunpack.c.h.b16 %v1721
        %v6132 = vunpack.c.l.b16 %v1722
        %v6133 = vunpack.c.h.b16 %v1722
        %v6134 = vunpack.c.l.b16 %v1723
        %v6135 = vunpack.c.h.b16 %v1723
        %v6136 = vunpack.c.l.b16 %v1724
        %v6137 = vunpack.c.h.b16 %v1724
        %v6138 = vunpack.c.l.b16 %v1725
        %v6139 = vunpack.c.h.b16 %v1725
        %v6140 = vunpack.c.l.b16 %v1726
        %v6141 = vunpack.c.h.b16 %v1726
        %v6142 = vunpack.c.l.b16 %v1727
        %v6143 = vunpack.c.h.b16 %v1727
        %v6144 = vunpack.c.l.b16 %v1728
        %v6145 = vunpack.c.h.b16 %v1728
        %v6146 = vunpack.c.l.b16 %v1729
        %v6147 = vunpack.c.h.b16 %v1729
        %v6148 = vunpack.c.l.b16 %v1730
        %v6149 = vunpack.c.h.b16 %v1730
        %v6150 = vunpack.c.l.b16 %v1731
        %v6151 = vunpack.c.h.b16 %v1731
        %v6152 = vunpack.c.l.b16 %v1732
        %v6153 = vunpack.c.h.b16 %v1732
        %v6154 = vunpack.c.l.b16 %v1733
        %v6155 = vunpack.c.h.b16 %v1733
        %v6156 = vunpack.c.l.b16 %v1734
        %v6157 = vunpack.c.h.b16 %v1734
        %v6158 = vunpack.c.l.b16 %v1735
        %v6159 = vunpack.c.h.b16 %v1735
        %v6160 = vunpack.c.l.b16 %v1736
        %v6161 = vunpack.c.h.b16 %v1736
        %v6162 = vunpack.c.l.b16 %v1737
        %v6163 = vunpack.c.h.b16 %v1737
        %v6164 = vunpack.c.l.b16 %v1738
        %v6165 = vunpack.c.h.b16 %v1738
        %v6166 = vunpack.c.l.b16 %v1739
        %v6167 = vunpack.c.h.b16 %v1739
        %v6168 = vunpack.c.l.b16 %v1740
        %v6169 = vunpack.c.h.b16 %v1740
        %v6170 = vunpack.c.l.b16 %v1741
        %v6171 = vunpack.c.h.b16 %v1741
        %v6172 = vunpack.c.l.b16 %v1742
        %v6173 = vunpack.c.h.b16 %v1742
        %v6174 = vunpack.c.l.b16 %v1743
        %v6175 = vunpack.c.h.b16 %v1743
        %v6176 = vunpack.c.l.b16 %v1744
        %v6177 = vunpack.c.h.b16 %v1744
        %v6178 = vunpack.c.l.b16 %v1745
        %v6179 = vunpack.c.h.b16 %v1745
        %v6180 = vunpack.c.l.b16 %v1746
        %v6181 = vunpack.c.h.b16 %v1746
        %v6182 = vunpack.c.l.b16 %v1747
        %v6183 = vunpack.c.h.b16 %v1747
        %v6184 = vunpack.c.l.b16 %v1748
        %v6185 = vunpack.c.h.b16 %v1748
        %v6186 = vunpack.c.l.b16 %v1749
        %v6187 = vunpack.c.h.b16 %v1749
        %v6188 = vunpack.c.l.b16 %v1750
        %v6189 = vunpack.c.h.b16 %v1750
        %v6190 = vunpack.c.l.b16 %v1751
        %v6191 = vunpack.c.h.b16 %v1751
        %v6192 = vunpack.c.l.b16 %v1752
        %v6193 = vunpack.c.h.b16 %v1752
        %v6194 = vunpack.c.l.b16 %v1753
        %v6195 = vunpack.c.h.b16 %v1753
        %v6196 = vunpack.c.l.b16 %v1754
        %v6197 = vunpack.c.h.b16 %v1754
        %v6198 = vunpack.c.l.b16 %v1755
        %v6199 = vunpack.c.h.b16 %v1755
        %v6200 = vunpack.c.l.b16 %v1756
        %v6201 = vunpack.c.h.b16 %v1756
        %v6202 = vunpack.c.l.b16 %v1757
        %v6203 = vunpack.c.h.b16 %v1757
        %v6204 = vunpack.c.l.b16 %v1758
        %v6205 = vunpack.c.h.b16 %v1758
        %v6206 = vunpack.c.l.b16 %v1759
        %v6207 = vunpack.c.h.b16 %v1759
        %v6208 = vunpack.c.l.b16 %v1760
        %v6209 = vunpack.c.h.b16 %v1760
        %v6210 = vunpack.c.l.b16 %v1761
        %v6211 = vunpack.c.h.b16 %v1761
        %v6212 = vunpack.c.l.b16 %v1762
        %v6213 = vunpack.c.h.b16 %v1762
        %v6214 = vunpack.c.l.b16 %v1763
        %v6215 = vunpack.c.h.b16 %v1763
        %v6216 = vunpack.c.l.b16 %v1764
        %v6217 = vunpack.c.h.b16 %v1764
        %v6218 = vunpack.c.l.b16 %v1765
        %v6219 = vunpack.c.h.b16 %v1765
        %v6220 = vunpack.c.l.b16 %v1766
        %v6221 = vunpack.c.h.b16 %v1766
        %v6222 = vunpack.c.l.b16 %v1767
        %v6223 = vunpack.c.h.b16 %v1767
        %v6224 = vunpack.c.l.b16 %v1768
        %v6225 = vunpack.c.h.b16 %v1768
        %v6226 = vunpack.c.l.b16 %v1769
        %v6227 = vunpack.c.h.b16 %v1769
        %v6228 = vunpack.c.l.b16 %v1770
        %v6229 = vunpack.c.h.b16 %v1770
        %v6230 = vunpack.c.l.b16 %v1771
        %v6231 = vunpack.c.h.b16 %v1771
        %v6232 = vunpack.c.l.b16 %v1772
        %v6233 = vunpack.c.h.b16 %v1772
        %v6234 = vunpack.c.l.b16 %v1773
        %v6235 = vunpack.c.h.b16 %v1773
        %v6236 = vunpack.c.l.b16 %v1774
        %v6237 = vunpack.c.h.b16 %v1774
        %v6238 = vunpack.c.l.b16 %v1775
        %v6239 = vunpack.c.h.b16 %v1775
        %v6240 = vunpack.c.l.b16 %v1776
        %v6241 = vunpack.c.h.b16 %v1776
        %v6242 = vunpack.c.l.b16 %v1777
        %v6243 = vunpack.c.h.b16 %v1777
        %v6244 = vunpack.c.l.b16 %v1778
        %v6245 = vunpack.c.h.b16 %v1778
        %v6246 = vunpack.c.l.b16 %v1779
        %v6247 = vunpack.c.h.b16 %v1779
        %v6248 = vunpack.c.l.b16 %v1780
        %v6249 = vunpack.c.h.b16 %v1780
        %v6250 = vunpack.c.l.b16 %v1781
        %v6251 = vunpack.c.h.b16 %v1781
        %v6252 = vunpack.c.l.b16 %v1782
        %v6253 = vunpack.c.h.b16 %v1782
        %v6254 = vunpack.c.l.b16 %v1783
        %v6255 = vunpack.c.h.b16 %v1783
        %v6256 = vunpack.c.l.b16 %v1784
        %v6257 = vunpack.c.h.b16 %v1784
        %v6258 = vunpack.c.l.b16 %v1785
        %v6259 = vunpack.c.h.b16 %v1785
        %v6260 = vunpack.c.l.b16 %v1786
        %v6261 = vunpack.c.h.b16 %v1786
        %v6262 = vunpack.c.l.b16 %v1787
        %v6263 = vunpack.c.h.b16 %v1787
        %v6264 = vunpack.c.l.b16 %v1788
        %v6265 = vunpack.c.h.b16 %v1788
        %v6266 = vunpack.c.l.b16 %v1789
        %v6267 = vunpack.c.h.b16 %v1789
        %v6268 = vunpack.c.l.b16 %v1790
        %v6269 = vunpack.c.h.b16 %v1790
        %v6270 = vunpack.c.l.b16 %v1791
        %v6271 = vunpack.c.h.b16 %v1791
        %v6272 = vunpack.c.l.b16 %v1792
        %v6273 = vunpack.c.h.b16 %v1792
        %v6274 = vunpack.c.l.b16 %v1793
        %v6275 = vunpack.c.h.b16 %v1793
        %v6276 = vunpack.c.l.b16 %v1794
        %v6277 = vunpack.c.h.b16 %v1794
        %v6278 = vunpack.c.l.b16 %v1795
        %v6279 = vunpack.c.h.b16 %v1795
        %v6280 = vunpack.c.l.b16 %v1796
        %v6281 = vunpack.c.h.b16 %v1796
        %v6282 = vunpack.c.l.b16 %v1797
        %v6283 = vunpack.c.h.b16 %v1797
        %v6284 = vunpack.c.l.b16 %v1798
        %v6285 = vunpack.c.h.b16 %v1798
        %v6286 = vunpack.c.l.b16 %v1799
        %v6287 = vunpack.c.h.b16 %v1799
        %v6288 = vunpack.c.l.b16 %v1800
        %v6289 = vunpack.c.h.b16 %v1800
        %v6290 = vunpack.c.l.b16 %v1801
        %v6291 = vunpack.c.h.b16 %v1801
        %v6292 = vunpack.c.l.b16 %v1802
        %v6293 = vunpack.c.h.b16 %v1802
        %v6294 = vunpack.c.l.b16 %v1803
        %v6295 = vunpack.c.h.b16 %v1803
        %v6296 = vunpack.c.l.b16 %v1804
        %v6297 = vunpack.c.h.b16 %v1804
        %v6298 = vunpack.c.l.b16 %v1805
        %v6299 = vunpack.c.h.b16 %v1805
        %v6300 = vunpack.c.l.b16 %v1806
        %v6301 = vunpack.c.h.b16 %v1806
        %v6302 = vunpack.c.l.b16 %v1807
        %v6303 = vunpack.c.h.b16 %v1807
        %v6304 = vunpack.c.l.b16 %v1808
        %v6305 = vunpack.c.h.b16 %v1808
        %v6306 = vunpack.c.l.b16 %v1809
        %v6307 = vunpack.c.h.b16 %v1809
        %v6308 = vunpack.c.l.b16 %v1810
        %v6309 = vunpack.c.h.b16 %v1810
        %v6310 = vunpack.c.l.b16 %v1811
        %v6311 = vunpack.c.h.b16 %v1811
        %v6312 = vunpack.c.l.b16 %v1812
        %v6313 = vunpack.c.h.b16 %v1812
        %v6314 = vunpack.c.l.b16 %v1813
        %v6315 = vunpack.c.h.b16 %v1813
        %v6316 = vunpack.c.l.b16 %v1814
        %v6317 = vunpack.c.h.b16 %v1814
        %v6318 = vunpack.c.l.b16 %v1815
        %v6319 = vunpack.c.h.b16 %v1815
        %v6320 = vunpack.c.l.b16 %v1816
        %v6321 = vunpack.c.h.b16 %v1816
        %v6322 = vunpack.c.l.b16 %v1817
        %v6323 = vunpack.c.h.b16 %v1817
        %v6324 = vunpack.c.l.b16 %v1818
        %v6325 = vunpack.c.h.b16 %v1818
        %v6326 = vunpack.c.l.b16 %v1819
        %v6327 = vunpack.c.h.b16 %v1819
        %v6328 = vunpack.c.l.b16 %v1820
        %v6329 = vunpack.c.h.b16 %v1820
        %v6330 = vunpack.c.l.b16 %v1821
        %v6331 = vunpack.c.h.b16 %v1821
        %v6332 = vunpack.c.l.b16 %v1822
        %v6333 = vunpack.c.h.b16 %v1822
        %v6334 = vunpack.c.l.b16 %v1823
        %v6335 = vunpack.c.h.b16 %v1823
        %v6336 = vunpack.c.l.b16 %v1824
        %v6337 = vunpack.c.h.b16 %v1824
        %v6338 = vunpack.c.l.b16 %v1825
        %v6339 = vunpack.c.h.b16 %v1825
        %v6340 = vunpack.c.l.b16 %v1826
        %v6341 = vunpack.c.h.b16 %v1826
        %v6342 = vunpack.c.l.b16 %v1827
        %v6343 = vunpack.c.h.b16 %v1827
        %v6344 = vunpack.c.l.b16 %v1828
        %v6345 = vunpack.c.h.b16 %v1828
        %v6346 = vunpack.c.l.b16 %v1829
        %v6347 = vunpack.c.h.b16 %v1829
        %v6348 = vunpack.c.l.b16 %v1830
        %v6349 = vunpack.c.h.b16 %v1830
        %v6350 = vunpack.c.l.b16 %v1831
        %v6351 = vunpack.c.h.b16 %v1831
        %v6352 = vunpack.c.l.b16 %v1832
        %v6353 = vunpack.c.h.b16 %v1832
        %v6354 = vunpack.c.l.b16 %v1833
        %v6355 = vunpack.c.h.b16 %v1833
        %v6356 = vunpack.c.l.b16 %v1834
        %v6357 = vunpack.c.h.b16 %v1834
        %v6358 = vunpack.c.l.b16 %v1835
        %v6359 = vunpack.c.h.b16 %v1835
        %v6360 = vunpack.c.l.b16 %v1836
        %v6361 = vunpack.c.h.b16 %v1836
        %v6362 = vunpack.c.l.b16 %v1837
        %v6363 = vunpack.c.h.b16 %v1837
        %v6364 = vunpack.c.l.b16 %v1838
        %v6365 = vunpack.c.h.b16 %v1838
        %v6366 = vunpack.c.l.b16 %v1839
        %v6367 = vunpack.c.h.b16 %v1839
        %v6368 = vunpack.c.l.b16 %v1840
        %v6369 = vunpack.c.h.b16 %v1840
        %v6370 = vunpack.c.l.b16 %v1841
        %v6371 = vunpack.c.h.b16 %v1841
        %v6372 = vunpack.c.l.b16 %v1842
        %v6373 = vunpack.c.h.b16 %v1842
        %v6374 = vunpack.c.l.b16 %v1843
        %v6375 = vunpack.c.h.b16 %v1843
        %v6376 = vunpack.c.l.b16 %v1844
        %v6377 = vunpack.c.h.b16 %v1844
        %v6378 = vunpack.c.l.b16 %v1845
        %v6379 = vunpack.c.h.b16 %v1845
        %v6380 = vunpack.c.l.b16 %v1846
        %v6381 = vunpack.c.h.b16 %v1846
        %v6382 = vunpack.c.l.b16 %v1847
        %v6383 = vunpack.c.h.b16 %v1847
        %v6384 = vunpack.c.l.b16 %v1848
        %v6385 = vunpack.c.h.b16 %v1848
        %v6386 = vunpack.c.l.b16 %v1849
        %v6387 = vunpack.c.h.b16 %v1849
        %v6388 = vunpack.c.l.b16 %v1850
        %v6389 = vunpack.c.h.b16 %v1850
        %v6390 = vunpack.c.l.b16 %v1851
        %v6391 = vunpack.c.h.b16 %v1851
        %v6392 = vunpack.c.l.b16 %v1852
        %v6393 = vunpack.c.h.b16 %v1852
        %v6394 = vunpack.c.l.b16 %v1853
        %v6395 = vunpack.c.h.b16 %v1853
        %v6396 = vunpack.c.l.b16 %v1854
        %v6397 = vunpack.c.h.b16 %v1854
        %v6398 = vunpack.c.l.b16 %v1855
        %v6399 = vunpack.c.h.b16 %v1855
        %v6400 = vunpack.c.l.b16 %v1856
        %v6401 = vunpack.c.h.b16 %v1856
        %v6402 = vunpack.c.l.b16 %v1857
        %v6403 = vunpack.c.h.b16 %v1857
        %v6404 = vunpack.c.l.b16 %v1858
        %v6405 = vunpack.c.h.b16 %v1858
        %v6406 = vunpack.c.l.b16 %v1859
        %v6407 = vunpack.c.h.b16 %v1859
        %v6408 = vunpack.c.l.b16 %v1860
        %v6409 = vunpack.c.h.b16 %v1860
        %v6410 = vunpack.c.l.b16 %v1861
        %v6411 = vunpack.c.h.b16 %v1861
        %v6412 = vunpack.c.l.b16 %v1862
        %v6413 = vunpack.c.h.b16 %v1862
        %v6414 = vunpack.c.l.b16 %v1863
        %v6415 = vunpack.c.h.b16 %v1863
        %v6416 = vunpack.c.l.b16 %v1864
        %v6417 = vunpack.c.h.b16 %v1864
        %v6418 = vunpack.c.l.b16 %v1865
        %v6419 = vunpack.c.h.b16 %v1865
        %v6420 = vunpack.c.l.b16 %v1866
        %v6421 = vunpack.c.h.b16 %v1866
        %v6422 = vunpack.c.l.b16 %v1867
        %v6423 = vunpack.c.h.b16 %v1867
        %v6424 = vunpack.c.l.b16 %v1868
        %v6425 = vunpack.c.h.b16 %v1868
        %v6426 = vunpack.c.l.b16 %v1869
        %v6427 = vunpack.c.h.b16 %v1869
        %v6428 = vunpack.c.l.b16 %v1870
        %v6429 = vunpack.c.h.b16 %v1870
        %v6430 = vunpack.c.l.b16 %v1871
        %v6431 = vunpack.c.h.b16 %v1871
        %v6432 = vunpack.c.l.b16 %v1872
        %v6433 = vunpack.c.h.b16 %v1872
        %v6434 = vunpack.c.l.b16 %v1873
        %v6435 = vunpack.c.h.b16 %v1873
        %v6436 = vunpack.c.l.b16 %v1874
        %v6437 = vunpack.c.h.b16 %v1874
        %v6438 = vunpack.c.l.b16 %v1875
        %v6439 = vunpack.c.h.b16 %v1875
        %v6440 = vunpack.c.l.b16 %v1876
        %v6441 = vunpack.c.h.b16 %v1876
        %v6442 = vunpack.c.l.b16 %v1877
        %v6443 = vunpack.c.h.b16 %v1877
        %v6444 = vunpack.c.l.b16 %v1878
        %v6445 = vunpack.c.h.b16 %v1878
        %v6446 = vunpack.c.l.b16 %v1879
        %v6447 = vunpack.c.h.b16 %v1879
        %v6448 = vunpack.c.l.b16 %v1880
        %v6449 = vunpack.c.h.b16 %v1880
        %v6450 = vunpack.c.l.b16 %v1881
        %v6451 = vunpack.c.h.b16 %v1881
        %v6452 = vunpack.c.l.b16 %v1882
        %v6453 = vunpack.c.h.b16 %v1882
        %v6454 = vunpack.c.l.b16 %v1883
        %v6455 = vunpack.c.h.b16 %v1883
        %v6456 = vunpack.c.l.b16 %v1884
        %v6457 = vunpack.c.h.b16 %v1884
        %v6458 = vunpack.c.l.b16 %v1885
        %v6459 = vunpack.c.h.b16 %v1885
        %v6460 = vunpack.c.l.b16 %v1886
        %v6461 = vunpack.c.h.b16 %v1886
        %v6462 = vunpack.c.l.b16 %v1887
        %v6463 = vunpack.c.h.b16 %v1887
        %v6464 = vunpack.c.l.b16 %v1888
        %v6465 = vunpack.c.h.b16 %v1888
        %v6466 = vunpack.c.l.b16 %v1889
        %v6467 = vunpack.c.h.b16 %v1889
        %v6468 = vunpack.c.l.b16 %v1890
        %v6469 = vunpack.c.h.b16 %v1890
        %v6470 = vunpack.c.l.b16 %v1891
        %v6471 = vunpack.c.h.b16 %v1891
        %v6472 = vunpack.c.l.b16 %v1892
        %v6473 = vunpack.c.h.b16 %v1892
        %v6474 = vunpack.c.l.b16 %v1893
        %v6475 = vunpack.c.h.b16 %v1893
        %v6476 = vunpack.c.l.b16 %v1894
        %v6477 = vunpack.c.h.b16 %v1894
        %v6478 = vunpack.c.l.b16 %v1895
        %v6479 = vunpack.c.h.b16 %v1895
        %v6480 = vunpack.c.l.b16 %v1896
        %v6481 = vunpack.c.h.b16 %v1896
        %v6482 = vunpack.c.l.b16 %v1897
        %v6483 = vunpack.c.h.b16 %v1897
        %v6484 = vunpack.c.l.b16 %v1898
        %v6485 = vunpack.c.h.b16 %v1898
        %v6486 = vunpack.c.l.b16 %v1899
        %v6487 = vunpack.c.h.b16 %v1899
        %v6488 = vunpack.c.l.b16 %v1900
        %v6489 = vunpack.c.h.b16 %v1900
        %v6490 = vunpack.c.l.b16 %v1901
        %v6491 = vunpack.c.h.b16 %v1901
        %v6492 = vunpack.c.l.b16 %v1902
        %v6493 = vunpack.c.h.b16 %v1902
        %v6494 = vunpack.c.l.b16 %v1903
        %v6495 = vunpack.c.h.b16 %v1903
        %v6496 = vunpack.c.l.b16 %v1904
        %v6497 = vunpack.c.h.b16 %v1904
        %v6498 = vunpack.c.l.b16 %v1905
        %v6499 = vunpack.c.h.b16 %v1905
        %v6500 = vunpack.c.l.b16 %v1906
        %v6501 = vunpack.c.h.b16 %v1906
        %v6502 = vunpack.c.l.b16 %v1907
        %v6503 = vunpack.c.h.b16 %v1907
        %v6504 = vunpack.c.l.b16 %v1908
        %v6505 = vunpack.c.h.b16 %v1908
        %v6506 = vunpack.c.l.b16 %v1909
        %v6507 = vunpack.c.h.b16 %v1909
        %v6508 = vunpack.c.l.b16 %v1910
        %v6509 = vunpack.c.h.b16 %v1910
        %v6510 = vunpack.c.l.b16 %v1911
        %v6511 = vunpack.c.h.b16 %v1911
        %v6512 = vunpack.c.l.b16 %v1912
        %v6513 = vunpack.c.h.b16 %v1912
        %v6514 = vunpack.c.l.b16 %v1913
        %v6515 = vunpack.c.h.b16 %v1913
        %v6516 = vunpack.c.l.b16 %v1914
        %v6517 = vunpack.c.h.b16 %v1914
        %v6518 = vunpack.c.l.b16 %v1915
        %v6519 = vunpack.c.h.b16 %v1915
        %v6520 = vunpack.c.l.b16 %v1916
        %v6521 = vunpack.c.h.b16 %v1916
        %v6522 = vunpack.c.l.b16 %v1917
        %v6523 = vunpack.c.h.b16 %v1917
        %v6524 = vunpack.c.l.b16 %v1918
        %v6525 = vunpack.c.h.b16 %v1918
        %v6526 = vunpack.c.l.b16 %v1919
        %v6527 = vunpack.c.h.b16 %v1919
        %v6528 = vunpack.c.l.b16 %v1920
        %v6529 = vunpack.c.h.b16 %v1920
        %v6530 = vunpack.c.l.b16 %v1921
        %v6531 = vunpack.c.h.b16 %v1921
        %v6532 = vunpack.c.l.b16 %v1922
        %v6533 = vunpack.c.h.b16 %v1922
        %v6534 = vunpack.c.l.b16 %v1923
        %v6535 = vunpack.c.h.b16 %v1923
        %v6536 = vunpack.c.l.b16 %v1924
        %v6537 = vunpack.c.h.b16 %v1924
        %v6538 = vunpack.c.l.b16 %v1925
        %v6539 = vunpack.c.h.b16 %v1925
        %v6540 = vunpack.c.l.b16 %v1926
        %v6541 = vunpack.c.h.b16 %v1926
        %v6542 = vunpack.c.l.b16 %v1927
        %v6543 = vunpack.c.h.b16 %v1927
        %v6544 = vunpack.c.l.b16 %v1928
        %v6545 = vunpack.c.h.b16 %v1928
        %v6546 = vunpack.c.l.b16 %v1929
        %v6547 = vunpack.c.h.b16 %v1929
        %v6548 = vunpack.c.l.b16 %v1930
        %v6549 = vunpack.c.h.b16 %v1930
        %v6550 = vunpack.c.l.b16 %v1931
        %v6551 = vunpack.c.h.b16 %v1931
        %v6552 = vunpack.c.l.b16 %v1932
        %v6553 = vunpack.c.h.b16 %v1932
        %v6554 = vunpack.c.l.b16 %v1933
        %v6555 = vunpack.c.h.b16 %v1933
        %v6556 = vunpack.c.l.b16 %v1934
        %v6557 = vunpack.c.h.b16 %v1934
        %v6558 = vunpack.c.l.b16 %v1935
        %v6559 = vunpack.c.h.b16 %v1935
        %v6560 = vunpack.c.l.b16 %v1936
        %v6561 = vunpack.c.h.b16 %v1936
        %v6562 = vunpack.c.l.b16 %v1937
        %v6563 = vunpack.c.h.b16 %v1937
        %v6564 = vunpack.c.l.b16 %v1938
        %v6565 = vunpack.c.h.b16 %v1938
        %v6566 = vunpack.c.l.b16 %v1939
        %v6567 = vunpack.c.h.b16 %v1939
        %v6568 = vunpack.c.l.b16 %v1940
        %v6569 = vunpack.c.h.b16 %v1940
        %v6570 = vunpack.c.l.b16 %v1941
        %v6571 = vunpack.c.h.b16 %v1941
        %v6572 = vunpack.c.l.b16 %v1942
        %v6573 = vunpack.c.h.b16 %v1942
        %v6574 = vunpack.c.l.b16 %v1943
        %v6575 = vunpack.c.h.b16 %v1943
        %v6576 = vunpack.c.l.b16 %v1944
        %v6577 = vunpack.c.h.b16 %v1944
        %v6578 = vunpack.c.l.b16 %v1945
        %v6579 = vunpack.c.h.b16 %v1945
        %v6580 = vunpack.c.l.b16 %v1946
        %v6581 = vunpack.c.h.b16 %v1946
        %v6582 = vunpack.c.l.b16 %v1947
        %v6583 = vunpack.c.h.b16 %v1947
        %v6584 = vunpack.c.l.b16 %v1948
        %v6585 = vunpack.c.h.b16 %v1948
        %v6586 = vunpack.c.l.b16 %v1949
        %v6587 = vunpack.c.h.b16 %v1949
        %v6588 = vunpack.c.l.b16 %v1950
        %v6589 = vunpack.c.h.b16 %v1950
        %v6590 = vunpack.c.l.b16 %v1951
        %v6591 = vunpack.c.h.b16 %v1951
        %v6592 = vunpack.c.l.b16 %v1952
        %v6593 = vunpack.c.h.b16 %v1952
        %v6594 = vunpack.c.l.b16 %v1953
        %v6595 = vunpack.c.h.b16 %v1953
        %v6596 = vunpack.c.l.b16 %v1954
        %v6597 = vunpack.c.h.b16 %v1954
        %v6598 = vunpack.c.l.b16 %v1955
        %v6599 = vunpack.c.h.b16 %v1955
        %v6600 = vunpack.c.l.b16 %v1956
        %v6601 = vunpack.c.h.b16 %v1956
        %v6602 = vunpack.c.l.b16 %v1957
        %v6603 = vunpack.c.h.b16 %v1957
        %v6604 = vunpack.c.l.b16 %v1958
        %v6605 = vunpack.c.h.b16 %v1958
        %v6606 = vunpack.c.l.b16 %v1959
        %v6607 = vunpack.c.h.b16 %v1959
        %v6608 = vunpack.c.l.b16 %v1960
        %v6609 = vunpack.c.h.b16 %v1960
        %v6610 = vunpack.c.l.b16 %v1961
        %v6611 = vunpack.c.h.b16 %v1961
        %v6612 = vpack.c.b16 %v3556, %v3540
        %v6613 = vpack.c.b16 %v3557, %v3541
        %v6614 = vpack.c.b16 %v3558, %v3542
        %v6615 = vpack.c.b16 %v3559, %v3543
        %v6616 = vpack.c.b16 %v3560, %v3544
        %v6617 = vpack.c.b16 %v3561, %v3545
        %v6618 = vpack.c.b16 %v3562, %v3546
        %v6619 = vpack.c.b16 %v3563, %v3547
        %v6620 = vpack.c.b16 %v3564, %v3548
        %v6621 = vpack.c.b16 %v3565, %v3549
        %v6622 = vpack.c.b16 %v3566, %v3550
        %v6623 = vpack.c.b16 %v3567, %v3551
        %v6624 = vpack.c.b16 %v3568, %v3552
        %v6625 = vpack.c.b16 %v3569, %v3553
        %v6626 = vpack.c.b16 %v3570, %v3554
        %v6627 = vpack.c.b16 %v3571, %v3555
        %v6628 = vpack.c.b16 %v3588, %v3572
        %v6629 = vpack.c.b16 %v3589, %v3573
        %v6630 = vpack.c.b16 %v3590, %v3574
        %v6631 = vpack.c.b16 %v3591, %v3575
        %v6632 = vpack.c.b16 %v3592, %v3576
        %v6633 = vpack.c.b16 %v3593, %v3577
        %v6634 = vpack.c.b16 %v3594, %v3578
        %v6635 = vpack.c.b16 %v3595, %v3579
        %v6636 = vpack.c.b16 %v3596, %v3580
        %v6637 = vpack.c.b16 %v3597, %v3581
        %v6638 = vpack.c.b16 %v3598, %v3582
        %v6639 = vpack.c.b16 %v3599, %v3583
        %v6640 = vpack.c.b16 %v3600, %v3584
        %v6641 = vpack.c.b16 %v3601, %v3585
        %v6642 = vpack.c.b16 %v3602, %v3586
        %v6643 = vpack.c.b16 %v3603, %v3587
        %v6644 = vpack.c.b16 %v3620, %v3604
        %v6645 = vpack.c.b16 %v3621, %v3605
        %v6646 = vpack.c.b16 %v3622, %v3606
        %v6647 = vpack.c.b16 %v3623, %v3607
        %v6648 = vpack.c.b16 %v3624, %v3608
        %v6649 = vpack.c.b16 %v3625, %v3609
        %v6650 = vpack.c.b16 %v3626, %v3610
        %v6651 = vpack.c.b16 %v3627, %v3611
        %v6652 = vpack.c.b16 %v3628, %v3612
        %v6653 = vpack.c.b16 %v3629, %v3613
        %v6654 = vpack.c.b16 %v3630, %v3614
        %v6655 = vpack.c.b16 %v3631, %v3615
        %v6656 = vpack.c.b16 %v3632, %v3616
        %v6657 = vpack.c.b16 %v3633, %v3617
        %v6658 = vpack.c.b16 %v3634, %v3618
        %v6659 = vpack.c.b16 %v3635, %v3619
        %v6660 = vpack.c.b16 %v3652, %v3636
        %v6661 = vpack.c.b16 %v3653, %v3637
        %v6662 = vpack.c.b16 %v3654, %v3638
        %v6663 = vpack.c.b16 %v3655, %v3639
        %v6664 = vpack.c.b16 %v3656, %v3640
        %v6665 = vpack.c.b16 %v3657, %v3641
        %v6666 = vpack.c.b16 %v3658, %v3642
        %v6667 = vpack.c.b16 %v3659, %v3643
        %v6668 = vpack.c.b16 %v3660, %v3644
        %v6669 = vpack.c.b16 %v3661, %v3645
        %v6670 = vpack.c.b16 %v3662, %v3646
        %v6671 = vpack.c.b16 %v3663, %v3647
        %v6672 = vpack.c.b16 %v3664, %v3648
        %v6673 = vpack.c.b16 %v3665, %v3649
        %v6674 = vpack.c.b16 %v3666, %v3650
        %v6675 = vpack.c.b16 %v3667, %v3651
        %v6676 = vpack.c.b16 %v3684, %v3668
        %v6677 = vpack.c.b16 %v3685, %v3669
        %v6678 = vpack.c.b16 %v3686, %v3670
        %v6679 = vpack.c.b16 %v3687, %v3671
        %v6680 = vpack.c.b16 %v3688, %v3672
        %v6681 = vpack.c.b16 %v3689, %v3673
        %v6682 = vpack.c.b16 %v3690, %v3674
        %v6683 = vpack.c.b16 %v3691, %v3675
        %v6684 = vpack.c.b16 %v3692, %v3676
        %v6685 = vpack.c.b16 %v3693, %v3677
        %v6686 = vpack.c.b16 %v3694, %v3678
        %v6687 = vpack.c.b16 %v3695, %v3679
        %v6688 = vpack.c.b16 %v3696, %v3680
        %v6689 = vpack.c.b16 %v3697, %v3681
        %v6690 = vpack.c.b16 %v3698, %v3682
        %v6691 = vpack.c.b16 %v3699, %v3683
        %v6692 = vpack.c.b16 %v3716, %v3700
        %v6693 = vpack.c.b16 %v3717, %v3701
        %v6694 = vpack.c.b16 %v3718, %v3702
        %v6695 = vpack.c.b16 %v3719, %v3703
        %v6696 = vpack.c.b16 %v3720, %v3704
        %v6697 = vpack.c.b16 %v3721, %v3705
        %v6698 = vpack.c.b16 %v3722, %v3706
        %v6699 = vpack.c.b16 %v3723, %v3707
        %v6700 = vpack.c.b16 %v3724, %v3708
        %v6701 = vpack.c.b16 %v3725, %v3709
        %v6702 = vpack.c.b16 %v3726, %v3710
        %v6703 = vpack.c.b16 %v3727, %v3711
        %v6704 = vpack.c.b16 %v3728, %v3712
        %v6705 = vpack.c.b16 %v3729, %v3713
        %v6706 = vpack.c.b16 %v3730, %v3714
        %v6707 = vpack.c.b16 %v3731, %v3715
        %v6708 = vpack.c.b16 %v3748, %v3732
        %v6709 = vpack.c.b16 %v3749, %v3733
        %v6710 = vpack.c.b16 %v3750, %v3734
        %v6711 = vpack.c.b16 %v3751, %v3735
        %v6712 = vpack.c.b16 %v3752, %v3736
        %v6713 = vpack.c.b16 %v3753, %v3737
        %v6714 = vpack.c.b16 %v3754, %v3738
        %v6715 = vpack.c.b16 %v3755, %v3739
        %v6716 = vpack.c.b16 %v3756, %v3740
        %v6717 = vpack.c.b16 %v3757, %v3741
        %v6718 = vpack.c.b16 %v3758, %v3742
        %v6719 = vpack.c.b16 %v3759, %v3743
        %v6720 = vpack.c.b16 %v3760, %v3744
        %v6721 = vpack.c.b16 %v3761, %v3745
        %v6722 = vpack.c.b16 %v3762, %v3746
        %v6723 = vpack.c.b16 %v3763, %v3747
        %v6724 = vpack.c.b16 %v3780, %v3764
        %v6725 = vpack.c.b16 %v3781, %v3765
        %v6726 = vpack.c.b16 %v3782, %v3766
        %v6727 = vpack.c.b16 %v3783, %v3767
        %v6728 = vpack.c.b16 %v3784, %v3768
        %v6729 = vpack.c.b16 %v3785, %v3769
        %v6730 = vpack.c.b16 %v3786, %v3770
        %v6731 = vpack.c.b16 %v3787, %v3771
        %v6732 = vpack.c.b16 %v3788, %v3772
        %v6733 = vpack.c.b16 %v3789, %v3773
        %v6734 = vpack.c.b16 %v3790, %v3774
        %v6735 = vpack.c.b16 %v3791, %v3775
        %v6736 = vpack.c.b16 %v3792, %v3776
        %v6737 = vpack.c.b16 %v3793, %v3777
        %v6738 = vpack.c.b16 %v3794, %v3778
        %v6739 = vpack.c.b16 %v3795, %v3779
        %v6740 = vpack.c.b16 %v3812, %v3796
        %v6741 = vpack.c.b16 %v3813, %v3797
        %v6742 = vpack.c.b16 %v3814, %v3798
        %v6743 = vpack.c.b16 %v3815, %v3799
        %v6744 = vpack.c.b16 %v3816, %v3800
        %v6745 = vpack.c.b16 %v3817, %v3801
        %v6746 = vpack.c.b16 %v3818, %v3802
        %v6747 = vpack.c.b16 %v3819, %v3803
        %v6748 = vpack.c.b16 %v3820, %v3804
        %v6749 = vpack.c.b16 %v3821, %v3805
        %v6750 = vpack.c.b16 %v3822, %v3806
        %v6751 = vpack.c.b16 %v3823, %v3807
        %v6752 = vpack.c.b16 %v3824, %v3808
        %v6753 = vpack.c.b16 %v3825, %v3809
        %v6754 = vpack.c.b16 %v3826, %v3810
        %v6755 = vpack.c.b16 %v3827, %v3811
        %v6756 = vpack.c.b16 %v3844, %v3828
        %v6757 = vpack.c.b16 %v3845, %v3829
        %v6758 = vpack.c.b16 %v3846, %v3830
        %v6759 = vpack.c.b16 %v3847, %v3831
        %v6760 = vpack.c.b16 %v3848, %v3832
        %v6761 = vpack.c.b16 %v3849, %v3833
        %v6762 = vpack.c.b16 %v3850, %v3834
        %v6763 = vpack.c.b16 %v3851, %v3835
        %v6764 = vpack.c.b16 %v3852, %v3836
        %v6765 = vpack.c.b16 %v3853, %v3837
        %v6766 = vpack.c.b16 %v3854, %v3838
        %v6767 = vpack.c.b16 %v3855, %v3839
        %v6768 = vpack.c.b16 %v3856, %v3840
        %v6769 = vpack.c.b16 %v3857, %v3841
        %v6770 = vpack.c.b16 %v3858, %v3842
        %v6771 = vpack.c.b16 %v3859, %v3843
        %v6772 = vpack.c.b16 %v3876, %v3860
        %v6773 = vpack.c.b16 %v3877, %v3861
        %v6774 = vpack.c.b16 %v3878, %v3862
        %v6775 = vpack.c.b16 %v3879, %v3863
        %v6776 = vpack.c.b16 %v3880, %v3864
        %v6777 = vpack.c.b16 %v3881, %v3865
        %v6778 = vpack.c.b16 %v3882, %v3866
        %v6779 = vpack.c.b16 %v3883, %v3867
        %v6780 = vpack.c.b16 %v3884, %v3868
        %v6781 = vpack.c.b16 %v3885, %v3869
        %v6782 = vpack.c.b16 %v3886, %v3870
        %v6783 = vpack.c.b16 %v3887, %v3871
        %v6784 = vpack.c.b16 %v3888, %v3872
        %v6785 = vpack.c.b16 %v3889, %v3873
        %v6786 = vpack.c.b16 %v3890, %v3874
        %v6787 = vpack.c.b16 %v3891, %v3875
        %v6788 = vpack.c.b16 %v3908, %v3892
        %v6789 = vpack.c.b16 %v3909, %v3893
        %v6790 = vpack.c.b16 %v3910, %v3894
        %v6791 = vpack.c.b16 %v3911, %v3895
        %v6792 = vpack.c.b16 %v3912, %v3896
        %v6793 = vpack.c.b16 %v3913, %v3897
        %v6794 = vpack.c.b16 %v3914, %v3898
        %v6795 = vpack.c.b16 %v3915, %v3899
        %v6796 = vpack.c.b16 %v3916, %v3900
        %v6797 = vpack.c.b16 %v3917, %v3901
        %v6798 = vpack.c.b16 %v3918, %v3902
        %v6799 = vpack.c.b16 %v3919, %v3903
        %v6800 = vpack.c.b16 %v3920, %v3904
        %v6801 = vpack.c.b16 %v3921, %v3905
        %v6802 = vpack.c.b16 %v3922, %v3906
        %v6803 = vpack.c.b16 %v3923, %v3907
        %v6804 = vpack.c.b16 %v3940, %v3924
        %v6805 = vpack.c.b16 %v3941, %v3925
        %v6806 = vpack.c.b16 %v3942, %v3926
        %v6807 = vpack.c.b16 %v3943, %v3927
        %v6808 = vpack.c.b16 %v3944, %v3928
        %v6809 = vpack.c.b16 %v3945, %v3929
        %v6810 = vpack.c.b16 %v3946, %v3930
        %v6811 = vpack.c.b16 %v3947, %v3931
        %v6812 = vpack.c.b16 %v3948, %v3932
        %v6813 = vpack.c.b16 %v3949, %v3933
        %v6814 = vpack.c.b16 %v3950, %v3934
        %v6815 = vpack.c.b16 %v3951, %v3935
        %v6816 = vpack.c.b16 %v3952, %v3936
        %v6817 = vpack.c.b16 %v3953, %v3937
        %v6818 = vpack.c.b16 %v3954, %v3938
        %v6819 = vpack.c.b16 %v3955, %v3939
        %v6820 = vpack.c.b16 %v3972, %v3956
        %v6821 = vpack.c.b16 %v3973, %v3957
        %v6822 = vpack.c.b16 %v3974, %v3958
        %v6823 = vpack.c.b16 %v3975, %v3959
        %v6824 = vpack.c.b16 %v3976, %v3960
        %v6825 = vpack.c.b16 %v3977, %v3961
        %v6826 = vpack.c.b16 %v3978, %v3962
        %v6827 = vpack.c.b16 %v3979, %v3963
        %v6828 = vpack.c.b16 %v3980, %v3964
        %v6829 = vpack.c.b16 %v3981, %v3965
        %v6830 = vpack.c.b16 %v3982, %v3966
        %v6831 = vpack.c.b16 %v3983, %v3967
        %v6832 = vpack.c.b16 %v3984, %v3968
        %v6833 = vpack.c.b16 %v3985, %v3969
        %v6834 = vpack.c.b16 %v3986, %v3970
        %v6835 = vpack.c.b16 %v3987, %v3971
        %v6836 = vpack.c.b16 %v4004, %v3988
        %v6837 = vpack.c.b16 %v4005, %v3989
        %v6838 = vpack.c.b16 %v4006, %v3990
        %v6839 = vpack.c.b16 %v4007, %v3991
        %v6840 = vpack.c.b16 %v4008, %v3992
        %v6841 = vpack.c.b16 %v4009, %v3993
        %v6842 = vpack.c.b16 %v4010, %v3994
        %v6843 = vpack.c.b16 %v4011, %v3995
        %v6844 = vpack.c.b16 %v4012, %v3996
        %v6845 = vpack.c.b16 %v4013, %v3997
        %v6846 = vpack.c.b16 %v4014, %v3998
        %v6847 = vpack.c.b16 %v4015, %v3999
        %v6848 = vpack.c.b16 %v4016, %v4000
        %v6849 = vpack.c.b16 %v4017, %v4001
        %v6850 = vpack.c.b16 %v4018, %v4002
        %v6851 = vpack.c.b16 %v4019, %v4003
        %v6852 = vpack.c.b16 %v4036, %v4020
        %v6853 = vpack.c.b16 %v4037, %v4021
        %v6854 = vpack.c.b16 %v4038, %v4022
        %v6855 = vpack.c.b16 %v4039, %v4023
        %v6856 = vpack.c.b16 %v4040, %v4024
        %v6857 = vpack.c.b16 %v4041, %v4025
        %v6858 = vpack.c.b16 %v4042, %v4026
        %v6859 = vpack.c.b16 %v4043, %v4027
        %v6860 = vpack.c.b16 %v4044, %v4028
        %v6861 = vpack.c.b16 %v4045, %v4029
        %v6862 = vpack.c.b16 %v4046, %v4030
        %v6863 = vpack.c.b16 %v4047, %v4031
        %v6864 = vpack.c.b16 %v4048, %v4032
        %v6865 = vpack.c.b16 %v4049, %v4033
        %v6866 = vpack.c.b16 %v4050, %v4034
        %v6867 = vpack.c.b16 %v4051, %v4035
        %v6868 = vpack.c.b16 %v4068, %v4052
        %v6869 = vpack.c.b16 %v4069, %v4053
        %v6870 = vpack.c.b16 %v4070, %v4054
        %v6871 = vpack.c.b16 %v4071, %v4055
        %v6872 = vpack.c.b16 %v4072, %v4056
        %v6873 = vpack.c.b16 %v4073, %v4057
        %v6874 = vpack.c.b16 %v4074, %v4058
        %v6875 = vpack.c.b16 %v4075, %v4059
        %v6876 = vpack.c.b16 %v4076, %v4060
        %v6877 = vpack.c.b16 %v4077, %v4061
        %v6878 = vpack.c.b16 %v4078, %v4062
        %v6879 = vpack.c.b16 %v4079, %v4063
        %v6880 = vpack.c.b16 %v4080, %v4064
        %v6881 = vpack.c.b16 %v4081, %v4065
        %v6882 = vpack.c.b16 %v4082, %v4066
        %v6883 = vpack.c.b16 %v4083, %v4067
        %v6884 = vpack.c.b16 %v4100, %v4084
        %v6885 = vpack.c.b16 %v4101, %v4085
        %v6886 = vpack.c.b16 %v4102, %v4086
        %v6887 = vpack.c.b16 %v4103, %v4087
        %v6888 = vpack.c.b16 %v4104, %v4088
        %v6889 = vpack.c.b16 %v4105, %v4089
        %v6890 = vpack.c.b16 %v4106, %v4090
        %v6891 = vpack.c.b16 %v4107, %v4091
        %v6892 = vpack.c.b16 %v4108, %v4092
        %v6893 = vpack.c.b16 %v4109, %v4093
        %v6894 = vpack.c.b16 %v4110, %v4094
        %v6895 = vpack.c.b16 %v4111, %v4095
        %v6896 = vpack.c.b16 %v4112, %v4096
        %v6897 = vpack.c.b16 %v4113, %v4097
        %v6898 = vpack.c.b16 %v4114, %v4098
        %v6899 = vpack.c.b16 %v4115, %v4099
        %v6900 = vpack.c.b16 %v4132, %v4116
        %v6901 = vpack.c.b16 %v4133, %v4117
        %v6902 = vpack.c.b16 %v4134, %v4118
        %v6903 = vpack.c.b16 %v4135, %v4119
        %v6904 = vpack.c.b16 %v4136, %v4120
        %v6905 = vpack.c.b16 %v4137, %v4121
        %v6906 = vpack.c.b16 %v4138, %v4122
        %v6907 = vpack.c.b16 %v4139, %v4123
        %v6908 = vpack.c.b16 %v4140, %v4124
        %v6909 = vpack.c.b16 %v4141, %v4125
        %v6910 = vpack.c.b16 %v4142, %v4126
        %v6911 = vpack.c.b16 %v4143, %v4127
        %v6912 = vpack.c.b16 %v4144, %v4128
        %v6913 = vpack.c.b16 %v4145, %v4129
        %v6914 = vpack.c.b16 %v4146, %v4130
        %v6915 = vpack.c.b16 %v4147, %v4131
        %v6916 = vpack.c.b16 %v4164, %v4148
        %v6917 = vpack.c.b16 %v4165, %v4149
        %v6918 = vpack.c.b16 %v4166, %v4150
        %v6919 = vpack.c.b16 %v4167, %v4151
        %v6920 = vpack.c.b16 %v4168, %v4152
        %v6921 = vpack.c.b16 %v4169, %v4153
        %v6922 = vpack.c.b16 %v4170, %v4154
        %v6923 = vpack.c.b16 %v4171, %v4155
        %v6924 = vpack.c.b16 %v4172, %v4156
        %v6925 = vpack.c.b16 %v4173, %v4157
        %v6926 = vpack.c.b16 %v4174, %v4158
        %v6927 = vpack.c.b16 %v4175, %v4159
        %v6928 = vpack.c.b16 %v4176, %v4160
        %v6929 = vpack.c.b16 %v4177, %v4161
        %v6930 = vpack.c.b16 %v4178, %v4162
        %v6931 = vpack.c.b16 %v4179, %v4163
        %v6932 = vpack.c.b16 %v4196, %v4180
        %v6933 = vpack.c.b16 %v4197, %v4181
        %v6934 = vpack.c.b16 %v4198, %v4182
        %v6935 = vpack.c.b16 %v4199, %v4183
        %v6936 = vpack.c.b16 %v4200, %v4184
        %v6937 = vpack.c.b16 %v4201, %v4185
        %v6938 = vpack.c.b16 %v4202, %v4186
        %v6939 = vpack.c.b16 %v4203, %v4187
        %v6940 = vpack.c.b16 %v4204, %v4188
        %v6941 = vpack.c.b16 %v4205, %v4189
        %v6942 = vpack.c.b16 %v4206, %v4190
        %v6943 = vpack.c.b16 %v4207, %v4191
        %v6944 = vpack.c.b16 %v4208, %v4192
        %v6945 = vpack.c.b16 %v4209, %v4193
        %v6946 = vpack.c.b16 %v4210, %v4194
        %v6947 = vpack.c.b16 %v4211, %v4195
        %v6948 = vpack.c.b16 %v4228, %v4212
        %v6949 = vpack.c.b16 %v4229, %v4213
        %v6950 = vpack.c.b16 %v4230, %v4214
        %v6951 = vpack.c.b16 %v4231, %v4215
        %v6952 = vpack.c.b16 %v4232, %v4216
        %v6953 = vpack.c.b16 %v4233, %v4217
        %v6954 = vpack.c.b16 %v4234, %v4218
        %v6955 = vpack.c.b16 %v4235, %v4219
        %v6956 = vpack.c.b16 %v4236, %v4220
        %v6957 = vpack.c.b16 %v4237, %v4221
        %v6958 = vpack.c.b16 %v4238, %v4222
        %v6959 = vpack.c.b16 %v4239, %v4223
        %v6960 = vpack.c.b16 %v4240, %v4224
        %v6961 = vpack.c.b16 %v4241, %v4225
        %v6962 = vpack.c.b16 %v4242, %v4226
        %v6963 = vpack.c.b16 %v4243, %v4227
        %v6964 = vpack.c.b16 %v4260, %v4244
        %v6965 = vpack.c.b16 %v4261, %v4245
        %v6966 = vpack.c.b16 %v4262, %v4246
        %v6967 = vpack.c.b16 %v4263, %v4247
        %v6968 = vpack.c.b16 %v4264, %v4248
        %v6969 = vpack.c.b16 %v4265, %v4249
        %v6970 = vpack.c.b16 %v4266, %v4250
        %v6971 = vpack.c.b16 %v4267, %v4251
        %v6972 = vpack.c.b16 %v4268, %v4252
        %v6973 = vpack.c.b16 %v4269, %v4253
        %v6974 = vpack.c.b16 %v4270, %v4254
        %v6975 = vpack.c.b16 %v4271, %v4255
        %v6976 = vpack.c.b16 %v4272, %v4256
        %v6977 = vpack.c.b16 %v4273, %v4257
        %v6978 = vpack.c.b16 %v4274, %v4258
        %v6979 = vpack.c.b16 %v4275, %v4259
        %v6980 = vpack.c.b16 %v4292, %v4276
        %v6981 = vpack.c.b16 %v4293, %v4277
        %v6982 = vpack.c.b16 %v4294, %v4278
        %v6983 = vpack.c.b16 %v4295, %v4279
        %v6984 = vpack.c.b16 %v4296, %v4280
        %v6985 = vpack.c.b16 %v4297, %v4281
        %v6986 = vpack.c.b16 %v4298, %v4282
        %v6987 = vpack.c.b16 %v4299, %v4283
        %v6988 = vpack.c.b16 %v4300, %v4284
        %v6989 = vpack.c.b16 %v4301, %v4285
        %v6990 = vpack.c.b16 %v4302, %v4286
        %v6991 = vpack.c.b16 %v4303, %v4287
        %v6992 = vpack.c.b16 %v4304, %v4288
        %v6993 = vpack.c.b16 %v4305, %v4289
        %v6994 = vpack.c.b16 %v4306, %v4290
        %v6995 = vpack.c.b16 %v4307, %v4291
        %v6996 = vpack.c.b16 %v4324, %v4308
        %v6997 = vpack.c.b16 %v4325, %v4309
        %v6998 = vpack.c.b16 %v4326, %v4310
        %v6999 = vpack.c.b16 %v4327, %v4311
        %v7000 = vpack.c.b16 %v4328, %v4312
        %v7001 = vpack.c.b16 %v4329, %v4313
        %v7002 = vpack.c.b16 %v4330, %v4314
        %v7003 = vpack.c.b16 %v4331, %v4315
        %v7004 = vpack.c.b16 %v4332, %v4316
        %v7005 = vpack.c.b16 %v4333, %v4317
        %v7006 = vpack.c.b16 %v4334, %v4318
        %v7007 = vpack.c.b16 %v4335, %v4319
        %v7008 = vpack.c.b16 %v4336, %v4320
        %v7009 = vpack.c.b16 %v4337, %v4321
        %v7010 = vpack.c.b16 %v4338, %v4322
        %v7011 = vpack.c.b16 %v4339, %v4323
        %v7012 = vpack.c.b16 %v4356, %v4340
        %v7013 = vpack.c.b16 %v4357, %v4341
        %v7014 = vpack.c.b16 %v4358, %v4342
        %v7015 = vpack.c.b16 %v4359, %v4343
        %v7016 = vpack.c.b16 %v4360, %v4344
        %v7017 = vpack.c.b16 %v4361, %v4345
        %v7018 = vpack.c.b16 %v4362, %v4346
        %v7019 = vpack.c.b16 %v4363, %v4347
        %v7020 = vpack.c.b16 %v4364, %v4348
        %v7021 = vpack.c.b16 %v4365, %v4349
        %v7022 = vpack.c.b16 %v4366, %v4350
        %v7023 = vpack.c.b16 %v4367, %v4351
        %v7024 = vpack.c.b16 %v4368, %v4352
        %v7025 = vpack.c.b16 %v4369, %v4353
        %v7026 = vpack.c.b16 %v4370, %v4354
        %v7027 = vpack.c.b16 %v4371, %v4355
        %v7028 = vpack.c.b16 %v4388, %v4372
        %v7029 = vpack.c.b16 %v4389, %v4373
        %v7030 = vpack.c.b16 %v4390, %v4374
        %v7031 = vpack.c.b16 %v4391, %v4375
        %v7032 = vpack.c.b16 %v4392, %v4376
        %v7033 = vpack.c.b16 %v4393, %v4377
        %v7034 = vpack.c.b16 %v4394, %v4378
        %v7035 = vpack.c.b16 %v4395, %v4379
        %v7036 = vpack.c.b16 %v4396, %v4380
        %v7037 = vpack.c.b16 %v4397, %v4381
        %v7038 = vpack.c.b16 %v4398, %v4382
        %v7039 = vpack.c.b16 %v4399, %v4383
        %v7040 = vpack.c.b16 %v4400, %v4384
        %v7041 = vpack.c.b16 %v4401, %v4385
        %v7042 = vpack.c.b16 %v4402, %v4386
        %v7043 = vpack.c.b16 %v4403, %v4387
        %v7044 = vpack.c.b16 %v4420, %v4404
        %v7045 = vpack.c.b16 %v4421, %v4405
        %v7046 = vpack.c.b16 %v4422, %v4406
        %v7047 = vpack.c.b16 %v4423, %v4407
        %v7048 = vpack.c.b16 %v4424, %v4408
        %v7049 = vpack.c.b16 %v4425, %v4409
        %v7050 = vpack.c.b16 %v4426, %v4410
        %v7051 = vpack.c.b16 %v4427, %v4411
        %v7052 = vpack.c.b16 %v4428, %v4412
        %v7053 = vpack.c.b16 %v4429, %v4413
        %v7054 = vpack.c.b16 %v4430, %v4414
        %v7055 = vpack.c.b16 %v4431, %v4415
        %v7056 = vpack.c.b16 %v4432, %v4416
        %v7057 = vpack.c.b16 %v4433, %v4417
        %v7058 = vpack.c.b16 %v4434, %v4418
        %v7059 = vpack.c.b16 %v4435, %v4419
        %v7060 = vpack.c.b16 %v4452, %v4436
        %v7061 = vpack.c.b16 %v4453, %v4437
        %v7062 = vpack.c.b16 %v4454, %v4438
        %v7063 = vpack.c.b16 %v4455, %v4439
        %v7064 = vpack.c.b16 %v4456, %v4440
        %v7065 = vpack.c.b16 %v4457, %v4441
        %v7066 = vpack.c.b16 %v4458, %v4442
        %v7067 = vpack.c.b16 %v4459, %v4443
        %v7068 = vpack.c.b16 %v4460, %v4444
        %v7069 = vpack.c.b16 %v4461, %v4445
        %v7070 = vpack.c.b16 %v4462, %v4446
        %v7071 = vpack.c.b16 %v4463, %v4447
        %v7072 = vpack.c.b16 %v4464, %v4448
        %v7073 = vpack.c.b16 %v4465, %v4449
        %v7074 = vpack.c.b16 %v4466, %v4450
        %v7075 = vpack.c.b16 %v4467, %v4451
        %v7076 = vpack.c.b16 %v4484, %v4468
        %v7077 = vpack.c.b16 %v4485, %v4469
        %v7078 = vpack.c.b16 %v4486, %v4470
        %v7079 = vpack.c.b16 %v4487, %v4471
        %v7080 = vpack.c.b16 %v4488, %v4472
        %v7081 = vpack.c.b16 %v4489, %v4473
        %v7082 = vpack.c.b16 %v4490, %v4474
        %v7083 = vpack.c.b16 %v4491, %v4475
        %v7084 = vpack.c.b16 %v4492, %v4476
        %v7085 = vpack.c.b16 %v4493, %v4477
        %v7086 = vpack.c.b16 %v4494, %v4478
        %v7087 = vpack.c.b16 %v4495, %v4479
        %v7088 = vpack.c.b16 %v4496, %v4480
        %v7089 = vpack.c.b16 %v4497, %v4481
        %v7090 = vpack.c.b16 %v4498, %v4482
        %v7091 = vpack.c.b16 %v4499, %v4483
        %v7092 = vpack.c.b16 %v4516, %v4500
        %v7093 = vpack.c.b16 %v4517, %v4501
        %v7094 = vpack.c.b16 %v4518, %v4502
        %v7095 = vpack.c.b16 %v4519, %v4503
        %v7096 = vpack.c.b16 %v4520, %v4504
        %v7097 = vpack.c.b16 %v4521, %v4505
        %v7098 = vpack.c.b16 %v4522, %v4506
        %v7099 = vpack.c.b16 %v4523, %v4507
        %v7100 = vpack.c.b16 %v4524, %v4508
        %v7101 = vpack.c.b16 %v4525, %v4509
        %v7102 = vpack.c.b16 %v4526, %v4510
        %v7103 = vpack.c.b16 %v4527, %v4511
        %v7104 = vpack.c.b16 %v4528, %v4512
        %v7105 = vpack.c.b16 %v4529, %v4513
        %v7106 = vpack.c.b16 %v4530, %v4514
        %v7107 = vpack.c.b16 %v4531, %v4515
        %v7108 = vpack.c.b16 %v4548, %v4532
        %v7109 = vpack.c.b16 %v4549, %v4533
        %v7110 = vpack.c.b16 %v4550, %v4534
        %v7111 = vpack.c.b16 %v4551, %v4535
        %v7112 = vpack.c.b16 %v4552, %v4536
        %v7113 = vpack.c.b16 %v4553, %v4537
        %v7114 = vpack.c.b16 %v4554, %v4538
        %v7115 = vpack.c.b16 %v4555, %v4539
        %v7116 = vpack.c.b16 %v4556, %v4540
        %v7117 = vpack.c.b16 %v4557, %v4541
        %v7118 = vpack.c.b16 %v4558, %v4542
        %v7119 = vpack.c.b16 %v4559, %v4543
        %v7120 = vpack.c.b16 %v4560, %v4544
        %v7121 = vpack.c.b16 %v4561, %v4545
        %v7122 = vpack.c.b16 %v4562, %v4546
        %v7123 = vpack.c.b16 %v4563, %v4547
        %v7124 = vpack.c.b16 %v4580, %v4564
        %v7125 = vpack.c.b16 %v4581, %v4565
        %v7126 = vpack.c.b16 %v4582, %v4566
        %v7127 = vpack.c.b16 %v4583, %v4567
        %v7128 = vpack.c.b16 %v4584, %v4568
        %v7129 = vpack.c.b16 %v4585, %v4569
        %v7130 = vpack.c.b16 %v4586, %v4570
        %v7131 = vpack.c.b16 %v4587, %v4571
        %v7132 = vpack.c.b16 %v4588, %v4572
        %v7133 = vpack.c.b16 %v4589, %v4573
        %v7134 = vpack.c.b16 %v4590, %v4574
        %v7135 = vpack.c.b16 %v4591, %v4575
        %v7136 = vpack.c.b16 %v4592, %v4576
        %v7137 = vpack.c.b16 %v4593, %v4577
        %v7138 = vpack.c.b16 %v4594, %v4578
        %v7139 = vpack.c.b16 %v4595, %v4579
        %v7140 = vpack.c.b16 %v4612, %v4596
        %v7141 = vpack.c.b16 %v4613, %v4597
        %v7142 = vpack.c.b16 %v4614, %v4598
        %v7143 = vpack.c.b16 %v4615, %v4599
        %v7144 = vpack.c.b16 %v4616, %v4600
        %v7145 = vpack.c.b16 %v4617, %v4601
        %v7146 = vpack.c.b16 %v4618, %v4602
        %v7147 = vpack.c.b16 %v4619, %v4603
        %v7148 = vpack.c.b16 %v4620, %v4604
        %v7149 = vpack.c.b16 %v4621, %v4605
        %v7150 = vpack.c.b16 %v4622, %v4606
        %v7151 = vpack.c.b16 %v4623, %v4607
        %v7152 = vpack.c.b16 %v4624, %v4608
        %v7153 = vpack.c.b16 %v4625, %v4609
        %v7154 = vpack.c.b16 %v4626, %v4610
        %v7155 = vpack.c.b16 %v4627, %v4611
        %v7156 = vpack.c.b16 %v4644, %v4628
        %v7157 = vpack.c.b16 %v4645, %v4629
        %v7158 = vpack.c.b16 %v4646, %v4630
        %v7159 = vpack.c.b16 %v4647, %v4631
        %v7160 = vpack.c.b16 %v4648, %v4632
        %v7161 = vpack.c.b16 %v4649, %v4633
        %v7162 = vpack.c.b16 %v4650, %v4634
        %v7163 = vpack.c.b16 %v4651, %v4635
        %v7164 = vpack.c.b16 %v4652, %v4636
        %v7165 = vpack.c.b16 %v4653, %v4637
        %v7166 = vpack.c.b16 %v4654, %v4638
        %v7167 = vpack.c.b16 %v4655, %v4639
        %v7168 = vpack.c.b16 %v4656, %v4640
        %v7169 = vpack.c.b16 %v4657, %v4641
        %v7170 = vpack.c.b16 %v4658, %v4642
        %v7171 = vpack.c.b16 %v4659, %v4643
        %v7172 = vpack.c.b16 %v4676, %v4660
        %v7173 = vpack.c.b16 %v4677, %v4661
        %v7174 = vpack.c.b16 %v4678, %v4662
        %v7175 = vpack.c.b16 %v4679, %v4663
        %v7176 = vpack.c.b16 %v4680, %v4664
        %v7177 = vpack.c.b16 %v4681, %v4665
        %v7178 = vpack.c.b16 %v4682, %v4666
        %v7179 = vpack.c.b16 %v4683, %v4667
        %v7180 = vpack.c.b16 %v4684, %v4668
        %v7181 = vpack.c.b16 %v4685, %v4669
        %v7182 = vpack.c.b16 %v4686, %v4670
        %v7183 = vpack.c.b16 %v4687, %v4671
        %v7184 = vpack.c.b16 %v4688, %v4672
        %v7185 = vpack.c.b16 %v4689, %v4673
        %v7186 = vpack.c.b16 %v4690, %v4674
        %v7187 = vpack.c.b16 %v4691, %v4675
        %v7188 = vpack.c.b16 %v4708, %v4692
        %v7189 = vpack.c.b16 %v4709, %v4693
        %v7190 = vpack.c.b16 %v4710, %v4694
        %v7191 = vpack.c.b16 %v4711, %v4695
        %v7192 = vpack.c.b16 %v4712, %v4696
        %v7193 = vpack.c.b16 %v4713, %v4697
        %v7194 = vpack.c.b16 %v4714, %v4698
        %v7195 = vpack.c.b16 %v4715, %v4699
        %v7196 = vpack.c.b16 %v4716, %v4700
        %v7197 = vpack.c.b16 %v4717, %v4701
        %v7198 = vpack.c.b16 %v4718, %v4702
        %v7199 = vpack.c.b16 %v4719, %v4703
        %v7200 = vpack.c.b16 %v4720, %v4704
        %v7201 = vpack.c.b16 %v4721, %v4705
        %v7202 = vpack.c.b16 %v4722, %v4706
        %v7203 = vpack.c.b16 %v4723, %v4707
        %v7204 = vpack.c.b16 %v4740, %v4724
        %v7205 = vpack.c.b16 %v4741, %v4725
        %v7206 = vpack.c.b16 %v4742, %v4726
        %v7207 = vpack.c.b16 %v4743, %v4727
        %v7208 = vpack.c.b16 %v4744, %v4728
        %v7209 = vpack.c.b16 %v4745, %v4729
        %v7210 = vpack.c.b16 %v4746, %v4730
        %v7211 = vpack.c.b16 %v4747, %v4731
        %v7212 = vpack.c.b16 %v4748, %v4732
        %v7213 = vpack.c.b16 %v4749, %v4733
        %v7214 = vpack.c.b16 %v4750, %v4734
        %v7215 = vpack.c.b16 %v4751, %v4735
        %v7216 = vpack.c.b16 %v4752, %v4736
        %v7217 = vpack.c.b16 %v4753, %v4737
        %v7218 = vpack.c.b16 %v4754, %v4738
        %v7219 = vpack.c.b16 %v4755, %v4739
        %v7220 = vpack.c.b16 %v4772, %v4756
        %v7221 = vpack.c.b16 %v4773, %v4757
        %v7222 = vpack.c.b16 %v4774, %v4758
        %v7223 = vpack.c.b16 %v4775, %v4759
        %v7224 = vpack.c.b16 %v4776, %v4760
        %v7225 = vpack.c.b16 %v4777, %v4761
        %v7226 = vpack.c.b16 %v4778, %v4762
        %v7227 = vpack.c.b16 %v4779, %v4763
        %v7228 = vpack.c.b16 %v4780, %v4764
        %v7229 = vpack.c.b16 %v4781, %v4765
        %v7230 = vpack.c.b16 %v4782, %v4766
        %v7231 = vpack.c.b16 %v4783, %v4767
        %v7232 = vpack.c.b16 %v4784, %v4768
        %v7233 = vpack.c.b16 %v4785, %v4769
        %v7234 = vpack.c.b16 %v4786, %v4770
        %v7235 = vpack.c.b16 %v4787, %v4771
        %v7236 = vpack.c.b16 %v4804, %v4788
        %v7237 = vpack.c.b16 %v4805, %v4789
        %v7238 = vpack.c.b16 %v4806, %v4790
        %v7239 = vpack.c.b16 %v4807, %v4791
        %v7240 = vpack.c.b16 %v4808, %v4792
        %v7241 = vpack.c.b16 %v4809, %v4793
        %v7242 = vpack.c.b16 %v4810, %v4794
        %v7243 = vpack.c.b16 %v4811, %v4795
        %v7244 = vpack.c.b16 %v4812, %v4796
        %v7245 = vpack.c.b16 %v4813, %v4797
        %v7246 = vpack.c.b16 %v4814, %v4798
        %v7247 = vpack.c.b16 %v4815, %v4799
        %v7248 = vpack.c.b16 %v4816, %v4800
        %v7249 = vpack.c.b16 %v4817, %v4801
        %v7250 = vpack.c.b16 %v4818, %v4802
        %v7251 = vpack.c.b16 %v4819, %v4803
        %v7252 = vpack.c.b16 %v4836, %v4820
        %v7253 = vpack.c.b16 %v4837, %v4821
        %v7254 = vpack.c.b16 %v4838, %v4822
        %v7255 = vpack.c.b16 %v4839, %v4823
        %v7256 = vpack.c.b16 %v4840, %v4824
        %v7257 = vpack.c.b16 %v4841, %v4825
        %v7258 = vpack.c.b16 %v4842, %v4826
        %v7259 = vpack.c.b16 %v4843, %v4827
        %v7260 = vpack.c.b16 %v4844, %v4828
        %v7261 = vpack.c.b16 %v4845, %v4829
        %v7262 = vpack.c.b16 %v4846, %v4830
        %v7263 = vpack.c.b16 %v4847, %v4831
        %v7264 = vpack.c.b16 %v4848, %v4832
        %v7265 = vpack.c.b16 %v4849, %v4833
        %v7266 = vpack.c.b16 %v4850, %v4834
        %v7267 = vpack.c.b16 %v4851, %v4835
        %v7268 = vpack.c.b16 %v4868, %v4852
        %v7269 = vpack.c.b16 %v4869, %v4853
        %v7270 = vpack.c.b16 %v4870, %v4854
        %v7271 = vpack.c.b16 %v4871, %v4855
        %v7272 = vpack.c.b16 %v4872, %v4856
        %v7273 = vpack.c.b16 %v4873, %v4857
        %v7274 = vpack.c.b16 %v4874, %v4858
        %v7275 = vpack.c.b16 %v4875, %v4859
        %v7276 = vpack.c.b16 %v4876, %v4860
        %v7277 = vpack.c.b16 %v4877, %v4861
        %v7278 = vpack.c.b16 %v4878, %v4862
        %v7279 = vpack.c.b16 %v4879, %v4863
        %v7280 = vpack.c.b16 %v4880, %v4864
        %v7281 = vpack.c.b16 %v4881, %v4865
        %v7282 = vpack.c.b16 %v4882, %v4866
        %v7283 = vpack.c.b16 %v4883, %v4867
        %v7284 = vpack.c.b16 %v4900, %v4884
        %v7285 = vpack.c.b16 %v4901, %v4885
        %v7286 = vpack.c.b16 %v4902, %v4886
        %v7287 = vpack.c.b16 %v4903, %v4887
        %v7288 = vpack.c.b16 %v4904, %v4888
        %v7289 = vpack.c.b16 %v4905, %v4889
        %v7290 = vpack.c.b16 %v4906, %v4890
        %v7291 = vpack.c.b16 %v4907, %v4891
        %v7292 = vpack.c.b16 %v4908, %v4892
        %v7293 = vpack.c.b16 %v4909, %v4893
        %v7294 = vpack.c.b16 %v4910, %v4894
        %v7295 = vpack.c.b16 %v4911, %v4895
        %v7296 = vpack.c.b16 %v4912, %v4896
        %v7297 = vpack.c.b16 %v4913, %v4897
        %v7298 = vpack.c.b16 %v4914, %v4898
        %v7299 = vpack.c.b16 %v4915, %v4899
        %v7300 = vpack.c.b16 %v4932, %v4916
        %v7301 = vpack.c.b16 %v4933, %v4917
        %v7302 = vpack.c.b16 %v4934, %v4918
        %v7303 = vpack.c.b16 %v4935, %v4919
        %v7304 = vpack.c.b16 %v4936, %v4920
        %v7305 = vpack.c.b16 %v4937, %v4921
        %v7306 = vpack.c.b16 %v4938, %v4922
        %v7307 = vpack.c.b16 %v4939, %v4923
        %v7308 = vpack.c.b16 %v4940, %v4924
        %v7309 = vpack.c.b16 %v4941, %v4925
        %v7310 = vpack.c.b16 %v4942, %v4926
        %v7311 = vpack.c.b16 %v4943, %v4927
        %v7312 = vpack.c.b16 %v4944, %v4928
        %v7313 = vpack.c.b16 %v4945, %v4929
        %v7314 = vpack.c.b16 %v4946, %v4930
        %v7315 = vpack.c.b16 %v4947, %v4931
        %v7316 = vpack.c.b16 %v4964, %v4948
        %v7317 = vpack.c.b16 %v4965, %v4949
        %v7318 = vpack.c.b16 %v4966, %v4950
        %v7319 = vpack.c.b16 %v4967, %v4951
        %v7320 = vpack.c.b16 %v4968, %v4952
        %v7321 = vpack.c.b16 %v4969, %v4953
        %v7322 = vpack.c.b16 %v4970, %v4954
        %v7323 = vpack.c.b16 %v4971, %v4955
        %v7324 = vpack.c.b16 %v4972, %v4956
        %v7325 = vpack.c.b16 %v4973, %v4957
        %v7326 = vpack.c.b16 %v4974, %v4958
        %v7327 = vpack.c.b16 %v4975, %v4959
        %v7328 = vpack.c.b16 %v4976, %v4960
        %v7329 = vpack.c.b16 %v4977, %v4961
        %v7330 = vpack.c.b16 %v4978, %v4962
        %v7331 = vpack.c.b16 %v4979, %v4963
        %v7332 = vpack.c.b16 %v4996, %v4980
        %v7333 = vpack.c.b16 %v4997, %v4981
        %v7334 = vpack.c.b16 %v4998, %v4982
        %v7335 = vpack.c.b16 %v4999, %v4983
        %v7336 = vpack.c.b16 %v5000, %v4984
        %v7337 = vpack.c.b16 %v5001, %v4985
        %v7338 = vpack.c.b16 %v5002, %v4986
        %v7339 = vpack.c.b16 %v5003, %v4987
        %v7340 = vpack.c.b16 %v5004, %v4988
        %v7341 = vpack.c.b16 %v5005, %v4989
        %v7342 = vpack.c.b16 %v5006, %v4990
        %v7343 = vpack.c.b16 %v5007, %v4991
        %v7344 = vpack.c.b16 %v5008, %v4992
        %v7345 = vpack.c.b16 %v5009, %v4993
        %v7346 = vpack.c.b16 %v5010, %v4994
        %v7347 = vpack.c.b16 %v5011, %v4995
        %v7348 = vpack.c.b16 %v5028, %v5012
        %v7349 = vpack.c.b16 %v5029, %v5013
        %v7350 = vpack.c.b16 %v5030, %v5014
        %v7351 = vpack.c.b16 %v5031, %v5015
        %v7352 = vpack.c.b16 %v5032, %v5016
        %v7353 = vpack.c.b16 %v5033, %v5017
        %v7354 = vpack.c.b16 %v5034, %v5018
        %v7355 = vpack.c.b16 %v5035, %v5019
        %v7356 = vpack.c.b16 %v5036, %v5020
        %v7357 = vpack.c.b16 %v5037, %v5021
        %v7358 = vpack.c.b16 %v5038, %v5022
        %v7359 = vpack.c.b16 %v5039, %v5023
        %v7360 = vpack.c.b16 %v5040, %v5024
        %v7361 = vpack.c.b16 %v5041, %v5025
        %v7362 = vpack.c.b16 %v5042, %v5026
        %v7363 = vpack.c.b16 %v5043, %v5027
        %v7364 = vpack.c.b16 %v5060, %v5044
        %v7365 = vpack.c.b16 %v5061, %v5045
        %v7366 = vpack.c.b16 %v5062, %v5046
        %v7367 = vpack.c.b16 %v5063, %v5047
        %v7368 = vpack.c.b16 %v5064, %v5048
        %v7369 = vpack.c.b16 %v5065, %v5049
        %v7370 = vpack.c.b16 %v5066, %v5050
        %v7371 = vpack.c.b16 %v5067, %v5051
        %v7372 = vpack.c.b16 %v5068, %v5052
        %v7373 = vpack.c.b16 %v5069, %v5053
        %v7374 = vpack.c.b16 %v5070, %v5054
        %v7375 = vpack.c.b16 %v5071, %v5055
        %v7376 = vpack.c.b16 %v5072, %v5056
        %v7377 = vpack.c.b16 %v5073, %v5057
        %v7378 = vpack.c.b16 %v5074, %v5058
        %v7379 = vpack.c.b16 %v5075, %v5059
        %v7380 = vpack.c.b16 %v5092, %v5076
        %v7381 = vpack.c.b16 %v5093, %v5077
        %v7382 = vpack.c.b16 %v5094, %v5078
        %v7383 = vpack.c.b16 %v5095, %v5079
        %v7384 = vpack.c.b16 %v5096, %v5080
        %v7385 = vpack.c.b16 %v5097, %v5081
        %v7386 = vpack.c.b16 %v5098, %v5082
        %v7387 = vpack.c.b16 %v5099, %v5083
        %v7388 = vpack.c.b16 %v5100, %v5084
        %v7389 = vpack.c.b16 %v5101, %v5085
        %v7390 = vpack.c.b16 %v5102, %v5086
        %v7391 = vpack.c.b16 %v5103, %v5087
        %v7392 = vpack.c.b16 %v5104, %v5088
        %v7393 = vpack.c.b16 %v5105, %v5089
        %v7394 = vpack.c.b16 %v5106, %v5090
        %v7395 = vpack.c.b16 %v5107, %v5091
        %v7396 = vpack.c.b16 %v5124, %v5108
        %v7397 = vpack.c.b16 %v5125, %v5109
        %v7398 = vpack.c.b16 %v5126, %v5110
        %v7399 = vpack.c.b16 %v5127, %v5111
        %v7400 = vpack.c.b16 %v5128, %v5112
        %v7401 = vpack.c.b16 %v5129, %v5113
        %v7402 = vpack.c.b16 %v5130, %v5114
        %v7403 = vpack.c.b16 %v5131, %v5115
        %v7404 = vpack.c.b16 %v5132, %v5116
        %v7405 = vpack.c.b16 %v5133, %v5117
        %v7406 = vpack.c.b16 %v5134, %v5118
        %v7407 = vpack.c.b16 %v5135, %v5119
        %v7408 = vpack.c.b16 %v5136, %v5120
        %v7409 = vpack.c.b16 %v5137, %v5121
        %v7410 = vpack.c.b16 %v5138, %v5122
        %v7411 = vpack.c.b16 %v5139, %v5123
        %v7412 = vpack.c.b16 %v5156, %v5140
        %v7413 = vpack.c.b16 %v5157, %v5141
        %v7414 = vpack.c.b16 %v5158, %v5142
        %v7415 = vpack.c.b16 %v5159, %v5143
        %v7416 = vpack.c.b16 %v5160, %v5144
        %v7417 = vpack.c.b16 %v5161, %v5145
        %v7418 = vpack.c.b16 %v5162, %v5146
        %v7419 = vpack.c.b16 %v5163, %v5147
        %v7420 = vpack.c.b16 %v5164, %v5148
        %v7421 = vpack.c.b16 %v5165, %v5149
        %v7422 = vpack.c.b16 %v5166, %v5150
        %v7423 = vpack.c.b16 %v5167, %v5151
        %v7424 = vpack.c.b16 %v5168, %v5152
        %v7425 = vpack.c.b16 %v5169, %v5153
        %v7426 = vpack.c.b16 %v5170, %v5154
        %v7427 = vpack.c.b16 %v5171, %v5155
        %v7428 = vpack.c.b16 %v5188, %v5172
        %v7429 = vpack.c.b16 %v5189, %v5173
        %v7430 = vpack.c.b16 %v5190, %v5174
        %v7431 = vpack.c.b16 %v5191, %v5175
        %v7432 = vpack.c.b16 %v5192, %v5176
        %v7433 = vpack.c.b16 %v5193, %v5177
        %v7434 = vpack.c.b16 %v5194, %v5178
        %v7435 = vpack.c.b16 %v5195, %v5179
        %v7436 = vpack.c.b16 %v5196, %v5180
        %v7437 = vpack.c.b16 %v5197, %v5181
        %v7438 = vpack.c.b16 %v5198, %v5182
        %v7439 = vpack.c.b16 %v5199, %v5183
        %v7440 = vpack.c.b16 %v5200, %v5184
        %v7441 = vpack.c.b16 %v5201, %v5185
        %v7442 = vpack.c.b16 %v5202, %v5186
        %v7443 = vpack.c.b16 %v5203, %v5187
        %v7444 = vpack.c.b16 %v5220, %v5204
        %v7445 = vpack.c.b16 %v5221, %v5205
        %v7446 = vpack.c.b16 %v5222, %v5206
        %v7447 = vpack.c.b16 %v5223, %v5207
        %v7448 = vpack.c.b16 %v5224, %v5208
        %v7449 = vpack.c.b16 %v5225, %v5209
        %v7450 = vpack.c.b16 %v5226, %v5210
        %v7451 = vpack.c.b16 %v5227, %v5211
        %v7452 = vpack.c.b16 %v5228, %v5212
        %v7453 = vpack.c.b16 %v5229, %v5213
        %v7454 = vpack.c.b16 %v5230, %v5214
        %v7455 = vpack.c.b16 %v5231, %v5215
        %v7456 = vpack.c.b16 %v5232, %v5216
        %v7457 = vpack.c.b16 %v5233, %v5217
        %v7458 = vpack.c.b16 %v5234, %v5218
        %v7459 = vpack.c.b16 %v5235, %v5219
        %v7460 = vpack.c.b16 %v5252, %v5236
        %v7461 = vpack.c.b16 %v5253, %v5237
        %v7462 = vpack.c.b16 %v5254, %v5238
        %v7463 = vpack.c.b16 %v5255, %v5239
        %v7464 = vpack.c.b16 %v5256, %v5240
        %v7465 = vpack.c.b16 %v5257, %v5241
        %v7466 = vpack.c.b16 %v5258, %v5242
        %v7467 = vpack.c.b16 %v5259, %v5243
        %v7468 = vpack.c.b16 %v5260, %v5244
        %v7469 = vpack.c.b16 %v5261, %v5245
        %v7470 = vpack.c.b16 %v5262, %v5246
        %v7471 = vpack.c.b16 %v5263, %v5247
        %v7472 = vpack.c.b16 %v5264, %v5248
        %v7473 = vpack.c.b16 %v5265, %v5249
        %v7474 = vpack.c.b16 %v5266, %v5250
        %v7475 = vpack.c.b16 %v5267, %v5251
        %v7476 = vpack.c.b16 %v5284, %v5268
        %v7477 = vpack.c.b16 %v5285, %v5269
        %v7478 = vpack.c.b16 %v5286, %v5270
        %v7479 = vpack.c.b16 %v5287, %v5271
        %v7480 = vpack.c.b16 %v5288, %v5272
        %v7481 = vpack.c.b16 %v5289, %v5273
        %v7482 = vpack.c.b16 %v5290, %v5274
        %v7483 = vpack.c.b16 %v5291, %v5275
        %v7484 = vpack.c.b16 %v5292, %v5276
        %v7485 = vpack.c.b16 %v5293, %v5277
        %v7486 = vpack.c.b16 %v5294, %v5278
        %v7487 = vpack.c.b16 %v5295, %v5279
        %v7488 = vpack.c.b16 %v5296, %v5280
        %v7489 = vpack.c.b16 %v5297, %v5281
        %v7490 = vpack.c.b16 %v5298, %v5282
        %v7491 = vpack.c.b16 %v5299, %v5283
        %v7492 = vpack.c.b16 %v5316, %v5300
        %v7493 = vpack.c.b16 %v5317, %v5301
        %v7494 = vpack.c.b16 %v5318, %v5302
        %v7495 = vpack.c.b16 %v5319, %v5303
        %v7496 = vpack.c.b16 %v5320, %v5304
        %v7497 = vpack.c.b16 %v5321, %v5305
        %v7498 = vpack.c.b16 %v5322, %v5306
        %v7499 = vpack.c.b16 %v5323, %v5307
        %v7500 = vpack.c.b16 %v5324, %v5308
        %v7501 = vpack.c.b16 %v5325, %v5309
        %v7502 = vpack.c.b16 %v5326, %v5310
        %v7503 = vpack.c.b16 %v5327, %v5311
        %v7504 = vpack.c.b16 %v5328, %v5312
        %v7505 = vpack.c.b16 %v5329, %v5313
        %v7506 = vpack.c.b16 %v5330, %v5314
        %v7507 = vpack.c.b16 %v5331, %v5315
        %v7508 = vpack.c.b16 %v5348, %v5332
        %v7509 = vpack.c.b16 %v5349, %v5333
        %v7510 = vpack.c.b16 %v5350, %v5334
        %v7511 = vpack.c.b16 %v5351, %v5335
        %v7512 = vpack.c.b16 %v5352, %v5336
        %v7513 = vpack.c.b16 %v5353, %v5337
        %v7514 = vpack.c.b16 %v5354, %v5338
        %v7515 = vpack.c.b16 %v5355, %v5339
        %v7516 = vpack.c.b16 %v5356, %v5340
        %v7517 = vpack.c.b16 %v5357, %v5341
        %v7518 = vpack.c.b16 %v5358, %v5342
        %v7519 = vpack.c.b16 %v5359, %v5343
        %v7520 = vpack.c.b16 %v5360, %v5344
        %v7521 = vpack.c.b16 %v5361, %v5345
        %v7522 = vpack.c.b16 %v5362, %v5346
        %v7523 = vpack.c.b16 %v5363, %v5347
        %v7524 = vpack.c.b16 %v5380, %v5364
        %v7525 = vpack.c.b16 %v5381, %v5365
        %v7526 = vpack.c.b16 %v5382, %v5366
        %v7527 = vpack.c.b16 %v5383, %v5367
        %v7528 = vpack.c.b16 %v5384, %v5368
        %v7529 = vpack.c.b16 %v5385, %v5369
        %v7530 = vpack.c.b16 %v5386, %v5370
        %v7531 = vpack.c.b16 %v5387, %v5371
        %v7532 = vpack.c.b16 %v5388, %v5372
        %v7533 = vpack.c.b16 %v5389, %v5373
        %v7534 = vpack.c.b16 %v5390, %v5374
        %v7535 = vpack.c.b16 %v5391, %v5375
        %v7536 = vpack.c.b16 %v5392, %v5376
        %v7537 = vpack.c.b16 %v5393, %v5377
        %v7538 = vpack.c.b16 %v5394, %v5378
        %v7539 = vpack.c.b16 %v5395, %v5379
        %v7540 = vpack.c.b16 %v5412, %v5396
        %v7541 = vpack.c.b16 %v5413, %v5397
        %v7542 = vpack.c.b16 %v5414, %v5398
        %v7543 = vpack.c.b16 %v5415, %v5399
        %v7544 = vpack.c.b16 %v5416, %v5400
        %v7545 = vpack.c.b16 %v5417, %v5401
        %v7546 = vpack.c.b16 %v5418, %v5402
        %v7547 = vpack.c.b16 %v5419, %v5403
        %v7548 = vpack.c.b16 %v5420, %v5404
        %v7549 = vpack.c.b16 %v5421, %v5405
        %v7550 = vpack.c.b16 %v5422, %v5406
        %v7551 = vpack.c.b16 %v5423, %v5407
        %v7552 = vpack.c.b16 %v5424, %v5408
        %v7553 = vpack.c.b16 %v5425, %v5409
        %v7554 = vpack.c.b16 %v5426, %v5410
        %v7555 = vpack.c.b16 %v5427, %v5411
        %v7556 = vpack.c.b16 %v5444, %v5428
        %v7557 = vpack.c.b16 %v5445, %v5429
        %v7558 = vpack.c.b16 %v5446, %v5430
        %v7559 = vpack.c.b16 %v5447, %v5431
        %v7560 = vpack.c.b16 %v5448, %v5432
        %v7561 = vpack.c.b16 %v5449, %v5433
        %v7562 = vpack.c.b16 %v5450, %v5434
        %v7563 = vpack.c.b16 %v5451, %v5435
        %v7564 = vpack.c.b16 %v5452, %v5436
        %v7565 = vpack.c.b16 %v5453, %v5437
        %v7566 = vpack.c.b16 %v5454, %v5438
        %v7567 = vpack.c.b16 %v5455, %v5439
        %v7568 = vpack.c.b16 %v5456, %v5440
        %v7569 = vpack.c.b16 %v5457, %v5441
        %v7570 = vpack.c.b16 %v5458, %v5442
        %v7571 = vpack.c.b16 %v5459, %v5443
        %v7572 = vpack.c.b16 %v5476, %v5460
        %v7573 = vpack.c.b16 %v5477, %v5461
        %v7574 = vpack.c.b16 %v5478, %v5462
        %v7575 = vpack.c.b16 %v5479, %v5463
        %v7576 = vpack.c.b16 %v5480, %v5464
        %v7577 = vpack.c.b16 %v5481, %v5465
        %v7578 = vpack.c.b16 %v5482, %v5466
        %v7579 = vpack.c.b16 %v5483, %v5467
        %v7580 = vpack.c.b16 %v5484, %v5468
        %v7581 = vpack.c.b16 %v5485, %v5469
        %v7582 = vpack.c.b16 %v5486, %v5470
        %v7583 = vpack.c.b16 %v5487, %v5471
        %v7584 = vpack.c.b16 %v5488, %v5472
        %v7585 = vpack.c.b16 %v5489, %v5473
        %v7586 = vpack.c.b16 %v5490, %v5474
        %v7587 = vpack.c.b16 %v5491, %v5475
        %v7588 = vpack.c.b16 %v5508, %v5492
        %v7589 = vpack.c.b16 %v5509, %v5493
        %v7590 = vpack.c.b16 %v5510, %v5494
        %v7591 = vpack.c.b16 %v5511, %v5495
        %v7592 = vpack.c.b16 %v5512, %v5496
        %v7593 = vpack.c.b16 %v5513, %v5497
        %v7594 = vpack.c.b16 %v5514, %v5498
        %v7595 = vpack.c.b16 %v5515, %v5499
        %v7596 = vpack.c.b16 %v5516, %v5500
        %v7597 = vpack.c.b16 %v5517, %v5501
        %v7598 = vpack.c.b16 %v5518, %v5502
        %v7599 = vpack.c.b16 %v5519, %v5503
        %v7600 = vpack.c.b16 %v5520, %v5504
        %v7601 = vpack.c.b16 %v5521, %v5505
        %v7602 = vpack.c.b16 %v5522, %v5506
        %v7603 = vpack.c.b16 %v5523, %v5507
        %v7604 = vpack.c.b16 %v5540, %v5524
        %v7605 = vpack.c.b16 %v5541, %v5525
        %v7606 = vpack.c.b16 %v5542, %v5526
        %v7607 = vpack.c.b16 %v5543, %v5527
        %v7608 = vpack.c.b16 %v5544, %v5528
        %v7609 = vpack.c.b16 %v5545, %v5529
        %v7610 = vpack.c.b16 %v5546, %v5530
        %v7611 = vpack.c.b16 %v5547, %v5531
        %v7612 = vpack.c.b16 %v5548, %v5532
        %v7613 = vpack.c.b16 %v5549, %v5533
        %v7614 = vpack.c.b16 %v5550, %v5534
        %v7615 = vpack.c.b16 %v5551, %v5535
        %v7616 = vpack.c.b16 %v5552, %v5536
        %v7617 = vpack.c.b16 %v5553, %v5537
        %v7618 = vpack.c.b16 %v5554, %v5538
        %v7619 = vpack.c.b16 %v5555, %v5539
        %v7620 = vpack.c.b16 %v5572, %v5556
        %v7621 = vpack.c.b16 %v5573, %v5557
        %v7622 = vpack.c.b16 %v5574, %v5558
        %v7623 = vpack.c.b16 %v5575, %v5559
        %v7624 = vpack.c.b16 %v5576, %v5560
        %v7625 = vpack.c.b16 %v5577, %v5561
        %v7626 = vpack.c.b16 %v5578, %v5562
        %v7627 = vpack.c.b16 %v5579, %v5563
        %v7628 = vpack.c.b16 %v5580, %v5564
        %v7629 = vpack.c.b16 %v5581, %v5565
        %v7630 = vpack.c.b16 %v5582, %v5566
        %v7631 = vpack.c.b16 %v5583, %v5567
        %v7632 = vpack.c.b16 %v5584, %v5568
        %v7633 = vpack.c.b16 %v5585, %v5569
        %v7634 = vpack.c.b16 %v5586, %v5570
        %v7635 = vpack.c.b16 %v5587, %v5571
        %v7636 = vpack.c.b16 %v5604, %v5588
        %v7637 = vpack.c.b16 %v5605, %v5589
        %v7638 = vpack.c.b16 %v5606, %v5590
        %v7639 = vpack.c.b16 %v5607, %v5591
        %v7640 = vpack.c.b16 %v5608, %v5592
        %v7641 = vpack.c.b16 %v5609, %v5593
        %v7642 = vpack.c.b16 %v5610, %v5594
        %v7643 = vpack.c.b16 %v5611, %v5595
        %v7644 = vpack.c.b16 %v5612, %v5596
        %v7645 = vpack.c.b16 %v5613, %v5597
        %v7646 = vpack.c.b16 %v5614, %v5598
        %v7647 = vpack.c.b16 %v5615, %v5599
        %v7648 = vpack.c.b16 %v5616, %v5600
        %v7649 = vpack.c.b16 %v5617, %v5601
        %v7650 = vpack.c.b16 %v5618, %v5602
        %v7651 = vpack.c.b16 %v5619, %v5603
        %v7652 = vpack.c.b16 %v5636, %v5620
        %v7653 = vpack.c.b16 %v5637, %v5621
        %v7654 = vpack.c.b16 %v5638, %v5622
        %v7655 = vpack.c.b16 %v5639, %v5623
        %v7656 = vpack.c.b16 %v5640, %v5624
        %v7657 = vpack.c.b16 %v5641, %v5625
        %v7658 = vpack.c.b16 %v5642, %v5626
        %v7659 = vpack.c.b16 %v5643, %v5627
        %v7660 = vpack.c.b16 %v5644, %v5628
        %v7661 = vpack.c.b16 %v5645, %v5629
        %v7662 = vpack.c.b16 %v5646, %v5630
        %v7663 = vpack.c.b16 %v5647, %v5631
        %v7664 = vpack.c.b16 %v5648, %v5632
        %v7665 = vpack.c.b16 %v5649, %v5633
        %v7666 = vpack.c.b16 %v5650, %v5634
        %v7667 = vpack.c.b16 %v5651, %v5635
        %v7668 = vpack.c.b16 %v5668, %v5652
        %v7669 = vpack.c.b16 %v5669, %v5653
        %v7670 = vpack.c.b16 %v5670, %v5654
        %v7671 = vpack.c.b16 %v5671, %v5655
        %v7672 = vpack.c.b16 %v5672, %v5656
        %v7673 = vpack.c.b16 %v5673, %v5657
        %v7674 = vpack.c.b16 %v5674, %v5658
        %v7675 = vpack.c.b16 %v5675, %v5659
        %v7676 = vpack.c.b16 %v5676, %v5660
        %v7677 = vpack.c.b16 %v5677, %v5661
        %v7678 = vpack.c.b16 %v5678, %v5662
        %v7679 = vpack.c.b16 %v5679, %v5663
        %v7680 = vpack.c.b16 %v5680, %v5664
        %v7681 = vpack.c.b16 %v5681, %v5665
        %v7682 = vpack.c.b16 %v5682, %v5666
        %v7683 = vpack.c.b16 %v5683, %v5667
        %v7684 = vpack.c.b16 %v5700, %v5684
        %v7685 = vpack.c.b16 %v5701, %v5685
        %v7686 = vpack.c.b16 %v5702, %v5686
        %v7687 = vpack.c.b16 %v5703, %v5687
        %v7688 = vpack.c.b16 %v5704, %v5688
        %v7689 = vpack.c.b16 %v5705, %v5689
        %v7690 = vpack.c.b16 %v5706, %v5690
        %v7691 = vpack.c.b16 %v5707, %v5691
        %v7692 = vpack.c.b16 %v5708, %v5692
        %v7693 = vpack.c.b16 %v5709, %v5693
        %v7694 = vpack.c.b16 %v5710, %v5694
        %v7695 = vpack.c.b16 %v5711, %v5695
        %v7696 = vpack.c.b16 %v5712, %v5696
        %v7697 = vpack.c.b16 %v5713, %v5697
        %v7698 = vpack.c.b16 %v5714, %v5698
        %v7699 = vpack.c.b16 %v5715, %v5699
        %v7700 = vpack.c.b16 %v5732, %v5716
        %v7701 = vpack.c.b16 %v5733, %v5717
        %v7702 = vpack.c.b16 %v5734, %v5718
        %v7703 = vpack.c.b16 %v5735, %v5719
        %v7704 = vpack.c.b16 %v5736, %v5720
        %v7705 = vpack.c.b16 %v5737, %v5721
        %v7706 = vpack.c.b16 %v5738, %v5722
        %v7707 = vpack.c.b16 %v5739, %v5723
        %v7708 = vpack.c.b16 %v5740, %v5724
        %v7709 = vpack.c.b16 %v5741, %v5725
        %v7710 = vpack.c.b16 %v5742, %v5726
        %v7711 = vpack.c.b16 %v5743, %v5727
        %v7712 = vpack.c.b16 %v5744, %v5728
        %v7713 = vpack.c.b16 %v5745, %v5729
        %v7714 = vpack.c.b16 %v5746, %v5730
        %v7715 = vpack.c.b16 %v5747, %v5731
        %v7716 = vpack.c.b16 %v5764, %v5748
        %v7717 = vpack.c.b16 %v5765, %v5749
        %v7718 = vpack.c.b16 %v5766, %v5750
        %v7719 = vpack.c.b16 %v5767, %v5751
        %v7720 = vpack.c.b16 %v5768, %v5752
        %v7721 = vpack.c.b16 %v5769, %v5753
        %v7722 = vpack.c.b16 %v5770, %v5754
        %v7723 = vpack.c.b16 %v5771, %v5755
        %v7724 = vpack.c.b16 %v5772, %v5756
        %v7725 = vpack.c.b16 %v5773, %v5757
        %v7726 = vpack.c.b16 %v5774, %v5758
        %v7727 = vpack.c.b16 %v5775, %v5759
        %v7728 = vpack.c.b16 %v5776, %v5760
        %v7729 = vpack.c.b16 %v5777, %v5761
        %v7730 = vpack.c.b16 %v5778, %v5762
        %v7731 = vpack.c.b16 %v5779, %v5763
        %v7732 = vpack.c.b16 %v5796, %v5780
        %v7733 = vpack.c.b16 %v5797, %v5781
        %v7734 = vpack.c.b16 %v5798, %v5782
        %v7735 = vpack.c.b16 %v5799, %v5783
        %v7736 = vpack.c.b16 %v5800, %v5784
        %v7737 = vpack.c.b16 %v5801, %v5785
        %v7738 = vpack.c.b16 %v5802, %v5786
        %v7739 = vpack.c.b16 %v5803, %v5787
        %v7740 = vpack.c.b16 %v5804, %v5788
        %v7741 = vpack.c.b16 %v5805, %v5789
        %v7742 = vpack.c.b16 %v5806, %v5790
        %v7743 = vpack.c.b16 %v5807, %v5791
        %v7744 = vpack.c.b16 %v5808, %v5792
        %v7745 = vpack.c.b16 %v5809, %v5793
        %v7746 = vpack.c.b16 %v5810, %v5794
        %v7747 = vpack.c.b16 %v5811, %v5795
        %v7748 = vpack.c.b16 %v5828, %v5812
        %v7749 = vpack.c.b16 %v5829, %v5813
        %v7750 = vpack.c.b16 %v5830, %v5814
        %v7751 = vpack.c.b16 %v5831, %v5815
        %v7752 = vpack.c.b16 %v5832, %v5816
        %v7753 = vpack.c.b16 %v5833, %v5817
        %v7754 = vpack.c.b16 %v5834, %v5818
        %v7755 = vpack.c.b16 %v5835, %v5819
        %v7756 = vpack.c.b16 %v5836, %v5820
        %v7757 = vpack.c.b16 %v5837, %v5821
        %v7758 = vpack.c.b16 %v5838, %v5822
        %v7759 = vpack.c.b16 %v5839, %v5823
        %v7760 = vpack.c.b16 %v5840, %v5824
        %v7761 = vpack.c.b16 %v5841, %v5825
        %v7762 = vpack.c.b16 %v5842, %v5826
        %v7763 = vpack.c.b16 %v5843, %v5827
        %v7764 = vpack.c.b16 %v5860, %v5844
        %v7765 = vpack.c.b16 %v5861, %v5845
        %v7766 = vpack.c.b16 %v5862, %v5846
        %v7767 = vpack.c.b16 %v5863, %v5847
        %v7768 = vpack.c.b16 %v5864, %v5848
        %v7769 = vpack.c.b16 %v5865, %v5849
        %v7770 = vpack.c.b16 %v5866, %v5850
        %v7771 = vpack.c.b16 %v5867, %v5851
        %v7772 = vpack.c.b16 %v5868, %v5852
        %v7773 = vpack.c.b16 %v5869, %v5853
        %v7774 = vpack.c.b16 %v5870, %v5854
        %v7775 = vpack.c.b16 %v5871, %v5855
        %v7776 = vpack.c.b16 %v5872, %v5856
        %v7777 = vpack.c.b16 %v5873, %v5857
        %v7778 = vpack.c.b16 %v5874, %v5858
        %v7779 = vpack.c.b16 %v5875, %v5859
        %v7780 = vpack.c.b16 %v5892, %v5876
        %v7781 = vpack.c.b16 %v5893, %v5877
        %v7782 = vpack.c.b16 %v5894, %v5878
        %v7783 = vpack.c.b16 %v5895, %v5879
        %v7784 = vpack.c.b16 %v5896, %v5880
        %v7785 = vpack.c.b16 %v5897, %v5881
        %v7786 = vpack.c.b16 %v5898, %v5882
        %v7787 = vpack.c.b16 %v5899, %v5883
        %v7788 = vpack.c.b16 %v5900, %v5884
        %v7789 = vpack.c.b16 %v5901, %v5885
        %v7790 = vpack.c.b16 %v5902, %v5886
        %v7791 = vpack.c.b16 %v5903, %v5887
        %v7792 = vpack.c.b16 %v5904, %v5888
        %v7793 = vpack.c.b16 %v5905, %v5889
        %v7794 = vpack.c.b16 %v5906, %v5890
        %v7795 = vpack.c.b16 %v5907, %v5891
        %v7796 = vpack.c.b16 %v5924, %v5908
        %v7797 = vpack.c.b16 %v5925, %v5909
        %v7798 = vpack.c.b16 %v5926, %v5910
        %v7799 = vpack.c.b16 %v5927, %v5911
        %v7800 = vpack.c.b16 %v5928, %v5912
        %v7801 = vpack.c.b16 %v5929, %v5913
        %v7802 = vpack.c.b16 %v5930, %v5914
        %v7803 = vpack.c.b16 %v5931, %v5915
        %v7804 = vpack.c.b16 %v5932, %v5916
        %v7805 = vpack.c.b16 %v5933, %v5917
        %v7806 = vpack.c.b16 %v5934, %v5918
        %v7807 = vpack.c.b16 %v5935, %v5919
        %v7808 = vpack.c.b16 %v5936, %v5920
        %v7809 = vpack.c.b16 %v5937, %v5921
        %v7810 = vpack.c.b16 %v5938, %v5922
        %v7811 = vpack.c.b16 %v5939, %v5923
        %v7812 = vpack.c.b16 %v5956, %v5940
        %v7813 = vpack.c.b16 %v5957, %v5941
        %v7814 = vpack.c.b16 %v5958, %v5942
        %v7815 = vpack.c.b16 %v5959, %v5943
        %v7816 = vpack.c.b16 %v5960, %v5944
        %v7817 = vpack.c.b16 %v5961, %v5945
        %v7818 = vpack.c.b16 %v5962, %v5946
        %v7819 = vpack.c.b16 %v5963, %v5947
        %v7820 = vpack.c.b16 %v5964, %v5948
        %v7821 = vpack.c.b16 %v5965, %v5949
        %v7822 = vpack.c.b16 %v5966, %v5950
        %v7823 = vpack.c.b16 %v5967, %v5951
        %v7824 = vpack.c.b16 %v5968, %v5952
        %v7825 = vpack.c.b16 %v5969, %v5953
        %v7826 = vpack.c.b16 %v5970, %v5954
        %v7827 = vpack.c.b16 %v5971, %v5955
        %v7828 = vpack.c.b16 %v5988, %v5972
        %v7829 = vpack.c.b16 %v5989, %v5973
        %v7830 = vpack.c.b16 %v5990, %v5974
        %v7831 = vpack.c.b16 %v5991, %v5975
        %v7832 = vpack.c.b16 %v5992, %v5976
        %v7833 = vpack.c.b16 %v5993, %v5977
        %v7834 = vpack.c.b16 %v5994, %v5978
        %v7835 = vpack.c.b16 %v5995, %v5979
        %v7836 = vpack.c.b16 %v5996, %v5980
        %v7837 = vpack.c.b16 %v5997, %v5981
        %v7838 = vpack.c.b16 %v5998, %v5982
        %v7839 = vpack.c.b16 %v5999, %v5983
        %v7840 = vpack.c.b16 %v6000, %v5984
        %v7841 = vpack.c.b16 %v6001, %v5985
        %v7842 = vpack.c.b16 %v6002, %v5986
        %v7843 = vpack.c.b16 %v6003, %v5987
        %v7844 = vpack.c.b16 %v6020, %v6004
        %v7845 = vpack.c.b16 %v6021, %v6005
        %v7846 = vpack.c.b16 %v6022, %v6006
        %v7847 = vpack.c.b16 %v6023, %v6007
        %v7848 = vpack.c.b16 %v6024, %v6008
        %v7849 = vpack.c.b16 %v6025, %v6009
        %v7850 = vpack.c.b16 %v6026, %v6010
        %v7851 = vpack.c.b16 %v6027, %v6011
        %v7852 = vpack.c.b16 %v6028, %v6012
        %v7853 = vpack.c.b16 %v6029, %v6013
        %v7854 = vpack.c.b16 %v6030, %v6014
        %v7855 = vpack.c.b16 %v6031, %v6015
        %v7856 = vpack.c.b16 %v6032, %v6016
        %v7857 = vpack.c.b16 %v6033, %v6017
        %v7858 = vpack.c.b16 %v6034, %v6018
        %v7859 = vpack.c.b16 %v6035, %v6019
        %v7860 = vpack.c.b16 %v6052, %v6036
        %v7861 = vpack.c.b16 %v6053, %v6037
        %v7862 = vpack.c.b16 %v6054, %v6038
        %v7863 = vpack.c.b16 %v6055, %v6039
        %v7864 = vpack.c.b16 %v6056, %v6040
        %v7865 = vpack.c.b16 %v6057, %v6041
        %v7866 = vpack.c.b16 %v6058, %v6042
        %v7867 = vpack.c.b16 %v6059, %v6043
        %v7868 = vpack.c.b16 %v6060, %v6044
        %v7869 = vpack.c.b16 %v6061, %v6045
        %v7870 = vpack.c.b16 %v6062, %v6046
        %v7871 = vpack.c.b16 %v6063, %v6047
        %v7872 = vpack.c.b16 %v6064, %v6048
        %v7873 = vpack.c.b16 %v6065, %v6049
        %v7874 = vpack.c.b16 %v6066, %v6050
        %v7875 = vpack.c.b16 %v6067, %v6051
        %v7876 = vpack.c.b16 %v6084, %v6068
        %v7877 = vpack.c.b16 %v6085, %v6069
        %v7878 = vpack.c.b16 %v6086, %v6070
        %v7879 = vpack.c.b16 %v6087, %v6071
        %v7880 = vpack.c.b16 %v6088, %v6072
        %v7881 = vpack.c.b16 %v6089, %v6073
        %v7882 = vpack.c.b16 %v6090, %v6074
        %v7883 = vpack.c.b16 %v6091, %v6075
        %v7884 = vpack.c.b16 %v6092, %v6076
        %v7885 = vpack.c.b16 %v6093, %v6077
        %v7886 = vpack.c.b16 %v6094, %v6078
        %v7887 = vpack.c.b16 %v6095, %v6079
        %v7888 = vpack.c.b16 %v6096, %v6080
        %v7889 = vpack.c.b16 %v6097, %v6081
        %v7890 = vpack.c.b16 %v6098, %v6082
        %v7891 = vpack.c.b16 %v6099, %v6083
        %v7892 = vpack.c.b16 %v6116, %v6100
        %v7893 = vpack.c.b16 %v6117, %v6101
        %v7894 = vpack.c.b16 %v6118, %v6102
        %v7895 = vpack.c.b16 %v6119, %v6103
        %v7896 = vpack.c.b16 %v6120, %v6104
        %v7897 = vpack.c.b16 %v6121, %v6105
        %v7898 = vpack.c.b16 %v6122, %v6106
        %v7899 = vpack.c.b16 %v6123, %v6107
        %v7900 = vpack.c.b16 %v6124, %v6108
        %v7901 = vpack.c.b16 %v6125, %v6109
        %v7902 = vpack.c.b16 %v6126, %v6110
        %v7903 = vpack.c.b16 %v6127, %v6111
        %v7904 = vpack.c.b16 %v6128, %v6112
        %v7905 = vpack.c.b16 %v6129, %v6113
        %v7906 = vpack.c.b16 %v6130, %v6114
        %v7907 = vpack.c.b16 %v6131, %v6115
        %v7908 = vpack.c.b16 %v6148, %v6132
        %v7909 = vpack.c.b16 %v6149, %v6133
        %v7910 = vpack.c.b16 %v6150, %v6134
        %v7911 = vpack.c.b16 %v6151, %v6135
        %v7912 = vpack.c.b16 %v6152, %v6136
        %v7913 = vpack.c.b16 %v6153, %v6137
        %v7914 = vpack.c.b16 %v6154, %v6138
        %v7915 = vpack.c.b16 %v6155, %v6139
        %v7916 = vpack.c.b16 %v6156, %v6140
        %v7917 = vpack.c.b16 %v6157, %v6141
        %v7918 = vpack.c.b16 %v6158, %v6142
        %v7919 = vpack.c.b16 %v6159, %v6143
        %v7920 = vpack.c.b16 %v6160, %v6144
        %v7921 = vpack.c.b16 %v6161, %v6145
        %v7922 = vpack.c.b16 %v6162, %v6146
        %v7923 = vpack.c.b16 %v6163, %v6147
        %v7924 = vpack.c.b16 %v6180, %v6164
        %v7925 = vpack.c.b16 %v6181, %v6165
        %v7926 = vpack.c.b16 %v6182, %v6166
        %v7927 = vpack.c.b16 %v6183, %v6167
        %v7928 = vpack.c.b16 %v6184, %v6168
        %v7929 = vpack.c.b16 %v6185, %v6169
        %v7930 = vpack.c.b16 %v6186, %v6170
        %v7931 = vpack.c.b16 %v6187, %v6171
        %v7932 = vpack.c.b16 %v6188, %v6172
        %v7933 = vpack.c.b16 %v6189, %v6173
        %v7934 = vpack.c.b16 %v6190, %v6174
        %v7935 = vpack.c.b16 %v6191, %v6175
        %v7936 = vpack.c.b16 %v6192, %v6176
        %v7937 = vpack.c.b16 %v6193, %v6177
        %v7938 = vpack.c.b16 %v6194, %v6178
        %v7939 = vpack.c.b16 %v6195, %v6179
        %v7940 = vpack.c.b16 %v6212, %v6196
        %v7941 = vpack.c.b16 %v6213, %v6197
        %v7942 = vpack.c.b16 %v6214, %v6198
        %v7943 = vpack.c.b16 %v6215, %v6199
        %v7944 = vpack.c.b16 %v6216, %v6200
        %v7945 = vpack.c.b16 %v6217, %v6201
        %v7946 = vpack.c.b16 %v6218, %v6202
        %v7947 = vpack.c.b16 %v6219, %v6203
        %v7948 = vpack.c.b16 %v6220, %v6204
        %v7949 = vpack.c.b16 %v6221, %v6205
        %v7950 = vpack.c.b16 %v6222, %v6206
        %v7951 = vpack.c.b16 %v6223, %v6207
        %v7952 = vpack.c.b16 %v6224, %v6208
        %v7953 = vpack.c.b16 %v6225, %v6209
        %v7954 = vpack.c.b16 %v6226, %v6210
        %v7955 = vpack.c.b16 %v6227, %v6211
        %v7956 = vpack.c.b16 %v6244, %v6228
        %v7957 = vpack.c.b16 %v6245, %v6229
        %v7958 = vpack.c.b16 %v6246, %v6230
        %v7959 = vpack.c.b16 %v6247, %v6231
        %v7960 = vpack.c.b16 %v6248, %v6232
        %v7961 = vpack.c.b16 %v6249, %v6233
        %v7962 = vpack.c.b16 %v6250, %v6234
        %v7963 = vpack.c.b16 %v6251, %v6235
        %v7964 = vpack.c.b16 %v6252, %v6236
        %v7965 = vpack.c.b16 %v6253, %v6237
        %v7966 = vpack.c.b16 %v6254, %v6238
        %v7967 = vpack.c.b16 %v6255, %v6239
        %v7968 = vpack.c.b16 %v6256, %v6240
        %v7969 = vpack.c.b16 %v6257, %v6241
        %v7970 = vpack.c.b16 %v6258, %v6242
        %v7971 = vpack.c.b16 %v6259, %v6243
        %v7972 = vpack.c.b16 %v6276, %v6260
        %v7973 = vpack.c.b16 %v6277, %v6261
        %v7974 = vpack.c.b16 %v6278, %v6262
        %v7975 = vpack.c.b16 %v6279, %v6263
        %v7976 = vpack.c.b16 %v6280, %v6264
        %v7977 = vpack.c.b16 %v6281, %v6265
        %v7978 = vpack.c.b16 %v6282, %v6266
        %v7979 = vpack.c.b16 %v6283, %v6267
        %v7980 = vpack.c.b16 %v6284, %v6268
        %v7981 = vpack.c.b16 %v6285, %v6269
        %v7982 = vpack.c.b16 %v6286, %v6270
        %v7983 = vpack.c.b16 %v6287, %v6271
        %v7984 = vpack.c.b16 %v6288, %v6272
        %v7985 = vpack.c.b16 %v6289, %v6273
        %v7986 = vpack.c.b16 %v6290, %v6274
        %v7987 = vpack.c.b16 %v6291, %v6275
        %v7988 = vpack.c.b16 %v6308, %v6292
        %v7989 = vpack.c.b16 %v6309, %v6293
        %v7990 = vpack.c.b16 %v6310, %v6294
        %v7991 = vpack.c.b16 %v6311, %v6295
        %v7992 = vpack.c.b16 %v6312, %v6296
        %v7993 = vpack.c.b16 %v6313, %v6297
        %v7994 = vpack.c.b16 %v6314, %v6298
        %v7995 = vpack.c.b16 %v6315, %v6299
        %v7996 = vpack.c.b16 %v6316, %v6300
        %v7997 = vpack.c.b16 %v6317, %v6301
        %v7998 = vpack.c.b16 %v6318, %v6302
        %v7999 = vpack.c.b16 %v6319, %v6303
        %v8000 = vpack.c.b16 %v6320, %v6304
        %v8001 = vpack.c.b16 %v6321, %v6305
        %v8002 = vpack.c.b16 %v6322, %v6306
        %v8003 = vpack.c.b16 %v6323, %v6307
        %v8004 = vpack.c.b16 %v6340, %v6324
        %v8005 = vpack.c.b16 %v6341, %v6325
        %v8006 = vpack.c.b16 %v6342, %v6326
        %v8007 = vpack.c.b16 %v6343, %v6327
        %v8008 = vpack.c.b16 %v6344, %v6328
        %v8009 = vpack.c.b16 %v6345, %v6329
        %v8010 = vpack.c.b16 %v6346, %v6330
        %v8011 = vpack.c.b16 %v6347, %v6331
        %v8012 = vpack.c.b16 %v6348, %v6332
        %v8013 = vpack.c.b16 %v6349, %v6333
        %v8014 = vpack.c.b16 %v6350, %v6334
        %v8015 = vpack.c.b16 %v6351, %v6335
        %v8016 = vpack.c.b16 %v6352, %v6336
        %v8017 = vpack.c.b16 %v6353, %v6337
        %v8018 = vpack.c.b16 %v6354, %v6338
        %v8019 = vpack.c.b16 %v6355, %v6339
        %v8020 = vpack.c.b16 %v6372, %v6356
        %v8021 = vpack.c.b16 %v6373, %v6357
        %v8022 = vpack.c.b16 %v6374, %v6358
        %v8023 = vpack.c.b16 %v6375, %v6359
        %v8024 = vpack.c.b16 %v6376, %v6360
        %v8025 = vpack.c.b16 %v6377, %v6361
        %v8026 = vpack.c.b16 %v6378, %v6362
        %v8027 = vpack.c.b16 %v6379, %v6363
        %v8028 = vpack.c.b16 %v6380, %v6364
        %v8029 = vpack.c.b16 %v6381, %v6365
        %v8030 = vpack.c.b16 %v6382, %v6366
        %v8031 = vpack.c.b16 %v6383, %v6367
        %v8032 = vpack.c.b16 %v6384, %v6368
        %v8033 = vpack.c.b16 %v6385, %v6369
        %v8034 = vpack.c.b16 %v6386, %v6370
        %v8035 = vpack.c.b16 %v6387, %v6371
        %v8036 = vpack.c.b16 %v6404, %v6388
        %v8037 = vpack.c.b16 %v6405, %v6389
        %v8038 = vpack.c.b16 %v6406, %v6390
        %v8039 = vpack.c.b16 %v6407, %v6391
        %v8040 = vpack.c.b16 %v6408, %v6392
        %v8041 = vpack.c.b16 %v6409, %v6393
        %v8042 = vpack.c.b16 %v6410, %v6394
        %v8043 = vpack.c.b16 %v6411, %v6395
        %v8044 = vpack.c.b16 %v6412, %v6396
        %v8045 = vpack.c.b16 %v6413, %v6397
        %v8046 = vpack.c.b16 %v6414, %v6398
        %v8047 = vpack.c.b16 %v6415, %v6399
        %v8048 = vpack.c.b16 %v6416, %v6400
        %v8049 = vpack.c.b16 %v6417, %v6401
        %v8050 = vpack.c.b16 %v6418, %v6402
        %v8051 = vpack.c.b16 %v6419, %v6403
        %v8052 = vpack.c.b16 %v6436, %v6420
        %v8053 = vpack.c.b16 %v6437, %v6421
        %v8054 = vpack.c.b16 %v6438, %v6422
        %v8055 = vpack.c.b16 %v6439, %v6423
        %v8056 = vpack.c.b16 %v6440, %v6424
        %v8057 = vpack.c.b16 %v6441, %v6425
        %v8058 = vpack.c.b16 %v6442, %v6426
        %v8059 = vpack.c.b16 %v6443, %v6427
        %v8060 = vpack.c.b16 %v6444, %v6428
        %v8061 = vpack.c.b16 %v6445, %v6429
        %v8062 = vpack.c.b16 %v6446, %v6430
        %v8063 = vpack.c.b16 %v6447, %v6431
        %v8064 = vpack.c.b16 %v6448, %v6432
        %v8065 = vpack.c.b16 %v6449, %v6433
        %v8066 = vpack.c.b16 %v6450, %v6434
        %v8067 = vpack.c.b16 %v6451, %v6435
        %v8068 = vpack.c.b16 %v6468, %v6452
        %v8069 = vpack.c.b16 %v6469, %v6453
        %v8070 = vpack.c.b16 %v6470, %v6454
        %v8071 = vpack.c.b16 %v6471, %v6455
        %v8072 = vpack.c.b16 %v6472, %v6456
        %v8073 = vpack.c.b16 %v6473, %v6457
        %v8074 = vpack.c.b16 %v6474, %v6458
        %v8075 = vpack.c.b16 %v6475, %v6459
        %v8076 = vpack.c.b16 %v6476, %v6460
        %v8077 = vpack.c.b16 %v6477, %v6461
        %v8078 = vpack.c.b16 %v6478, %v6462
        %v8079 = vpack.c.b16 %v6479, %v6463
        %v8080 = vpack.c.b16 %v6480, %v6464
        %v8081 = vpack.c.b16 %v6481, %v6465
        %v8082 = vpack.c.b16 %v6482, %v6466
        %v8083 = vpack.c.b16 %v6483, %v6467
        %v8084 = vpack.c.b16 %v6500, %v6484
        %v8085 = vpack.c.b16 %v6501, %v6485
        %v8086 = vpack.c.b16 %v6502, %v6486
        %v8087 = vpack.c.b16 %v6503, %v6487
        %v8088 = vpack.c.b16 %v6504, %v6488
        %v8089 = vpack.c.b16 %v6505, %v6489
        %v8090 = vpack.c.b16 %v6506, %v6490
        %v8091 = vpack.c.b16 %v6507, %v6491
        %v8092 = vpack.c.b16 %v6508, %v6492
        %v8093 = vpack.c.b16 %v6509, %v6493
        %v8094 = vpack.c.b16 %v6510, %v6494
        %v8095 = vpack.c.b16 %v6511, %v6495
        %v8096 = vpack.c.b16 %v6512, %v6496
        %v8097 = vpack.c.b16 %v6513, %v6497
        %v8098 = vpack.c.b16 %v6514, %v6498
        %v8099 = vpack.c.b16 %v6515, %v6499
        %v8100 = vpack.c.b16 %v6532, %v6516
        %v8101 = vpack.c.b16 %v6533, %v6517
        %v8102 = vpack.c.b16 %v6534, %v6518
        %v8103 = vpack.c.b16 %v6535, %v6519
        %v8104 = vpack.c.b16 %v6536, %v6520
        %v8105 = vpack.c.b16 %v6537, %v6521
        %v8106 = vpack.c.b16 %v6538, %v6522
        %v8107 = vpack.c.b16 %v6539, %v6523
        %v8108 = vpack.c.b16 %v6540, %v6524
        %v8109 = vpack.c.b16 %v6541, %v6525
        %v8110 = vpack.c.b16 %v6542, %v6526
        %v8111 = vpack.c.b16 %v6543, %v6527
        %v8112 = vpack.c.b16 %v6544, %v6528
        %v8113 = vpack.c.b16 %v6545, %v6529
        %v8114 = vpack.c.b16 %v6546, %v6530
        %v8115 = vpack.c.b16 %v6547, %v6531
        %v8116 = vpack.c.b16 %v6564, %v6548
        %v8117 = vpack.c.b16 %v6565, %v6549
        %v8118 = vpack.c.b16 %v6566, %v6550
        %v8119 = vpack.c.b16 %v6567, %v6551
        %v8120 = vpack.c.b16 %v6568, %v6552
        %v8121 = vpack.c.b16 %v6569, %v6553
        %v8122 = vpack.c.b16 %v6570, %v6554
        %v8123 = vpack.c.b16 %v6571, %v6555
        %v8124 = vpack.c.b16 %v6572, %v6556
        %v8125 = vpack.c.b16 %v6573, %v6557
        %v8126 = vpack.c.b16 %v6574, %v6558
        %v8127 = vpack.c.b16 %v6575, %v6559
        %v8128 = vpack.c.b16 %v6576, %v6560
        %v8129 = vpack.c.b16 %v6577, %v6561
        %v8130 = vpack.c.b16 %v6578, %v6562
        %v8131 = vpack.c.b16 %v6579, %v6563
        %v8132 = vpack.c.b16 %v6596, %v6580
        %v8133 = vpack.c.b16 %v6597, %v6581
        %v8134 = vpack.c.b16 %v6598, %v6582
        %v8135 = vpack.c.b16 %v6599, %v6583
        %v8136 = vpack.c.b16 %v6600, %v6584
        %v8137 = vpack.c.b16 %v6601, %v6585
        %v8138 = vpack.c.b16 %v6602, %v6586
        %v8139 = vpack.c.b16 %v6603, %v6587
        %v8140 = vpack.c.b16 %v6604, %v6588
        %v8141 = vpack.c.b16 %v6605, %v6589
        %v8142 = vpack.c.b16 %v6606, %v6590
        %v8143 = vpack.c.b16 %v6607, %v6591
        %v8144 = vpack.c.b16 %v6608, %v6592
        %v8145 = vpack.c.b16 %v6609, %v6593
        %v8146 = vpack.c.b16 %v6610, %v6594
        %v8147 = vpack.c.b16 %v6611, %v6595
        %9684 = vmatprep.subr.bf16.mxu0 %v6613
        %9685 = vmatpush1.bf16.msra.mxu0 %v6612
        %9686 = vmatprep.subr.bf16.mxu0 %v6629
        %9687 = vmatpush1.bf16.msra.mxu0 %v6628
        %9688 = vmatprep.subr.bf16.mxu0 %v6645
        %9689 = vmatpush1.bf16.msra.mxu0 %v6644
        %9690 = vmatprep.subr.bf16.mxu0 %v6661
        %9691 = vmatpush1.bf16.msra.mxu0 %v6660
        %9692 = vmatprep.subr.bf16.mxu0 %v6677
        %9693 = vmatpush1.bf16.msra.mxu0 %v6676
        %9694 = vmatprep.subr.bf16.mxu0 %v6693
        %9695 = vmatpush1.bf16.msra.mxu0 %v6692
        %9696 = vmatprep.subr.bf16.mxu0 %v6709
        %9697 = vmatpush1.bf16.msra.mxu0 %v6708
        %9698 = vmatprep.subr.bf16.mxu0 %v6725
        %9699 = vmatpush1.bf16.msra.mxu0 %v6724
        %9700 = vmatprep.subr.bf16.mxu0 %v6741
        %9701 = vmatpush1.bf16.msra.mxu0 %v6740
        %9702 = vmatprep.subr.bf16.mxu0 %v6757
        %9703 = vmatpush1.bf16.msra.mxu0 %v6756
        %9704 = vmatprep.subr.bf16.mxu0 %v6773
        %9705 = vmatpush1.bf16.msra.mxu0 %v6772
        %9706 = vmatprep.subr.bf16.mxu0 %v6789
        %9707 = vmatpush1.bf16.msra.mxu0 %v6788
        %9708 = vmatprep.subr.bf16.mxu0 %v6805
        %9709 = vmatpush1.bf16.msra.mxu0 %v6804
        %9710 = vmatprep.subr.bf16.mxu0 %v6821
        %9711 = vmatpush1.bf16.msra.mxu0 %v6820
        %9712 = vmatprep.subr.bf16.mxu0 %v6837
        %9713 = vmatpush1.bf16.msra.mxu0 %v6836
        %9714 = vmatprep.subr.bf16.mxu0 %v6853
        %9715 = vmatpush1.bf16.msra.mxu0 %v6852
        %9716 = vmatprep.mubr.bf16.mxu0 %v1981
        %9717 = vmatmul.mubr.bf16.gmra.mrb[0].mxu0 %v1980
        %v9718 = vpop.f32.mrb[0].mxu0
        %v9719 = vadd.f32 0.0, %v9718
        %v9720 = vpop.f32.mrb[0].mxu0
        %v9721 = vadd.f32 0.0, %v9720
        %v9722 = vpop.f32.mrb[0].mxu0
        %v9723 = vpop.f32.mrb[0].mxu0
        %9724 = vdwg.mxu0
        %9725 = vmatprep.subr.bf16.mxu0 %v6869
        %9726 = vmatpush1.bf16.msra.mxu0 %v6868
        %9727 = vmatprep.subr.bf16.mxu0 %v6885
        %9728 = vmatpush1.bf16.msra.mxu0 %v6884
        %9729 = vmatprep.subr.bf16.mxu0 %v6901
        %9730 = vmatpush1.bf16.msra.mxu0 %v6900
        %9731 = vmatprep.subr.bf16.mxu0 %v6917
        %9732 = vmatpush1.bf16.msra.mxu0 %v6916
        %9733 = vmatprep.subr.bf16.mxu0 %v6933
        %9734 = vmatpush1.bf16.msra.mxu0 %v6932
        %9735 = vmatprep.subr.bf16.mxu0 %v6949
        %9736 = vmatpush1.bf16.msra.mxu0 %v6948
        %9737 = vmatprep.subr.bf16.mxu0 %v6965
        %9738 = vmatpush1.bf16.msra.mxu0 %v6964
        %9739 = vmatprep.subr.bf16.mxu0 %v6981
        %9740 = vmatpush1.bf16.msra.mxu0 %v6980
        %9741 = vmatprep.subr.bf16.mxu0 %v6997
        %9742 = vmatpush1.bf16.msra.mxu0 %v6996
        %9743 = vmatprep.subr.bf16.mxu0 %v7013
        %9744 = vmatpush1.bf16.msra.mxu0 %v7012
        %9745 = vmatprep.subr.bf16.mxu0 %v7029
        %9746 = vmatpush1.bf16.msra.mxu0 %v7028
        %9747 = vmatprep.subr.bf16.mxu0 %v7045
        %9748 = vmatpush1.bf16.msra.mxu0 %v7044
        %9749 = vmatprep.subr.bf16.mxu0 %v7061
        %9750 = vmatpush1.bf16.msra.mxu0 %v7060
        %9751 = vmatprep.subr.bf16.mxu0 %v7077
        %9752 = vmatpush1.bf16.msra.mxu0 %v7076
        %9753 = vmatprep.subr.bf16.mxu0 %v7093
        %9754 = vmatpush1.bf16.msra.mxu0 %v7092
        %9755 = vmatprep.subr.bf16.mxu0 %v7109
        %9756 = vmatpush1.bf16.msra.mxu0 %v7108
        %9757 = vmatprep.mubr.bf16.mxu0 %v1983
        %9758 = vmatmul.mubr.bf16.gmra.mrb[0].mxu0 %v1982
        %v9759 = vpop.f32.mrb[0].mxu0
        %v9760 = vadd.f32 %v9719, %v9759
        %v9761 = vpop.f32.mrb[0].mxu0
        %v9762 = vadd.f32 %v9721, %v9761
        %v9763 = vpop.f32.mrb[0].mxu0
        %v9764 = vpop.f32.mrb[0].mxu0
        %9765 = vdwg.mxu0
        %9766 = vmatprep.subr.bf16.mxu0 %v7125
        %9767 = vmatpush1.bf16.msra.mxu0 %v7124
        %9768 = vmatprep.subr.bf16.mxu0 %v7141
        %9769 = vmatpush1.bf16.msra.mxu0 %v7140
        %9770 = vmatprep.subr.bf16.mxu0 %v7157
        %9771 = vmatpush1.bf16.msra.mxu0 %v7156
        %9772 = vmatprep.subr.bf16.mxu0 %v7173
        %9773 = vmatpush1.bf16.msra.mxu0 %v7172
        %9774 = vmatprep.subr.bf16.mxu0 %v7189
        %9775 = vmatpush1.bf16.msra.mxu0 %v7188
        %9776 = vmatprep.subr.bf16.mxu0 %v7205
        %9777 = vmatpush1.bf16.msra.mxu0 %v7204
        %9778 = vmatprep.subr.bf16.mxu0 %v7221
        %9779 = vmatpush1.bf16.msra.mxu0 %v7220
        %9780 = vmatprep.subr.bf16.mxu0 %v7237
        %9781 = vmatpush1.bf16.msra.mxu0 %v7236
        %9782 = vmatprep.subr.bf16.mxu0 %v7253
        %9783 = vmatpush1.bf16.msra.mxu0 %v7252
        %9784 = vmatprep.subr.bf16.mxu0 %v7269
        %9785 = vmatpush1.bf16.msra.mxu0 %v7268
        %9786 = vmatprep.subr.bf16.mxu0 %v7285
        %9787 = vmatpush1.bf16.msra.mxu0 %v7284
        %9788 = vmatprep.subr.bf16.mxu0 %v7301
        %9789 = vmatpush1.bf16.msra.mxu0 %v7300
        %9790 = vmatprep.subr.bf16.mxu0 %v7317
        %9791 = vmatpush1.bf16.msra.mxu0 %v7316
        %9792 = vmatprep.subr.bf16.mxu0 %v7333
        %9793 = vmatpush1.bf16.msra.mxu0 %v7332
        %9794 = vmatprep.subr.bf16.mxu0 %v7349
        %9795 = vmatpush1.bf16.msra.mxu0 %v7348
        %9796 = vmatprep.subr.bf16.mxu0 %v7365
        %9797 = vmatpush1.bf16.msra.mxu0 %v7364
        %9798 = vmatprep.mubr.bf16.mxu0 %v1985
        %9799 = vmatmul.mubr.bf16.gmra.mrb[0].mxu0 %v1984
        %v9800 = vpop.f32.mrb[0].mxu0
        %v9801 = vadd.f32 %v9760, %v9800
        %v9802 = vpop.f32.mrb[0].mxu0
        %v9803 = vadd.f32 %v9762, %v9802
        %v9804 = vpop.f32.mrb[0].mxu0
        %v9805 = vpop.f32.mrb[0].mxu0
        %9806 = vdwg.mxu0
        %9807 = vmatprep.subr.bf16.mxu0 %v7381
        %9808 = vmatpush1.bf16.msra.mxu0 %v7380
        %9809 = vmatprep.subr.bf16.mxu0 %v7397
        %9810 = vmatpush1.bf16.msra.mxu0 %v7396
        %9811 = vmatprep.subr.bf16.mxu0 %v7413
        %9812 = vmatpush1.bf16.msra.mxu0 %v7412
        %9813 = vmatprep.subr.bf16.mxu0 %v7429
        %9814 = vmatpush1.bf16.msra.mxu0 %v7428
        %9815 = vmatprep.subr.bf16.mxu0 %v7445
        %9816 = vmatpush1.bf16.msra.mxu0 %v7444
        %9817 = vmatprep.subr.bf16.mxu0 %v7461
        %9818 = vmatpush1.bf16.msra.mxu0 %v7460
        %9819 = vmatprep.subr.bf16.mxu0 %v7477
        %9820 = vmatpush1.bf16.msra.mxu0 %v7476
        %9821 = vmatprep.subr.bf16.mxu0 %v7493
        %9822 = vmatpush1.bf16.msra.mxu0 %v7492
        %9823 = vmatprep.subr.bf16.mxu0 %v7509
        %9824 = vmatpush1.bf16.msra.mxu0 %v7508
        %9825 = vmatprep.subr.bf16.mxu0 %v7525
        %9826 = vmatpush1.bf16.msra.mxu0 %v7524
        %9827 = vmatprep.subr.bf16.mxu0 %v7541
        %9828 = vmatpush1.bf16.msra.mxu0 %v7540
        %9829 = vmatprep.subr.bf16.mxu0 %v7557
        %9830 = vmatpush1.bf16.msra.mxu0 %v7556
        %9831 = vmatprep.subr.bf16.mxu0 %v7573
        %9832 = vmatpush1.bf16.msra.mxu0 %v7572
        %9833 = vmatprep.subr.bf16.mxu0 %v7589
        %9834 = vmatpush1.bf16.msra.mxu0 %v7588
        %9835 = vmatprep.subr.bf16.mxu0 %v7605
        %9836 = vmatpush1.bf16.msra.mxu0 %v7604
        %9837 = vmatprep.subr.bf16.mxu0 %v7621
        %9838 = vmatpush1.bf16.msra.mxu0 %v7620
        %9839 = vmatprep.mubr.bf16.mxu0 %v1987
        %9840 = vmatmul.mubr.bf16.gmra.mrb[0].mxu0 %v1986
        %v9841 = vpop.f32.mrb[0].mxu0
        %v9842 = vadd.f32 %v9801, %v9841
        %v9843 = vpop.f32.mrb[0].mxu0
        %v9844 = vadd.f32 %v9803, %v9843
        %v9845 = vpop.f32.mrb[0].mxu0
        %v9846 = vpop.f32.mrb[0].mxu0
        %9847 = vdwg.mxu0
        %9848 = vmatprep.subr.bf16.mxu0 %v7637
        %9849 = vmatpush1.bf16.msra.mxu0 %v7636
        %9850 = vmatprep.subr.bf16.mxu0 %v7653
        %9851 = vmatpush1.bf16.msra.mxu0 %v7652
        %9852 = vmatprep.subr.bf16.mxu0 %v7669
        %9853 = vmatpush1.bf16.msra.mxu0 %v7668
        %9854 = vmatprep.subr.bf16.mxu0 %v7685
        %9855 = vmatpush1.bf16.msra.mxu0 %v7684
        %9856 = vmatprep.subr.bf16.mxu0 %v7701
        %9857 = vmatpush1.bf16.msra.mxu0 %v7700
        %9858 = vmatprep.subr.bf16.mxu0 %v7717
        %9859 = vmatpush1.bf16.msra.mxu0 %v7716
        %9860 = vmatprep.subr.bf16.mxu0 %v7733
        %9861 = vmatpush1.bf16.msra.mxu0 %v7732
        %9862 = vmatprep.subr.bf16.mxu0 %v7749
        %9863 = vmatpush1.bf16.msra.mxu0 %v7748
        %9864 = vmatprep.subr.bf16.mxu0 %v7765
        %9865 = vmatpush1.bf16.msra.mxu0 %v7764
        %9866 = vmatprep.subr.bf16.mxu0 %v7781
        %9867 = vmatpush1.bf16.msra.mxu0 %v7780
        %9868 = vmatprep.subr.bf16.mxu0 %v7797
        %9869 = vmatpush1.bf16.msra.mxu0 %v7796
        %9870 = vmatprep.subr.bf16.mxu0 %v7813
        %9871 = vmatpush1.bf16.msra.mxu0 %v7812
        %9872 = vmatprep.subr.bf16.mxu0 %v7829
        %9873 = vmatpush1.bf16.msra.mxu0 %v7828
        %9874 = vmatprep.subr.bf16.mxu0 %v7845
        %9875 = vmatpush1.bf16.msra.mxu0 %v7844
        %9876 = vmatprep.subr.bf16.mxu0 %v7861
        %9877 = vmatpush1.bf16.msra.mxu0 %v7860
        %9878 = vmatprep.subr.bf16.mxu0 %v7877
        %9879 = vmatpush1.bf16.msra.mxu0 %v7876
        %9880 = vmatprep.mubr.bf16.mxu0 %v1989
        %9881 = vmatmul.mubr.bf16.gmra.mrb[0].mxu0 %v1988
        %v9882 = vpop.f32.mrb[0].mxu0
        %v9883 = vadd.f32 %v9842, %v9882
        %v9884 = vpop.f32.mrb[0].mxu0
        %v9885 = vadd.f32 %v9844, %v9884
        %v9886 = vpop.f32.mrb[0].mxu0
        %v9887 = vpop.f32.mrb[0].mxu0
        %9888 = vdwg.mxu0
        %9889 = vmatprep.subr.bf16.mxu0 %v7893
        %9890 = vmatpush1.bf16.msra.mxu0 %v7892
        %9891 = vmatprep.subr.bf16.mxu0 %v7909
        %9892 = vmatpush1.bf16.msra.mxu0 %v7908
        %9893 = vmatprep.subr.bf16.mxu0 %v7925
        %9894 = vmatpush1.bf16.msra.mxu0 %v7924
        %9895 = vmatprep.subr.bf16.mxu0 %v7941
        %9896 = vmatpush1.bf16.msra.mxu0 %v7940
        %9897 = vmatprep.subr.bf16.mxu0 %v7957
        %9898 = vmatpush1.bf16.msra.mxu0 %v7956
        %9899 = vmatprep.subr.bf16.mxu0 %v7973
        %9900 = vmatpush1.bf16.msra.mxu0 %v7972
        %9901 = vmatprep.subr.bf16.mxu0 %v7989
        %9902 = vmatpush1.bf16.msra.mxu0 %v7988
        %9903 = vmatprep.subr.bf16.mxu0 %v8005
        %9904 = vmatpush1.bf16.msra.mxu0 %v8004
        %9905 = vmatprep.subr.bf16.mxu0 %v8021
        %9906 = vmatpush1.bf16.msra.mxu0 %v8020
        %9907 = vmatprep.subr.bf16.mxu0 %v8037
        %9908 = vmatpush1.bf16.msra.mxu0 %v8036
        %9909 = vmatprep.subr.bf16.mxu0 %v8053
        %9910 = vmatpush1.bf16.msra.mxu0 %v8052
        %9911 = vmatprep.subr.bf16.mxu0 %v8069
        %9912 = vmatpush1.bf16.msra.mxu0 %v8068
        %9913 = vmatprep.subr.bf16.mxu0 %v8085
        %9914 = vmatpush1.bf16.msra.mxu0 %v8084
        %9915 = vmatprep.subr.bf16.mxu0 %v8101
        %9916 = vmatpush1.bf16.msra.mxu0 %v8100
        %9917 = vmatprep.subr.bf16.mxu0 %v8117
        %9918 = vmatpush1.bf16.msra.mxu0 %v8116
        %9919 = vmatprep.subr.bf16.mxu0 %v8133
        %9920 = vmatpush1.bf16.msra.mxu0 %v8132
        %9921 = vmatprep.mubr.bf16.mxu0 %v1991
        %9922 = vmatmul.mubr.bf16.gmra.mrb[0].mxu0 %v1990
        %v9923 = vpop.f32.mrb[0].mxu0
        %v9924 = vadd.f32 %v9883, %v9923
        %v9925 = vpop.f32.mrb[0].mxu0
        %v9926 = vadd.f32 %v9885, %v9925
        %v9927 = vpop.f32.mrb[0].mxu0
        %v9928 = vpop.f32.mrb[0].mxu0
        %9929 = vdwg.mxu0
        %9930 = vmatprep.subr.bf16.mxu0 %v6615
        %9931 = vmatpush1.bf16.msra.mxu0 %v6614
        %9932 = vmatprep.subr.bf16.mxu0 %v6631
        %9933 = vmatpush1.bf16.msra.mxu0 %v6630
        %9934 = vmatprep.subr.bf16.mxu0 %v6647
        %9935 = vmatpush1.bf16.msra.mxu0 %v6646
        %9936 = vmatprep.subr.bf16.mxu0 %v6663
        %9937 = vmatpush1.bf16.msra.mxu0 %v6662
        %9938 = vmatprep.subr.bf16.mxu0 %v6679
        %9939 = vmatpush1.bf16.msra.mxu0 %v6678
        %9940 = vmatprep.subr.bf16.mxu0 %v6695
        %9941 = vmatpush1.bf16.msra.mxu0 %v6694
        %9942 = vmatprep.subr.bf16.mxu0 %v6711
        %9943 = vmatpush1.bf16.msra.mxu0 %v6710
        %9944 = vmatprep.subr.bf16.mxu0 %v6727
        %9945 = vmatpush1.bf16.msra.mxu0 %v6726
        %9946 = vmatprep.subr.bf16.mxu0 %v6743
        %9947 = vmatpush1.bf16.msra.mxu0 %v6742
        %9948 = vmatprep.subr.bf16.mxu0 %v6759
        %9949 = vmatpush1.bf16.msra.mxu0 %v6758
        %9950 = vmatprep.subr.bf16.mxu0 %v6775
        %9951 = vmatpush1.bf16.msra.mxu0 %v6774
        %9952 = vmatprep.subr.bf16.mxu0 %v6791
        %9953 = vmatpush1.bf16.msra.mxu0 %v6790
        %9954 = vmatprep.subr.bf16.mxu0 %v6807
        %9955 = vmatpush1.bf16.msra.mxu0 %v6806
        %9956 = vmatprep.subr.bf16.mxu0 %v6823
        %9957 = vmatpush1.bf16.msra.mxu0 %v6822
        %9958 = vmatprep.subr.bf16.mxu0 %v6839
        %9959 = vmatpush1.bf16.msra.mxu0 %v6838
        %9960 = vmatprep.subr.bf16.mxu0 %v6855
        %9961 = vmatpush1.bf16.msra.mxu0 %v6854
        %9962 = vmatprep.mubr.bf16.mxu0 %v1981
        %9963 = vmatmul.mubr.bf16.gmra.mrb[0].mxu0 %v1980
        %v9964 = vpop.f32.mrb[0].mxu0
        %v9965 = vadd.f32 0.0, %v9964
        %v9966 = vpop.f32.mrb[0].mxu0
        %v9967 = vadd.f32 0.0, %v9966
        %v9968 = vpop.f32.mrb[0].mxu0
        %v9969 = vpop.f32.mrb[0].mxu0
        %9970 = vdwg.mxu0
        %9971 = vmatprep.subr.bf16.mxu0 %v6871
        %9972 = vmatpush1.bf16.msra.mxu0 %v6870
        %9973 = vmatprep.subr.bf16.mxu0 %v6887
        %9974 = vmatpush1.bf16.msra.mxu0 %v6886
        %9975 = vmatprep.subr.bf16.mxu0 %v6903
        %9976 = vmatpush1.bf16.msra.mxu0 %v6902
        %9977 = vmatprep.subr.bf16.mxu0 %v6919
        %9978 = vmatpush1.bf16.msra.mxu0 %v6918
        %9979 = vmatprep.subr.bf16.mxu0 %v6935
        %9980 = vmatpush1.bf16.msra.mxu0 %v6934
        %9981 = vmatprep.subr.bf16.mxu0 %v6951
        %9982 = vmatpush1.bf16.msra.mxu0 %v6950
        %9983 = vmatprep.subr.bf16.mxu0 %v6967
        %9984 = vmatpush1.bf16.msra.mxu0 %v6966
        %9985 = vmatprep.subr.bf16.mxu0 %v6983
        %9986 = vmatpush1.bf16.msra.mxu0 %v6982
        %9987 = vmatprep.subr.bf16.mxu0 %v6999
        %9988 = vmatpush1.bf16.msra.mxu0 %v6998
        %9989 = vmatprep.subr.bf16.mxu0 %v7015
        %9990 = vmatpush1.bf16.msra.mxu0 %v7014
        %9991 = vmatprep.subr.bf16.mxu0 %v7031
        %9992 = vmatpush1.bf16.msra.mxu0 %v7030
        %9993 = vmatprep.subr.bf16.mxu0 %v7047
        %9994 = vmatpush1.bf16.msra.mxu0 %v7046
        %9995 = vmatprep.subr.bf16.mxu0 %v7063
        %9996 = vmatpush1.bf16.msra.mxu0 %v7062
        %9997 = vmatprep.subr.bf16.mxu0 %v7079
        %9998 = vmatpush1.bf16.msra.mxu0 %v7078
        %9999 = vmatprep.subr.bf16.mxu0 %v7095
        %10000 = vmatpush1.bf16.msra.mxu0 %v7094
        %10001 = vmatprep.subr.bf16.mxu0 %v7111
        %10002 = vmatpush1.bf16.msra.mxu0 %v7110
        %10003 = vmatprep.mubr.bf16.mxu0 %v1983
        %10004 = vmatmul.mubr.bf16.gmra.mrb[0].mxu0 %v1982
        %v10005 = vpop.f32.mrb[0].mxu0
        %v10006 = vadd.f32 %v9965, %v10005
        %v10007 = vpop.f32.mrb[0].mxu0
        %v10008 = vadd.f32 %v9967, %v10007
        %v10009 = vpop.f32.mrb[0].mxu0
        %v10010 = vpop.f32.mrb[0].mxu0
        %10011 = vdwg.mxu0
        %10012 = vmatprep.subr.bf16.mxu0 %v7127
        %10013 = vmatpush1.bf16.msra.mxu0 %v7126
        %10014 = vmatprep.subr.bf16.mxu0 %v7143
        %10015 = vmatpush1.bf16.msra.mxu0 %v7142
        %10016 = vmatprep.subr.bf16.mxu0 %v7159
        %10017 = vmatpush1.bf16.msra.mxu0 %v7158
        %10018 = vmatprep.subr.bf16.mxu0 %v7175
        %10019 = vmatpush1.bf16.msra.mxu0 %v7174
        %10020 = vmatprep.subr.bf16.mxu0 %v7191
        %10021 = vmatpush1.bf16.msra.mxu0 %v7190
        %10022 = vmatprep.subr.bf16.mxu0 %v7207
        %10023 = vmatpush1.bf16.msra.mxu0 %v7206
        %10024 = vmatprep.subr.bf16.mxu0 %v7223
        %10025 = vmatpush1.bf16.msra.mxu0 %v7222
        %10026 = vmatprep.subr.bf16.mxu0 %v7239
        %10027 = vmatpush1.bf16.msra.mxu0 %v7238
        %10028 = vmatprep.subr.bf16.mxu0 %v7255
        %10029 = vmatpush1.bf16.msra.mxu0 %v7254
        %10030 = vmatprep.subr.bf16.mxu0 %v7271
        %10031 = vmatpush1.bf16.msra.mxu0 %v7270
        %10032 = vmatprep.subr.bf16.mxu0 %v7287
        %10033 = vmatpush1.bf16.msra.mxu0 %v7286
        %10034 = vmatprep.subr.bf16.mxu0 %v7303
        %10035 = vmatpush1.bf16.msra.mxu0 %v7302
        %10036 = vmatprep.subr.bf16.mxu0 %v7319
        %10037 = vmatpush1.bf16.msra.mxu0 %v7318
        %10038 = vmatprep.subr.bf16.mxu0 %v7335
        %10039 = vmatpush1.bf16.msra.mxu0 %v7334
        %10040 = vmatprep.subr.bf16.mxu0 %v7351
        %10041 = vmatpush1.bf16.msra.mxu0 %v7350
        %10042 = vmatprep.subr.bf16.mxu0 %v7367
        %10043 = vmatpush1.bf16.msra.mxu0 %v7366
        %10044 = vmatprep.mubr.bf16.mxu0 %v1985
        %10045 = vmatmul.mubr.bf16.gmra.mrb[0].mxu0 %v1984
        %v10046 = vpop.f32.mrb[0].mxu0
        %v10047 = vadd.f32 %v10006, %v10046
        %v10048 = vpop.f32.mrb[0].mxu0
        %v10049 = vadd.f32 %v10008, %v10048
        %v10050 = vpop.f32.mrb[0].mxu0
        %v10051 = vpop.f32.mrb[0].mxu0
        %10052 = vdwg.mxu0
        %10053 = vmatprep.subr.bf16.mxu0 %v7383
        %10054 = vmatpush1.bf16.msra.mxu0 %v7382
        %10055 = vmatprep.subr.bf16.mxu0 %v7399
        %10056 = vmatpush1.bf16.msra.mxu0 %v7398
        %10057 = vmatprep.subr.bf16.mxu0 %v7415
        %10058 = vmatpush1.bf16.msra.mxu0 %v7414
        %10059 = vmatprep.subr.bf16.mxu0 %v7431
        %10060 = vmatpush1.bf16.msra.mxu0 %v7430
        %10061 = vmatprep.subr.bf16.mxu0 %v7447
        %10062 = vmatpush1.bf16.msra.mxu0 %v7446
        %10063 = vmatprep.subr.bf16.mxu0 %v7463
        %10064 = vmatpush1.bf16.msra.mxu0 %v7462
        %10065 = vmatprep.subr.bf16.mxu0 %v7479
        %10066 = vmatpush1.bf16.msra.mxu0 %v7478
        %10067 = vmatprep.subr.bf16.mxu0 %v7495
        %10068 = vmatpush1.bf16.msra.mxu0 %v7494
        %10069 = vmatprep.subr.bf16.mxu0 %v7511
        %10070 = vmatpush1.bf16.msra.mxu0 %v7510
        %10071 = vmatprep.subr.bf16.mxu0 %v7527
        %10072 = vmatpush1.bf16.msra.mxu0 %v7526
        %10073 = vmatprep.subr.bf16.mxu0 %v7543
        %10074 = vmatpush1.bf16.msra.mxu0 %v7542
        %10075 = vmatprep.subr.bf16.mxu0 %v7559
        %10076 = vmatpush1.bf16.msra.mxu0 %v7558
        %10077 = vmatprep.subr.bf16.mxu0 %v7575
        %10078 = vmatpush1.bf16.msra.mxu0 %v7574
        %10079 = vmatprep.subr.bf16.mxu0 %v7591
        %10080 = vmatpush1.bf16.msra.mxu0 %v7590
        %10081 = vmatprep.subr.bf16.mxu0 %v7607
        %10082 = vmatpush1.bf16.msra.mxu0 %v7606
        %10083 = vmatprep.subr.bf16.mxu0 %v7623
        %10084 = vmatpush1.bf16.msra.mxu0 %v7622
        %10085 = vmatprep.mubr.bf16.mxu0 %v1987
        %10086 = vmatmul.mubr.bf16.gmra.mrb[0].mxu0 %v1986
        %v10087 = vpop.f32.mrb[0].mxu0
        %v10088 = vadd.f32 %v10047, %v10087
        %v10089 = vpop.f32.mrb[0].mxu0
        %v10090 = vadd.f32 %v10049, %v10089
        %v10091 = vpop.f32.mrb[0].mxu0
        %v10092 = vpop.f32.mrb[0].mxu0
        %10093 = vdwg.mxu0
        %10094 = vmatprep.subr.bf16.mxu0 %v7639
        %10095 = vmatpush1.bf16.msra.mxu0 %v7638
        %10096 = vmatprep.subr.bf16.mxu0 %v7655
        %10097 = vmatpush1.bf16.msra.mxu0 %v7654
        %10098 = vmatprep.subr.bf16.mxu0 %v7671
        %10099 = vmatpush1.bf16.msra.mxu0 %v7670
        %10100 = vmatprep.subr.bf16.mxu0 %v7687
        %10101 = vmatpush1.bf16.msra.mxu0 %v7686
        %10102 = vmatprep.subr.bf16.mxu0 %v7703
        %10103 = vmatpush1.bf16.msra.mxu0 %v7702
        %10104 = vmatprep.subr.bf16.mxu0 %v7719
        %10105 = vmatpush1.bf16.msra.mxu0 %v7718
        %10106 = vmatprep.subr.bf16.mxu0 %v7735
        %10107 = vmatpush1.bf16.msra.mxu0 %v7734
        %10108 = vmatprep.subr.bf16.mxu0 %v7751
        %10109 = vmatpush1.bf16.msra.mxu0 %v7750
        %10110 = vmatprep.subr.bf16.mxu0 %v7767
        %10111 = vmatpush1.bf16.msra.mxu0 %v7766
        %10112 = vmatprep.subr.bf16.mxu0 %v7783
        %10113 = vmatpush1.bf16.msra.mxu0 %v7782
        %10114 = vmatprep.subr.bf16.mxu0 %v7799
        %10115 = vmatpush1.bf16.msra.mxu0 %v7798
        %10116 = vmatprep.subr.bf16.mxu0 %v7815
        %10117 = vmatpush1.bf16.msra.mxu0 %v7814
        %10118 = vmatprep.subr.bf16.mxu0 %v7831
        %10119 = vmatpush1.bf16.msra.mxu0 %v7830
        %10120 = vmatprep.subr.bf16.mxu0 %v7847
        %10121 = vmatpush1.bf16.msra.mxu0 %v7846
        %10122 = vmatprep.subr.bf16.mxu0 %v7863
        %10123 = vmatpush1.bf16.msra.mxu0 %v7862
        %10124 = vmatprep.subr.bf16.mxu0 %v7879
        %10125 = vmatpush1.bf16.msra.mxu0 %v7878
        %10126 = vmatprep.mubr.bf16.mxu0 %v1989
        %10127 = vmatmul.mubr.bf16.gmra.mrb[0].mxu0 %v1988
        %v10128 = vpop.f32.mrb[0].mxu0
        %v10129 = vadd.f32 %v10088, %v10128
        %v10130 = vpop.f32.mrb[0].mxu0
        %v10131 = vadd.f32 %v10090, %v10130
        %v10132 = vpop.f32.mrb[0].mxu0
        %v10133 = vpop.f32.mrb[0].mxu0
        %10134 = vdwg.mxu0
        %10135 = vmatprep.subr.bf16.mxu0 %v7895
        %10136 = vmatpush1.bf16.msra.mxu0 %v7894
        %10137 = vmatprep.subr.bf16.mxu0 %v7911
        %10138 = vmatpush1.bf16.msra.mxu0 %v7910
        %10139 = vmatprep.subr.bf16.mxu0 %v7927
        %10140 = vmatpush1.bf16.msra.mxu0 %v7926
        %10141 = vmatprep.subr.bf16.mxu0 %v7943
        %10142 = vmatpush1.bf16.msra.mxu0 %v7942
        %10143 = vmatprep.subr.bf16.mxu0 %v7959
        %10144 = vmatpush1.bf16.msra.mxu0 %v7958
        %10145 = vmatprep.subr.bf16.mxu0 %v7975
        %10146 = vmatpush1.bf16.msra.mxu0 %v7974
        %10147 = vmatprep.subr.bf16.mxu0 %v7991
        %10148 = vmatpush1.bf16.msra.mxu0 %v7990
        %10149 = vmatprep.subr.bf16.mxu0 %v8007
        %10150 = vmatpush1.bf16.msra.mxu0 %v8006
        %10151 = vmatprep.subr.bf16.mxu0 %v8023
        %10152 = vmatpush1.bf16.msra.mxu0 %v8022
        %10153 = vmatprep.subr.bf16.mxu0 %v8039
        %10154 = vmatpush1.bf16.msra.mxu0 %v8038
        %10155 = vmatprep.subr.bf16.mxu0 %v8055
        %10156 = vmatpush1.bf16.msra.mxu0 %v8054
        %10157 = vmatprep.subr.bf16.mxu0 %v8071
        %10158 = vmatpush1.bf16.msra.mxu0 %v8070
        %10159 = vmatprep.subr.bf16.mxu0 %v8087
        %10160 = vmatpush1.bf16.msra.mxu0 %v8086
        %10161 = vmatprep.subr.bf16.mxu0 %v8103
        %10162 = vmatpush1.bf16.msra.mxu0 %v8102
        %10163 = vmatprep.subr.bf16.mxu0 %v8119
        %10164 = vmatpush1.bf16.msra.mxu0 %v8118
        %10165 = vmatprep.subr.bf16.mxu0 %v8135
        %10166 = vmatpush1.bf16.msra.mxu0 %v8134
        %10167 = vmatprep.mubr.bf16.mxu0 %v1991
        %10168 = vmatmul.mubr.bf16.gmra.mrb[0].mxu0 %v1990
        %v10169 = vpop.f32.mrb[0].mxu0
        %v10170 = vadd.f32 %v10129, %v10169
        %v10171 = vpop.f32.mrb[0].mxu0
        %v10172 = vadd.f32 %v10131, %v10171
        %v10173 = vpop.f32.mrb[0].mxu0
        %v10174 = vpop.f32.mrb[0].mxu0
        %10175 = vdwg.mxu0
        %10176 = vmatprep.subr.bf16.mxu0 %v6617
        %10177 = vmatpush1.bf16.msra.mxu0 %v6616
        %10178 = vmatprep.subr.bf16.mxu0 %v6633
        %10179 = vmatpush1.bf16.msra.mxu0 %v6632
        %10180 = vmatprep.subr.bf16.mxu0 %v6649
        %10181 = vmatpush1.bf16.msra.mxu0 %v6648
        %10182 = vmatprep.subr.bf16.mxu0 %v6665
        %10183 = vmatpush1.bf16.msra.mxu0 %v6664
        %10184 = vmatprep.subr.bf16.mxu0 %v6681
        %10185 = vmatpush1.bf16.msra.mxu0 %v6680
        %10186 = vmatprep.subr.bf16.mxu0 %v6697
        %10187 = vmatpush1.bf16.msra.mxu0 %v6696
        %10188 = vmatprep.subr.bf16.mxu0 %v6713
        %10189 = vmatpush1.bf16.msra.mxu0 %v6712
        %10190 = vmatprep.subr.bf16.mxu0 %v6729
        %10191 = vmatpush1.bf16.msra.mxu0 %v6728
        %10192 = vmatprep.subr.bf16.mxu0 %v6745
        %10193 = vmatpush1.bf16.msra.mxu0 %v6744
        %10194 = vmatprep.subr.bf16.mxu0 %v6761
        %10195 = vmatpush1.bf16.msra.mxu0 %v6760
        %10196 = vmatprep.subr.bf16.mxu0 %v6777
        %10197 = vmatpush1.bf16.msra.mxu0 %v6776
        %10198 = vmatprep.subr.bf16.mxu0 %v6793
        %10199 = vmatpush1.bf16.msra.mxu0 %v6792
        %10200 = vmatprep.subr.bf16.mxu0 %v6809
        %10201 = vmatpush1.bf16.msra.mxu0 %v6808
        %10202 = vmatprep.subr.bf16.mxu0 %v6825
        %10203 = vmatpush1.bf16.msra.mxu0 %v6824
        %10204 = vmatprep.subr.bf16.mxu0 %v6841
        %10205 = vmatpush1.bf16.msra.mxu0 %v6840
        %10206 = vmatprep.subr.bf16.mxu0 %v6857
        %10207 = vmatpush1.bf16.msra.mxu0 %v6856
        %10208 = vmatprep.mubr.bf16.mxu0 %v1981
        %10209 = vmatmul.mubr.bf16.gmra.mrb[0].mxu0 %v1980
        %v10210 = vpop.f32.mrb[0].mxu0
        %v10211 = vadd.f32 0.0, %v10210
        %v10212 = vpop.f32.mrb[0].mxu0
        %v10213 = vadd.f32 0.0, %v10212
        %v10214 = vpop.f32.mrb[0].mxu0
        %v10215 = vpop.f32.mrb[0].mxu0
        %10216 = vdwg.mxu0
        %10217 = vmatprep.subr.bf16.mxu0 %v6873
        %10218 = vmatpush1.bf16.msra.mxu0 %v6872
        %10219 = vmatprep.subr.bf16.mxu0 %v6889
        %10220 = vmatpush1.bf16.msra.mxu0 %v6888
        %10221 = vmatprep.subr.bf16.mxu0 %v6905
        %10222 = vmatpush1.bf16.msra.mxu0 %v6904
        %10223 = vmatprep.subr.bf16.mxu0 %v6921
        %10224 = vmatpush1.bf16.msra.mxu0 %v6920
        %10225 = vmatprep.subr.bf16.mxu0 %v6937
        %10226 = vmatpush1.bf16.msra.mxu0 %v6936
        %10227 = vmatprep.subr.bf16.mxu0 %v6953
        %10228 = vmatpush1.bf16.msra.mxu0 %v6952
        %10229 = vmatprep.subr.bf16.mxu0 %v6969
        %10230 = vmatpush1.bf16.msra.mxu0 %v6968
        %10231 = vmatprep.subr.bf16.mxu0 %v6985
        %10232 = vmatpush1.bf16.msra.mxu0 %v6984
        %10233 = vmatprep.subr.bf16.mxu0 %v7001
        %10234 = vmatpush1.bf16.msra.mxu0 %v7000
        %10235 = vmatprep.subr.bf16.mxu0 %v7017
        %10236 = vmatpush1.bf16.msra.mxu0 %v7016
        %10237 = vmatprep.subr.bf16.mxu0 %v7033
        %10238 = vmatpush1.bf16.msra.mxu0 %v7032
        %10239 = vmatprep.subr.bf16.mxu0 %v7049
        %10240 = vmatpush1.bf16.msra.mxu0 %v7048
        %10241 = vmatprep.subr.bf16.mxu0 %v7065
        %10242 = vmatpush1.bf16.msra.mxu0 %v7064
        %10243 = vmatprep.subr.bf16.mxu0 %v7081
        %10244 = vmatpush1.bf16.msra.mxu0 %v7080
        %10245 = vmatprep.subr.bf16.mxu0 %v7097
        %10246 = vmatpush1.bf16.msra.mxu0 %v7096
        %10247 = vmatprep.subr.bf16.mxu0 %v7113
        %10248 = vmatpush1.bf16.msra.mxu0 %v7112
        %10249 = vmatprep.mubr.bf16.mxu0 %v1983
        %10250 = vmatmul.mubr.bf16.gmra.mrb[0].mxu0 %v1982
        %v10251 = vpop.f32.mrb[0].mxu0
        %v10252 = vadd.f32 %v10211, %v10251
        %v10253 = vpop.f32.mrb[0].mxu0
        %v10254 = vadd.f32 %v10213, %v10253
        %v10255 = vpop.f32.mrb[0].mxu0
        %v10256 = vpop.f32.mrb[0].mxu0
        %10257 = vdwg.mxu0
        %10258 = vmatprep.subr.bf16.mxu0 %v7129
        %10259 = vmatpush1.bf16.msra.mxu0 %v7128
        %10260 = vmatprep.subr.bf16.mxu0 %v7145
        %10261 = vmatpush1.bf16.msra.mxu0 %v7144
        %10262 = vmatprep.subr.bf16.mxu0 %v7161
        %10263 = vmatpush1.bf16.msra.mxu0 %v7160
        %10264 = vmatprep.subr.bf16.mxu0 %v7177
        %10265 = vmatpush1.bf16.msra.mxu0 %v7176
        %10266 = vmatprep.subr.bf16.mxu0 %v7193
        %10267 = vmatpush1.bf16.msra.mxu0 %v7192
        %10268 = vmatprep.subr.bf16.mxu0 %v7209
        %10269 = vmatpush1.bf16.msra.mxu0 %v7208
        %10270 = vmatprep.subr.bf16.mxu0 %v7225
        %10271 = vmatpush1.bf16.msra.mxu0 %v7224
        %10272 = vmatprep.subr.bf16.mxu0 %v7241
        %10273 = vmatpush1.bf16.msra.mxu0 %v7240
        %10274 = vmatprep.subr.bf16.mxu0 %v7257
        %10275 = vmatpush1.bf16.msra.mxu0 %v7256
        %10276 = vmatprep.subr.bf16.mxu0 %v7273
        %10277 = vmatpush1.bf16.msra.mxu0 %v7272
        %10278 = vmatprep.subr.bf16.mxu0 %v7289
        %10279 = vmatpush1.bf16.msra.mxu0 %v7288
        %10280 = vmatprep.subr.bf16.mxu0 %v7305
        %10281 = vmatpush1.bf16.msra.mxu0 %v7304
        %10282 = vmatprep.subr.bf16.mxu0 %v7321
        %10283 = vmatpush1.bf16.msra.mxu0 %v7320
        %10284 = vmatprep.subr.bf16.mxu0 %v7337
        %10285 = vmatpush1.bf16.msra.mxu0 %v7336
        %10286 = vmatprep.subr.bf16.mxu0 %v7353
        %10287 = vmatpush1.bf16.msra.mxu0 %v7352
        %10288 = vmatprep.subr.bf16.mxu0 %v7369
        %10289 = vmatpush1.bf16.msra.mxu0 %v7368
        %10290 = vmatprep.mubr.bf16.mxu0 %v1985
        %10291 = vmatmul.mubr.bf16.gmra.mrb[0].mxu0 %v1984
        %v10292 = vpop.f32.mrb[0].mxu0
        %v10293 = vadd.f32 %v10252, %v10292
        %v10294 = vpop.f32.mrb[0].mxu0
        %v10295 = vadd.f32 %v10254, %v10294
        %v10296 = vpop.f32.mrb[0].mxu0
        %v10297 = vpop.f32.mrb[0].mxu0
        %10298 = vdwg.mxu0
        %10299 = vmatprep.subr.bf16.mxu0 %v7385
        %10300 = vmatpush1.bf16.msra.mxu0 %v7384
        %10301 = vmatprep.subr.bf16.mxu0 %v7401
        %10302 = vmatpush1.bf16.msra.mxu0 %v7400
        %10303 = vmatprep.subr.bf16.mxu0 %v7417
        %10304 = vmatpush1.bf16.msra.mxu0 %v7416
        %10305 = vmatprep.subr.bf16.mxu0 %v7433
        %10306 = vmatpush1.bf16.msra.mxu0 %v7432
        %10307 = vmatprep.subr.bf16.mxu0 %v7449
        %10308 = vmatpush1.bf16.msra.mxu0 %v7448
        %10309 = vmatprep.subr.bf16.mxu0 %v7465
        %10310 = vmatpush1.bf16.msra.mxu0 %v7464
        %10311 = vmatprep.subr.bf16.mxu0 %v7481
        %10312 = vmatpush1.bf16.msra.mxu0 %v7480
        %10313 = vmatprep.subr.bf16.mxu0 %v7497
        %10314 = vmatpush1.bf16.msra.mxu0 %v7496
        %10315 = vmatprep.subr.bf16.mxu0 %v7513
        %10316 = vmatpush1.bf16.msra.mxu0 %v7512
        %10317 = vmatprep.subr.bf16.mxu0 %v7529
        %10318 = vmatpush1.bf16.msra.mxu0 %v7528
        %10319 = vmatprep.subr.bf16.mxu0 %v7545
        %10320 = vmatpush1.bf16.msra.mxu0 %v7544
        %10321 = vmatprep.subr.bf16.mxu0 %v7561
        %10322 = vmatpush1.bf16.msra.mxu0 %v7560
        %10323 = vmatprep.subr.bf16.mxu0 %v7577
        %10324 = vmatpush1.bf16.msra.mxu0 %v7576
        %10325 = vmatprep.subr.bf16.mxu0 %v7593
        %10326 = vmatpush1.bf16.msra.mxu0 %v7592
        %10327 = vmatprep.subr.bf16.mxu0 %v7609
        %10328 = vmatpush1.bf16.msra.mxu0 %v7608
        %10329 = vmatprep.subr.bf16.mxu0 %v7625
        %10330 = vmatpush1.bf16.msra.mxu0 %v7624
        %10331 = vmatprep.mubr.bf16.mxu0 %v1987
        %10332 = vmatmul.mubr.bf16.gmra.mrb[0].mxu0 %v1986
        %v10333 = vpop.f32.mrb[0].mxu0
        %v10334 = vadd.f32 %v10293, %v10333
        %v10335 = vpop.f32.mrb[0].mxu0
        %v10336 = vadd.f32 %v10295, %v10335
        %v10337 = vpop.f32.mrb[0].mxu0
        %v10338 = vpop.f32.mrb[0].mxu0
        %10339 = vdwg.mxu0
        %10340 = vmatprep.subr.bf16.mxu0 %v7641
        %10341 = vmatpush1.bf16.msra.mxu0 %v7640
        %10342 = vmatprep.subr.bf16.mxu0 %v7657
        %10343 = vmatpush1.bf16.msra.mxu0 %v7656
        %10344 = vmatprep.subr.bf16.mxu0 %v7673
        %10345 = vmatpush1.bf16.msra.mxu0 %v7672
        %10346 = vmatprep.subr.bf16.mxu0 %v7689
        %10347 = vmatpush1.bf16.msra.mxu0 %v7688
        %10348 = vmatprep.subr.bf16.mxu0 %v7705
        %10349 = vmatpush1.bf16.msra.mxu0 %v7704
        %10350 = vmatprep.subr.bf16.mxu0 %v7721
        %10351 = vmatpush1.bf16.msra.mxu0 %v7720
        %10352 = vmatprep.subr.bf16.mxu0 %v7737
        %10353 = vmatpush1.bf16.msra.mxu0 %v7736
        %10354 = vmatprep.subr.bf16.mxu0 %v7753
        %10355 = vmatpush1.bf16.msra.mxu0 %v7752
        %10356 = vmatprep.subr.bf16.mxu0 %v7769
        %10357 = vmatpush1.bf16.msra.mxu0 %v7768
        %10358 = vmatprep.subr.bf16.mxu0 %v7785
        %10359 = vmatpush1.bf16.msra.mxu0 %v7784
        %10360 = vmatprep.subr.bf16.mxu0 %v7801
        %10361 = vmatpush1.bf16.msra.mxu0 %v7800
        %10362 = vmatprep.subr.bf16.mxu0 %v7817
        %10363 = vmatpush1.bf16.msra.mxu0 %v7816
        %10364 = vmatprep.subr.bf16.mxu0 %v7833
        %10365 = vmatpush1.bf16.msra.mxu0 %v7832
        %10366 = vmatprep.subr.bf16.mxu0 %v7849
        %10367 = vmatpush1.bf16.msra.mxu0 %v7848
        %10368 = vmatprep.subr.bf16.mxu0 %v7865
        %10369 = vmatpush1.bf16.msra.mxu0 %v7864
        %10370 = vmatprep.subr.bf16.mxu0 %v7881
        %10371 = vmatpush1.bf16.msra.mxu0 %v7880
        %10372 = vmatprep.mubr.bf16.mxu0 %v1989
        %10373 = vmatmul.mubr.bf16.gmra.mrb[0].mxu0 %v1988
        %v10374 = vpop.f32.mrb[0].mxu0
        %v10375 = vadd.f32 %v10334, %v10374
        %v10376 = vpop.f32.mrb[0].mxu0
        %v10377 = vadd.f32 %v10336, %v10376
        %v10378 = vpop.f32.mrb[0].mxu0
        %v10379 = vpop.f32.mrb[0].mxu0
        %10380 = vdwg.mxu0
        %10381 = vmatprep.subr.bf16.mxu0 %v7897
        %10382 = vmatpush1.bf16.msra.mxu0 %v7896
        %10383 = vmatprep.subr.bf16.mxu0 %v7913
        %10384 = vmatpush1.bf16.msra.mxu0 %v7912
        %10385 = vmatprep.subr.bf16.mxu0 %v7929
        %10386 = vmatpush1.bf16.msra.mxu0 %v7928
        %10387 = vmatprep.subr.bf16.mxu0 %v7945
        %10388 = vmatpush1.bf16.msra.mxu0 %v7944
        %10389 = vmatprep.subr.bf16.mxu0 %v7961
        %10390 = vmatpush1.bf16.msra.mxu0 %v7960
        %10391 = vmatprep.subr.bf16.mxu0 %v7977
        %10392 = vmatpush1.bf16.msra.mxu0 %v7976
        %10393 = vmatprep.subr.bf16.mxu0 %v7993
        %10394 = vmatpush1.bf16.msra.mxu0 %v7992
        %10395 = vmatprep.subr.bf16.mxu0 %v8009
        %10396 = vmatpush1.bf16.msra.mxu0 %v8008
        %10397 = vmatprep.subr.bf16.mxu0 %v8025
        %10398 = vmatpush1.bf16.msra.mxu0 %v8024
        %10399 = vmatprep.subr.bf16.mxu0 %v8041
        %10400 = vmatpush1.bf16.msra.mxu0 %v8040
        %10401 = vmatprep.subr.bf16.mxu0 %v8057
        %10402 = vmatpush1.bf16.msra.mxu0 %v8056
        %10403 = vmatprep.subr.bf16.mxu0 %v8073
        %10404 = vmatpush1.bf16.msra.mxu0 %v8072
        %10405 = vmatprep.subr.bf16.mxu0 %v8089
        %10406 = vmatpush1.bf16.msra.mxu0 %v8088
        %10407 = vmatprep.subr.bf16.mxu0 %v8105
        %10408 = vmatpush1.bf16.msra.mxu0 %v8104
        %10409 = vmatprep.subr.bf16.mxu0 %v8121
        %10410 = vmatpush1.bf16.msra.mxu0 %v8120
        %10411 = vmatprep.subr.bf16.mxu0 %v8137
        %10412 = vmatpush1.bf16.msra.mxu0 %v8136
        %10413 = vmatprep.mubr.bf16.mxu0 %v1991
        %10414 = vmatmul.mubr.bf16.gmra.mrb[0].mxu0 %v1990
        %v10415 = vpop.f32.mrb[0].mxu0
        %v10416 = vadd.f32 %v10375, %v10415
        %v10417 = vpop.f32.mrb[0].mxu0
        %v10418 = vadd.f32 %v10377, %v10417
        %v10419 = vpop.f32.mrb[0].mxu0
        %v10420 = vpop.f32.mrb[0].mxu0
        %10421 = vdwg.mxu0
        %10422 = vmatprep.subr.bf16.mxu0 %v6619
        %10423 = vmatpush1.bf16.msra.mxu0 %v6618
        %10424 = vmatprep.subr.bf16.mxu0 %v6635
        %10425 = vmatpush1.bf16.msra.mxu0 %v6634
        %10426 = vmatprep.subr.bf16.mxu0 %v6651
        %10427 = vmatpush1.bf16.msra.mxu0 %v6650
        %10428 = vmatprep.subr.bf16.mxu0 %v6667
        %10429 = vmatpush1.bf16.msra.mxu0 %v6666
        %10430 = vmatprep.subr.bf16.mxu0 %v6683
        %10431 = vmatpush1.bf16.msra.mxu0 %v6682
        %10432 = vmatprep.subr.bf16.mxu0 %v6699
        %10433 = vmatpush1.bf16.msra.mxu0 %v6698
        %10434 = vmatprep.subr.bf16.mxu0 %v6715
        %10435 = vmatpush1.bf16.msra.mxu0 %v6714
        %10436 = vmatprep.subr.bf16.mxu0 %v6731
        %10437 = vmatpush1.bf16.msra.mxu0 %v6730
        %10438 = vmatprep.subr.bf16.mxu0 %v6747
        %10439 = vmatpush1.bf16.msra.mxu0 %v6746
        %10440 = vmatprep.subr.bf16.mxu0 %v6763
        %10441 = vmatpush1.bf16.msra.mxu0 %v6762
        %10442 = vmatprep.subr.bf16.mxu0 %v6779
        %10443 = vmatpush1.bf16.msra.mxu0 %v6778
        %10444 = vmatprep.subr.bf16.mxu0 %v6795
        %10445 = vmatpush1.bf16.msra.mxu0 %v6794
        %10446 = vmatprep.subr.bf16.mxu0 %v6811
        %10447 = vmatpush1.bf16.msra.mxu0 %v6810
        %10448 = vmatprep.subr.bf16.mxu0 %v6827
        %10449 = vmatpush1.bf16.msra.mxu0 %v6826
        %10450 = vmatprep.subr.bf16.mxu0 %v6843
        %10451 = vmatpush1.bf16.msra.mxu0 %v6842
        %10452 = vmatprep.subr.bf16.mxu0 %v6859
        %10453 = vmatpush1.bf16.msra.mxu0 %v6858
        %10454 = vmatprep.mubr.bf16.mxu0 %v1981
        %10455 = vmatmul.mubr.bf16.gmra.mrb[0].mxu0 %v1980
        %v10456 = vpop.f32.mrb[0].mxu0
        %v10457 = vadd.f32 0.0, %v10456
        %v10458 = vpop.f32.mrb[0].mxu0
        %v10459 = vadd.f32 0.0, %v10458
        %v10460 = vpop.f32.mrb[0].mxu0
        %v10461 = vpop.f32.mrb[0].mxu0
        %10462 = vdwg.mxu0
        %10463 = vmatprep.subr.bf16.mxu0 %v6875
        %10464 = vmatpush1.bf16.msra.mxu0 %v6874
        %10465 = vmatprep.subr.bf16.mxu0 %v6891
        %10466 = vmatpush1.bf16.msra.mxu0 %v6890
        %10467 = vmatprep.subr.bf16.mxu0 %v6907
        %10468 = vmatpush1.bf16.msra.mxu0 %v6906
        %10469 = vmatprep.subr.bf16.mxu0 %v6923
        %10470 = vmatpush1.bf16.msra.mxu0 %v6922
        %10471 = vmatprep.subr.bf16.mxu0 %v6939
        %10472 = vmatpush1.bf16.msra.mxu0 %v6938
        %10473 = vmatprep.subr.bf16.mxu0 %v6955
        %10474 = vmatpush1.bf16.msra.mxu0 %v6954
        %10475 = vmatprep.subr.bf16.mxu0 %v6971
        %10476 = vmatpush1.bf16.msra.mxu0 %v6970
        %10477 = vmatprep.subr.bf16.mxu0 %v6987
        %10478 = vmatpush1.bf16.msra.mxu0 %v6986
        %10479 = vmatprep.subr.bf16.mxu0 %v7003
        %10480 = vmatpush1.bf16.msra.mxu0 %v7002
        %10481 = vmatprep.subr.bf16.mxu0 %v7019
        %10482 = vmatpush1.bf16.msra.mxu0 %v7018
        %10483 = vmatprep.subr.bf16.mxu0 %v7035
        %10484 = vmatpush1.bf16.msra.mxu0 %v7034
        %10485 = vmatprep.subr.bf16.mxu0 %v7051
        %10486 = vmatpush1.bf16.msra.mxu0 %v7050
        %10487 = vmatprep.subr.bf16.mxu0 %v7067
        %10488 = vmatpush1.bf16.msra.mxu0 %v7066
        %10489 = vmatprep.subr.bf16.mxu0 %v7083
        %10490 = vmatpush1.bf16.msra.mxu0 %v7082
        %10491 = vmatprep.subr.bf16.mxu0 %v7099
        %10492 = vmatpush1.bf16.msra.mxu0 %v7098
        %10493 = vmatprep.subr.bf16.mxu0 %v7115
        %10494 = vmatpush1.bf16.msra.mxu0 %v7114
        %10495 = vmatprep.mubr.bf16.mxu0 %v1983
        %10496 = vmatmul.mubr.bf16.gmra.mrb[0].mxu0 %v1982
        %v10497 = vpop.f32.mrb[0].mxu0
        %v10498 = vadd.f32 %v10457, %v10497
        %v10499 = vpop.f32.mrb[0].mxu0
        %v10500 = vadd.f32 %v10459, %v10499
        %v10501 = vpop.f32.mrb[0].mxu0
        %v10502 = vpop.f32.mrb[0].mxu0
        %10503 = vdwg.mxu0
        %10504 = vmatprep.subr.bf16.mxu0 %v7131
        %10505 = vmatpush1.bf16.msra.mxu0 %v7130
        %10506 = vmatprep.subr.bf16.mxu0 %v7147
        %10507 = vmatpush1.bf16.msra.mxu0 %v7146
        %10508 = vmatprep.subr.bf16.mxu0 %v7163
        %10509 = vmatpush1.bf16.msra.mxu0 %v7162
        %10510 = vmatprep.subr.bf16.mxu0 %v7179
        %10511 = vmatpush1.bf16.msra.mxu0 %v7178
        %10512 = vmatprep.subr.bf16.mxu0 %v7195
        %10513 = vmatpush1.bf16.msra.mxu0 %v7194
        %10514 = vmatprep.subr.bf16.mxu0 %v7211
        %10515 = vmatpush1.bf16.msra.mxu0 %v7210
        %10516 = vmatprep.subr.bf16.mxu0 %v7227
        %10517 = vmatpush1.bf16.msra.mxu0 %v7226
        %10518 = vmatprep.subr.bf16.mxu0 %v7243
        %10519 = vmatpush1.bf16.msra.mxu0 %v7242
        %10520 = vmatprep.subr.bf16.mxu0 %v7259
        %10521 = vmatpush1.bf16.msra.mxu0 %v7258
        %10522 = vmatprep.subr.bf16.mxu0 %v7275
        %10523 = vmatpush1.bf16.msra.mxu0 %v7274
        %10524 = vmatprep.subr.bf16.mxu0 %v7291
        %10525 = vmatpush1.bf16.msra.mxu0 %v7290
        %10526 = vmatprep.subr.bf16.mxu0 %v7307
        %10527 = vmatpush1.bf16.msra.mxu0 %v7306
        %10528 = vmatprep.subr.bf16.mxu0 %v7323
        %10529 = vmatpush1.bf16.msra.mxu0 %v7322
        %10530 = vmatprep.subr.bf16.mxu0 %v7339
        %10531 = vmatpush1.bf16.msra.mxu0 %v7338
        %10532 = vmatprep.subr.bf16.mxu0 %v7355
        %10533 = vmatpush1.bf16.msra.mxu0 %v7354
        %10534 = vmatprep.subr.bf16.mxu0 %v7371
        %10535 = vmatpush1.bf16.msra.mxu0 %v7370
        %10536 = vmatprep.mubr.bf16.mxu0 %v1985
        %10537 = vmatmul.mubr.bf16.gmra.mrb[0].mxu0 %v1984
        %v10538 = vpop.f32.mrb[0].mxu0
        %v10539 = vadd.f32 %v10498, %v10538
        %v10540 = vpop.f32.mrb[0].mxu0
        %v10541 = vadd.f32 %v10500, %v10540
        %v10542 = vpop.f32.mrb[0].mxu0
        %v10543 = vpop.f32.mrb[0].mxu0
        %10544 = vdwg.mxu0
        %10545 = vmatprep.subr.bf16.mxu0 %v7387
        %10546 = vmatpush1.bf16.msra.mxu0 %v7386
        %10547 = vmatprep.subr.bf16.mxu0 %v7403
        %10548 = vmatpush1.bf16.msra.mxu0 %v7402
        %10549 = vmatprep.subr.bf16.mxu0 %v7419
        %10550 = vmatpush1.bf16.msra.mxu0 %v7418
        %10551 = vmatprep.subr.bf16.mxu0 %v7435
        %10552 = vmatpush1.bf16.msra.mxu0 %v7434
        %10553 = vmatprep.subr.bf16.mxu0 %v7451
        %10554 = vmatpush1.bf16.msra.mxu0 %v7450
        %10555 = vmatprep.subr.bf16.mxu0 %v7467
        %10556 = vmatpush1.bf16.msra.mxu0 %v7466
        %10557 = vmatprep.subr.bf16.mxu0 %v7483
        %10558 = vmatpush1.bf16.msra.mxu0 %v7482
        %10559 = vmatprep.subr.bf16.mxu0 %v7499
        %10560 = vmatpush1.bf16.msra.mxu0 %v7498
        %10561 = vmatprep.subr.bf16.mxu0 %v7515
        %10562 = vmatpush1.bf16.msra.mxu0 %v7514
        %10563 = vmatprep.subr.bf16.mxu0 %v7531
        %10564 = vmatpush1.bf16.msra.mxu0 %v7530
        %10565 = vmatprep.subr.bf16.mxu0 %v7547
        %10566 = vmatpush1.bf16.msra.mxu0 %v7546
        %10567 = vmatprep.subr.bf16.mxu0 %v7563
        %10568 = vmatpush1.bf16.msra.mxu0 %v7562
        %10569 = vmatprep.subr.bf16.mxu0 %v7579
        %10570 = vmatpush1.bf16.msra.mxu0 %v7578
        %10571 = vmatprep.subr.bf16.mxu0 %v7595
        %10572 = vmatpush1.bf16.msra.mxu0 %v7594
        %10573 = vmatprep.subr.bf16.mxu0 %v7611
        %10574 = vmatpush1.bf16.msra.mxu0 %v7610
        %10575 = vmatprep.subr.bf16.mxu0 %v7627
        %10576 = vmatpush1.bf16.msra.mxu0 %v7626
        %10577 = vmatprep.mubr.bf16.mxu0 %v1987
        %10578 = vmatmul.mubr.bf16.gmra.mrb[0].mxu0 %v1986
        %v10579 = vpop.f32.mrb[0].mxu0
        %v10580 = vadd.f32 %v10539, %v10579
        %v10581 = vpop.f32.mrb[0].mxu0
        %v10582 = vadd.f32 %v10541, %v10581
        %v10583 = vpop.f32.mrb[0].mxu0
        %v10584 = vpop.f32.mrb[0].mxu0
        %10585 = vdwg.mxu0
        %10586 = vmatprep.subr.bf16.mxu0 %v7643
        %10587 = vmatpush1.bf16.msra.mxu0 %v7642
        %10588 = vmatprep.subr.bf16.mxu0 %v7659
        %10589 = vmatpush1.bf16.msra.mxu0 %v7658
        %10590 = vmatprep.subr.bf16.mxu0 %v7675
        %10591 = vmatpush1.bf16.msra.mxu0 %v7674
        %10592 = vmatprep.subr.bf16.mxu0 %v7691
        %10593 = vmatpush1.bf16.msra.mxu0 %v7690
        %10594 = vmatprep.subr.bf16.mxu0 %v7707
        %10595 = vmatpush1.bf16.msra.mxu0 %v7706
        %10596 = vmatprep.subr.bf16.mxu0 %v7723
        %10597 = vmatpush1.bf16.msra.mxu0 %v7722
        %10598 = vmatprep.subr.bf16.mxu0 %v7739
        %10599 = vmatpush1.bf16.msra.mxu0 %v7738
        %10600 = vmatprep.subr.bf16.mxu0 %v7755
        %10601 = vmatpush1.bf16.msra.mxu0 %v7754
        %10602 = vmatprep.subr.bf16.mxu0 %v7771
        %10603 = vmatpush1.bf16.msra.mxu0 %v7770
        %10604 = vmatprep.subr.bf16.mxu0 %v7787
        %10605 = vmatpush1.bf16.msra.mxu0 %v7786
        %10606 = vmatprep.subr.bf16.mxu0 %v7803
        %10607 = vmatpush1.bf16.msra.mxu0 %v7802
        %10608 = vmatprep.subr.bf16.mxu0 %v7819
        %10609 = vmatpush1.bf16.msra.mxu0 %v7818
        %10610 = vmatprep.subr.bf16.mxu0 %v7835
        %10611 = vmatpush1.bf16.msra.mxu0 %v7834
        %10612 = vmatprep.subr.bf16.mxu0 %v7851
        %10613 = vmatpush1.bf16.msra.mxu0 %v7850
        %10614 = vmatprep.subr.bf16.mxu0 %v7867
        %10615 = vmatpush1.bf16.msra.mxu0 %v7866
        %10616 = vmatprep.subr.bf16.mxu0 %v7883
        %10617 = vmatpush1.bf16.msra.mxu0 %v7882
        %10618 = vmatprep.mubr.bf16.mxu0 %v1989
        %10619 = vmatmul.mubr.bf16.gmra.mrb[0].mxu0 %v1988
        %v10620 = vpop.f32.mrb[0].mxu0
        %v10621 = vadd.f32 %v10580, %v10620
        %v10622 = vpop.f32.mrb[0].mxu0
        %v10623 = vadd.f32 %v10582, %v10622
        %v10624 = vpop.f32.mrb[0].mxu0
        %v10625 = vpop.f32.mrb[0].mxu0
        %10626 = vdwg.mxu0
        %10627 = vmatprep.subr.bf16.mxu0 %v7899
        %10628 = vmatpush1.bf16.msra.mxu0 %v7898
        %10629 = vmatprep.subr.bf16.mxu0 %v7915
        %10630 = vmatpush1.bf16.msra.mxu0 %v7914
        %10631 = vmatprep.subr.bf16.mxu0 %v7931
        %10632 = vmatpush1.bf16.msra.mxu0 %v7930
        %10633 = vmatprep.subr.bf16.mxu0 %v7947
        %10634 = vmatpush1.bf16.msra.mxu0 %v7946
        %10635 = vmatprep.subr.bf16.mxu0 %v7963
        %10636 = vmatpush1.bf16.msra.mxu0 %v7962
        %10637 = vmatprep.subr.bf16.mxu0 %v7979
        %10638 = vmatpush1.bf16.msra.mxu0 %v7978
        %10639 = vmatprep.subr.bf16.mxu0 %v7995
        %10640 = vmatpush1.bf16.msra.mxu0 %v7994
        %10641 = vmatprep.subr.bf16.mxu0 %v8011
        %10642 = vmatpush1.bf16.msra.mxu0 %v8010
        %10643 = vmatprep.subr.bf16.mxu0 %v8027
        %10644 = vmatpush1.bf16.msra.mxu0 %v8026
        %10645 = vmatprep.subr.bf16.mxu0 %v8043
        %10646 = vmatpush1.bf16.msra.mxu0 %v8042
        %10647 = vmatprep.subr.bf16.mxu0 %v8059
        %10648 = vmatpush1.bf16.msra.mxu0 %v8058
        %10649 = vmatprep.subr.bf16.mxu0 %v8075
        %10650 = vmatpush1.bf16.msra.mxu0 %v8074
        %10651 = vmatprep.subr.bf16.mxu0 %v8091
        %10652 = vmatpush1.bf16.msra.mxu0 %v8090
        %10653 = vmatprep.subr.bf16.mxu0 %v8107
        %10654 = vmatpush1.bf16.msra.mxu0 %v8106
        %10655 = vmatprep.subr.bf16.mxu0 %v8123
        %10656 = vmatpush1.bf16.msra.mxu0 %v8122
        %10657 = vmatprep.subr.bf16.mxu0 %v8139
        %10658 = vmatpush1.bf16.msra.mxu0 %v8138
        %10659 = vmatprep.mubr.bf16.mxu0 %v1991
        %10660 = vmatmul.mubr.bf16.gmra.mrb[0].mxu0 %v1990
        %v10661 = vpop.f32.mrb[0].mxu0
        %v10662 = vadd.f32 %v10621, %v10661
        %v10663 = vpop.f32.mrb[0].mxu0
        %v10664 = vadd.f32 %v10623, %v10663
        %v10665 = vpop.f32.mrb[0].mxu0
        %v10666 = vpop.f32.mrb[0].mxu0
        %10667 = vdwg.mxu0
        %10668 = vmatprep.subr.bf16.mxu0 %v6621
        %10669 = vmatpush1.bf16.msra.mxu0 %v6620
        %10670 = vmatprep.subr.bf16.mxu0 %v6637
        %10671 = vmatpush1.bf16.msra.mxu0 %v6636
        %10672 = vmatprep.subr.bf16.mxu0 %v6653
        %10673 = vmatpush1.bf16.msra.mxu0 %v6652
        %10674 = vmatprep.subr.bf16.mxu0 %v6669
        %10675 = vmatpush1.bf16.msra.mxu0 %v6668
        %10676 = vmatprep.subr.bf16.mxu0 %v6685
        %10677 = vmatpush1.bf16.msra.mxu0 %v6684
        %10678 = vmatprep.subr.bf16.mxu0 %v6701
        %10679 = vmatpush1.bf16.msra.mxu0 %v6700
        %10680 = vmatprep.subr.bf16.mxu0 %v6717
        %10681 = vmatpush1.bf16.msra.mxu0 %v6716
        %10682 = vmatprep.subr.bf16.mxu0 %v6733
        %10683 = vmatpush1.bf16.msra.mxu0 %v6732
        %10684 = vmatprep.subr.bf16.mxu0 %v6749
        %10685 = vmatpush1.bf16.msra.mxu0 %v6748
        %10686 = vmatprep.subr.bf16.mxu0 %v6765
        %10687 = vmatpush1.bf16.msra.mxu0 %v6764
        %10688 = vmatprep.subr.bf16.mxu0 %v6781
        %10689 = vmatpush1.bf16.msra.mxu0 %v6780
        %10690 = vmatprep.subr.bf16.mxu0 %v6797
        %10691 = vmatpush1.bf16.msra.mxu0 %v6796
        %10692 = vmatprep.subr.bf16.mxu0 %v6813
        %10693 = vmatpush1.bf16.msra.mxu0 %v6812
        %10694 = vmatprep.subr.bf16.mxu0 %v6829
        %10695 = vmatpush1.bf16.msra.mxu0 %v6828
        %10696 = vmatprep.subr.bf16.mxu0 %v6845
        %10697 = vmatpush1.bf16.msra.mxu0 %v6844
        %10698 = vmatprep.subr.bf16.mxu0 %v6861
        %10699 = vmatpush1.bf16.msra.mxu0 %v6860
        %10700 = vmatprep.mubr.bf16.mxu0 %v1981
        %10701 = vmatmul.mubr.bf16.gmra.mrb[0].mxu0 %v1980
        %v10702 = vpop.f32.mrb[0].mxu0
        %v10703 = vadd.f32 0.0, %v10702
        %v10704 = vpop.f32.mrb[0].mxu0
        %v10705 = vadd.f32 0.0, %v10704
        %v10706 = vpop.f32.mrb[0].mxu0
        %v10707 = vpop.f32.mrb[0].mxu0
        %10708 = vdwg.mxu0
        %10709 = vmatprep.subr.bf16.mxu0 %v6877
        %10710 = vmatpush1.bf16.msra.mxu0 %v6876
        %10711 = vmatprep.subr.bf16.mxu0 %v6893
        %10712 = vmatpush1.bf16.msra.mxu0 %v6892
        %10713 = vmatprep.subr.bf16.mxu0 %v6909
        %10714 = vmatpush1.bf16.msra.mxu0 %v6908
        %10715 = vmatprep.subr.bf16.mxu0 %v6925
        %10716 = vmatpush1.bf16.msra.mxu0 %v6924
        %10717 = vmatprep.subr.bf16.mxu0 %v6941
        %10718 = vmatpush1.bf16.msra.mxu0 %v6940
        %10719 = vmatprep.subr.bf16.mxu0 %v6957
        %10720 = vmatpush1.bf16.msra.mxu0 %v6956
        %10721 = vmatprep.subr.bf16.mxu0 %v6973
        %10722 = vmatpush1.bf16.msra.mxu0 %v6972
        %10723 = vmatprep.subr.bf16.mxu0 %v6989
        %10724 = vmatpush1.bf16.msra.mxu0 %v6988
        %10725 = vmatprep.subr.bf16.mxu0 %v7005
        %10726 = vmatpush1.bf16.msra.mxu0 %v7004
        %10727 = vmatprep.subr.bf16.mxu0 %v7021
        %10728 = vmatpush1.bf16.msra.mxu0 %v7020
        %10729 = vmatprep.subr.bf16.mxu0 %v7037
        %10730 = vmatpush1.bf16.msra.mxu0 %v7036
        %10731 = vmatprep.subr.bf16.mxu0 %v7053
        %10732 = vmatpush1.bf16.msra.mxu0 %v7052
        %10733 = vmatprep.subr.bf16.mxu0 %v7069
        %10734 = vmatpush1.bf16.msra.mxu0 %v7068
        %10735 = vmatprep.subr.bf16.mxu0 %v7085
        %10736 = vmatpush1.bf16.msra.mxu0 %v7084
        %10737 = vmatprep.subr.bf16.mxu0 %v7101
        %10738 = vmatpush1.bf16.msra.mxu0 %v7100
        %10739 = vmatprep.subr.bf16.mxu0 %v7117
        %10740 = vmatpush1.bf16.msra.mxu0 %v7116
        %10741 = vmatprep.mubr.bf16.mxu0 %v1983
        %10742 = vmatmul.mubr.bf16.gmra.mrb[0].mxu0 %v1982
        %v10743 = vpop.f32.mrb[0].mxu0
        %v10744 = vadd.f32 %v10703, %v10743
        %v10745 = vpop.f32.mrb[0].mxu0
        %v10746 = vadd.f32 %v10705, %v10745
        %v10747 = vpop.f32.mrb[0].mxu0
        %v10748 = vpop.f32.mrb[0].mxu0
        %10749 = vdwg.mxu0
        %10750 = vmatprep.subr.bf16.mxu0 %v7133
        %10751 = vmatpush1.bf16.msra.mxu0 %v7132
        %10752 = vmatprep.subr.bf16.mxu0 %v7149
        %10753 = vmatpush1.bf16.msra.mxu0 %v7148
        %10754 = vmatprep.subr.bf16.mxu0 %v7165
        %10755 = vmatpush1.bf16.msra.mxu0 %v7164
        %10756 = vmatprep.subr.bf16.mxu0 %v7181
        %10757 = vmatpush1.bf16.msra.mxu0 %v7180
        %10758 = vmatprep.subr.bf16.mxu0 %v7197
        %10759 = vmatpush1.bf16.msra.mxu0 %v7196
        %10760 = vmatprep.subr.bf16.mxu0 %v7213
        %10761 = vmatpush1.bf16.msra.mxu0 %v7212
        %10762 = vmatprep.subr.bf16.mxu0 %v7229
        %10763 = vmatpush1.bf16.msra.mxu0 %v7228
        %10764 = vmatprep.subr.bf16.mxu0 %v7245
        %10765 = vmatpush1.bf16.msra.mxu0 %v7244
        %10766 = vmatprep.subr.bf16.mxu0 %v7261
        %10767 = vmatpush1.bf16.msra.mxu0 %v7260
        %10768 = vmatprep.subr.bf16.mxu0 %v7277
        %10769 = vmatpush1.bf16.msra.mxu0 %v7276
        %10770 = vmatprep.subr.bf16.mxu0 %v7293
        %10771 = vmatpush1.bf16.msra.mxu0 %v7292
        %10772 = vmatprep.subr.bf16.mxu0 %v7309
        %10773 = vmatpush1.bf16.msra.mxu0 %v7308
        %10774 = vmatprep.subr.bf16.mxu0 %v7325
        %10775 = vmatpush1.bf16.msra.mxu0 %v7324
        %10776 = vmatprep.subr.bf16.mxu0 %v7341
        %10777 = vmatpush1.bf16.msra.mxu0 %v7340
        %10778 = vmatprep.subr.bf16.mxu0 %v7357
        %10779 = vmatpush1.bf16.msra.mxu0 %v7356
        %10780 = vmatprep.subr.bf16.mxu0 %v7373
        %10781 = vmatpush1.bf16.msra.mxu0 %v7372
        %10782 = vmatprep.mubr.bf16.mxu0 %v1985
        %10783 = vmatmul.mubr.bf16.gmra.mrb[0].mxu0 %v1984
        %v10784 = vpop.f32.mrb[0].mxu0
        %v10785 = vadd.f32 %v10744, %v10784
        %v10786 = vpop.f32.mrb[0].mxu0
        %v10787 = vadd.f32 %v10746, %v10786
        %v10788 = vpop.f32.mrb[0].mxu0
        %v10789 = vpop.f32.mrb[0].mxu0
        %10790 = vdwg.mxu0
        %10791 = vmatprep.subr.bf16.mxu0 %v7389
        %10792 = vmatpush1.bf16.msra.mxu0 %v7388
        %10793 = vmatprep.subr.bf16.mxu0 %v7405
        %10794 = vmatpush1.bf16.msra.mxu0 %v7404
        %10795 = vmatprep.subr.bf16.mxu0 %v7421
        %10796 = vmatpush1.bf16.msra.mxu0 %v7420
        %10797 = vmatprep.subr.bf16.mxu0 %v7437
        %10798 = vmatpush1.bf16.msra.mxu0 %v7436
        %10799 = vmatprep.subr.bf16.mxu0 %v7453
        %10800 = vmatpush1.bf16.msra.mxu0 %v7452
        %10801 = vmatprep.subr.bf16.mxu0 %v7469
        %10802 = vmatpush1.bf16.msra.mxu0 %v7468
        %10803 = vmatprep.subr.bf16.mxu0 %v7485
        %10804 = vmatpush1.bf16.msra.mxu0 %v7484
        %10805 = vmatprep.subr.bf16.mxu0 %v7501
        %10806 = vmatpush1.bf16.msra.mxu0 %v7500
        %10807 = vmatprep.subr.bf16.mxu0 %v7517
        %10808 = vmatpush1.bf16.msra.mxu0 %v7516
        %10809 = vmatprep.subr.bf16.mxu0 %v7533
        %10810 = vmatpush1.bf16.msra.mxu0 %v7532
        %10811 = vmatprep.subr.bf16.mxu0 %v7549
        %10812 = vmatpush1.bf16.msra.mxu0 %v7548
        %10813 = vmatprep.subr.bf16.mxu0 %v7565
        %10814 = vmatpush1.bf16.msra.mxu0 %v7564
        %10815 = vmatprep.subr.bf16.mxu0 %v7581
        %10816 = vmatpush1.bf16.msra.mxu0 %v7580
        %10817 = vmatprep.subr.bf16.mxu0 %v7597
        %10818 = vmatpush1.bf16.msra.mxu0 %v7596
        %10819 = vmatprep.subr.bf16.mxu0 %v7613
        %10820 = vmatpush1.bf16.msra.mxu0 %v7612
        %10821 = vmatprep.subr.bf16.mxu0 %v7629
        %10822 = vmatpush1.bf16.msra.mxu0 %v7628
        %10823 = vmatprep.mubr.bf16.mxu0 %v1987
        %10824 = vmatmul.mubr.bf16.gmra.mrb[0].mxu0 %v1986
        %v10825 = vpop.f32.mrb[0].mxu0
        %v10826 = vadd.f32 %v10785, %v10825
        %v10827 = vpop.f32.mrb[0].mxu0
        %v10828 = vadd.f32 %v10787, %v10827
        %v10829 = vpop.f32.mrb[0].mxu0
        %v10830 = vpop.f32.mrb[0].mxu0
        %10831 = vdwg.mxu0
        %10832 = vmatprep.subr.bf16.mxu0 %v7645
        %10833 = vmatpush1.bf16.msra.mxu0 %v7644
        %10834 = vmatprep.subr.bf16.mxu0 %v7661
        %10835 = vmatpush1.bf16.msra.mxu0 %v7660
        %10836 = vmatprep.subr.bf16.mxu0 %v7677
        %10837 = vmatpush1.bf16.msra.mxu0 %v7676
        %10838 = vmatprep.subr.bf16.mxu0 %v7693
        %10839 = vmatpush1.bf16.msra.mxu0 %v7692
        %10840 = vmatprep.subr.bf16.mxu0 %v7709
        %10841 = vmatpush1.bf16.msra.mxu0 %v7708
        %10842 = vmatprep.subr.bf16.mxu0 %v7725
        %10843 = vmatpush1.bf16.msra.mxu0 %v7724
        %10844 = vmatprep.subr.bf16.mxu0 %v7741
        %10845 = vmatpush1.bf16.msra.mxu0 %v7740
        %10846 = vmatprep.subr.bf16.mxu0 %v7757
        %10847 = vmatpush1.bf16.msra.mxu0 %v7756
        %10848 = vmatprep.subr.bf16.mxu0 %v7773
        %10849 = vmatpush1.bf16.msra.mxu0 %v7772
        %10850 = vmatprep.subr.bf16.mxu0 %v7789
        %10851 = vmatpush1.bf16.msra.mxu0 %v7788
        %10852 = vmatprep.subr.bf16.mxu0 %v7805
        %10853 = vmatpush1.bf16.msra.mxu0 %v7804
        %10854 = vmatprep.subr.bf16.mxu0 %v7821
        %10855 = vmatpush1.bf16.msra.mxu0 %v7820
        %10856 = vmatprep.subr.bf16.mxu0 %v7837
        %10857 = vmatpush1.bf16.msra.mxu0 %v7836
        %10858 = vmatprep.subr.bf16.mxu0 %v7853
        %10859 = vmatpush1.bf16.msra.mxu0 %v7852
        %10860 = vmatprep.subr.bf16.mxu0 %v7869
        %10861 = vmatpush1.bf16.msra.mxu0 %v7868
        %10862 = vmatprep.subr.bf16.mxu0 %v7885
        %10863 = vmatpush1.bf16.msra.mxu0 %v7884
        %10864 = vmatprep.mubr.bf16.mxu0 %v1989
        %10865 = vmatmul.mubr.bf16.gmra.mrb[0].mxu0 %v1988
        %v10866 = vpop.f32.mrb[0].mxu0
        %v10867 = vadd.f32 %v10826, %v10866
        %v10868 = vpop.f32.mrb[0].mxu0
        %v10869 = vadd.f32 %v10828, %v10868
        %v10870 = vpop.f32.mrb[0].mxu0
        %v10871 = vpop.f32.mrb[0].mxu0
        %10872 = vdwg.mxu0
        %10873 = vmatprep.subr.bf16.mxu0 %v7901
        %10874 = vmatpush1.bf16.msra.mxu0 %v7900
        %10875 = vmatprep.subr.bf16.mxu0 %v7917
        %10876 = vmatpush1.bf16.msra.mxu0 %v7916
        %10877 = vmatprep.subr.bf16.mxu0 %v7933
        %10878 = vmatpush1.bf16.msra.mxu0 %v7932
        %10879 = vmatprep.subr.bf16.mxu0 %v7949
        %10880 = vmatpush1.bf16.msra.mxu0 %v7948
        %10881 = vmatprep.subr.bf16.mxu0 %v7965
        %10882 = vmatpush1.bf16.msra.mxu0 %v7964
        %10883 = vmatprep.subr.bf16.mxu0 %v7981
        %10884 = vmatpush1.bf16.msra.mxu0 %v7980
        %10885 = vmatprep.subr.bf16.mxu0 %v7997
        %10886 = vmatpush1.bf16.msra.mxu0 %v7996
        %10887 = vmatprep.subr.bf16.mxu0 %v8013
        %10888 = vmatpush1.bf16.msra.mxu0 %v8012
        %10889 = vmatprep.subr.bf16.mxu0 %v8029
        %10890 = vmatpush1.bf16.msra.mxu0 %v8028
        %10891 = vmatprep.subr.bf16.mxu0 %v8045
        %10892 = vmatpush1.bf16.msra.mxu0 %v8044
        %10893 = vmatprep.subr.bf16.mxu0 %v8061
        %10894 = vmatpush1.bf16.msra.mxu0 %v8060
        %10895 = vmatprep.subr.bf16.mxu0 %v8077
        %10896 = vmatpush1.bf16.msra.mxu0 %v8076
        %10897 = vmatprep.subr.bf16.mxu0 %v8093
        %10898 = vmatpush1.bf16.msra.mxu0 %v8092
        %10899 = vmatprep.subr.bf16.mxu0 %v8109
        %10900 = vmatpush1.bf16.msra.mxu0 %v8108
        %10901 = vmatprep.subr.bf16.mxu0 %v8125
        %10902 = vmatpush1.bf16.msra.mxu0 %v8124
        %10903 = vmatprep.subr.bf16.mxu0 %v8141
        %10904 = vmatpush1.bf16.msra.mxu0 %v8140
        %10905 = vmatprep.mubr.bf16.mxu0 %v1991
        %10906 = vmatmul.mubr.bf16.gmra.mrb[0].mxu0 %v1990
        %v10907 = vpop.f32.mrb[0].mxu0
        %v10908 = vadd.f32 %v10867, %v10907
        %v10909 = vpop.f32.mrb[0].mxu0
        %v10910 = vadd.f32 %v10869, %v10909
        %v10911 = vpop.f32.mrb[0].mxu0
        %v10912 = vpop.f32.mrb[0].mxu0
        %10913 = vdwg.mxu0
        %10914 = vmatprep.subr.bf16.mxu0 %v6623
        %10915 = vmatpush1.bf16.msra.mxu0 %v6622
        %10916 = vmatprep.subr.bf16.mxu0 %v6639
        %10917 = vmatpush1.bf16.msra.mxu0 %v6638
        %10918 = vmatprep.subr.bf16.mxu0 %v6655
        %10919 = vmatpush1.bf16.msra.mxu0 %v6654
        %10920 = vmatprep.subr.bf16.mxu0 %v6671
        %10921 = vmatpush1.bf16.msra.mxu0 %v6670
        %10922 = vmatprep.subr.bf16.mxu0 %v6687
        %10923 = vmatpush1.bf16.msra.mxu0 %v6686
        %10924 = vmatprep.subr.bf16.mxu0 %v6703
        %10925 = vmatpush1.bf16.msra.mxu0 %v6702
        %10926 = vmatprep.subr.bf16.mxu0 %v6719
        %10927 = vmatpush1.bf16.msra.mxu0 %v6718
        %10928 = vmatprep.subr.bf16.mxu0 %v6735
        %10929 = vmatpush1.bf16.msra.mxu0 %v6734
        %10930 = vmatprep.subr.bf16.mxu0 %v6751
        %10931 = vmatpush1.bf16.msra.mxu0 %v6750
        %10932 = vmatprep.subr.bf16.mxu0 %v6767
        %10933 = vmatpush1.bf16.msra.mxu0 %v6766
        %10934 = vmatprep.subr.bf16.mxu0 %v6783
        %10935 = vmatpush1.bf16.msra.mxu0 %v6782
        %10936 = vmatprep.subr.bf16.mxu0 %v6799
        %10937 = vmatpush1.bf16.msra.mxu0 %v6798
        %10938 = vmatprep.subr.bf16.mxu0 %v6815
        %10939 = vmatpush1.bf16.msra.mxu0 %v6814
        %10940 = vmatprep.subr.bf16.mxu0 %v6831
        %10941 = vmatpush1.bf16.msra.mxu0 %v6830
        %10942 = vmatprep.subr.bf16.mxu0 %v6847
        %10943 = vmatpush1.bf16.msra.mxu0 %v6846
        %10944 = vmatprep.subr.bf16.mxu0 %v6863
        %10945 = vmatpush1.bf16.msra.mxu0 %v6862
        %10946 = vmatprep.mubr.bf16.mxu0 %v1981
        %10947 = vmatmul.mubr.bf16.gmra.mrb[0].mxu0 %v1980
        %v10948 = vpop.f32.mrb[0].mxu0
        %v10949 = vadd.f32 0.0, %v10948
        %v10950 = vpop.f32.mrb[0].mxu0
        %v10951 = vadd.f32 0.0, %v10950
        %v10952 = vpop.f32.mrb[0].mxu0
        %v10953 = vpop.f32.mrb[0].mxu0
        %10954 = vdwg.mxu0
        %10955 = vmatprep.subr.bf16.mxu0 %v6879
        %10956 = vmatpush1.bf16.msra.mxu0 %v6878
        %10957 = vmatprep.subr.bf16.mxu0 %v6895
        %10958 = vmatpush1.bf16.msra.mxu0 %v6894
        %10959 = vmatprep.subr.bf16.mxu0 %v6911
        %10960 = vmatpush1.bf16.msra.mxu0 %v6910
        %10961 = vmatprep.subr.bf16.mxu0 %v6927
        %10962 = vmatpush1.bf16.msra.mxu0 %v6926
        %10963 = vmatprep.subr.bf16.mxu0 %v6943
        %10964 = vmatpush1.bf16.msra.mxu0 %v6942
        %10965 = vmatprep.subr.bf16.mxu0 %v6959
        %10966 = vmatpush1.bf16.msra.mxu0 %v6958
        %10967 = vmatprep.subr.bf16.mxu0 %v6975
        %10968 = vmatpush1.bf16.msra.mxu0 %v6974
        %10969 = vmatprep.subr.bf16.mxu0 %v6991
        %10970 = vmatpush1.bf16.msra.mxu0 %v6990
        %10971 = vmatprep.subr.bf16.mxu0 %v7007
        %10972 = vmatpush1.bf16.msra.mxu0 %v7006
        %10973 = vmatprep.subr.bf16.mxu0 %v7023
        %10974 = vmatpush1.bf16.msra.mxu0 %v7022
        %10975 = vmatprep.subr.bf16.mxu0 %v7039
        %10976 = vmatpush1.bf16.msra.mxu0 %v7038
        %10977 = vmatprep.subr.bf16.mxu0 %v7055
        %10978 = vmatpush1.bf16.msra.mxu0 %v7054
        %10979 = vmatprep.subr.bf16.mxu0 %v7071
        %10980 = vmatpush1.bf16.msra.mxu0 %v7070
        %10981 = vmatprep.subr.bf16.mxu0 %v7087
        %10982 = vmatpush1.bf16.msra.mxu0 %v7086
        %10983 = vmatprep.subr.bf16.mxu0 %v7103
        %10984 = vmatpush1.bf16.msra.mxu0 %v7102
        %10985 = vmatprep.subr.bf16.mxu0 %v7119
        %10986 = vmatpush1.bf16.msra.mxu0 %v7118
        %10987 = vmatprep.mubr.bf16.mxu0 %v1983
        %10988 = vmatmul.mubr.bf16.gmra.mrb[0].mxu0 %v1982
        %v10989 = vpop.f32.mrb[0].mxu0
        %v10990 = vadd.f32 %v10949, %v10989
        %v10991 = vpop.f32.mrb[0].mxu0
        %v10992 = vadd.f32 %v10951, %v10991
        %v10993 = vpop.f32.mrb[0].mxu0
        %v10994 = vpop.f32.mrb[0].mxu0
        %10995 = vdwg.mxu0
        %10996 = vmatprep.subr.bf16.mxu0 %v7135
        %10997 = vmatpush1.bf16.msra.mxu0 %v7134
        %10998 = vmatprep.subr.bf16.mxu0 %v7151
        %10999 = vmatpush1.bf16.msra.mxu0 %v7150
        %11000 = vmatprep.subr.bf16.mxu0 %v7167
        %11001 = vmatpush1.bf16.msra.mxu0 %v7166
        %11002 = vmatprep.subr.bf16.mxu0 %v7183
        %11003 = vmatpush1.bf16.msra.mxu0 %v7182
        %11004 = vmatprep.subr.bf16.mxu0 %v7199
        %11005 = vmatpush1.bf16.msra.mxu0 %v7198
        %11006 = vmatprep.subr.bf16.mxu0 %v7215
        %11007 = vmatpush1.bf16.msra.mxu0 %v7214
        %11008 = vmatprep.subr.bf16.mxu0 %v7231
        %11009 = vmatpush1.bf16.msra.mxu0 %v7230
        %11010 = vmatprep.subr.bf16.mxu0 %v7247
        %11011 = vmatpush1.bf16.msra.mxu0 %v7246
        %11012 = vmatprep.subr.bf16.mxu0 %v7263
        %11013 = vmatpush1.bf16.msra.mxu0 %v7262
        %11014 = vmatprep.subr.bf16.mxu0 %v7279
        %11015 = vmatpush1.bf16.msra.mxu0 %v7278
        %11016 = vmatprep.subr.bf16.mxu0 %v7295
        %11017 = vmatpush1.bf16.msra.mxu0 %v7294
        %11018 = vmatprep.subr.bf16.mxu0 %v7311
        %11019 = vmatpush1.bf16.msra.mxu0 %v7310
        %11020 = vmatprep.subr.bf16.mxu0 %v7327
        %11021 = vmatpush1.bf16.msra.mxu0 %v7326
        %11022 = vmatprep.subr.bf16.mxu0 %v7343
        %11023 = vmatpush1.bf16.msra.mxu0 %v7342
        %11024 = vmatprep.subr.bf16.mxu0 %v7359
        %11025 = vmatpush1.bf16.msra.mxu0 %v7358
        %11026 = vmatprep.subr.bf16.mxu0 %v7375
        %11027 = vmatpush1.bf16.msra.mxu0 %v7374
        %11028 = vmatprep.mubr.bf16.mxu0 %v1985
        %11029 = vmatmul.mubr.bf16.gmra.mrb[0].mxu0 %v1984
        %v11030 = vpop.f32.mrb[0].mxu0
        %v11031 = vadd.f32 %v10990, %v11030
        %v11032 = vpop.f32.mrb[0].mxu0
        %v11033 = vadd.f32 %v10992, %v11032
        %v11034 = vpop.f32.mrb[0].mxu0
        %v11035 = vpop.f32.mrb[0].mxu0
        %11036 = vdwg.mxu0
        %11037 = vmatprep.subr.bf16.mxu0 %v7391
        %11038 = vmatpush1.bf16.msra.mxu0 %v7390
        %11039 = vmatprep.subr.bf16.mxu0 %v7407
        %11040 = vmatpush1.bf16.msra.mxu0 %v7406
        %11041 = vmatprep.subr.bf16.mxu0 %v7423
        %11042 = vmatpush1.bf16.msra.mxu0 %v7422
        %11043 = vmatprep.subr.bf16.mxu0 %v7439
        %11044 = vmatpush1.bf16.msra.mxu0 %v7438
        %11045 = vmatprep.subr.bf16.mxu0 %v7455
        %11046 = vmatpush1.bf16.msra.mxu0 %v7454
        %11047 = vmatprep.subr.bf16.mxu0 %v7471
        %11048 = vmatpush1.bf16.msra.mxu0 %v7470
        %11049 = vmatprep.subr.bf16.mxu0 %v7487
        %11050 = vmatpush1.bf16.msra.mxu0 %v7486
        %11051 = vmatprep.subr.bf16.mxu0 %v7503
        %11052 = vmatpush1.bf16.msra.mxu0 %v7502
        %11053 = vmatprep.subr.bf16.mxu0 %v7519
        %11054 = vmatpush1.bf16.msra.mxu0 %v7518
        %11055 = vmatprep.subr.bf16.mxu0 %v7535
        %11056 = vmatpush1.bf16.msra.mxu0 %v7534
        %11057 = vmatprep.subr.bf16.mxu0 %v7551
        %11058 = vmatpush1.bf16.msra.mxu0 %v7550
        %11059 = vmatprep.subr.bf16.mxu0 %v7567
        %11060 = vmatpush1.bf16.msra.mxu0 %v7566
        %11061 = vmatprep.subr.bf16.mxu0 %v7583
        %11062 = vmatpush1.bf16.msra.mxu0 %v7582
        %11063 = vmatprep.subr.bf16.mxu0 %v7599
        %11064 = vmatpush1.bf16.msra.mxu0 %v7598
        %11065 = vmatprep.subr.bf16.mxu0 %v7615
        %11066 = vmatpush1.bf16.msra.mxu0 %v7614
        %11067 = vmatprep.subr.bf16.mxu0 %v7631
        %11068 = vmatpush1.bf16.msra.mxu0 %v7630
        %11069 = vmatprep.mubr.bf16.mxu0 %v1987
        %11070 = vmatmul.mubr.bf16.gmra.mrb[0].mxu0 %v1986
        %v11071 = vpop.f32.mrb[0].mxu0
        %v11072 = vadd.f32 %v11031, %v11071
        %v11073 = vpop.f32.mrb[0].mxu0
        %v11074 = vadd.f32 %v11033, %v11073
        %v11075 = vpop.f32.mrb[0].mxu0
        %v11076 = vpop.f32.mrb[0].mxu0
        %11077 = vdwg.mxu0
        %11078 = vmatprep.subr.bf16.mxu0 %v7647
        %11079 = vmatpush1.bf16.msra.mxu0 %v7646
        %11080 = vmatprep.subr.bf16.mxu0 %v7663
        %11081 = vmatpush1.bf16.msra.mxu0 %v7662
        %11082 = vmatprep.subr.bf16.mxu0 %v7679
        %11083 = vmatpush1.bf16.msra.mxu0 %v7678
        %11084 = vmatprep.subr.bf16.mxu0 %v7695
        %11085 = vmatpush1.bf16.msra.mxu0 %v7694
        %11086 = vmatprep.subr.bf16.mxu0 %v7711
        %11087 = vmatpush1.bf16.msra.mxu0 %v7710
        %11088 = vmatprep.subr.bf16.mxu0 %v7727
        %11089 = vmatpush1.bf16.msra.mxu0 %v7726
        %11090 = vmatprep.subr.bf16.mxu0 %v7743
        %11091 = vmatpush1.bf16.msra.mxu0 %v7742
        %11092 = vmatprep.subr.bf16.mxu0 %v7759
        %11093 = vmatpush1.bf16.msra.mxu0 %v7758
        %11094 = vmatprep.subr.bf16.mxu0 %v7775
        %11095 = vmatpush1.bf16.msra.mxu0 %v7774
        %11096 = vmatprep.subr.bf16.mxu0 %v7791
        %11097 = vmatpush1.bf16.msra.mxu0 %v7790
        %11098 = vmatprep.subr.bf16.mxu0 %v7807
        %11099 = vmatpush1.bf16.msra.mxu0 %v7806
        %11100 = vmatprep.subr.bf16.mxu0 %v7823
        %11101 = vmatpush1.bf16.msra.mxu0 %v7822
        %11102 = vmatprep.subr.bf16.mxu0 %v7839
        %11103 = vmatpush1.bf16.msra.mxu0 %v7838
        %11104 = vmatprep.subr.bf16.mxu0 %v7855
        %11105 = vmatpush1.bf16.msra.mxu0 %v7854
        %11106 = vmatprep.subr.bf16.mxu0 %v7871
        %11107 = vmatpush1.bf16.msra.mxu0 %v7870
        %11108 = vmatprep.subr.bf16.mxu0 %v7887
        %11109 = vmatpush1.bf16.msra.mxu0 %v7886
        %11110 = vmatprep.mubr.bf16.mxu0 %v1989
        %11111 = vmatmul.mubr.bf16.gmra.mrb[0].mxu0 %v1988
        %v11112 = vpop.f32.mrb[0].mxu0
        %v11113 = vadd.f32 %v11072, %v11112
        %v11114 = vpop.f32.mrb[0].mxu0
        %v11115 = vadd.f32 %v11074, %v11114
        %v11116 = vpop.f32.mrb[0].mxu0
        %v11117 = vpop.f32.mrb[0].mxu0
        %11118 = vdwg.mxu0
        %11119 = vmatprep.subr.bf16.mxu0 %v7903
        %11120 = vmatpush1.bf16.msra.mxu0 %v7902
        %11121 = vmatprep.subr.bf16.mxu0 %v7919
        %11122 = vmatpush1.bf16.msra.mxu0 %v7918
        %11123 = vmatprep.subr.bf16.mxu0 %v7935
        %11124 = vmatpush1.bf16.msra.mxu0 %v7934
        %11125 = vmatprep.subr.bf16.mxu0 %v7951
        %11126 = vmatpush1.bf16.msra.mxu0 %v7950
        %11127 = vmatprep.subr.bf16.mxu0 %v7967
        %11128 = vmatpush1.bf16.msra.mxu0 %v7966
        %11129 = vmatprep.subr.bf16.mxu0 %v7983
        %11130 = vmatpush1.bf16.msra.mxu0 %v7982
        %11131 = vmatprep.subr.bf16.mxu0 %v7999
        %11132 = vmatpush1.bf16.msra.mxu0 %v7998
        %11133 = vmatprep.subr.bf16.mxu0 %v8015
        %11134 = vmatpush1.bf16.msra.mxu0 %v8014
        %11135 = vmatprep.subr.bf16.mxu0 %v8031
        %11136 = vmatpush1.bf16.msra.mxu0 %v8030
        %11137 = vmatprep.subr.bf16.mxu0 %v8047
        %11138 = vmatpush1.bf16.msra.mxu0 %v8046
        %11139 = vmatprep.subr.bf16.mxu0 %v8063
        %11140 = vmatpush1.bf16.msra.mxu0 %v8062
        %11141 = vmatprep.subr.bf16.mxu0 %v8079
        %11142 = vmatpush1.bf16.msra.mxu0 %v8078
        %11143 = vmatprep.subr.bf16.mxu0 %v8095
        %11144 = vmatpush1.bf16.msra.mxu0 %v8094
        %11145 = vmatprep.subr.bf16.mxu0 %v8111
        %11146 = vmatpush1.bf16.msra.mxu0 %v8110
        %11147 = vmatprep.subr.bf16.mxu0 %v8127
        %11148 = vmatpush1.bf16.msra.mxu0 %v8126
        %11149 = vmatprep.subr.bf16.mxu0 %v8143
        %11150 = vmatpush1.bf16.msra.mxu0 %v8142
        %11151 = vmatprep.mubr.bf16.mxu0 %v1991
        %11152 = vmatmul.mubr.bf16.gmra.mrb[0].mxu0 %v1990
        %v11153 = vpop.f32.mrb[0].mxu0
        %v11154 = vadd.f32 %v11113, %v11153
        %v11155 = vpop.f32.mrb[0].mxu0
        %v11156 = vadd.f32 %v11115, %v11155
        %v11157 = vpop.f32.mrb[0].mxu0
        %v11158 = vpop.f32.mrb[0].mxu0
        %11159 = vdwg.mxu0
        %11160 = vmatprep.subr.bf16.mxu0 %v6625
        %11161 = vmatpush1.bf16.msra.mxu0 %v6624
        %11162 = vmatprep.subr.bf16.mxu0 %v6641
        %11163 = vmatpush1.bf16.msra.mxu0 %v6640
        %11164 = vmatprep.subr.bf16.mxu0 %v6657
        %11165 = vmatpush1.bf16.msra.mxu0 %v6656
        %11166 = vmatprep.subr.bf16.mxu0 %v6673
        %11167 = vmatpush1.bf16.msra.mxu0 %v6672
        %11168 = vmatprep.subr.bf16.mxu0 %v6689
        %11169 = vmatpush1.bf16.msra.mxu0 %v6688
        %11170 = vmatprep.subr.bf16.mxu0 %v6705
        %11171 = vmatpush1.bf16.msra.mxu0 %v6704
        %11172 = vmatprep.subr.bf16.mxu0 %v6721
        %11173 = vmatpush1.bf16.msra.mxu0 %v6720
        %11174 = vmatprep.subr.bf16.mxu0 %v6737
        %11175 = vmatpush1.bf16.msra.mxu0 %v6736
        %11176 = vmatprep.subr.bf16.mxu0 %v6753
        %11177 = vmatpush1.bf16.msra.mxu0 %v6752
        %11178 = vmatprep.subr.bf16.mxu0 %v6769
        %11179 = vmatpush1.bf16.msra.mxu0 %v6768
        %11180 = vmatprep.subr.bf16.mxu0 %v6785
        %11181 = vmatpush1.bf16.msra.mxu0 %v6784
        %11182 = vmatprep.subr.bf16.mxu0 %v6801
        %11183 = vmatpush1.bf16.msra.mxu0 %v6800
        %11184 = vmatprep.subr.bf16.mxu0 %v6817
        %11185 = vmatpush1.bf16.msra.mxu0 %v6816
        %11186 = vmatprep.subr.bf16.mxu0 %v6833
        %11187 = vmatpush1.bf16.msra.mxu0 %v6832
        %11188 = vmatprep.subr.bf16.mxu0 %v6849
        %11189 = vmatpush1.bf16.msra.mxu0 %v6848
        %11190 = vmatprep.subr.bf16.mxu0 %v6865
        %11191 = vmatpush1.bf16.msra.mxu0 %v6864
        %11192 = vmatprep.mubr.bf16.mxu0 %v1981
        %11193 = vmatmul.mubr.bf16.gmra.mrb[0].mxu0 %v1980
        %v11194 = vpop.f32.mrb[0].mxu0
        %v11195 = vadd.f32 0.0, %v11194
        %v11196 = vpop.f32.mrb[0].mxu0
        %v11197 = vadd.f32 0.0, %v11196
        %v11198 = vpop.f32.mrb[0].mxu0
        %v11199 = vpop.f32.mrb[0].mxu0
        %11200 = vdwg.mxu0
        %11201 = vmatprep.subr.bf16.mxu0 %v6881
        %11202 = vmatpush1.bf16.msra.mxu0 %v6880
        %11203 = vmatprep.subr.bf16.mxu0 %v6897
        %11204 = vmatpush1.bf16.msra.mxu0 %v6896
        %11205 = vmatprep.subr.bf16.mxu0 %v6913
        %11206 = vmatpush1.bf16.msra.mxu0 %v6912
        %11207 = vmatprep.subr.bf16.mxu0 %v6929
        %11208 = vmatpush1.bf16.msra.mxu0 %v6928
        %11209 = vmatprep.subr.bf16.mxu0 %v6945
        %11210 = vmatpush1.bf16.msra.mxu0 %v6944
        %11211 = vmatprep.subr.bf16.mxu0 %v6961
        %11212 = vmatpush1.bf16.msra.mxu0 %v6960
        %11213 = vmatprep.subr.bf16.mxu0 %v6977
        %11214 = vmatpush1.bf16.msra.mxu0 %v6976
        %11215 = vmatprep.subr.bf16.mxu0 %v6993
        %11216 = vmatpush1.bf16.msra.mxu0 %v6992
        %11217 = vmatprep.subr.bf16.mxu0 %v7009
        %11218 = vmatpush1.bf16.msra.mxu0 %v7008
        %11219 = vmatprep.subr.bf16.mxu0 %v7025
        %11220 = vmatpush1.bf16.msra.mxu0 %v7024
        %11221 = vmatprep.subr.bf16.mxu0 %v7041
        %11222 = vmatpush1.bf16.msra.mxu0 %v7040
        %11223 = vmatprep.subr.bf16.mxu0 %v7057
        %11224 = vmatpush1.bf16.msra.mxu0 %v7056
        %11225 = vmatprep.subr.bf16.mxu0 %v7073
        %11226 = vmatpush1.bf16.msra.mxu0 %v7072
        %11227 = vmatprep.subr.bf16.mxu0 %v7089
        %11228 = vmatpush1.bf16.msra.mxu0 %v7088
        %11229 = vmatprep.subr.bf16.mxu0 %v7105
        %11230 = vmatpush1.bf16.msra.mxu0 %v7104
        %11231 = vmatprep.subr.bf16.mxu0 %v7121
        %11232 = vmatpush1.bf16.msra.mxu0 %v7120
        %11233 = vmatprep.mubr.bf16.mxu0 %v1983
        %11234 = vmatmul.mubr.bf16.gmra.mrb[0].mxu0 %v1982
        %v11235 = vpop.f32.mrb[0].mxu0
        %v11236 = vadd.f32 %v11195, %v11235
        %v11237 = vpop.f32.mrb[0].mxu0
        %v11238 = vadd.f32 %v11197, %v11237
        %v11239 = vpop.f32.mrb[0].mxu0
        %v11240 = vpop.f32.mrb[0].mxu0
        %11241 = vdwg.mxu0
        %11242 = vmatprep.subr.bf16.mxu0 %v7137
        %11243 = vmatpush1.bf16.msra.mxu0 %v7136
        %11244 = vmatprep.subr.bf16.mxu0 %v7153
        %11245 = vmatpush1.bf16.msra.mxu0 %v7152
        %11246 = vmatprep.subr.bf16.mxu0 %v7169
        %11247 = vmatpush1.bf16.msra.mxu0 %v7168
        %11248 = vmatprep.subr.bf16.mxu0 %v7185
        %11249 = vmatpush1.bf16.msra.mxu0 %v7184
        %11250 = vmatprep.subr.bf16.mxu0 %v7201
        %11251 = vmatpush1.bf16.msra.mxu0 %v7200
        %11252 = vmatprep.subr.bf16.mxu0 %v7217
        %11253 = vmatpush1.bf16.msra.mxu0 %v7216
        %11254 = vmatprep.subr.bf16.mxu0 %v7233
        %11255 = vmatpush1.bf16.msra.mxu0 %v7232
        %11256 = vmatprep.subr.bf16.mxu0 %v7249
        %11257 = vmatpush1.bf16.msra.mxu0 %v7248
        %11258 = vmatprep.subr.bf16.mxu0 %v7265
        %11259 = vmatpush1.bf16.msra.mxu0 %v7264
        %11260 = vmatprep.subr.bf16.mxu0 %v7281
        %11261 = vmatpush1.bf16.msra.mxu0 %v7280
        %11262 = vmatprep.subr.bf16.mxu0 %v7297
        %11263 = vmatpush1.bf16.msra.mxu0 %v7296
        %11264 = vmatprep.subr.bf16.mxu0 %v7313
        %11265 = vmatpush1.bf16.msra.mxu0 %v7312
        %11266 = vmatprep.subr.bf16.mxu0 %v7329
        %11267 = vmatpush1.bf16.msra.mxu0 %v7328
        %11268 = vmatprep.subr.bf16.mxu0 %v7345
        %11269 = vmatpush1.bf16.msra.mxu0 %v7344
        %11270 = vmatprep.subr.bf16.mxu0 %v7361
        %11271 = vmatpush1.bf16.msra.mxu0 %v7360
        %11272 = vmatprep.subr.bf16.mxu0 %v7377
        %11273 = vmatpush1.bf16.msra.mxu0 %v7376
        %11274 = vmatprep.mubr.bf16.mxu0 %v1985
        %11275 = vmatmul.mubr.bf16.gmra.mrb[0].mxu0 %v1984
        %v11276 = vpop.f32.mrb[0].mxu0
        %v11277 = vadd.f32 %v11236, %v11276
        %v11278 = vpop.f32.mrb[0].mxu0
        %v11279 = vadd.f32 %v11238, %v11278
        %v11280 = vpop.f32.mrb[0].mxu0
        %v11281 = vpop.f32.mrb[0].mxu0
        %11282 = vdwg.mxu0
        %11283 = vmatprep.subr.bf16.mxu0 %v7393
        %11284 = vmatpush1.bf16.msra.mxu0 %v7392
        %11285 = vmatprep.subr.bf16.mxu0 %v7409
        %11286 = vmatpush1.bf16.msra.mxu0 %v7408
        %11287 = vmatprep.subr.bf16.mxu0 %v7425
        %11288 = vmatpush1.bf16.msra.mxu0 %v7424
        %11289 = vmatprep.subr.bf16.mxu0 %v7441
        %11290 = vmatpush1.bf16.msra.mxu0 %v7440
        %11291 = vmatprep.subr.bf16.mxu0 %v7457
        %11292 = vmatpush1.bf16.msra.mxu0 %v7456
        %11293 = vmatprep.subr.bf16.mxu0 %v7473
        %11294 = vmatpush1.bf16.msra.mxu0 %v7472
        %11295 = vmatprep.subr.bf16.mxu0 %v7489
        %11296 = vmatpush1.bf16.msra.mxu0 %v7488
        %11297 = vmatprep.subr.bf16.mxu0 %v7505
        %11298 = vmatpush1.bf16.msra.mxu0 %v7504
        %11299 = vmatprep.subr.bf16.mxu0 %v7521
        %11300 = vmatpush1.bf16.msra.mxu0 %v7520
        %11301 = vmatprep.subr.bf16.mxu0 %v7537
        %11302 = vmatpush1.bf16.msra.mxu0 %v7536
        %11303 = vmatprep.subr.bf16.mxu0 %v7553
        %11304 = vmatpush1.bf16.msra.mxu0 %v7552
        %11305 = vmatprep.subr.bf16.mxu0 %v7569
        %11306 = vmatpush1.bf16.msra.mxu0 %v7568
        %11307 = vmatprep.subr.bf16.mxu0 %v7585
        %11308 = vmatpush1.bf16.msra.mxu0 %v7584
        %11309 = vmatprep.subr.bf16.mxu0 %v7601
        %11310 = vmatpush1.bf16.msra.mxu0 %v7600
        %11311 = vmatprep.subr.bf16.mxu0 %v7617
        %11312 = vmatpush1.bf16.msra.mxu0 %v7616
        %11313 = vmatprep.subr.bf16.mxu0 %v7633
        %11314 = vmatpush1.bf16.msra.mxu0 %v7632
        %11315 = vmatprep.mubr.bf16.mxu0 %v1987
        %11316 = vmatmul.mubr.bf16.gmra.mrb[0].mxu0 %v1986
        %v11317 = vpop.f32.mrb[0].mxu0
        %v11318 = vadd.f32 %v11277, %v11317
        %v11319 = vpop.f32.mrb[0].mxu0
        %v11320 = vadd.f32 %v11279, %v11319
        %v11321 = vpop.f32.mrb[0].mxu0
        %v11322 = vpop.f32.mrb[0].mxu0
        %11323 = vdwg.mxu0
        %11324 = vmatprep.subr.bf16.mxu0 %v7649
        %11325 = vmatpush1.bf16.msra.mxu0 %v7648
        %11326 = vmatprep.subr.bf16.mxu0 %v7665
        %11327 = vmatpush1.bf16.msra.mxu0 %v7664
        %11328 = vmatprep.subr.bf16.mxu0 %v7681
        %11329 = vmatpush1.bf16.msra.mxu0 %v7680
        %11330 = vmatprep.subr.bf16.mxu0 %v7697
        %11331 = vmatpush1.bf16.msra.mxu0 %v7696
        %11332 = vmatprep.subr.bf16.mxu0 %v7713
        %11333 = vmatpush1.bf16.msra.mxu0 %v7712
        %11334 = vmatprep.subr.bf16.mxu0 %v7729
        %11335 = vmatpush1.bf16.msra.mxu0 %v7728
        %11336 = vmatprep.subr.bf16.mxu0 %v7745
        %11337 = vmatpush1.bf16.msra.mxu0 %v7744
        %11338 = vmatprep.subr.bf16.mxu0 %v7761
        %11339 = vmatpush1.bf16.msra.mxu0 %v7760
        %11340 = vmatprep.subr.bf16.mxu0 %v7777
        %11341 = vmatpush1.bf16.msra.mxu0 %v7776
        %11342 = vmatprep.subr.bf16.mxu0 %v7793
        %11343 = vmatpush1.bf16.msra.mxu0 %v7792
        %11344 = vmatprep.subr.bf16.mxu0 %v7809
        %11345 = vmatpush1.bf16.msra.mxu0 %v7808
        %11346 = vmatprep.subr.bf16.mxu0 %v7825
        %11347 = vmatpush1.bf16.msra.mxu0 %v7824
        %11348 = vmatprep.subr.bf16.mxu0 %v7841
        %11349 = vmatpush1.bf16.msra.mxu0 %v7840
        %11350 = vmatprep.subr.bf16.mxu0 %v7857
        %11351 = vmatpush1.bf16.msra.mxu0 %v7856
        %11352 = vmatprep.subr.bf16.mxu0 %v7873
        %11353 = vmatpush1.bf16.msra.mxu0 %v7872
        %11354 = vmatprep.subr.bf16.mxu0 %v7889
        %11355 = vmatpush1.bf16.msra.mxu0 %v7888
        %11356 = vmatprep.mubr.bf16.mxu0 %v1989
        %11357 = vmatmul.mubr.bf16.gmra.mrb[0].mxu0 %v1988
        %v11358 = vpop.f32.mrb[0].mxu0
        %v11359 = vadd.f32 %v11318, %v11358
        %v11360 = vpop.f32.mrb[0].mxu0
        %v11361 = vadd.f32 %v11320, %v11360
        %v11362 = vpop.f32.mrb[0].mxu0
        %v11363 = vpop.f32.mrb[0].mxu0
        %11364 = vdwg.mxu0
        %11365 = vmatprep.subr.bf16.mxu0 %v7905
        %11366 = vmatpush1.bf16.msra.mxu0 %v7904
        %11367 = vmatprep.subr.bf16.mxu0 %v7921
        %11368 = vmatpush1.bf16.msra.mxu0 %v7920
        %11369 = vmatprep.subr.bf16.mxu0 %v7937
        %11370 = vmatpush1.bf16.msra.mxu0 %v7936
        %11371 = vmatprep.subr.bf16.mxu0 %v7953
        %11372 = vmatpush1.bf16.msra.mxu0 %v7952
        %11373 = vmatprep.subr.bf16.mxu0 %v7969
        %11374 = vmatpush1.bf16.msra.mxu0 %v7968
        %11375 = vmatprep.subr.bf16.mxu0 %v7985
        %11376 = vmatpush1.bf16.msra.mxu0 %v7984
        %11377 = vmatprep.subr.bf16.mxu0 %v8001
        %11378 = vmatpush1.bf16.msra.mxu0 %v8000
        %11379 = vmatprep.subr.bf16.mxu0 %v8017
        %11380 = vmatpush1.bf16.msra.mxu0 %v8016
        %11381 = vmatprep.subr.bf16.mxu0 %v8033
        %11382 = vmatpush1.bf16.msra.mxu0 %v8032
        %11383 = vmatprep.subr.bf16.mxu0 %v8049
        %11384 = vmatpush1.bf16.msra.mxu0 %v8048
        %11385 = vmatprep.subr.bf16.mxu0 %v8065
        %11386 = vmatpush1.bf16.msra.mxu0 %v8064
        %11387 = vmatprep.subr.bf16.mxu0 %v8081
        %11388 = vmatpush1.bf16.msra.mxu0 %v8080
        %11389 = vmatprep.subr.bf16.mxu0 %v8097
        %11390 = vmatpush1.bf16.msra.mxu0 %v8096
        %11391 = vmatprep.subr.bf16.mxu0 %v8113
        %11392 = vmatpush1.bf16.msra.mxu0 %v8112
        %11393 = vmatprep.subr.bf16.mxu0 %v8129
        %11394 = vmatpush1.bf16.msra.mxu0 %v8128
        %11395 = vmatprep.subr.bf16.mxu0 %v8145
        %11396 = vmatpush1.bf16.msra.mxu0 %v8144
        %11397 = vmatprep.mubr.bf16.mxu0 %v1991
        %11398 = vmatmul.mubr.bf16.gmra.mrb[0].mxu0 %v1990
        %v11399 = vpop.f32.mrb[0].mxu0
        %v11400 = vadd.f32 %v11359, %v11399
        %v11401 = vpop.f32.mrb[0].mxu0
        %v11402 = vadd.f32 %v11361, %v11401
        %v11403 = vpop.f32.mrb[0].mxu0
        %v11404 = vpop.f32.mrb[0].mxu0
        %11405 = vdwg.mxu0
        %11406 = vmatprep.subr.bf16.mxu0 %v6627
        %11407 = vmatpush1.bf16.msra.mxu0 %v6626
        %11408 = vmatprep.subr.bf16.mxu0 %v6643
        %11409 = vmatpush1.bf16.msra.mxu0 %v6642
        %11410 = vmatprep.subr.bf16.mxu0 %v6659
        %11411 = vmatpush1.bf16.msra.mxu0 %v6658
        %11412 = vmatprep.subr.bf16.mxu0 %v6675
        %11413 = vmatpush1.bf16.msra.mxu0 %v6674
        %11414 = vmatprep.subr.bf16.mxu0 %v6691
        %11415 = vmatpush1.bf16.msra.mxu0 %v6690
        %11416 = vmatprep.subr.bf16.mxu0 %v6707
        %11417 = vmatpush1.bf16.msra.mxu0 %v6706
        %11418 = vmatprep.subr.bf16.mxu0 %v6723
        %11419 = vmatpush1.bf16.msra.mxu0 %v6722
        %11420 = vmatprep.subr.bf16.mxu0 %v6739
        %11421 = vmatpush1.bf16.msra.mxu0 %v6738
        %11422 = vmatprep.subr.bf16.mxu0 %v6755
        %11423 = vmatpush1.bf16.msra.mxu0 %v6754
        %11424 = vmatprep.subr.bf16.mxu0 %v6771
        %11425 = vmatpush1.bf16.msra.mxu0 %v6770
        %11426 = vmatprep.subr.bf16.mxu0 %v6787
        %11427 = vmatpush1.bf16.msra.mxu0 %v6786
        %11428 = vmatprep.subr.bf16.mxu0 %v6803
        %11429 = vmatpush1.bf16.msra.mxu0 %v6802
        %11430 = vmatprep.subr.bf16.mxu0 %v6819
        %11431 = vmatpush1.bf16.msra.mxu0 %v6818
        %11432 = vmatprep.subr.bf16.mxu0 %v6835
        %11433 = vmatpush1.bf16.msra.mxu0 %v6834
        %11434 = vmatprep.subr.bf16.mxu0 %v6851
        %11435 = vmatpush1.bf16.msra.mxu0 %v6850
        %11436 = vmatprep.subr.bf16.mxu0 %v6867
        %11437 = vmatpush1.bf16.msra.mxu0 %v6866
        %11438 = vmatprep.mubr.bf16.mxu0 %v1981
        %11439 = vmatmul.mubr.bf16.gmra.mrb[0].mxu0 %v1980
        %v11440 = vpop.f32.mrb[0].mxu0
        %v11441 = vadd.f32 0.0, %v11440
        %v11442 = vpop.f32.mrb[0].mxu0
        %v11443 = vadd.f32 0.0, %v11442
        %v11444 = vpop.f32.mrb[0].mxu0
        %v11445 = vpop.f32.mrb[0].mxu0
        %11446 = vdwg.mxu0
        %11447 = vmatprep.subr.bf16.mxu0 %v6883
        %11448 = vmatpush1.bf16.msra.mxu0 %v6882
        %11449 = vmatprep.subr.bf16.mxu0 %v6899
        %11450 = vmatpush1.bf16.msra.mxu0 %v6898
        %11451 = vmatprep.subr.bf16.mxu0 %v6915
        %11452 = vmatpush1.bf16.msra.mxu0 %v6914
        %11453 = vmatprep.subr.bf16.mxu0 %v6931
        %11454 = vmatpush1.bf16.msra.mxu0 %v6930
        %11455 = vmatprep.subr.bf16.mxu0 %v6947
        %11456 = vmatpush1.bf16.msra.mxu0 %v6946
        %11457 = vmatprep.subr.bf16.mxu0 %v6963
        %11458 = vmatpush1.bf16.msra.mxu0 %v6962
        %11459 = vmatprep.subr.bf16.mxu0 %v6979
        %11460 = vmatpush1.bf16.msra.mxu0 %v6978
        %11461 = vmatprep.subr.bf16.mxu0 %v6995
        %11462 = vmatpush1.bf16.msra.mxu0 %v6994
        %11463 = vmatprep.subr.bf16.mxu0 %v7011
        %11464 = vmatpush1.bf16.msra.mxu0 %v7010
        %11465 = vmatprep.subr.bf16.mxu0 %v7027
        %11466 = vmatpush1.bf16.msra.mxu0 %v7026
        %11467 = vmatprep.subr.bf16.mxu0 %v7043
        %11468 = vmatpush1.bf16.msra.mxu0 %v7042
        %11469 = vmatprep.subr.bf16.mxu0 %v7059
        %11470 = vmatpush1.bf16.msra.mxu0 %v7058
        %11471 = vmatprep.subr.bf16.mxu0 %v7075
        %11472 = vmatpush1.bf16.msra.mxu0 %v7074
        %11473 = vmatprep.subr.bf16.mxu0 %v7091
        %11474 = vmatpush1.bf16.msra.mxu0 %v7090
        %11475 = vmatprep.subr.bf16.mxu0 %v7107
        %11476 = vmatpush1.bf16.msra.mxu0 %v7106
        %11477 = vmatprep.subr.bf16.mxu0 %v7123
        %11478 = vmatpush1.bf16.msra.mxu0 %v7122
        %11479 = vmatprep.mubr.bf16.mxu0 %v1983
        %11480 = vmatmul.mubr.bf16.gmra.mrb[0].mxu0 %v1982
        %v11481 = vpop.f32.mrb[0].mxu0
        %v11482 = vadd.f32 %v11441, %v11481
        %v11483 = vpop.f32.mrb[0].mxu0
        %v11484 = vadd.f32 %v11443, %v11483
        %v11485 = vpop.f32.mrb[0].mxu0
        %v11486 = vpop.f32.mrb[0].mxu0
        %11487 = vdwg.mxu0
        %11488 = vmatprep.subr.bf16.mxu0 %v7139
        %11489 = vmatpush1.bf16.msra.mxu0 %v7138
        %11490 = vmatprep.subr.bf16.mxu0 %v7155
        %11491 = vmatpush1.bf16.msra.mxu0 %v7154
        %11492 = vmatprep.subr.bf16.mxu0 %v7171
        %11493 = vmatpush1.bf16.msra.mxu0 %v7170
        %11494 = vmatprep.subr.bf16.mxu0 %v7187
        %11495 = vmatpush1.bf16.msra.mxu0 %v7186
        %11496 = vmatprep.subr.bf16.mxu0 %v7203
        %11497 = vmatpush1.bf16.msra.mxu0 %v7202
        %11498 = vmatprep.subr.bf16.mxu0 %v7219
        %11499 = vmatpush1.bf16.msra.mxu0 %v7218
        %11500 = vmatprep.subr.bf16.mxu0 %v7235
        %11501 = vmatpush1.bf16.msra.mxu0 %v7234
        %11502 = vmatprep.subr.bf16.mxu0 %v7251
        %11503 = vmatpush1.bf16.msra.mxu0 %v7250
        %11504 = vmatprep.subr.bf16.mxu0 %v7267
        %11505 = vmatpush1.bf16.msra.mxu0 %v7266
        %11506 = vmatprep.subr.bf16.mxu0 %v7283
        %11507 = vmatpush1.bf16.msra.mxu0 %v7282
        %11508 = vmatprep.subr.bf16.mxu0 %v7299
        %11509 = vmatpush1.bf16.msra.mxu0 %v7298
        %11510 = vmatprep.subr.bf16.mxu0 %v7315
        %11511 = vmatpush1.bf16.msra.mxu0 %v7314
        %11512 = vmatprep.subr.bf16.mxu0 %v7331
        %11513 = vmatpush1.bf16.msra.mxu0 %v7330
        %11514 = vmatprep.subr.bf16.mxu0 %v7347
        %11515 = vmatpush1.bf16.msra.mxu0 %v7346
        %11516 = vmatprep.subr.bf16.mxu0 %v7363
        %11517 = vmatpush1.bf16.msra.mxu0 %v7362
        %11518 = vmatprep.subr.bf16.mxu0 %v7379
        %11519 = vmatpush1.bf16.msra.mxu0 %v7378
        %11520 = vmatprep.mubr.bf16.mxu0 %v1985
        %11521 = vmatmul.mubr.bf16.gmra.mrb[0].mxu0 %v1984
        %v11522 = vpop.f32.mrb[0].mxu0
        %v11523 = vadd.f32 %v11482, %v11522
        %v11524 = vpop.f32.mrb[0].mxu0
        %v11525 = vadd.f32 %v11484, %v11524
        %v11526 = vpop.f32.mrb[0].mxu0
        %v11527 = vpop.f32.mrb[0].mxu0
        %11528 = vdwg.mxu0
        %11529 = vmatprep.subr.bf16.mxu0 %v7395
        %11530 = vmatpush1.bf16.msra.mxu0 %v7394
        %11531 = vmatprep.subr.bf16.mxu0 %v7411
        %11532 = vmatpush1.bf16.msra.mxu0 %v7410
        %11533 = vmatprep.subr.bf16.mxu0 %v7427
        %11534 = vmatpush1.bf16.msra.mxu0 %v7426
        %11535 = vmatprep.subr.bf16.mxu0 %v7443
        %11536 = vmatpush1.bf16.msra.mxu0 %v7442
        %11537 = vmatprep.subr.bf16.mxu0 %v7459
        %11538 = vmatpush1.bf16.msra.mxu0 %v7458
        %11539 = vmatprep.subr.bf16.mxu0 %v7475
        %11540 = vmatpush1.bf16.msra.mxu0 %v7474
        %11541 = vmatprep.subr.bf16.mxu0 %v7491
        %11542 = vmatpush1.bf16.msra.mxu0 %v7490
        %11543 = vmatprep.subr.bf16.mxu0 %v7507
        %11544 = vmatpush1.bf16.msra.mxu0 %v7506
        %11545 = vmatprep.subr.bf16.mxu0 %v7523
        %11546 = vmatpush1.bf16.msra.mxu0 %v7522
        %11547 = vmatprep.subr.bf16.mxu0 %v7539
        %11548 = vmatpush1.bf16.msra.mxu0 %v7538
        %11549 = vmatprep.subr.bf16.mxu0 %v7555
        %11550 = vmatpush1.bf16.msra.mxu0 %v7554
        %11551 = vmatprep.subr.bf16.mxu0 %v7571
        %11552 = vmatpush1.bf16.msra.mxu0 %v7570
        %11553 = vmatprep.subr.bf16.mxu0 %v7587
        %11554 = vmatpush1.bf16.msra.mxu0 %v7586
        %11555 = vmatprep.subr.bf16.mxu0 %v7603
        %11556 = vmatpush1.bf16.msra.mxu0 %v7602
        %11557 = vmatprep.subr.bf16.mxu0 %v7619
        %11558 = vmatpush1.bf16.msra.mxu0 %v7618
        %11559 = vmatprep.subr.bf16.mxu0 %v7635
        %11560 = vmatpush1.bf16.msra.mxu0 %v7634
        %11561 = vmatprep.mubr.bf16.mxu0 %v1987
        %11562 = vmatmul.mubr.bf16.gmra.mrb[0].mxu0 %v1986
        %v11563 = vpop.f32.mrb[0].mxu0
        %v11564 = vadd.f32 %v11523, %v11563
        %v11565 = vpop.f32.mrb[0].mxu0
        %v11566 = vadd.f32 %v11525, %v11565
        %v11567 = vpop.f32.mrb[0].mxu0
        %v11568 = vpop.f32.mrb[0].mxu0
        %11569 = vdwg.mxu0
        %11570 = vmatprep.subr.bf16.mxu0 %v7651
        %11571 = vmatpush1.bf16.msra.mxu0 %v7650
        %11572 = vmatprep.subr.bf16.mxu0 %v7667
        %11573 = vmatpush1.bf16.msra.mxu0 %v7666
        %11574 = vmatprep.subr.bf16.mxu0 %v7683
        %11575 = vmatpush1.bf16.msra.mxu0 %v7682
        %11576 = vmatprep.subr.bf16.mxu0 %v7699
        %11577 = vmatpush1.bf16.msra.mxu0 %v7698
        %11578 = vmatprep.subr.bf16.mxu0 %v7715
        %11579 = vmatpush1.bf16.msra.mxu0 %v7714
        %11580 = vmatprep.subr.bf16.mxu0 %v7731
        %11581 = vmatpush1.bf16.msra.mxu0 %v7730
        %11582 = vmatprep.subr.bf16.mxu0 %v7747
        %11583 = vmatpush1.bf16.msra.mxu0 %v7746
        %11584 = vmatprep.subr.bf16.mxu0 %v7763
        %11585 = vmatpush1.bf16.msra.mxu0 %v7762
        %11586 = vmatprep.subr.bf16.mxu0 %v7779
        %11587 = vmatpush1.bf16.msra.mxu0 %v7778
        %11588 = vmatprep.subr.bf16.mxu0 %v7795
        %11589 = vmatpush1.bf16.msra.mxu0 %v7794
        %11590 = vmatprep.subr.bf16.mxu0 %v7811
        %11591 = vmatpush1.bf16.msra.mxu0 %v7810
        %11592 = vmatprep.subr.bf16.mxu0 %v7827
        %11593 = vmatpush1.bf16.msra.mxu0 %v7826
        %11594 = vmatprep.subr.bf16.mxu0 %v7843
        %11595 = vmatpush1.bf16.msra.mxu0 %v7842
        %11596 = vmatprep.subr.bf16.mxu0 %v7859
        %11597 = vmatpush1.bf16.msra.mxu0 %v7858
        %11598 = vmatprep.subr.bf16.mxu0 %v7875
        %11599 = vmatpush1.bf16.msra.mxu0 %v7874
        %11600 = vmatprep.subr.bf16.mxu0 %v7891
        %11601 = vmatpush1.bf16.msra.mxu0 %v7890
        %11602 = vmatprep.mubr.bf16.mxu0 %v1989
        %11603 = vmatmul.mubr.bf16.gmra.mrb[0].mxu0 %v1988
        %v11604 = vpop.f32.mrb[0].mxu0
        %v11605 = vadd.f32 %v11564, %v11604
        %v11606 = vpop.f32.mrb[0].mxu0
        %v11607 = vadd.f32 %v11566, %v11606
        %v11608 = vpop.f32.mrb[0].mxu0
        %v11609 = vpop.f32.mrb[0].mxu0
        %11610 = vdwg.mxu0
        %11611 = vmatprep.subr.bf16.mxu0 %v7907
        %11612 = vmatpush1.bf16.msra.mxu0 %v7906
        %11613 = vmatprep.subr.bf16.mxu0 %v7923
        %11614 = vmatpush1.bf16.msra.mxu0 %v7922
        %11615 = vmatprep.subr.bf16.mxu0 %v7939
        %11616 = vmatpush1.bf16.msra.mxu0 %v7938
        %11617 = vmatprep.subr.bf16.mxu0 %v7955
        %11618 = vmatpush1.bf16.msra.mxu0 %v7954
        %11619 = vmatprep.subr.bf16.mxu0 %v7971
        %11620 = vmatpush1.bf16.msra.mxu0 %v7970
        %11621 = vmatprep.subr.bf16.mxu0 %v7987
        %11622 = vmatpush1.bf16.msra.mxu0 %v7986
        %11623 = vmatprep.subr.bf16.mxu0 %v8003
        %11624 = vmatpush1.bf16.msra.mxu0 %v8002
        %11625 = vmatprep.subr.bf16.mxu0 %v8019
        %11626 = vmatpush1.bf16.msra.mxu0 %v8018
        %11627 = vmatprep.subr.bf16.mxu0 %v8035
        %11628 = vmatpush1.bf16.msra.mxu0 %v8034
        %11629 = vmatprep.subr.bf16.mxu0 %v8051
        %11630 = vmatpush1.bf16.msra.mxu0 %v8050
        %11631 = vmatprep.subr.bf16.mxu0 %v8067
        %11632 = vmatpush1.bf16.msra.mxu0 %v8066
        %11633 = vmatprep.subr.bf16.mxu0 %v8083
        %11634 = vmatpush1.bf16.msra.mxu0 %v8082
        %11635 = vmatprep.subr.bf16.mxu0 %v8099
        %11636 = vmatpush1.bf16.msra.mxu0 %v8098
        %11637 = vmatprep.subr.bf16.mxu0 %v8115
        %11638 = vmatpush1.bf16.msra.mxu0 %v8114
        %11639 = vmatprep.subr.bf16.mxu0 %v8131
        %11640 = vmatpush1.bf16.msra.mxu0 %v8130
        %11641 = vmatprep.subr.bf16.mxu0 %v8147
        %11642 = vmatpush1.bf16.msra.mxu0 %v8146
        %11643 = vmatprep.mubr.bf16.mxu0 %v1991
        %11644 = vmatmul.mubr.bf16.gmra.mrb[0].mxu0 %v1990
        %v11645 = vpop.f32.mrb[0].mxu0
        %v11646 = vadd.f32 %v11605, %v11645
        %v11647 = vpop.f32.mrb[0].mxu0
        %v11648 = vadd.f32 %v11607, %v11647
        %v11649 = vpop.f32.mrb[0].mxu0
        %v11650 = vpop.f32.mrb[0].mxu0
        %11651 = vdwg.mxu0
        %v11652 = vadd.f32 %v404, %v9924
        %v11653 = vadd.f32 %v405, %v9926
        %v11654 = vadd.f32 %v406, %v10170
        %v11655 = vadd.f32 %v407, %v10172
        %v11656 = vadd.f32 %v408, %v10416
        %v11657 = vadd.f32 %v409, %v10418
        %v11658 = vadd.f32 %v410, %v10662
        %v11659 = vadd.f32 %v411, %v10664
        %v11660 = vadd.f32 %v412, %v10908
        %v11661 = vadd.f32 %v413, %v10910
        %v11662 = vadd.f32 %v414, %v11154
        %v11663 = vadd.f32 %v415, %v11156
        %v11664 = vadd.f32 %v416, %v11400
        %v11665 = vadd.f32 %v417, %v11402
        %v11666 = vadd.f32 %v418, %v11646
        %v11667 = vadd.f32 %v419, %v11648
        %11668 = vst [vmem:[#allocation2] sm:$0xff] %v11652
        %11669 = vst [vmem:[#allocation2 + $0x8] sm:$0xff] %v11653
        %11670 = vst [vmem:[#allocation2 + $0x10] sm:$0xff] %v11654
        %11671 = vst [vmem:[#allocation2 + $0x18] sm:$0xff] %v11655
        %11672 = vst [vmem:[#allocation2 + $0x20] sm:$0xff] %v11656
        %11673 = vst [vmem:[#allocation2 + $0x28] sm:$0xff] %v11657
        %11674 = vst [vmem:[#allocation2 + $0x30] sm:$0xff] %v11658
        %11675 = vst [vmem:[#allocation2 + $0x38] sm:$0xff] %v11659
        %11676 = vst [vmem:[#allocation2 + $0x40] sm:$0xff] %v11660
        %11677 = vst [vmem:[#allocation2 + $0x48] sm:$0xff] %v11661
        %11678 = vst [vmem:[#allocation2 + $0x50] sm:$0xff] %v11662
        %11679 = vst [vmem:[#allocation2 + $0x58] sm:$0xff] %v11663
        %11680 = vst [vmem:[#allocation2 + $0x60] sm:$0xff] %v11664
        %11681 = vst [vmem:[#allocation2 + $0x68] sm:$0xff] %v11665
        %11682 = vst [vmem:[#allocation2 + $0x70] sm:$0xff] %v11666
        %11683 = vst [vmem:[#allocation2 + $0x78] sm:$0xff] %v11667
        %p11684 = scmp.eq.s32.totalorder %s28, 1
        // Predicated region
        $region69: #{classifier_forward.1} parent=43 // pred_check
          %p11685 = pneg %p11684
        $region70: #{classifier_forward.1} parent=43 // pred_check_branch
          %11687 = sbr.rel (%p11685) target = $region72
        $region71: #{classifier_forward.1} parent=43 // pred_region
          %v11688 = vld [vmem:[#allocation2] sm:$0xff]
          %v11689 = vld [vmem:[#allocation2 + $0x8] sm:$0xff]
          %v11690 = vld [vmem:[#allocation2 + $0x10] sm:$0xff]
          %v11691 = vld [vmem:[#allocation2 + $0x18] sm:$0xff]
          %v11692 = vld [vmem:[#allocation2 + $0x20] sm:$0xff]
          %v11693 = vld [vmem:[#allocation2 + $0x28] sm:$0xff]
          %v11694 = vld [vmem:[#allocation2 + $0x30] sm:$0xff]
          %v11695 = vld [vmem:[#allocation2 + $0x38] sm:$0xff]
          %v11696 = vld [vmem:[#allocation2 + $0x40] sm:$0xff]
          %v11697 = vld [vmem:[#allocation2 + $0x48] sm:$0xff]
          %v11698 = vld [vmem:[#allocation2 + $0x50] sm:$0xff]
          %v11699 = vld [vmem:[#allocation2 + $0x58] sm:$0xff]
          %v11700 = vld [vmem:[#allocation2 + $0x60] sm:$0xff]
          %v11701 = vld [vmem:[#allocation2 + $0x68] sm:$0xff]
          %v11702 = vld [vmem:[#allocation2 + $0x70] sm:$0xff]
          %v11703 = vld [vmem:[#allocation2 + $0x78] sm:$0xff]
          %v11704 = vld [vmem:[#allocation6] sm:$0xff]
          %v11705 = vld [vmem:[#allocation6 + $0x8] sm:$0xff]
          %v11708 = vlaneseq
          %v11709 = vshrl.u32 %v11708, 7
          %v11710 = vsub.s32 0, %v11709
          %v11711 = vrot.slane %v11704, %v11710
          %v11712 = vlaneseq
          %v11713 = vshrl.u32 %v11712, 7
          %v11714 = vsub.s32 1, %v11713
          %v11715 = vrot.slane %v11704, %v11714
          %v11716 = vlaneseq
          %v11717 = vshrl.u32 %v11716, 7
          %v11718 = vsub.s32 2, %v11717
          %v11719 = vrot.slane %v11704, %v11718
          %v11720 = vlaneseq
          %v11721 = vshrl.u32 %v11720, 7
          %v11722 = vsub.s32 3, %v11721
          %v11723 = vrot.slane %v11704, %v11722
          %v11724 = vlaneseq
          %v11725 = vshrl.u32 %v11724, 7
          %v11726 = vsub.s32 4, %v11725
          %v11727 = vrot.slane %v11704, %v11726
          %v11728 = vlaneseq
          %v11729 = vshrl.u32 %v11728, 7
          %v11730 = vsub.s32 5, %v11729
          %v11731 = vrot.slane %v11704, %v11730
          %v11732 = vlaneseq
          %v11733 = vshrl.u32 %v11732, 7
          %v11734 = vsub.s32 6, %v11733
          %v11735 = vrot.slane %v11704, %v11734
          %v11736 = vlaneseq
          %v11737 = vshrl.u32 %v11736, 7
          %v11738 = vsub.s32 7, %v11737
          %v11739 = vrot.slane %v11704, %v11738
          %v11740 = vlaneseq
          %v11741 = vshrl.u32 %v11740, 7
          %v11742 = vsub.s32 0, %v11741
          %v11743 = vrot.slane %v11705, %v11742
          %v11744 = vlaneseq
          %v11745 = vshrl.u32 %v11744, 7
          %v11746 = vsub.s32 1, %v11745
          %v11747 = vrot.slane %v11705, %v11746
          %v11748 = vlaneseq
          %v11749 = vshrl.u32 %v11748, 7
          %v11750 = vsub.s32 2, %v11749
          %v11751 = vrot.slane %v11705, %v11750
          %v11752 = vlaneseq
          %v11753 = vshrl.u32 %v11752, 7
          %v11754 = vsub.s32 3, %v11753
          %v11755 = vrot.slane %v11705, %v11754
          %v11756 = vlaneseq
          %v11757 = vshrl.u32 %v11756, 7
          %v11758 = vsub.s32 4, %v11757
          %v11759 = vrot.slane %v11705, %v11758
          %v11760 = vlaneseq
          %v11761 = vshrl.u32 %v11760, 7
          %v11762 = vsub.s32 5, %v11761
          %v11763 = vrot.slane %v11705, %v11762
          %v11764 = vlaneseq
          %v11765 = vshrl.u32 %v11764, 7
          %v11766 = vsub.s32 6, %v11765
          %v11767 = vrot.slane %v11705, %v11766
          %v11768 = vlaneseq
          %v11769 = vshrl.u32 %v11768, 7
          %v11770 = vsub.s32 7, %v11769
          %v11771 = vrot.slane %v11705, %v11770
          %v11788 = vmul.f32 %v11688, %v11711
          %v11789 = vmul.f32 %v11689, %v11715
          %v11790 = vmul.f32 %v11690, %v11719
          %v11791 = vmul.f32 %v11691, %v11723
          %v11792 = vmul.f32 %v11692, %v11727
          %v11793 = vmul.f32 %v11693, %v11731
          %v11794 = vmul.f32 %v11694, %v11735
          %v11795 = vmul.f32 %v11695, %v11739
          %v11796 = vmul.f32 %v11696, %v11743
          %v11797 = vmul.f32 %v11697, %v11747
          %v11798 = vmul.f32 %v11698, %v11751
          %v11799 = vmul.f32 %v11699, %v11755
          %v11800 = vmul.f32 %v11700, %v11759
          %v11801 = vmul.f32 %v11701, %v11763
          %v11802 = vmul.f32 %v11702, %v11767
          %v11803 = vmul.f32 %v11703, %v11771
          %v11804 = vld [vmem:[#allocation8] sm:$0xff]
          %v11805 = vld [vmem:[#allocation8 + $0x8] sm:$0xff]
          %v11808 = vlaneseq
          %v11809 = vshrl.u32 %v11808, 7
          %v11810 = vsub.s32 0, %v11809
          %v11811 = vrot.slane %v11804, %v11810
          %v11812 = vlaneseq
          %v11813 = vshrl.u32 %v11812, 7
          %v11814 = vsub.s32 1, %v11813
          %v11815 = vrot.slane %v11804, %v11814
          %v11816 = vlaneseq
          %v11817 = vshrl.u32 %v11816, 7
          %v11818 = vsub.s32 2, %v11817
          %v11819 = vrot.slane %v11804, %v11818
          %v11820 = vlaneseq
          %v11821 = vshrl.u32 %v11820, 7
          %v11822 = vsub.s32 3, %v11821
          %v11823 = vrot.slane %v11804, %v11822
          %v11824 = vlaneseq
          %v11825 = vshrl.u32 %v11824, 7
          %v11826 = vsub.s32 4, %v11825
          %v11827 = vrot.slane %v11804, %v11826
          %v11828 = vlaneseq
          %v11829 = vshrl.u32 %v11828, 7
          %v11830 = vsub.s32 5, %v11829
          %v11831 = vrot.slane %v11804, %v11830
          %v11832 = vlaneseq
          %v11833 = vshrl.u32 %v11832, 7
          %v11834 = vsub.s32 6, %v11833
          %v11835 = vrot.slane %v11804, %v11834
          %v11836 = vlaneseq
          %v11837 = vshrl.u32 %v11836, 7
          %v11838 = vsub.s32 7, %v11837
          %v11839 = vrot.slane %v11804, %v11838
          %v11840 = vlaneseq
          %v11841 = vshrl.u32 %v11840, 7
          %v11842 = vsub.s32 0, %v11841
          %v11843 = vrot.slane %v11805, %v11842
          %v11844 = vlaneseq
          %v11845 = vshrl.u32 %v11844, 7
          %v11846 = vsub.s32 1, %v11845
          %v11847 = vrot.slane %v11805, %v11846
          %v11848 = vlaneseq
          %v11849 = vshrl.u32 %v11848, 7
          %v11850 = vsub.s32 2, %v11849
          %v11851 = vrot.slane %v11805, %v11850
          %v11852 = vlaneseq
          %v11853 = vshrl.u32 %v11852, 7
          %v11854 = vsub.s32 3, %v11853
          %v11855 = vrot.slane %v11805, %v11854
          %v11856 = vlaneseq
          %v11857 = vshrl.u32 %v11856, 7
          %v11858 = vsub.s32 4, %v11857
          %v11859 = vrot.slane %v11805, %v11858
          %v11860 = vlaneseq
          %v11861 = vshrl.u32 %v11860, 7
          %v11862 = vsub.s32 5, %v11861
          %v11863 = vrot.slane %v11805, %v11862
          %v11864 = vlaneseq
          %v11865 = vshrl.u32 %v11864, 7
          %v11866 = vsub.s32 6, %v11865
          %v11867 = vrot.slane %v11805, %v11866
          %v11868 = vlaneseq
          %v11869 = vshrl.u32 %v11868, 7
          %v11870 = vsub.s32 7, %v11869
          %v11871 = vrot.slane %v11805, %v11870
          %v11888 = vadd.f32 %v11788, %v11811
          %v11889 = vadd.f32 %v11789, %v11815
          %v11890 = vadd.f32 %v11790, %v11819
          %v11891 = vadd.f32 %v11791, %v11823
          %v11892 = vadd.f32 %v11792, %v11827
          %v11893 = vadd.f32 %v11793, %v11831
          %v11894 = vadd.f32 %v11794, %v11835
          %v11895 = vadd.f32 %v11795, %v11839
          %v11896 = vadd.f32 %v11796, %v11843
          %v11897 = vadd.f32 %v11797, %v11847
          %v11898 = vadd.f32 %v11798, %v11851
          %v11899 = vadd.f32 %v11799, %v11855
          %v11900 = vadd.f32 %v11800, %v11859
          %v11901 = vadd.f32 %v11801, %v11863
          %v11902 = vadd.f32 %v11802, %v11867
          %v11903 = vadd.f32 %v11803, %v11871
          %v11904 = vmax.f32 %v11888, 0.0
          %v11905 = vmax.f32 %v11889, 0.0
          %v11906 = vmax.f32 %v11890, 0.0
          %v11907 = vmax.f32 %v11891, 0.0
          %v11908 = vmax.f32 %v11892, 0.0
          %v11909 = vmax.f32 %v11893, 0.0
          %v11910 = vmax.f32 %v11894, 0.0
          %v11911 = vmax.f32 %v11895, 0.0
          %v11912 = vmax.f32 %v11896, 0.0
          %v11913 = vmax.f32 %v11897, 0.0
          %v11914 = vmax.f32 %v11898, 0.0
          %v11915 = vmax.f32 %v11899, 0.0
          %v11916 = vmax.f32 %v11900, 0.0
          %v11917 = vmax.f32 %v11901, 0.0
          %v11918 = vmax.f32 %v11902, 0.0
          %v11919 = vmax.f32 %v11903, 0.0
          %v11920 = vpack.c.bf16 %v11904, %v11904
          %v11921 = vpack.c.bf16 %v11905, %v11905
          %v11922 = vpack.c.bf16 %v11906, %v11906
          %v11923 = vpack.c.bf16 %v11907, %v11907
          %v11924 = vpack.c.bf16 %v11908, %v11908
          %v11925 = vpack.c.bf16 %v11909, %v11909
          %v11926 = vpack.c.bf16 %v11910, %v11910
          %v11927 = vpack.c.bf16 %v11911, %v11911
          %v11928 = vpack.c.bf16 %v11912, %v11912
          %v11929 = vpack.c.bf16 %v11913, %v11913
          %v11930 = vpack.c.bf16 %v11914, %v11914
          %v11931 = vpack.c.bf16 %v11915, %v11915
          %v11932 = vpack.c.bf16 %v11916, %v11916
          %v11933 = vpack.c.bf16 %v11917, %v11917
          %v11934 = vpack.c.bf16 %v11918, %v11918
          %v11935 = vpack.c.bf16 %v11919, %v11919
          %v11936 = vld [vmem:[#allocation9] sm:$0xf]
          %v11937 = vld [vmem:[#allocation9 + $0x4] sm:$0xf]
          %v11938 = vld [vmem:[#allocation9 + $0x8] sm:$0xf]
          %v11939 = vld [vmem:[#allocation9 + $0xc] sm:$0xf]
          %v11940 = vld [vmem:[#allocation9 + $0x10] sm:$0xf]
          %v11941 = vld [vmem:[#allocation9 + $0x14] sm:$0xf]
          %v11942 = vld [vmem:[#allocation9 + $0x18] sm:$0xf]
          %v11943 = vld [vmem:[#allocation9 + $0x1c] sm:$0xf]
          %v11944 = vld [vmem:[#allocation9 + $0x20] sm:$0xf]
          %v11945 = vld [vmem:[#allocation9 + $0x24] sm:$0xf]
          %v11946 = vld [vmem:[#allocation9 + $0x28] sm:$0xf]
          %v11947 = vld [vmem:[#allocation9 + $0x2c] sm:$0xf]
          %v11948 = vld [vmem:[#allocation9 + $0x30] sm:$0xf]
          %v11949 = vld [vmem:[#allocation9 + $0x34] sm:$0xf]
          %v11950 = vld [vmem:[#allocation9 + $0x38] sm:$0xf]
          %v11951 = vld [vmem:[#allocation9 + $0x3c] sm:$0xf]
          %v11952 = vld [vmem:[#allocation9 + $0x40] sm:$0xf]
          %v11953 = vld [vmem:[#allocation9 + $0x44] sm:$0xf]
          %v11954 = vld [vmem:[#allocation9 + $0x48] sm:$0xf]
          %v11955 = vld [vmem:[#allocation9 + $0x4c] sm:$0xf]
          %v11956 = vld [vmem:[#allocation9 + $0x50] sm:$0xf]
          %v11957 = vld [vmem:[#allocation9 + $0x54] sm:$0xf]
          %v11958 = vld [vmem:[#allocation9 + $0x58] sm:$0xf]
          %v11959 = vld [vmem:[#allocation9 + $0x5c] sm:$0xf]
          %v11960 = vld [vmem:[#allocation9 + $0x60] sm:$0xf]
          %v11961 = vld [vmem:[#allocation9 + $0x64] sm:$0xf]
          %v11962 = vld [vmem:[#allocation9 + $0x68] sm:$0xf]
          %v11963 = vld [vmem:[#allocation9 + $0x6c] sm:$0xf]
          %v11964 = vld [vmem:[#allocation9 + $0x70] sm:$0xf]
          %v11965 = vld [vmem:[#allocation9 + $0x74] sm:$0xf]
          %v11966 = vld [vmem:[#allocation9 + $0x78] sm:$0xf]
          %v11967 = vld [vmem:[#allocation9 + $0x7c] sm:$0xf]
          %v11968 = vld [vmem:[#allocation9 + $0x80] sm:$0xf]
          %v11969 = vld [vmem:[#allocation9 + $0x84] sm:$0xf]
          %v11970 = vld [vmem:[#allocation9 + $0x88] sm:$0xf]
          %v11971 = vld [vmem:[#allocation9 + $0x8c] sm:$0xf]
          %v11972 = vld [vmem:[#allocation9 + $0x90] sm:$0xf]
          %v11973 = vld [vmem:[#allocation9 + $0x94] sm:$0xf]
          %v11974 = vld [vmem:[#allocation9 + $0x98] sm:$0xf]
          %v11975 = vld [vmem:[#allocation9 + $0x9c] sm:$0xf]
          %v11976 = vld [vmem:[#allocation9 + $0xa0] sm:$0xf]
          %v11977 = vld [vmem:[#allocation9 + $0xa4] sm:$0xf]
          %v11978 = vld [vmem:[#allocation9 + $0xa8] sm:$0xf]
          %v11979 = vld [vmem:[#allocation9 + $0xac] sm:$0xf]
          %v11980 = vld [vmem:[#allocation9 + $0xb0] sm:$0xf]
          %v11981 = vld [vmem:[#allocation9 + $0xb4] sm:$0xf]
          %v11982 = vld [vmem:[#allocation9 + $0xb8] sm:$0xf]
          %v11983 = vld [vmem:[#allocation9 + $0xbc] sm:$0xf]
          %v11984 = vld [vmem:[#allocation9 + $0xc0] sm:$0xf]
          %v11985 = vld [vmem:[#allocation9 + $0xc4] sm:$0xf]
          %v11986 = vld [vmem:[#allocation9 + $0xc8] sm:$0xf]
          %v11987 = vld [vmem:[#allocation9 + $0xcc] sm:$0xf]
          %v11988 = vld [vmem:[#allocation9 + $0xd0] sm:$0xf]
          %v11989 = vld [vmem:[#allocation9 + $0xd4] sm:$0xf]
          %v11990 = vld [vmem:[#allocation9 + $0xd8] sm:$0xf]
          %v11991 = vld [vmem:[#allocation9 + $0xdc] sm:$0xf]
          %v11992 = vld [vmem:[#allocation9 + $0xe0] sm:$0xf]
          %v11993 = vld [vmem:[#allocation9 + $0xe4] sm:$0xf]
          %v11994 = vld [vmem:[#allocation9 + $0xe8] sm:$0xf]
          %v11995 = vld [vmem:[#allocation9 + $0xec] sm:$0xf]
          %v11996 = vld [vmem:[#allocation9 + $0xf0] sm:$0xf]
          %v11997 = vld [vmem:[#allocation9 + $0xf4] sm:$0xf]
          %v11998 = vld [vmem:[#allocation9 + $0xf8] sm:$0xf]
          %v11999 = vld [vmem:[#allocation9 + $0xfc] sm:$0xf]
          %v12000 = vld [vmem:[#allocation9 + $0x100] sm:$0xf]
          %v12001 = vld [vmem:[#allocation9 + $0x104] sm:$0xf]
          %v12002 = vld [vmem:[#allocation9 + $0x108] sm:$0xf]
          %v12003 = vld [vmem:[#allocation9 + $0x10c] sm:$0xf]
          %v12004 = vld [vmem:[#allocation9 + $0x110] sm:$0xf]
          %v12005 = vld [vmem:[#allocation9 + $0x114] sm:$0xf]
          %v12006 = vld [vmem:[#allocation9 + $0x118] sm:$0xf]
          %v12007 = vld [vmem:[#allocation9 + $0x11c] sm:$0xf]
          %v12008 = vld [vmem:[#allocation9 + $0x120] sm:$0xf]
          %v12009 = vld [vmem:[#allocation9 + $0x124] sm:$0xf]
          %v12010 = vld [vmem:[#allocation9 + $0x128] sm:$0xf]
          %v12011 = vld [vmem:[#allocation9 + $0x12c] sm:$0xf]
          %v12012 = vld [vmem:[#allocation9 + $0x130] sm:$0xf]
          %v12013 = vld [vmem:[#allocation9 + $0x134] sm:$0xf]
          %v12014 = vld [vmem:[#allocation9 + $0x138] sm:$0xf]
          %v12015 = vld [vmem:[#allocation9 + $0x13c] sm:$0xf]
          %v12016 = vld [vmem:[#allocation9 + $0x140] sm:$0xf]
          %v12017 = vld [vmem:[#allocation9 + $0x144] sm:$0xf]
          %v12018 = vld [vmem:[#allocation9 + $0x148] sm:$0xf]
          %v12019 = vld [vmem:[#allocation9 + $0x14c] sm:$0xf]
          %v12020 = vld [vmem:[#allocation9 + $0x150] sm:$0xf]
          %v12021 = vld [vmem:[#allocation9 + $0x154] sm:$0xf]
          %v12022 = vld [vmem:[#allocation9 + $0x158] sm:$0xf]
          %v12023 = vld [vmem:[#allocation9 + $0x15c] sm:$0xf]
          %v12024 = vld [vmem:[#allocation9 + $0x160] sm:$0xf]
          %v12025 = vld [vmem:[#allocation9 + $0x164] sm:$0xf]
          %v12026 = vld [vmem:[#allocation9 + $0x168] sm:$0xf]
          %v12027 = vld [vmem:[#allocation9 + $0x16c] sm:$0xf]
          %v12028 = vld [vmem:[#allocation9 + $0x170] sm:$0xf]
          %v12029 = vld [vmem:[#allocation9 + $0x174] sm:$0xf]
          %v12030 = vld [vmem:[#allocation9 + $0x178] sm:$0xf]
          %v12031 = vld [vmem:[#allocation9 + $0x17c] sm:$0xf]
          %v12032 = vld [vmem:[#allocation9 + $0x180] sm:$0xf]
          %v12033 = vld [vmem:[#allocation9 + $0x184] sm:$0xf]
          %v12034 = vld [vmem:[#allocation9 + $0x188] sm:$0xf]
          %v12035 = vld [vmem:[#allocation9 + $0x18c] sm:$0xf]
          %v12036 = vld [vmem:[#allocation9 + $0x190] sm:$0xf]
          %v12037 = vld [vmem:[#allocation9 + $0x194] sm:$0xf]
          %v12038 = vld [vmem:[#allocation9 + $0x198] sm:$0xf]
          %v12039 = vld [vmem:[#allocation9 + $0x19c] sm:$0xf]
          %v12040 = vld [vmem:[#allocation9 + $0x1a0] sm:$0xf]
          %v12041 = vld [vmem:[#allocation9 + $0x1a4] sm:$0xf]
          %v12042 = vld [vmem:[#allocation9 + $0x1a8] sm:$0xf]
          %v12043 = vld [vmem:[#allocation9 + $0x1ac] sm:$0xf]
          %v12044 = vld [vmem:[#allocation9 + $0x1b0] sm:$0xf]
          %v12045 = vld [vmem:[#allocation9 + $0x1b4] sm:$0xf]
          %v12046 = vld [vmem:[#allocation9 + $0x1b8] sm:$0xf]
          %v12047 = vld [vmem:[#allocation9 + $0x1bc] sm:$0xf]
          %v12048 = vld [vmem:[#allocation9 + $0x1c0] sm:$0xf]
          %v12049 = vld [vmem:[#allocation9 + $0x1c4] sm:$0xf]
          %v12050 = vld [vmem:[#allocation9 + $0x1c8] sm:$0xf]
          %v12051 = vld [vmem:[#allocation9 + $0x1cc] sm:$0xf]
          %v12052 = vld [vmem:[#allocation9 + $0x1d0] sm:$0xf]
          %v12053 = vld [vmem:[#allocation9 + $0x1d4] sm:$0xf]
          %v12054 = vld [vmem:[#allocation9 + $0x1d8] sm:$0xf]
          %v12055 = vld [vmem:[#allocation9 + $0x1dc] sm:$0xf]
          %v12056 = vld [vmem:[#allocation9 + $0x1e0] sm:$0xf]
          %v12057 = vld [vmem:[#allocation9 + $0x1e4] sm:$0xf]
          %v12058 = vld [vmem:[#allocation9 + $0x1e8] sm:$0xf]
          %v12059 = vld [vmem:[#allocation9 + $0x1ec] sm:$0xf]
          %v12060 = vld [vmem:[#allocation9 + $0x1f0] sm:$0xf]
          %v12061 = vld [vmem:[#allocation9 + $0x1f4] sm:$0xf]
          %v12062 = vld [vmem:[#allocation9 + $0x1f8] sm:$0xf]
          %v12063 = vld [vmem:[#allocation9 + $0x1fc] sm:$0xf]
          %v12064 = vld [vmem:[#allocation9 + $0x200] sm:$0xf]
          %v12065 = vld [vmem:[#allocation9 + $0x204] sm:$0xf]
          %v12066 = vld [vmem:[#allocation9 + $0x208] sm:$0xf]
          %v12067 = vld [vmem:[#allocation9 + $0x20c] sm:$0xf]
          %v12068 = vld [vmem:[#allocation9 + $0x210] sm:$0xf]
          %v12069 = vld [vmem:[#allocation9 + $0x214] sm:$0xf]
          %v12070 = vld [vmem:[#allocation9 + $0x218] sm:$0xf]
          %v12071 = vld [vmem:[#allocation9 + $0x21c] sm:$0xf]
          %v12072 = vld [vmem:[#allocation9 + $0x220] sm:$0xf]
          %v12073 = vld [vmem:[#allocation9 + $0x224] sm:$0xf]
          %v12074 = vld [vmem:[#allocation9 + $0x228] sm:$0xf]
          %v12075 = vld [vmem:[#allocation9 + $0x22c] sm:$0xf]
          %v12076 = vld [vmem:[#allocation9 + $0x230] sm:$0xf]
          %v12077 = vld [vmem:[#allocation9 + $0x234] sm:$0xf]
          %v12078 = vld [vmem:[#allocation9 + $0x238] sm:$0xf]
          %v12079 = vld [vmem:[#allocation9 + $0x23c] sm:$0xf]
          %v12080 = vld [vmem:[#allocation9 + $0x240] sm:$0xf]
          %v12081 = vld [vmem:[#allocation9 + $0x244] sm:$0xf]
          %v12082 = vld [vmem:[#allocation9 + $0x248] sm:$0xf]
          %v12083 = vld [vmem:[#allocation9 + $0x24c] sm:$0xf]
          %v12084 = vld [vmem:[#allocation9 + $0x250] sm:$0xf]
          %v12085 = vld [vmem:[#allocation9 + $0x254] sm:$0xf]
          %v12086 = vld [vmem:[#allocation9 + $0x258] sm:$0xf]
          %v12087 = vld [vmem:[#allocation9 + $0x25c] sm:$0xf]
          %v12088 = vld [vmem:[#allocation9 + $0x260] sm:$0xf]
          %v12089 = vld [vmem:[#allocation9 + $0x264] sm:$0xf]
          %v12090 = vld [vmem:[#allocation9 + $0x268] sm:$0xf]
          %v12091 = vld [vmem:[#allocation9 + $0x26c] sm:$0xf]
          %v12092 = vld [vmem:[#allocation9 + $0x270] sm:$0xf]
          %v12093 = vld [vmem:[#allocation9 + $0x274] sm:$0xf]
          %v12094 = vld [vmem:[#allocation9 + $0x278] sm:$0xf]
          %v12095 = vld [vmem:[#allocation9 + $0x27c] sm:$0xf]
          %v12096 = vld [vmem:[#allocation9 + $0x280] sm:$0xf]
          %v12097 = vld [vmem:[#allocation9 + $0x284] sm:$0xf]
          %v12098 = vld [vmem:[#allocation9 + $0x288] sm:$0xf]
          %v12099 = vld [vmem:[#allocation9 + $0x28c] sm:$0xf]
          %v12100 = vld [vmem:[#allocation9 + $0x290] sm:$0xf]
          %v12101 = vld [vmem:[#allocation9 + $0x294] sm:$0xf]
          %v12102 = vld [vmem:[#allocation9 + $0x298] sm:$0xf]
          %v12103 = vld [vmem:[#allocation9 + $0x29c] sm:$0xf]
          %v12104 = vld [vmem:[#allocation9 + $0x2a0] sm:$0xf]
          %v12105 = vld [vmem:[#allocation9 + $0x2a4] sm:$0xf]
          %v12106 = vld [vmem:[#allocation9 + $0x2a8] sm:$0xf]
          %v12107 = vld [vmem:[#allocation9 + $0x2ac] sm:$0xf]
          %v12108 = vld [vmem:[#allocation9 + $0x2b0] sm:$0xf]
          %v12109 = vld [vmem:[#allocation9 + $0x2b4] sm:$0xf]
          %v12110 = vld [vmem:[#allocation9 + $0x2b8] sm:$0xf]
          %v12111 = vld [vmem:[#allocation9 + $0x2bc] sm:$0xf]
          %v12112 = vld [vmem:[#allocation9 + $0x2c0] sm:$0xf]
          %v12113 = vld [vmem:[#allocation9 + $0x2c4] sm:$0xf]
          %v12114 = vld [vmem:[#allocation9 + $0x2c8] sm:$0xf]
          %v12115 = vld [vmem:[#allocation9 + $0x2cc] sm:$0xf]
          %v12116 = vld [vmem:[#allocation9 + $0x2d0] sm:$0xf]
          %v12117 = vld [vmem:[#allocation9 + $0x2d4] sm:$0xf]
          %v12118 = vld [vmem:[#allocation9 + $0x2d8] sm:$0xf]
          %v12119 = vld [vmem:[#allocation9 + $0x2dc] sm:$0xf]
          %v12120 = vld [vmem:[#allocation9 + $0x2e0] sm:$0xf]
          %v12121 = vld [vmem:[#allocation9 + $0x2e4] sm:$0xf]
          %v12122 = vld [vmem:[#allocation9 + $0x2e8] sm:$0xf]
          %v12123 = vld [vmem:[#allocation9 + $0x2ec] sm:$0xf]
          %v12124 = vld [vmem:[#allocation9 + $0x2f0] sm:$0xf]
          %v12125 = vld [vmem:[#allocation9 + $0x2f4] sm:$0xf]
          %v12126 = vld [vmem:[#allocation9 + $0x2f8] sm:$0xf]
          %v12127 = vld [vmem:[#allocation9 + $0x2fc] sm:$0xf]
          %v12128 = vld [vmem:[#allocation9 + $0x300] sm:$0xf]
          %v12129 = vld [vmem:[#allocation9 + $0x304] sm:$0xf]
          %v12130 = vld [vmem:[#allocation9 + $0x308] sm:$0xf]
          %v12131 = vld [vmem:[#allocation9 + $0x30c] sm:$0xf]
          %v12132 = vld [vmem:[#allocation9 + $0x310] sm:$0xf]
          %v12133 = vld [vmem:[#allocation9 + $0x314] sm:$0xf]
          %v12134 = vld [vmem:[#allocation9 + $0x318] sm:$0xf]
          %v12135 = vld [vmem:[#allocation9 + $0x31c] sm:$0xf]
          %v12136 = vld [vmem:[#allocation9 + $0x320] sm:$0xf]
          %v12137 = vld [vmem:[#allocation9 + $0x324] sm:$0xf]
          %v12138 = vld [vmem:[#allocation9 + $0x328] sm:$0xf]
          %v12139 = vld [vmem:[#allocation9 + $0x32c] sm:$0xf]
          %v12140 = vld [vmem:[#allocation9 + $0x330] sm:$0xf]
          %v12141 = vld [vmem:[#allocation9 + $0x334] sm:$0xf]
          %v12142 = vld [vmem:[#allocation9 + $0x338] sm:$0xf]
          %v12143 = vld [vmem:[#allocation9 + $0x33c] sm:$0xf]
          %v12144 = vld [vmem:[#allocation9 + $0x340] sm:$0xf]
          %v12145 = vld [vmem:[#allocation9 + $0x344] sm:$0xf]
          %v12146 = vld [vmem:[#allocation9 + $0x348] sm:$0xf]
          %v12147 = vld [vmem:[#allocation9 + $0x34c] sm:$0xf]
          %v12148 = vld [vmem:[#allocation9 + $0x350] sm:$0xf]
          %v12149 = vld [vmem:[#allocation9 + $0x354] sm:$0xf]
          %v12150 = vld [vmem:[#allocation9 + $0x358] sm:$0xf]
          %v12151 = vld [vmem:[#allocation9 + $0x35c] sm:$0xf]
          %v12152 = vld [vmem:[#allocation9 + $0x360] sm:$0xf]
          %v12153 = vld [vmem:[#allocation9 + $0x364] sm:$0xf]
          %v12154 = vld [vmem:[#allocation9 + $0x368] sm:$0xf]
          %v12155 = vld [vmem:[#allocation9 + $0x36c] sm:$0xf]
          %v12156 = vld [vmem:[#allocation9 + $0x370] sm:$0xf]
          %v12157 = vld [vmem:[#allocation9 + $0x374] sm:$0xf]
          %v12158 = vld [vmem:[#allocation9 + $0x378] sm:$0xf]
          %v12159 = vld [vmem:[#allocation9 + $0x37c] sm:$0xf]
          %v12160 = vld [vmem:[#allocation9 + $0x380] sm:$0xf]
          %v12161 = vld [vmem:[#allocation9 + $0x384] sm:$0xf]
          %v12162 = vld [vmem:[#allocation9 + $0x388] sm:$0xf]
          %v12163 = vld [vmem:[#allocation9 + $0x38c] sm:$0xf]
          %v12164 = vld [vmem:[#allocation9 + $0x390] sm:$0xf]
          %v12165 = vld [vmem:[#allocation9 + $0x394] sm:$0xf]
          %v12166 = vld [vmem:[#allocation9 + $0x398] sm:$0xf]
          %v12167 = vld [vmem:[#allocation9 + $0x39c] sm:$0xf]
          %v12168 = vld [vmem:[#allocation9 + $0x3a0] sm:$0xf]
          %v12169 = vld [vmem:[#allocation9 + $0x3a4] sm:$0xf]
          %v12170 = vld [vmem:[#allocation9 + $0x3a8] sm:$0xf]
          %v12171 = vld [vmem:[#allocation9 + $0x3ac] sm:$0xf]
          %v12172 = vld [vmem:[#allocation9 + $0x3b0] sm:$0xf]
          %v12173 = vld [vmem:[#allocation9 + $0x3b4] sm:$0xf]
          %v12174 = vld [vmem:[#allocation9 + $0x3b8] sm:$0xf]
          %v12175 = vld [vmem:[#allocation9 + $0x3bc] sm:$0xf]
          %v12176 = vld [vmem:[#allocation9 + $0x3c0] sm:$0xf]
          %v12177 = vld [vmem:[#allocation9 + $0x3c4] sm:$0xf]
          %v12178 = vld [vmem:[#allocation9 + $0x3c8] sm:$0xf]
          %v12179 = vld [vmem:[#allocation9 + $0x3cc] sm:$0xf]
          %v12180 = vld [vmem:[#allocation9 + $0x3d0] sm:$0xf]
          %v12181 = vld [vmem:[#allocation9 + $0x3d4] sm:$0xf]
          %v12182 = vld [vmem:[#allocation9 + $0x3d8] sm:$0xf]
          %v12183 = vld [vmem:[#allocation9 + $0x3dc] sm:$0xf]
          %v12184 = vld [vmem:[#allocation9 + $0x3e0] sm:$0xf]
          %v12185 = vld [vmem:[#allocation9 + $0x3e4] sm:$0xf]
          %v12186 = vld [vmem:[#allocation9 + $0x3e8] sm:$0xf]
          %v12187 = vld [vmem:[#allocation9 + $0x3ec] sm:$0xf]
          %v12188 = vld [vmem:[#allocation9 + $0x3f0] sm:$0xf]
          %v12189 = vld [vmem:[#allocation9 + $0x3f4] sm:$0xf]
          %v12190 = vld [vmem:[#allocation9 + $0x3f8] sm:$0xf]
          %v12191 = vld [vmem:[#allocation9 + $0x3fc] sm:$0xf]
          %v12192 = vld [vmem:[#allocation11] sm:$0x1]
          %v12194 = vlaneseq
          %v12195 = vshrl.u32 %v12194, 7
          %v12196 = vsub.s32 0, %v12195
          %v12197 = vrot.slane %v12192, %v12196
          %v12455 = vunpack.c.l.b16 %v11936
          %v12456 = vunpack.c.l.b16 %v11937
          %v12457 = vunpack.c.l.b16 %v11938
          %v12458 = vunpack.c.l.b16 %v11939
          %v12459 = vunpack.c.l.b16 %v11940
          %v12460 = vunpack.c.l.b16 %v11941
          %v12461 = vunpack.c.l.b16 %v11942
          %v12462 = vunpack.c.l.b16 %v11943
          %v12463 = vunpack.c.l.b16 %v11944
          %v12464 = vunpack.c.l.b16 %v11945
          %v12465 = vunpack.c.l.b16 %v11946
          %v12466 = vunpack.c.l.b16 %v11947
          %v12467 = vunpack.c.l.b16 %v11948
          %v12468 = vunpack.c.l.b16 %v11949
          %v12469 = vunpack.c.l.b16 %v11950
          %v12470 = vunpack.c.l.b16 %v11951
          %v12471 = vunpack.c.l.b16 %v11952
          %v12472 = vunpack.c.l.b16 %v11953
          %v12473 = vunpack.c.l.b16 %v11954
          %v12474 = vunpack.c.l.b16 %v11955
          %v12475 = vunpack.c.l.b16 %v11956
          %v12476 = vunpack.c.l.b16 %v11957
          %v12477 = vunpack.c.l.b16 %v11958
          %v12478 = vunpack.c.l.b16 %v11959
          %v12479 = vunpack.c.l.b16 %v11960
          %v12480 = vunpack.c.l.b16 %v11961
          %v12481 = vunpack.c.l.b16 %v11962
          %v12482 = vunpack.c.l.b16 %v11963
          %v12483 = vunpack.c.l.b16 %v11964
          %v12484 = vunpack.c.l.b16 %v11965
          %v12485 = vunpack.c.l.b16 %v11966
          %v12486 = vunpack.c.l.b16 %v11967
          %v12487 = vunpack.c.l.b16 %v11968
          %v12488 = vunpack.c.l.b16 %v11969
          %v12489 = vunpack.c.l.b16 %v11970
          %v12490 = vunpack.c.l.b16 %v11971
          %v12491 = vunpack.c.l.b16 %v11972
          %v12492 = vunpack.c.l.b16 %v11973
          %v12493 = vunpack.c.l.b16 %v11974
          %v12494 = vunpack.c.l.b16 %v11975
          %v12495 = vunpack.c.l.b16 %v11976
          %v12496 = vunpack.c.l.b16 %v11977
          %v12497 = vunpack.c.l.b16 %v11978
          %v12498 = vunpack.c.l.b16 %v11979
          %v12499 = vunpack.c.l.b16 %v11980
          %v12500 = vunpack.c.l.b16 %v11981
          %v12501 = vunpack.c.l.b16 %v11982
          %v12502 = vunpack.c.l.b16 %v11983
          %v12503 = vunpack.c.l.b16 %v11984
          %v12504 = vunpack.c.l.b16 %v11985
          %v12505 = vunpack.c.l.b16 %v11986
          %v12506 = vunpack.c.l.b16 %v11987
          %v12507 = vunpack.c.l.b16 %v11988
          %v12508 = vunpack.c.l.b16 %v11989
          %v12509 = vunpack.c.l.b16 %v11990
          %v12510 = vunpack.c.l.b16 %v11991
          %v12511 = vunpack.c.l.b16 %v11992
          %v12512 = vunpack.c.l.b16 %v11993
          %v12513 = vunpack.c.l.b16 %v11994
          %v12514 = vunpack.c.l.b16 %v11995
          %v12515 = vunpack.c.l.b16 %v11996
          %v12516 = vunpack.c.l.b16 %v11997
          %v12517 = vunpack.c.l.b16 %v11998
          %v12518 = vunpack.c.l.b16 %v11999
          %v12519 = vunpack.c.l.b16 %v12000
          %v12520 = vunpack.c.l.b16 %v12001
          %v12521 = vunpack.c.l.b16 %v12002
          %v12522 = vunpack.c.l.b16 %v12003
          %v12523 = vunpack.c.l.b16 %v12004
          %v12524 = vunpack.c.l.b16 %v12005
          %v12525 = vunpack.c.l.b16 %v12006
          %v12526 = vunpack.c.l.b16 %v12007
          %v12527 = vunpack.c.l.b16 %v12008
          %v12528 = vunpack.c.l.b16 %v12009
          %v12529 = vunpack.c.l.b16 %v12010
          %v12530 = vunpack.c.l.b16 %v12011
          %v12531 = vunpack.c.l.b16 %v12012
          %v12532 = vunpack.c.l.b16 %v12013
          %v12533 = vunpack.c.l.b16 %v12014
          %v12534 = vunpack.c.l.b16 %v12015
          %v12535 = vunpack.c.l.b16 %v12016
          %v12536 = vunpack.c.l.b16 %v12017
          %v12537 = vunpack.c.l.b16 %v12018
          %v12538 = vunpack.c.l.b16 %v12019
          %v12539 = vunpack.c.l.b16 %v12020
          %v12540 = vunpack.c.l.b16 %v12021
          %v12541 = vunpack.c.l.b16 %v12022
          %v12542 = vunpack.c.l.b16 %v12023
          %v12543 = vunpack.c.l.b16 %v12024
          %v12544 = vunpack.c.l.b16 %v12025
          %v12545 = vunpack.c.l.b16 %v12026
          %v12546 = vunpack.c.l.b16 %v12027
          %v12547 = vunpack.c.l.b16 %v12028
          %v12548 = vunpack.c.l.b16 %v12029
          %v12549 = vunpack.c.l.b16 %v12030
          %v12550 = vunpack.c.l.b16 %v12031
          %v12551 = vunpack.c.l.b16 %v12032
          %v12552 = vunpack.c.l.b16 %v12033
          %v12553 = vunpack.c.l.b16 %v12034
          %v12554 = vunpack.c.l.b16 %v12035
          %v12555 = vunpack.c.l.b16 %v12036
          %v12556 = vunpack.c.l.b16 %v12037
          %v12557 = vunpack.c.l.b16 %v12038
          %v12558 = vunpack.c.l.b16 %v12039
          %v12559 = vunpack.c.l.b16 %v12040
          %v12560 = vunpack.c.l.b16 %v12041
          %v12561 = vunpack.c.l.b16 %v12042
          %v12562 = vunpack.c.l.b16 %v12043
          %v12563 = vunpack.c.l.b16 %v12044
          %v12564 = vunpack.c.l.b16 %v12045
          %v12565 = vunpack.c.l.b16 %v12046
          %v12566 = vunpack.c.l.b16 %v12047
          %v12567 = vunpack.c.l.b16 %v12048
          %v12568 = vunpack.c.l.b16 %v12049
          %v12569 = vunpack.c.l.b16 %v12050
          %v12570 = vunpack.c.l.b16 %v12051
          %v12571 = vunpack.c.l.b16 %v12052
          %v12572 = vunpack.c.l.b16 %v12053
          %v12573 = vunpack.c.l.b16 %v12054
          %v12574 = vunpack.c.l.b16 %v12055
          %v12575 = vunpack.c.l.b16 %v12056
          %v12576 = vunpack.c.l.b16 %v12057
          %v12577 = vunpack.c.l.b16 %v12058
          %v12578 = vunpack.c.l.b16 %v12059
          %v12579 = vunpack.c.l.b16 %v12060
          %v12580 = vunpack.c.l.b16 %v12061
          %v12581 = vunpack.c.l.b16 %v12062
          %v12582 = vunpack.c.l.b16 %v12063
          %v12583 = vunpack.c.l.b16 %v12064
          %v12584 = vunpack.c.l.b16 %v12065
          %v12585 = vunpack.c.l.b16 %v12066
          %v12586 = vunpack.c.l.b16 %v12067
          %v12587 = vunpack.c.l.b16 %v12068
          %v12588 = vunpack.c.l.b16 %v12069
          %v12589 = vunpack.c.l.b16 %v12070
          %v12590 = vunpack.c.l.b16 %v12071
          %v12591 = vunpack.c.l.b16 %v12072
          %v12592 = vunpack.c.l.b16 %v12073
          %v12593 = vunpack.c.l.b16 %v12074
          %v12594 = vunpack.c.l.b16 %v12075
          %v12595 = vunpack.c.l.b16 %v12076
          %v12596 = vunpack.c.l.b16 %v12077
          %v12597 = vunpack.c.l.b16 %v12078
          %v12598 = vunpack.c.l.b16 %v12079
          %v12599 = vunpack.c.l.b16 %v12080
          %v12600 = vunpack.c.l.b16 %v12081
          %v12601 = vunpack.c.l.b16 %v12082
          %v12602 = vunpack.c.l.b16 %v12083
          %v12603 = vunpack.c.l.b16 %v12084
          %v12604 = vunpack.c.l.b16 %v12085
          %v12605 = vunpack.c.l.b16 %v12086
          %v12606 = vunpack.c.l.b16 %v12087
          %v12607 = vunpack.c.l.b16 %v12088
          %v12608 = vunpack.c.l.b16 %v12089
          %v12609 = vunpack.c.l.b16 %v12090
          %v12610 = vunpack.c.l.b16 %v12091
          %v12611 = vunpack.c.l.b16 %v12092
          %v12612 = vunpack.c.l.b16 %v12093
          %v12613 = vunpack.c.l.b16 %v12094
          %v12614 = vunpack.c.l.b16 %v12095
          %v12615 = vunpack.c.l.b16 %v12096
          %v12616 = vunpack.c.l.b16 %v12097
          %v12617 = vunpack.c.l.b16 %v12098
          %v12618 = vunpack.c.l.b16 %v12099
          %v12619 = vunpack.c.l.b16 %v12100
          %v12620 = vunpack.c.l.b16 %v12101
          %v12621 = vunpack.c.l.b16 %v12102
          %v12622 = vunpack.c.l.b16 %v12103
          %v12623 = vunpack.c.l.b16 %v12104
          %v12624 = vunpack.c.l.b16 %v12105
          %v12625 = vunpack.c.l.b16 %v12106
          %v12626 = vunpack.c.l.b16 %v12107
          %v12627 = vunpack.c.l.b16 %v12108
          %v12628 = vunpack.c.l.b16 %v12109
          %v12629 = vunpack.c.l.b16 %v12110
          %v12630 = vunpack.c.l.b16 %v12111
          %v12631 = vunpack.c.l.b16 %v12112
          %v12632 = vunpack.c.l.b16 %v12113
          %v12633 = vunpack.c.l.b16 %v12114
          %v12634 = vunpack.c.l.b16 %v12115
          %v12635 = vunpack.c.l.b16 %v12116
          %v12636 = vunpack.c.l.b16 %v12117
          %v12637 = vunpack.c.l.b16 %v12118
          %v12638 = vunpack.c.l.b16 %v12119
          %v12639 = vunpack.c.l.b16 %v12120
          %v12640 = vunpack.c.l.b16 %v12121
          %v12641 = vunpack.c.l.b16 %v12122
          %v12642 = vunpack.c.l.b16 %v12123
          %v12643 = vunpack.c.l.b16 %v12124
          %v12644 = vunpack.c.l.b16 %v12125
          %v12645 = vunpack.c.l.b16 %v12126
          %v12646 = vunpack.c.l.b16 %v12127
          %v12647 = vunpack.c.l.b16 %v12128
          %v12648 = vunpack.c.l.b16 %v12129
          %v12649 = vunpack.c.l.b16 %v12130
          %v12650 = vunpack.c.l.b16 %v12131
          %v12651 = vunpack.c.l.b16 %v12132
          %v12652 = vunpack.c.l.b16 %v12133
          %v12653 = vunpack.c.l.b16 %v12134
          %v12654 = vunpack.c.l.b16 %v12135
          %v12655 = vunpack.c.l.b16 %v12136
          %v12656 = vunpack.c.l.b16 %v12137
          %v12657 = vunpack.c.l.b16 %v12138
          %v12658 = vunpack.c.l.b16 %v12139
          %v12659 = vunpack.c.l.b16 %v12140
          %v12660 = vunpack.c.l.b16 %v12141
          %v12661 = vunpack.c.l.b16 %v12142
          %v12662 = vunpack.c.l.b16 %v12143
          %v12663 = vunpack.c.l.b16 %v12144
          %v12664 = vunpack.c.l.b16 %v12145
          %v12665 = vunpack.c.l.b16 %v12146
          %v12666 = vunpack.c.l.b16 %v12147
          %v12667 = vunpack.c.l.b16 %v12148
          %v12668 = vunpack.c.l.b16 %v12149
          %v12669 = vunpack.c.l.b16 %v12150
          %v12670 = vunpack.c.l.b16 %v12151
          %v12671 = vunpack.c.l.b16 %v12152
          %v12672 = vunpack.c.l.b16 %v12153
          %v12673 = vunpack.c.l.b16 %v12154
          %v12674 = vunpack.c.l.b16 %v12155
          %v12675 = vunpack.c.l.b16 %v12156
          %v12676 = vunpack.c.l.b16 %v12157
          %v12677 = vunpack.c.l.b16 %v12158
          %v12678 = vunpack.c.l.b16 %v12159
          %v12679 = vunpack.c.l.b16 %v12160
          %v12680 = vunpack.c.l.b16 %v12161
          %v12681 = vunpack.c.l.b16 %v12162
          %v12682 = vunpack.c.l.b16 %v12163
          %v12683 = vunpack.c.l.b16 %v12164
          %v12684 = vunpack.c.l.b16 %v12165
          %v12685 = vunpack.c.l.b16 %v12166
          %v12686 = vunpack.c.l.b16 %v12167
          %v12687 = vunpack.c.l.b16 %v12168
          %v12688 = vunpack.c.l.b16 %v12169
          %v12689 = vunpack.c.l.b16 %v12170
          %v12690 = vunpack.c.l.b16 %v12171
          %v12691 = vunpack.c.l.b16 %v12172
          %v12692 = vunpack.c.l.b16 %v12173
          %v12693 = vunpack.c.l.b16 %v12174
          %v12694 = vunpack.c.l.b16 %v12175
          %v12695 = vunpack.c.l.b16 %v12176
          %v12696 = vunpack.c.l.b16 %v12177
          %v12697 = vunpack.c.l.b16 %v12178
          %v12698 = vunpack.c.l.b16 %v12179
          %v12699 = vunpack.c.l.b16 %v12180
          %v12700 = vunpack.c.l.b16 %v12181
          %v12701 = vunpack.c.l.b16 %v12182
          %v12702 = vunpack.c.l.b16 %v12183
          %v12703 = vunpack.c.l.b16 %v12184
          %v12704 = vunpack.c.l.b16 %v12185
          %v12705 = vunpack.c.l.b16 %v12186
          %v12706 = vunpack.c.l.b16 %v12187
          %v12707 = vunpack.c.l.b16 %v12188
          %v12708 = vunpack.c.l.b16 %v12189
          %v12709 = vunpack.c.l.b16 %v12190
          %v12710 = vunpack.c.l.b16 %v12191
          %v12711 = vpack.c.b16 %v12456, %v12455
          %v12712 = vpack.c.b16 %v12458, %v12457
          %v12713 = vpack.c.b16 %v12460, %v12459
          %v12714 = vpack.c.b16 %v12462, %v12461
          %v12715 = vpack.c.b16 %v12464, %v12463
          %v12716 = vpack.c.b16 %v12466, %v12465
          %v12717 = vpack.c.b16 %v12468, %v12467
          %v12718 = vpack.c.b16 %v12470, %v12469
          %v12719 = vpack.c.b16 %v12472, %v12471
          %v12720 = vpack.c.b16 %v12474, %v12473
          %v12721 = vpack.c.b16 %v12476, %v12475
          %v12722 = vpack.c.b16 %v12478, %v12477
          %v12723 = vpack.c.b16 %v12480, %v12479
          %v12724 = vpack.c.b16 %v12482, %v12481
          %v12725 = vpack.c.b16 %v12484, %v12483
          %v12726 = vpack.c.b16 %v12486, %v12485
          %v12727 = vpack.c.b16 %v12488, %v12487
          %v12728 = vpack.c.b16 %v12490, %v12489
          %v12729 = vpack.c.b16 %v12492, %v12491
          %v12730 = vpack.c.b16 %v12494, %v12493
          %v12731 = vpack.c.b16 %v12496, %v12495
          %v12732 = vpack.c.b16 %v12498, %v12497
          %v12733 = vpack.c.b16 %v12500, %v12499
          %v12734 = vpack.c.b16 %v12502, %v12501
          %v12735 = vpack.c.b16 %v12504, %v12503
          %v12736 = vpack.c.b16 %v12506, %v12505
          %v12737 = vpack.c.b16 %v12508, %v12507
          %v12738 = vpack.c.b16 %v12510, %v12509
          %v12739 = vpack.c.b16 %v12512, %v12511
          %v12740 = vpack.c.b16 %v12514, %v12513
          %v12741 = vpack.c.b16 %v12516, %v12515
          %v12742 = vpack.c.b16 %v12518, %v12517
          %v12743 = vpack.c.b16 %v12520, %v12519
          %v12744 = vpack.c.b16 %v12522, %v12521
          %v12745 = vpack.c.b16 %v12524, %v12523
          %v12746 = vpack.c.b16 %v12526, %v12525
          %v12747 = vpack.c.b16 %v12528, %v12527
          %v12748 = vpack.c.b16 %v12530, %v12529
          %v12749 = vpack.c.b16 %v12532, %v12531
          %v12750 = vpack.c.b16 %v12534, %v12533
          %v12751 = vpack.c.b16 %v12536, %v12535
          %v12752 = vpack.c.b16 %v12538, %v12537
          %v12753 = vpack.c.b16 %v12540, %v12539
          %v12754 = vpack.c.b16 %v12542, %v12541
          %v12755 = vpack.c.b16 %v12544, %v12543
          %v12756 = vpack.c.b16 %v12546, %v12545
          %v12757 = vpack.c.b16 %v12548, %v12547
          %v12758 = vpack.c.b16 %v12550, %v12549
          %v12759 = vpack.c.b16 %v12552, %v12551
          %v12760 = vpack.c.b16 %v12554, %v12553
          %v12761 = vpack.c.b16 %v12556, %v12555
          %v12762 = vpack.c.b16 %v12558, %v12557
          %v12763 = vpack.c.b16 %v12560, %v12559
          %v12764 = vpack.c.b16 %v12562, %v12561
          %v12765 = vpack.c.b16 %v12564, %v12563
          %v12766 = vpack.c.b16 %v12566, %v12565
          %v12767 = vpack.c.b16 %v12568, %v12567
          %v12768 = vpack.c.b16 %v12570, %v12569
          %v12769 = vpack.c.b16 %v12572, %v12571
          %v12770 = vpack.c.b16 %v12574, %v12573
          %v12771 = vpack.c.b16 %v12576, %v12575
          %v12772 = vpack.c.b16 %v12578, %v12577
          %v12773 = vpack.c.b16 %v12580, %v12579
          %v12774 = vpack.c.b16 %v12582, %v12581
          %v12775 = vpack.c.b16 %v12584, %v12583
          %v12776 = vpack.c.b16 %v12586, %v12585
          %v12777 = vpack.c.b16 %v12588, %v12587
          %v12778 = vpack.c.b16 %v12590, %v12589
          %v12779 = vpack.c.b16 %v12592, %v12591
          %v12780 = vpack.c.b16 %v12594, %v12593
          %v12781 = vpack.c.b16 %v12596, %v12595
          %v12782 = vpack.c.b16 %v12598, %v12597
          %v12783 = vpack.c.b16 %v12600, %v12599
          %v12784 = vpack.c.b16 %v12602, %v12601
          %v12785 = vpack.c.b16 %v12604, %v12603
          %v12786 = vpack.c.b16 %v12606, %v12605
          %v12787 = vpack.c.b16 %v12608, %v12607
          %v12788 = vpack.c.b16 %v12610, %v12609
          %v12789 = vpack.c.b16 %v12612, %v12611
          %v12790 = vpack.c.b16 %v12614, %v12613
          %v12791 = vpack.c.b16 %v12616, %v12615
          %v12792 = vpack.c.b16 %v12618, %v12617
          %v12793 = vpack.c.b16 %v12620, %v12619
          %v12794 = vpack.c.b16 %v12622, %v12621
          %v12795 = vpack.c.b16 %v12624, %v12623
          %v12796 = vpack.c.b16 %v12626, %v12625
          %v12797 = vpack.c.b16 %v12628, %v12627
          %v12798 = vpack.c.b16 %v12630, %v12629
          %v12799 = vpack.c.b16 %v12632, %v12631
          %v12800 = vpack.c.b16 %v12634, %v12633
          %v12801 = vpack.c.b16 %v12636, %v12635
          %v12802 = vpack.c.b16 %v12638, %v12637
          %v12803 = vpack.c.b16 %v12640, %v12639
          %v12804 = vpack.c.b16 %v12642, %v12641
          %v12805 = vpack.c.b16 %v12644, %v12643
          %v12806 = vpack.c.b16 %v12646, %v12645
          %v12807 = vpack.c.b16 %v12648, %v12647
          %v12808 = vpack.c.b16 %v12650, %v12649
          %v12809 = vpack.c.b16 %v12652, %v12651
          %v12810 = vpack.c.b16 %v12654, %v12653
          %v12811 = vpack.c.b16 %v12656, %v12655
          %v12812 = vpack.c.b16 %v12658, %v12657
          %v12813 = vpack.c.b16 %v12660, %v12659
          %v12814 = vpack.c.b16 %v12662, %v12661
          %v12815 = vpack.c.b16 %v12664, %v12663
          %v12816 = vpack.c.b16 %v12666, %v12665
          %v12817 = vpack.c.b16 %v12668, %v12667
          %v12818 = vpack.c.b16 %v12670, %v12669
          %v12819 = vpack.c.b16 %v12672, %v12671
          %v12820 = vpack.c.b16 %v12674, %v12673
          %v12821 = vpack.c.b16 %v12676, %v12675
          %v12822 = vpack.c.b16 %v12678, %v12677
          %v12823 = vpack.c.b16 %v12680, %v12679
          %v12824 = vpack.c.b16 %v12682, %v12681
          %v12825 = vpack.c.b16 %v12684, %v12683
          %v12826 = vpack.c.b16 %v12686, %v12685
          %v12827 = vpack.c.b16 %v12688, %v12687
          %v12828 = vpack.c.b16 %v12690, %v12689
          %v12829 = vpack.c.b16 %v12692, %v12691
          %v12830 = vpack.c.b16 %v12694, %v12693
          %v12831 = vpack.c.b16 %v12696, %v12695
          %v12832 = vpack.c.b16 %v12698, %v12697
          %v12833 = vpack.c.b16 %v12700, %v12699
          %v12834 = vpack.c.b16 %v12702, %v12701
          %v12835 = vpack.c.b16 %v12704, %v12703
          %v12836 = vpack.c.b16 %v12706, %v12705
          %v12837 = vpack.c.b16 %v12708, %v12707
          %v12838 = vpack.c.b16 %v12710, %v12709
          %12967 = vmatprep.subr.bf16.mxu0 0
          %12968 = vmatpush1.bf16.msra.mxu0 %v12711
          %12969 = vmatprep.subr.bf16.mxu0 0
          %12970 = vmatpush1.bf16.msra.mxu0 %v12712
          %12971 = vmatprep.subr.bf16.mxu0 0
          %12972 = vmatpush1.bf16.msra.mxu0 %v12713
          %12973 = vmatprep.subr.bf16.mxu0 0
          %12974 = vmatpush1.bf16.msra.mxu0 %v12714
          %12975 = vmatprep.subr.bf16.mxu0 0
          %12976 = vmatpush1.bf16.msra.mxu0 %v12715
          %12977 = vmatprep.subr.bf16.mxu0 0
          %12978 = vmatpush1.bf16.msra.mxu0 %v12716
          %12979 = vmatprep.subr.bf16.mxu0 0
          %12980 = vmatpush1.bf16.msra.mxu0 %v12717
          %12981 = vmatprep.subr.bf16.mxu0 0
          %12982 = vmatpush1.bf16.msra.mxu0 %v12718
          %12983 = vmatprep.subr.bf16.mxu0 0
          %12984 = vmatpush1.bf16.msra.mxu0 %v12719
          %12985 = vmatprep.subr.bf16.mxu0 0
          %12986 = vmatpush1.bf16.msra.mxu0 %v12720
          %12987 = vmatprep.subr.bf16.mxu0 0
          %12988 = vmatpush1.bf16.msra.mxu0 %v12721
          %12989 = vmatprep.subr.bf16.mxu0 0
          %12990 = vmatpush1.bf16.msra.mxu0 %v12722
          %12991 = vmatprep.subr.bf16.mxu0 0
          %12992 = vmatpush1.bf16.msra.mxu0 %v12723
          %12993 = vmatprep.subr.bf16.mxu0 0
          %12994 = vmatpush1.bf16.msra.mxu0 %v12724
          %12995 = vmatprep.subr.bf16.mxu0 0
          %12996 = vmatpush1.bf16.msra.mxu0 %v12725
          %12997 = vmatprep.subr.bf16.mxu0 0
          %12998 = vmatpush1.bf16.msra.mxu0 %v12726
          %12999 = vmatprep.mubr.bf16.mxu0 %v11921
          %13000 = vmatmul.mubr.bf16.gmra.mrb[0].mxu0 %v11920
          %v13001 = vpop.f32.mrb[0].mxu0
          %v13002 = vadd.f32 %v12197, %v13001
          %v13003 = vpop.f32.mrb[0].mxu0
          %v13004 = vpop.f32.mrb[0].mxu0
          %v13005 = vpop.f32.mrb[0].mxu0
          %13006 = vdwg.mxu0
          %13007 = vmatprep.subr.bf16.mxu0 0
          %13008 = vmatpush1.bf16.msra.mxu0 %v12727
          %13009 = vmatprep.subr.bf16.mxu0 0
          %13010 = vmatpush1.bf16.msra.mxu0 %v12728
          %13011 = vmatprep.subr.bf16.mxu0 0
          %13012 = vmatpush1.bf16.msra.mxu0 %v12729
          %13013 = vmatprep.subr.bf16.mxu0 0
          %13014 = vmatpush1.bf16.msra.mxu0 %v12730
          %13015 = vmatprep.subr.bf16.mxu0 0
          %13016 = vmatpush1.bf16.msra.mxu0 %v12731
          %13017 = vmatprep.subr.bf16.mxu0 0
          %13018 = vmatpush1.bf16.msra.mxu0 %v12732
          %13019 = vmatprep.subr.bf16.mxu0 0
          %13020 = vmatpush1.bf16.msra.mxu0 %v12733
          %13021 = vmatprep.subr.bf16.mxu0 0
          %13022 = vmatpush1.bf16.msra.mxu0 %v12734
          %13023 = vmatprep.subr.bf16.mxu0 0
          %13024 = vmatpush1.bf16.msra.mxu0 %v12735
          %13025 = vmatprep.subr.bf16.mxu0 0
          %13026 = vmatpush1.bf16.msra.mxu0 %v12736
          %13027 = vmatprep.subr.bf16.mxu0 0
          %13028 = vmatpush1.bf16.msra.mxu0 %v12737
          %13029 = vmatprep.subr.bf16.mxu0 0
          %13030 = vmatpush1.bf16.msra.mxu0 %v12738
          %13031 = vmatprep.subr.bf16.mxu0 0
          %13032 = vmatpush1.bf16.msra.mxu0 %v12739
          %13033 = vmatprep.subr.bf16.mxu0 0
          %13034 = vmatpush1.bf16.msra.mxu0 %v12740
          %13035 = vmatprep.subr.bf16.mxu0 0
          %13036 = vmatpush1.bf16.msra.mxu0 %v12741
          %13037 = vmatprep.subr.bf16.mxu0 0
          %13038 = vmatpush1.bf16.msra.mxu0 %v12742
          %13039 = vmatprep.mubr.bf16.mxu0 %v11923
          %13040 = vmatmul.mubr.bf16.gmra.mrb[0].mxu0 %v11922
          %v13041 = vpop.f32.mrb[0].mxu0
          %v13042 = vadd.f32 %v13002, %v13041
          %v13043 = vpop.f32.mrb[0].mxu0
          %v13044 = vpop.f32.mrb[0].mxu0
          %v13045 = vpop.f32.mrb[0].mxu0
          %13046 = vdwg.mxu0
          %13047 = vmatprep.subr.bf16.mxu0 0
          %13048 = vmatpush1.bf16.msra.mxu0 %v12743
          %13049 = vmatprep.subr.bf16.mxu0 0
          %13050 = vmatpush1.bf16.msra.mxu0 %v12744
          %13051 = vmatprep.subr.bf16.mxu0 0
          %13052 = vmatpush1.bf16.msra.mxu0 %v12745
          %13053 = vmatprep.subr.bf16.mxu0 0
          %13054 = vmatpush1.bf16.msra.mxu0 %v12746
          %13055 = vmatprep.subr.bf16.mxu0 0
          %13056 = vmatpush1.bf16.msra.mxu0 %v12747
          %13057 = vmatprep.subr.bf16.mxu0 0
          %13058 = vmatpush1.bf16.msra.mxu0 %v12748
          %13059 = vmatprep.subr.bf16.mxu0 0
          %13060 = vmatpush1.bf16.msra.mxu0 %v12749
          %13061 = vmatprep.subr.bf16.mxu0 0
          %13062 = vmatpush1.bf16.msra.mxu0 %v12750
          %13063 = vmatprep.subr.bf16.mxu0 0
          %13064 = vmatpush1.bf16.msra.mxu0 %v12751
          %13065 = vmatprep.subr.bf16.mxu0 0
          %13066 = vmatpush1.bf16.msra.mxu0 %v12752
          %13067 = vmatprep.subr.bf16.mxu0 0
          %13068 = vmatpush1.bf16.msra.mxu0 %v12753
          %13069 = vmatprep.subr.bf16.mxu0 0
          %13070 = vmatpush1.bf16.msra.mxu0 %v12754
          %13071 = vmatprep.subr.bf16.mxu0 0
          %13072 = vmatpush1.bf16.msra.mxu0 %v12755
          %13073 = vmatprep.subr.bf16.mxu0 0
          %13074 = vmatpush1.bf16.msra.mxu0 %v12756
          %13075 = vmatprep.subr.bf16.mxu0 0
          %13076 = vmatpush1.bf16.msra.mxu0 %v12757
          %13077 = vmatprep.subr.bf16.mxu0 0
          %13078 = vmatpush1.bf16.msra.mxu0 %v12758
          %13079 = vmatprep.mubr.bf16.mxu0 %v11925
          %13080 = vmatmul.mubr.bf16.gmra.mrb[0].mxu0 %v11924
          %v13081 = vpop.f32.mrb[0].mxu0
          %v13082 = vadd.f32 %v13042, %v13081
          %v13083 = vpop.f32.mrb[0].mxu0
          %v13084 = vpop.f32.mrb[0].mxu0
          %v13085 = vpop.f32.mrb[0].mxu0
          %13086 = vdwg.mxu0
          %13087 = vmatprep.subr.bf16.mxu0 0
          %13088 = vmatpush1.bf16.msra.mxu0 %v12759
          %13089 = vmatprep.subr.bf16.mxu0 0
          %13090 = vmatpush1.bf16.msra.mxu0 %v12760
          %13091 = vmatprep.subr.bf16.mxu0 0
          %13092 = vmatpush1.bf16.msra.mxu0 %v12761
          %13093 = vmatprep.subr.bf16.mxu0 0
          %13094 = vmatpush1.bf16.msra.mxu0 %v12762
          %13095 = vmatprep.subr.bf16.mxu0 0
          %13096 = vmatpush1.bf16.msra.mxu0 %v12763
          %13097 = vmatprep.subr.bf16.mxu0 0
          %13098 = vmatpush1.bf16.msra.mxu0 %v12764
          %13099 = vmatprep.subr.bf16.mxu0 0
          %13100 = vmatpush1.bf16.msra.mxu0 %v12765
          %13101 = vmatprep.subr.bf16.mxu0 0
          %13102 = vmatpush1.bf16.msra.mxu0 %v12766
          %13103 = vmatprep.subr.bf16.mxu0 0
          %13104 = vmatpush1.bf16.msra.mxu0 %v12767
          %13105 = vmatprep.subr.bf16.mxu0 0
          %13106 = vmatpush1.bf16.msra.mxu0 %v12768
          %13107 = vmatprep.subr.bf16.mxu0 0
          %13108 = vmatpush1.bf16.msra.mxu0 %v12769
          %13109 = vmatprep.subr.bf16.mxu0 0
          %13110 = vmatpush1.bf16.msra.mxu0 %v12770
          %13111 = vmatprep.subr.bf16.mxu0 0
          %13112 = vmatpush1.bf16.msra.mxu0 %v12771
          %13113 = vmatprep.subr.bf16.mxu0 0
          %13114 = vmatpush1.bf16.msra.mxu0 %v12772
          %13115 = vmatprep.subr.bf16.mxu0 0
          %13116 = vmatpush1.bf16.msra.mxu0 %v12773
          %13117 = vmatprep.subr.bf16.mxu0 0
          %13118 = vmatpush1.bf16.msra.mxu0 %v12774
          %13119 = vmatprep.mubr.bf16.mxu0 %v11927
          %13120 = vmatmul.mubr.bf16.gmra.mrb[0].mxu0 %v11926
          %v13121 = vpop.f32.mrb[0].mxu0
          %v13122 = vadd.f32 %v13082, %v13121
          %v13123 = vpop.f32.mrb[0].mxu0
          %v13124 = vpop.f32.mrb[0].mxu0
          %v13125 = vpop.f32.mrb[0].mxu0
          %13126 = vdwg.mxu0
          %13127 = vmatprep.subr.bf16.mxu0 0
          %13128 = vmatpush1.bf16.msra.mxu0 %v12775
          %13129 = vmatprep.subr.bf16.mxu0 0
          %13130 = vmatpush1.bf16.msra.mxu0 %v12776
          %13131 = vmatprep.subr.bf16.mxu0 0
          %13132 = vmatpush1.bf16.msra.mxu0 %v12777
          %13133 = vmatprep.subr.bf16.mxu0 0
          %13134 = vmatpush1.bf16.msra.mxu0 %v12778
          %13135 = vmatprep.subr.bf16.mxu0 0
          %13136 = vmatpush1.bf16.msra.mxu0 %v12779
          %13137 = vmatprep.subr.bf16.mxu0 0
          %13138 = vmatpush1.bf16.msra.mxu0 %v12780
          %13139 = vmatprep.subr.bf16.mxu0 0
          %13140 = vmatpush1.bf16.msra.mxu0 %v12781
          %13141 = vmatprep.subr.bf16.mxu0 0
          %13142 = vmatpush1.bf16.msra.mxu0 %v12782
          %13143 = vmatprep.subr.bf16.mxu0 0
          %13144 = vmatpush1.bf16.msra.mxu0 %v12783
          %13145 = vmatprep.subr.bf16.mxu0 0
          %13146 = vmatpush1.bf16.msra.mxu0 %v12784
          %13147 = vmatprep.subr.bf16.mxu0 0
          %13148 = vmatpush1.bf16.msra.mxu0 %v12785
          %13149 = vmatprep.subr.bf16.mxu0 0
          %13150 = vmatpush1.bf16.msra.mxu0 %v12786
          %13151 = vmatprep.subr.bf16.mxu0 0
          %13152 = vmatpush1.bf16.msra.mxu0 %v12787
          %13153 = vmatprep.subr.bf16.mxu0 0
          %13154 = vmatpush1.bf16.msra.mxu0 %v12788
          %13155 = vmatprep.subr.bf16.mxu0 0
          %13156 = vmatpush1.bf16.msra.mxu0 %v12789
          %13157 = vmatprep.subr.bf16.mxu0 0
          %13158 = vmatpush1.bf16.msra.mxu0 %v12790
          %13159 = vmatprep.mubr.bf16.mxu0 %v11929
          %13160 = vmatmul.mubr.bf16.gmra.mrb[0].mxu0 %v11928
          %v13161 = vpop.f32.mrb[0].mxu0
          %v13162 = vadd.f32 %v13122, %v13161
          %v13163 = vpop.f32.mrb[0].mxu0
          %v13164 = vpop.f32.mrb[0].mxu0
          %v13165 = vpop.f32.mrb[0].mxu0
          %13166 = vdwg.mxu0
          %13167 = vmatprep.subr.bf16.mxu0 0
          %13168 = vmatpush1.bf16.msra.mxu0 %v12791
          %13169 = vmatprep.subr.bf16.mxu0 0
          %13170 = vmatpush1.bf16.msra.mxu0 %v12792
          %13171 = vmatprep.subr.bf16.mxu0 0
          %13172 = vmatpush1.bf16.msra.mxu0 %v12793
          %13173 = vmatprep.subr.bf16.mxu0 0
          %13174 = vmatpush1.bf16.msra.mxu0 %v12794
          %13175 = vmatprep.subr.bf16.mxu0 0
          %13176 = vmatpush1.bf16.msra.mxu0 %v12795
          %13177 = vmatprep.subr.bf16.mxu0 0
          %13178 = vmatpush1.bf16.msra.mxu0 %v12796
          %13179 = vmatprep.subr.bf16.mxu0 0
          %13180 = vmatpush1.bf16.msra.mxu0 %v12797
          %13181 = vmatprep.subr.bf16.mxu0 0
          %13182 = vmatpush1.bf16.msra.mxu0 %v12798
          %13183 = vmatprep.subr.bf16.mxu0 0
          %13184 = vmatpush1.bf16.msra.mxu0 %v12799
          %13185 = vmatprep.subr.bf16.mxu0 0
          %13186 = vmatpush1.bf16.msra.mxu0 %v12800
          %13187 = vmatprep.subr.bf16.mxu0 0
          %13188 = vmatpush1.bf16.msra.mxu0 %v12801
          %13189 = vmatprep.subr.bf16.mxu0 0
          %13190 = vmatpush1.bf16.msra.mxu0 %v12802
          %13191 = vmatprep.subr.bf16.mxu0 0
          %13192 = vmatpush1.bf16.msra.mxu0 %v12803
          %13193 = vmatprep.subr.bf16.mxu0 0
          %13194 = vmatpush1.bf16.msra.mxu0 %v12804
          %13195 = vmatprep.subr.bf16.mxu0 0
          %13196 = vmatpush1.bf16.msra.mxu0 %v12805
          %13197 = vmatprep.subr.bf16.mxu0 0
          %13198 = vmatpush1.bf16.msra.mxu0 %v12806
          %13199 = vmatprep.mubr.bf16.mxu0 %v11931
          %13200 = vmatmul.mubr.bf16.gmra.mrb[0].mxu0 %v11930
          %v13201 = vpop.f32.mrb[0].mxu0
          %v13202 = vadd.f32 %v13162, %v13201
          %v13203 = vpop.f32.mrb[0].mxu0
          %v13204 = vpop.f32.mrb[0].mxu0
          %v13205 = vpop.f32.mrb[0].mxu0
          %13206 = vdwg.mxu0
          %13207 = vmatprep.subr.bf16.mxu0 0
          %13208 = vmatpush1.bf16.msra.mxu0 %v12807
          %13209 = vmatprep.subr.bf16.mxu0 0
          %13210 = vmatpush1.bf16.msra.mxu0 %v12808
          %13211 = vmatprep.subr.bf16.mxu0 0
          %13212 = vmatpush1.bf16.msra.mxu0 %v12809
          %13213 = vmatprep.subr.bf16.mxu0 0
          %13214 = vmatpush1.bf16.msra.mxu0 %v12810
          %13215 = vmatprep.subr.bf16.mxu0 0
          %13216 = vmatpush1.bf16.msra.mxu0 %v12811
          %13217 = vmatprep.subr.bf16.mxu0 0
          %13218 = vmatpush1.bf16.msra.mxu0 %v12812
          %13219 = vmatprep.subr.bf16.mxu0 0
          %13220 = vmatpush1.bf16.msra.mxu0 %v12813
          %13221 = vmatprep.subr.bf16.mxu0 0
          %13222 = vmatpush1.bf16.msra.mxu0 %v12814
          %13223 = vmatprep.subr.bf16.mxu0 0
          %13224 = vmatpush1.bf16.msra.mxu0 %v12815
          %13225 = vmatprep.subr.bf16.mxu0 0
          %13226 = vmatpush1.bf16.msra.mxu0 %v12816
          %13227 = vmatprep.subr.bf16.mxu0 0
          %13228 = vmatpush1.bf16.msra.mxu0 %v12817
          %13229 = vmatprep.subr.bf16.mxu0 0
          %13230 = vmatpush1.bf16.msra.mxu0 %v12818
          %13231 = vmatprep.subr.bf16.mxu0 0
          %13232 = vmatpush1.bf16.msra.mxu0 %v12819
          %13233 = vmatprep.subr.bf16.mxu0 0
          %13234 = vmatpush1.bf16.msra.mxu0 %v12820
          %13235 = vmatprep.subr.bf16.mxu0 0
          %13236 = vmatpush1.bf16.msra.mxu0 %v12821
          %13237 = vmatprep.subr.bf16.mxu0 0
          %13238 = vmatpush1.bf16.msra.mxu0 %v12822
          %13239 = vmatprep.mubr.bf16.mxu0 %v11933
          %13240 = vmatmul.mubr.bf16.gmra.mrb[0].mxu0 %v11932
          %v13241 = vpop.f32.mrb[0].mxu0
          %v13242 = vadd.f32 %v13202, %v13241
          %v13243 = vpop.f32.mrb[0].mxu0
          %v13244 = vpop.f32.mrb[0].mxu0
          %v13245 = vpop.f32.mrb[0].mxu0
          %13246 = vdwg.mxu0
          %13247 = vmatprep.subr.bf16.mxu0 0
          %13248 = vmatpush1.bf16.msra.mxu0 %v12823
          %13249 = vmatprep.subr.bf16.mxu0 0
          %13250 = vmatpush1.bf16.msra.mxu0 %v12824
          %13251 = vmatprep.subr.bf16.mxu0 0
          %13252 = vmatpush1.bf16.msra.mxu0 %v12825
          %13253 = vmatprep.subr.bf16.mxu0 0
          %13254 = vmatpush1.bf16.msra.mxu0 %v12826
          %13255 = vmatprep.subr.bf16.mxu0 0
          %13256 = vmatpush1.bf16.msra.mxu0 %v12827
          %13257 = vmatprep.subr.bf16.mxu0 0
          %13258 = vmatpush1.bf16.msra.mxu0 %v12828
          %13259 = vmatprep.subr.bf16.mxu0 0
          %13260 = vmatpush1.bf16.msra.mxu0 %v12829
          %13261 = vmatprep.subr.bf16.mxu0 0
          %13262 = vmatpush1.bf16.msra.mxu0 %v12830
          %13263 = vmatprep.subr.bf16.mxu0 0
          %13264 = vmatpush1.bf16.msra.mxu0 %v12831
          %13265 = vmatprep.subr.bf16.mxu0 0
          %13266 = vmatpush1.bf16.msra.mxu0 %v12832
          %13267 = vmatprep.subr.bf16.mxu0 0
          %13268 = vmatpush1.bf16.msra.mxu0 %v12833
          %13269 = vmatprep.subr.bf16.mxu0 0
          %13270 = vmatpush1.bf16.msra.mxu0 %v12834
          %13271 = vmatprep.subr.bf16.mxu0 0
          %13272 = vmatpush1.bf16.msra.mxu0 %v12835
          %13273 = vmatprep.subr.bf16.mxu0 0
          %13274 = vmatpush1.bf16.msra.mxu0 %v12836
          %13275 = vmatprep.subr.bf16.mxu0 0
          %13276 = vmatpush1.bf16.msra.mxu0 %v12837
          %13277 = vmatprep.subr.bf16.mxu0 0
          %13278 = vmatpush1.bf16.msra.mxu0 %v12838
          %13279 = vmatprep.mubr.bf16.mxu0 %v11935
          %13280 = vmatmul.mubr.bf16.gmra.mrb[0].mxu0 %v11934
          %v13281 = vpop.f32.mrb[0].mxu0
          %v13282 = vadd.f32 %v13242, %v13281
          %v13283 = vpop.f32.mrb[0].mxu0
          %v13284 = vpop.f32.mrb[0].mxu0
          %v13285 = vpop.f32.mrb[0].mxu0
          %13286 = vdwg.mxu0
          %13287 = vst [vmem:[#allocation12] sm:$0xff] %v13282
        $region72: #{classifier_forward.1} parent=43 // pred_fallthru
          _
        // Predicated region
        $region73: #{classifier_forward.1} parent=43 // pred_check
          %p13288 = pneg %p206
        $region74: #{classifier_forward.1} parent=43 // pred_check_branch
          %13290 = sbr.rel (%p13288) target = $region76
        $region75: #{classifier_forward.1} parent=43 // pred_region
          %s13292 = ssub.s32 128, 128
          %13293 = vsyncadd [#allocation5], %s13292
          %s13294 = smul.addr %s27, 128
          %s13295 = scalar_lea.hbm %s6, %s13294
          %s13297 = sshll.u32 [#allocation12], 4
          %s13298 = int_to_ptr.vmem [resolvable:$true] %s13297
          %13300 = dma.vmem_to_hbm [thread:$0]  %s13298, 128, %s13295, [#allocation5]
        $region76: #{classifier_forward.1} parent=43 // pred_fallthru
          _
        // Predicated region
        $region77: #{classifier_forward.1} parent=43 // pred_check
          %p13301 = pneg %p206
        $region78: #{classifier_forward.1} parent=43 // pred_check_branch
          %13303 = sbr.rel (%p13301) target = $region80
        $region79: #{classifier_forward.1} parent=43 // pred_region
          %13304 = dma.done [#allocation5], 128
        $region80: #{classifier_forward.1} parent=43 // pred_fallthru
          _
      $region44: #{classifier_forward.1} parent=5 // pred_fallthru
        _
      %p13305 = scmp.le.s32.totalorder 2, %s18
      // Predicated region
      $region81: #{classifier_forward.1} parent=5 // pred_check
        %p13306 = pneg %p13305
      $region82: #{classifier_forward.1} parent=5 // pred_check_branch
        %13308 = sbr.rel (%p13306) target = $region84
      $region83: #{classifier_forward.1} parent=5 // pred_region
        %s13309 = ssub.s32 %s18, 2
      $region84: #{classifier_forward.1} parent=5 // pred_fallthru
        _
    $region6: #{classifier_forward.1} parent=1 // loop_footer
      %s22 = sadd.s32 1, %s18
    $region7: #{classifier_forward.1} parent=1 // loop_footer_branch
      %17 = sbr.rel target = $region3
    $region8: #{classifier_forward.1} parent=1 // loop_exit
      _
    %13310 = vsyncpa [#allocation4], 1
    %s13311 = scalar_lea.sflag [#allocation4], 1
    %13312 = vsyncpa %s13311, 1
    %13313 = vsyncpa [#allocation7], 1
    %13314 = vsyncpa [#allocation10], 1
    %13315 = vsyncpa [#allocation5], 1
    %s13316 = scalar_lea.sflag [#allocation5], 1
    %13317 = vsyncpa %s13316, 1

</llo_original>
